<compile_context>
chip_gen: v7x
topology: tpu7x:2x2x1
jax: 0.10.0
libtpu: 0.0.40
codegen_flags: <defaults>
</compile_context>

<pallas_src>
import functools

import jax
import jax.numpy as jnp
import numpy as np
from jax.experimental import pallas as pl
from jax.experimental.pallas import tpu as pltpu


PARAM_KEYS = ('w0', 'b0', 'w1', 'b1', 'wd2', 'p2', 'b2',
              'wd3', 'p3', 'b3', 'w4', 'b4', 'fc1t', 'fc2')


def _pad_off(w):
    # interior starts at a lane-tile aligned offset (>= w+1 so the top halo fits)
    return ((w + 1 + 127) // 128) * 128


def _pad_len(h, w):
    return _pad_off(w) + h * w + w + 1


# ------------------------------------------------------------------------------ kernel ----
def lfe3_kernel(x_ref, cmask_ref,
                w0_ref, b0_ref, w1_ref, b1_ref,
                wd2_ref, p2_ref, b2_ref,
                wd3_ref, p3_ref, b3_ref,
                w4_ref, b4_ref, fc1t_ref, fc2_ref,
                o_ref, stage_ref, *, H, W, gp, n_blocks):
    f32 = jnp.float32
    HW = H * W
    OFF = _pad_off(W)
    HALO = W + 1
    NROWS = stage_ref.shape[0]          # 2 * gp

    mask_l = cmask_ref[0:1, :]          # 0 where w == 0     (taps that read w-1)
    mask_r = cmask_ref[1:2, :]          # 0 where w == W-1   (taps that read w+1)

    # zero ONLY the halo columns the 3x3 taps actually read; interiors are rewritten
    stage_ref[:, pl.ds(OFF - HALO, HALO)] = jnp.zeros((NROWS, HALO), f32)
    stage_ref[:, pl.ds(OFF + HW, HALO)] = jnp.zeros((NROWS, HALO), f32)

    def dw_taps(nch, wtaps):
        # 3x3 depthwise taps over stage rows [0, nch); wtaps: (nch, 9) per-channel weights.
        # Partial sums per column offset so each boundary mask is applied once.
        accs = [None, None, None]        # kx == 0 / 1 / 2
        for k in range(9):
            ky, kx = divmod(k, 3)
            start = OFF + (ky - 1) * W + (kx - 1)              # static offset
            term = stage_ref[0:nch, pl.ds(start, HW)] * wtaps[:, k:k + 1]
            accs[kx] = term if accs[kx] is None else accs[kx] + term
        return accs[1] + accs[0] * mask_l + accs[2] * mask_r

    x = x_ref[0]                                               # (Cin, HW)

    for i in range(n_blocks):
        # ---- conv0 (1x1, BN1 folded) + ReLU: single fused matmul over the 4 branches ----
        a0 = jnp.maximum(
            jnp.dot(w0_ref[i], x, preferred_element_type=f32) + b0_ref[i], 0.0)  # (4gp, HW)
        y1 = a0[0 * gp:1 * gp]
        y2p = a0[1 * gp:2 * gp]
        y3p = a0[2 * gp:3 * gp]
        y4p = a0[3 * gp:4 * gp]

        # ---- conv1: depthwise 3x3 on y2 (BN2 folded) + ReLU ------------------------------
        stage_ref[0:gp, pl.ds(OFF, HW)] = y2p
        y2 = jnp.maximum(dw_taps(gp, w1_ref[i]) + b1_ref[i], 0.0)

        # ---- conv2: grouped 3x3 (2-in/1-out) on [y2, y3] (BN3 folded) + ReLU -------------
        stage_ref[0:gp, pl.ds(OFF, HW)] = y2
        stage_ref[gp:2 * gp, pl.ds(OFF, HW)] = y3p
        t = dw_taps(2 * gp, wd2_ref[i])
        y3 = jnp.maximum(
            jnp.dot(p2_ref[i], t, preferred_element_type=f32) + b2_ref[i], 0.0)

        # ---- conv3: grouped 3x3 on [y3, y4] (BN4 folded) + ReLU --------------------------
        stage_ref[0:gp, pl.ds(OFF, HW)] = y3
        stage_ref[gp:2 * gp, pl.ds(OFF, HW)] = y4p
        t = dw_taps(2 * gp, wd3_ref[i])
        y4 = jnp.maximum(
            jnp.dot(p3_ref[i], t, preferred_element_type=f32) + b3_ref[i], 0.0)

        # ---- conv4 (1x1, BN5 + shuffle folded) + ReLU: directly from register y's --------
        out = (jnp.dot(w4_ref[i, 0], y1, preferred_element_type=f32)
               + jnp.dot(w4_ref[i, 1], y2, preferred_element_type=f32)
               + jnp.dot(w4_ref[i, 2], y3, preferred_element_type=f32)
               + jnp.dot(w4_ref[i, 3], y4, preferred_element_type=f32)
               + b4_ref[i])
        out = jnp.maximum(out, 0.0)                                               # (Cout, HW)

        # ---- SE ('max') on the block input x: VPU/XLU + EUP only -------------------------
        v = jnp.max(x, axis=-1, keepdims=True)                                    # (Cin, 1)
        h1 = jnp.maximum(jnp.sum(fc1t_ref[i] * v, axis=0, keepdims=True), 0.0)    # (1, hid)
        logits = jnp.sum(fc2_ref[i] * h1, axis=-1, keepdims=True)                 # (Cout, 1)
        s = pl.reciprocal(1.0 + jnp.exp(-logits), approx=True)
        res = out * s                                                             # (Cout, HW)

        if i < n_blocks - 1:
            x = res            # out >= 0 and s > 0 -> res >= 0; inter-block ReLU is a no-op
        else:
            o_ref[0] = res


# ----------------------------------------------------------------------------- wrapper ----
def _zero_index_map(ndim):
    zeros = (0,) * ndim
    return lambda b: zeros


def lfe3_pallas(x_nchw, params):
    B, C, H, W = x_nchw.shape
    HW = H * W
    gp = int(params['w1'].shape[1])          # sublane-padded group size
    x = x_nchw.reshape(B, C, HW)

    col = np.arange(HW, dtype=np.int64) % W
    cmask = jnp.asarray(np.stack([(col > 0), (col < W - 1)]).astype(np.float32))  # (2, HW)

    plist = [params[k] for k in PARAM_KEYS]
    n_blocks = int(plist[0].shape[0])

    in_specs = [pl.BlockSpec((1, C, HW), lambda b: (b, 0, 0)),
                pl.BlockSpec((2, HW), lambda b: (0, 0))]
    in_specs += [pl.BlockSpec(p.shape, _zero_index_map(p.ndim)) for p in plist]

    grid_spec = pltpu.PrefetchScalarGridSpec(
        num_scalar_prefetch=0,
        grid=(B,),
        in_specs=in_specs,
        out_specs=pl.BlockSpec((1, C, HW), lambda b: (b, 0, 0)),
        scratch_shapes=[pltpu.VMEM((2 * gp, _pad_len(H, W)), jnp.float32)],
    )

    y = pl.pallas_call(
        functools.partial(lfe3_kernel, H=H, W=W, gp=gp, n_blocks=n_blocks),
        grid_spec=grid_spec,
        out_shape=jax.ShapeDtypeStruct((B, C, HW), jnp.float32),
        compiler_params=pltpu.CompilerParams(dimension_semantics=("parallel",)),
    )(x, cmask, *plist)
    return y.reshape(B, C, H, W)


@jax.jit
def lfe3_forward(x_nchw, params):
    return lfe3_pallas(x_nchw, params)


# ------------------------------------------------------------------- parameter setup ------
def init_fe_raw(key, cin, cout):
    g = (2 * cout) // 4
    hid = cout // 9
    ks = jax.random.split(key, 32)

    def w(k, shape, scale):
        return scale * jax.random.normal(k, shape, jnp.float32)

    raw = {
        'conv0_w': w(ks[0], (2 * cout, cin, 1, 1), 0.25),
        'conv1_w': w(ks[1], (g, 1, 3, 3), 0.3),
        'conv2_w': w(ks[2], (g, 2, 3, 3), 0.3),
        'conv3_w': w(ks[3], (g, 2, 3, 3), 0.3),
        'conv4_w': w(ks[4], (cout, 2 * cout, 1, 1), 0.2),
        'fc1_w':   w(ks[5], (hid, cout), 0.4),
        'fc2_w':   w(ks[6], (cout, hid), 0.4),
    }
    chans = {1: 2 * cout, 2: g, 3: g, 4: g, 5: cout}
    for i, c in chans.items():
        raw[f'bn{i}_gamma'] = 1.0 + 0.1 * jax.random.normal(ks[6 + i], (c,), jnp.float32)
        raw[f'bn{i}_beta'] = 0.1 * jax.random.normal(ks[11 + i], (c,), jnp.float32)
        raw[f'bn{i}_mean'] = 0.1 * jax.random.normal(ks[16 + i], (c,), jnp.float32)
        raw[f'bn{i}_var'] = jax.random.uniform(ks[21 + i], (c,), jnp.float32, 0.5, 1.5)
    return raw


def fold_fe_params(raw, cin, cout, eps=1e-5):
    """Fold BN (inference) + channel_shuffle into conv weights and pad every
    channel group from g up to gp (multiple of 8) so all kernel-side slices /
    stage writes are sublane-aligned.  Padded rows/cols are zero -> padded
    activation channels stay exactly zero through every stage."""
    g = (2 * cout) // 4
    gp = ((g + 7) // 8) * 8
    r = {k: np.asarray(v) for k, v in raw.items()}

    def bn(i):
        s = r[f'bn{i}_gamma'] / np.sqrt(r[f'bn{i}_var'] + eps)
        return s, r[f'bn{i}_beta'] - r[f'bn{i}_mean'] * s

    s1, t1 = bn(1); s2, t2 = bn(2); s3, t3 = bn(3); s4, t4 = bn(4); s5, t5 = bn(5)

    # conv0 + bn1 (4 branches fused); each g-band placed at a gp-aligned row offset
    w0 = r['conv0_w'][:, :, 0, 0] * s1[:, None]                   # (4g, cin)
    W0 = np.zeros((4 * gp, cin), np.float32)
    B0 = np.zeros((4 * gp, 1), np.float32)
    for b in range(4):
        W0[b * gp: b * gp + g] = w0[b * g:(b + 1) * g]
        B0[b * gp: b * gp + g, 0] = t1[b * g:(b + 1) * g]

    # conv1 (depthwise 3x3) + bn2
    W1 = np.zeros((gp, 9), np.float32)
    W1[:g] = r['conv1_w'][:, 0].reshape(g, 9) * s2[:, None]
    B1 = np.zeros((gp, 1), np.float32)
    B1[:g, 0] = t2

    def row(j):                       # concat channel j -> padded stage row
        return j if j < g else gp + (j - g)

    def grouped(wname, s_out, t_out):
        wnp = r[wname]                                            # (g, 2, 3, 3)
        WD = np.zeros((2 * gp, 9), np.float32)                    # per-stage-row taps
        P = np.zeros((gp, 2 * gp), np.float32)                    # 2-in/1-out pairing * BN
        Bv = np.zeros((gp, 1), np.float32)
        for m in range(g):
            WD[row(2 * m)] = wnp[m, 0].reshape(9)
            WD[row(2 * m + 1)] = wnp[m, 1].reshape(9)
            P[m, row(2 * m)] = s_out[m]
            P[m, row(2 * m + 1)] = s_out[m]
            Bv[m, 0] = t_out[m]
        return WD, P, Bv

    WD2, P2, B2 = grouped('conv2_w', s3, t3)
    WD3, P3, B3 = grouped('conv3_w', s4, t4)

    # conv4 + bn5, channel_shuffle(groups=2) folded into output-channel perm;
    # split into the 4 input bands so the kernel avoids the staging round-trip.
    perm = np.array([(o % 2) * (cout // 2) + (o // 2) for o in range(cout)])
    w4 = (r['conv4_w'][:, :, 0, 0] * s5[:, None])[perm, :]        # (cout, 4g)
    W4 = np.zeros((4, cout, gp), np.float32)
    for b in range(4):
        W4[b, :, :g] = w4[:, b * g:(b + 1) * g]
    B4 = t5[perm][:, None].astype(np.float32)

    FC1T = r['fc1_w'].T.astype(np.float32)                        # (cin, hid)
    FC2 = r['fc2_w'][perm, :].astype(np.float32)                  # (cout, hid)

    return dict(w0=jnp.asarray(W0), b0=jnp.asarray(B0),
                w1=jnp.asarray(W1), b1=jnp.asarray(B1),
                wd2=jnp.asarray(WD2), p2=jnp.asarray(P2), b2=jnp.asarray(B2),
                wd3=jnp.asarray(WD3), p3=jnp.asarray(P3), b3=jnp.asarray(B3),
                w4=jnp.asarray(W4), b4=jnp.asarray(B4),
                fc1t=jnp.asarray(FC1T), fc2=jnp.asarray(FC2))


def stack_blocks(per_block):
    return {k: jnp.stack([p[k] for p in per_block], axis=0) for k in PARAM_KEYS}


# ------------------------------------------------------------- pure-JAX reference (NCHW) --
def _conv_ref(x, w, padding, groups):
    return jax.lax.conv_general_dilated(
        x, w, (1, 1), [(padding, padding)] * 2,
        feature_group_count=groups,
        dimension_numbers=('NCHW', 'OIHW', 'NCHW'),
        precision=jax.lax.Precision.HIGHEST)


def fe_save_ref(x, raw, cout, eps=1e-5):
    g = (2 * cout) // 4
    relu = lambda a: jnp.maximum(a, 0.0)

    def bn(h, i):
        ga, be = raw[f'bn{i}_gamma'], raw[f'bn{i}_beta']
        mu, va = raw[f'bn{i}_mean'], raw[f'bn{i}_var']
        return ((h - mu[None, :, None, None]) / jnp.sqrt(va + eps)[None, :, None, None]
                * ga[None, :, None, None] + be[None, :, None, None])

    x1 = relu(bn(_conv_ref(x, raw['conv0_w'], 0, 1), 1))
    y1, y2, y3, y4 = x1[:, :g], x1[:, g:2 * g], x1[:, 2 * g:3 * g], x1[:, 3 * g:]
    y2 = relu(bn(_conv_ref(y2, raw['conv1_w'], 1, g), 2))
    y3 = relu(bn(_conv_ref(jnp.concatenate([y2, y3], 1), raw['conv2_w'], 1, g), 3))
    y4 = relu(bn(_conv_ref(jnp.concatenate([y3, y4], 1), raw['conv3_w'], 1, g), 4))
    y = relu(bn(_conv_ref(jnp.concatenate([y1, y2, y3, y4], 1), raw['conv4_w'], 0, 1), 5))
    v = jnp.max(x, axis=(2, 3))
    v = jnp.maximum(jnp.dot(v, raw['fc1_w'].T, precision=jax.lax.Precision.HIGHEST), 0.0)
    v = jax.nn.sigmoid(jnp.dot(v, raw['fc2_w'].T, precision=jax.lax.Precision.HIGHEST))
    y = y * v[:, :, None, None]
    b, c, hh, ww = y.shape
    return y.reshape(b, 2, c // 2, hh, ww).transpose(0, 2, 1, 3, 4).reshape(b, c, hh, ww)


def lfe3_ref(x, raws, cout):
    y = jnp.maximum(fe_save_ref(x, raws[0], cout), 0.0)
    y = jnp.maximum(fe_save_ref(y, raws[1], cout), 0.0)
    return fe_save_ref(y, raws[2], cout)


# --------------------------------------------------------------------------------- main ---
if __name__ == "__main__":
    # channels must be even and >= 9 (SE ratio 9); inp == out so the 3 blocks can chain
    B, C, H, W = 2, 18, 16, 16
    key = jax.random.PRNGKey(0)
    kx, k0, k1, k2 = jax.random.split(key, 4)
    x = jax.random.normal(kx, (B, C, H, W), jnp.float32)

    raws = [init_fe_raw(k, C, C) for k in (k0, k1, k2)]
    stacked = stack_blocks([fold_fe_params(r, C, C) for r in raws])

    y = jax.block_until_ready(lfe3_forward(x, stacked))
    assert y.shape == (B, C, H, W), y.shape

    y_ref = jax.block_until_ready(lfe3_ref(x, raws, C))
    max_err = float(jnp.max(jnp.abs(y - y_ref)))
    if not bool(jnp.allclose(y, y_ref, atol=3e-3, rtol=3e-2)):
        raise AssertionError(f"Pallas kernel mismatch vs reference, max abs err = {max_err}")

    print("KERNEL_OK")
</pallas_src>

<mosaic_0001>
module attributes {stable_mosaic.version = 11 : i64} {
  func.func @lfe3_kernel(%arg0: i32, %arg1: memref<1x18x256xf32, #tpu.memory_space<vmem>>, %arg2: memref<2x256xf32, #tpu.memory_space<vmem>>, %arg3: memref<3x64x18xf32, #tpu.memory_space<vmem>>, %arg4: memref<3x64x1xf32, #tpu.memory_space<vmem>>, %arg5: memref<3x16x9xf32, #tpu.memory_space<vmem>>, %arg6: memref<3x16x1xf32, #tpu.memory_space<vmem>>, %arg7: memref<3x32x9xf32, #tpu.memory_space<vmem>>, %arg8: memref<3x16x32xf32, #tpu.memory_space<vmem>>, %arg9: memref<3x16x1xf32, #tpu.memory_space<vmem>>, %arg10: memref<3x32x9xf32, #tpu.memory_space<vmem>>, %arg11: memref<3x16x32xf32, #tpu.memory_space<vmem>>, %arg12: memref<3x16x1xf32, #tpu.memory_space<vmem>>, %arg13: memref<3x4x18x16xf32, #tpu.memory_space<vmem>>, %arg14: memref<3x18x1xf32, #tpu.memory_space<vmem>>, %arg15: memref<3x18x2xf32, #tpu.memory_space<vmem>>, %arg16: memref<3x18x2xf32, #tpu.memory_space<vmem>>, %arg17: memref<1x18x256xf32, #tpu.memory_space<vmem>>, %arg18: memref<32x401xf32, #tpu.memory_space<vmem>>) attributes {dimension_semantics = [#tpu.dimension_semantics<parallel>], iteration_bounds = array<i64: 2>, scalar_prefetch = 0 : i64, scratch_operands = 1 : i64, tpu.core_type = #tpu.core_type<tc>, window_params = [{transform_indices = @transform_0, window_bounds = array<i64: 1, 18, 256>}, {pipeline_mode = #tpu.pipeline_mode<synchronous>, transform_indices = @transform_1, window_bounds = array<i64: 2, 256>}, {pipeline_mode = #tpu.pipeline_mode<synchronous>, transform_indices = @transform_2, window_bounds = array<i64: 3, 64, 18>}, {pipeline_mode = #tpu.pipeline_mode<synchronous>, transform_indices = @transform_3, window_bounds = array<i64: 3, 64, 1>}, {pipeline_mode = #tpu.pipeline_mode<synchronous>, transform_indices = @transform_4, window_bounds = array<i64: 3, 16, 9>}, {pipeline_mode = #tpu.pipeline_mode<synchronous>, transform_indices = @transform_5, window_bounds = array<i64: 3, 16, 1>}, {pipeline_mode = #tpu.pipeline_mode<synchronous>, transform_indices = @transform_6, window_bounds = array<i64: 3, 32, 9>}, {pipeline_mode = #tpu.pipeline_mode<synchronous>, transform_indices = @transform_7, window_bounds = array<i64: 3, 16, 32>}, {pipeline_mode = #tpu.pipeline_mode<synchronous>, transform_indices = @transform_8, window_bounds = array<i64: 3, 16, 1>}, {pipeline_mode = #tpu.pipeline_mode<synchronous>, transform_indices = @transform_9, window_bounds = array<i64: 3, 32, 9>}, {pipeline_mode = #tpu.pipeline_mode<synchronous>, transform_indices = @transform_10, window_bounds = array<i64: 3, 16, 32>}, {pipeline_mode = #tpu.pipeline_mode<synchronous>, transform_indices = @transform_11, window_bounds = array<i64: 3, 16, 1>}, {pipeline_mode = #tpu.pipeline_mode<synchronous>, transform_indices = @transform_12, window_bounds = array<i64: 3, 4, 18, 16>}, {pipeline_mode = #tpu.pipeline_mode<synchronous>, transform_indices = @transform_13, window_bounds = array<i64: 3, 18, 1>}, {pipeline_mode = #tpu.pipeline_mode<synchronous>, transform_indices = @transform_14, window_bounds = array<i64: 3, 18, 2>}, {pipeline_mode = #tpu.pipeline_mode<synchronous>, transform_indices = @transform_15, window_bounds = array<i64: 3, 18, 2>}, {transform_indices = @transform_16, window_bounds = array<i64: 1, 18, 256>}]} {
    %c0 = arith.constant 0 : index
    %c0_0 = arith.constant 0 : index
    %0 = vector.load %arg2[%c0, %c0_0] : memref<2x256xf32, #tpu.memory_space<vmem>>, vector<1x256xf32>
    %c1 = arith.constant 1 : index
    %c0_1 = arith.constant 0 : index
    %1 = vector.load %arg2[%c1, %c0_1] : memref<2x256xf32, #tpu.memory_space<vmem>>, vector<1x256xf32>
    %cst = arith.constant 0.000000e+00 : f32
    %2 = vector.broadcast %cst : f32 to vector<32x17xf32>
    %c0_2 = arith.constant 0 : index
    %c111 = arith.constant 111 : index
    %3 = vector.load %arg18[%c0_2, %c111] : memref<32x401xf32, #tpu.memory_space<vmem>>, vector<32x17xf32>
    tpu.vector_store %arg18[%c0_2, %c111], %2 {strides = array<i32>} : memref<32x401xf32, #tpu.memory_space<vmem>>, vector<32x17xf32>,
    %cst_3 = arith.constant 0.000000e+00 : f32
    %4 = vector.broadcast %cst_3 : f32 to vector<32x17xf32>
    %c0_4 = arith.constant 0 : index
    %c384 = arith.constant 384 : index
    %5 = vector.load %arg18[%c0_4, %c384] : memref<32x401xf32, #tpu.memory_space<vmem>>, vector<32x17xf32>
    tpu.vector_store %arg18[%c0_4, %c384], %4 {strides = array<i32>} : memref<32x401xf32, #tpu.memory_space<vmem>>, vector<32x17xf32>,
    %c0_5 = arith.constant 0 : index
    %c0_6 = arith.constant 0 : index
    %c0_7 = arith.constant 0 : index
    %6 = vector.load %arg1[%c0_5, %c0_6, %c0_7] : memref<1x18x256xf32, #tpu.memory_space<vmem>>, vector<1x18x256xf32>
    %7 = vector.shape_cast %6 : vector<1x18x256xf32> to vector<18x256xf32>
    %c0_8 = arith.constant 0 : index
    %c0_9 = arith.constant 0 : index
    %c0_10 = arith.constant 0 : index
    %8 = vector.load %arg3[%c0_8, %c0_9, %c0_10] : memref<3x64x18xf32, #tpu.memory_space<vmem>>, vector<1x64x18xf32>
    %9 = vector.shape_cast %8 : vector<1x64x18xf32> to vector<64x18xf32>
    %cst_11 = arith.constant dense<0.000000e+00> : vector<64x256xf32>
    %10 = tpu.matmul %9, %7, %cst_11 {dimension_numbers = #tpu.dot_dimension_numbers<[1], [0], [0], [1], [0, 0, 1, 1], [], []>} : vector<64x18xf32>, vector<18x256xf32>, vector<64x256xf32> -> vector<64x256xf32>
    %c0_12 = arith.constant 0 : index
    %c0_13 = arith.constant 0 : index
    %c0_14 = arith.constant 0 : index
    %11 = vector.load %arg4[%c0_12, %c0_13, %c0_14] : memref<3x64x1xf32, #tpu.memory_space<vmem>>, vector<1x64x1xf32>
    %12 = vector.shape_cast %11 : vector<1x64x1xf32> to vector<64x1xf32>
    %13 = vector.broadcast %12 : vector<64x1xf32> to vector<64x256xf32>
    %14 = arith.addf %10, %13 : vector<64x256xf32>
    %cst_15 = arith.constant 0.000000e+00 : f32
    %15 = vector.broadcast %cst_15 : f32 to vector<64x256xf32>
    %16 = arith.maximumf %14, %15 : vector<64x256xf32>
    %17 = vector.extract_strided_slice %16 {offsets = [0, 0], sizes = [16, 256], strides = [1, 1]} : vector<64x256xf32> to vector<16x256xf32>
    %18 = vector.extract_strided_slice %16 {offsets = [16, 0], sizes = [16, 256], strides = [1, 1]} : vector<64x256xf32> to vector<16x256xf32>
    %19 = vector.extract_strided_slice %16 {offsets = [32, 0], sizes = [16, 256], strides = [1, 1]} : vector<64x256xf32> to vector<16x256xf32>
    %20 = vector.extract_strided_slice %16 {offsets = [48, 0], sizes = [16, 256], strides = [1, 1]} : vector<64x256xf32> to vector<16x256xf32>
    %c0_16 = arith.constant 0 : index
    %c128 = arith.constant 128 : index
    %21 = vector.load %arg18[%c0_16, %c128] : memref<32x401xf32, #tpu.memory_space<vmem>>, vector<16x256xf32>
    tpu.vector_store %arg18[%c0_16, %c128], %18 {strides = array<i32>} : memref<32x401xf32, #tpu.memory_space<vmem>>, vector<16x256xf32>,
    %c0_17 = arith.constant 0 : index
    %c0_18 = arith.constant 0 : index
    %c0_19 = arith.constant 0 : index
    %22 = vector.load %arg5[%c0_17, %c0_18, %c0_19] : memref<3x16x9xf32, #tpu.memory_space<vmem>>, vector<1x16x9xf32>
    %23 = vector.shape_cast %22 : vector<1x16x9xf32> to vector<16x9xf32>
    %c0_20 = arith.constant 0 : index
    %c111_21 = arith.constant 111 : index
    %24 = vector.load %arg18[%c0_20, %c111_21] : memref<32x401xf32, #tpu.memory_space<vmem>>, vector<16x256xf32>
    %25 = vector.extract_strided_slice %23 {offsets = [0, 0], sizes = [16, 1], strides = [1, 1]} : vector<16x9xf32> to vector<16x1xf32>
    %26 = vector.broadcast %25 : vector<16x1xf32> to vector<16x256xf32>
    %27 = arith.mulf %24, %26 : vector<16x256xf32>
    %c0_22 = arith.constant 0 : index
    %c112 = arith.constant 112 : index
    %28 = vector.load %arg18[%c0_22, %c112] : memref<32x401xf32, #tpu.memory_space<vmem>>, vector<16x256xf32>
    %29 = vector.extract_strided_slice %23 {offsets = [0, 1], sizes = [16, 1], strides = [1, 1]} : vector<16x9xf32> to vector<16x1xf32>
    %30 = vector.broadcast %29 : vector<16x1xf32> to vector<16x256xf32>
    %31 = arith.mulf %28, %30 : vector<16x256xf32>
    %c0_23 = arith.constant 0 : index
    %c113 = arith.constant 113 : index
    %32 = vector.load %arg18[%c0_23, %c113] : memref<32x401xf32, #tpu.memory_space<vmem>>, vector<16x256xf32>
    %33 = vector.extract_strided_slice %23 {offsets = [0, 2], sizes = [16, 1], strides = [1, 1]} : vector<16x9xf32> to vector<16x1xf32>
    %34 = vector.broadcast %33 : vector<16x1xf32> to vector<16x256xf32>
    %35 = arith.mulf %32, %34 : vector<16x256xf32>
    %c0_24 = arith.constant 0 : index
    %c127 = arith.constant 127 : index
    %36 = vector.load %arg18[%c0_24, %c127] : memref<32x401xf32, #tpu.memory_space<vmem>>, vector<16x256xf32>
    %37 = vector.extract_strided_slice %23 {offsets = [0, 3], sizes = [16, 1], strides = [1, 1]} : vector<16x9xf32> to vector<16x1xf32>
    %38 = vector.broadcast %37 : vector<16x1xf32> to vector<16x256xf32>
    %39 = arith.mulf %36, %38 : vector<16x256xf32>
    %40 = arith.addf %27, %39 : vector<16x256xf32>
    %c0_25 = arith.constant 0 : index
    %c128_26 = arith.constant 128 : index
    %41 = vector.load %arg18[%c0_25, %c128_26] : memref<32x401xf32, #tpu.memory_space<vmem>>, vector<16x256xf32>
    %42 = vector.extract_strided_slice %23 {offsets = [0, 4], sizes = [16, 1], strides = [1, 1]} : vector<16x9xf32> to vector<16x1xf32>
    %43 = vector.broadcast %42 : vector<16x1xf32> to vector<16x256xf32>
    %44 = arith.mulf %41, %43 : vector<16x256xf32>
    %45 = arith.addf %31, %44 : vector<16x256xf32>
    %c0_27 = arith.constant 0 : index
    %c129 = arith.constant 129 : index
    %46 = vector.load %arg18[%c0_27, %c129] : memref<32x401xf32, #tpu.memory_space<vmem>>, vector<16x256xf32>
    %47 = vector.extract_strided_slice %23 {offsets = [0, 5], sizes = [16, 1], strides = [1, 1]} : vector<16x9xf32> to vector<16x1xf32>
    %48 = vector.broadcast %47 : vector<16x1xf32> to vector<16x256xf32>
    %49 = arith.mulf %46, %48 : vector<16x256xf32>
    %50 = arith.addf %35, %49 : vector<16x256xf32>
    %c0_28 = arith.constant 0 : index
    %c143 = arith.constant 143 : index
    %51 = vector.load %arg18[%c0_28, %c143] : memref<32x401xf32, #tpu.memory_space<vmem>>, vector<16x256xf32>
    %52 = vector.extract_strided_slice %23 {offsets = [0, 6], sizes = [16, 1], strides = [1, 1]} : vector<16x9xf32> to vector<16x1xf32>
    %53 = vector.broadcast %52 : vector<16x1xf32> to vector<16x256xf32>
    %54 = arith.mulf %51, %53 : vector<16x256xf32>
    %55 = arith.addf %40, %54 : vector<16x256xf32>
    %c0_29 = arith.constant 0 : index
    %c144 = arith.constant 144 : index
    %56 = vector.load %arg18[%c0_29, %c144] : memref<32x401xf32, #tpu.memory_space<vmem>>, vector<16x256xf32>
    %57 = vector.extract_strided_slice %23 {offsets = [0, 7], sizes = [16, 1], strides = [1, 1]} : vector<16x9xf32> to vector<16x1xf32>
    %58 = vector.broadcast %57 : vector<16x1xf32> to vector<16x256xf32>
    %59 = arith.mulf %56, %58 : vector<16x256xf32>
    %60 = arith.addf %45, %59 : vector<16x256xf32>
    %c0_30 = arith.constant 0 : index
    %c145 = arith.constant 145 : index
    %61 = vector.load %arg18[%c0_30, %c145] : memref<32x401xf32, #tpu.memory_space<vmem>>, vector<16x256xf32>
    %62 = vector.extract_strided_slice %23 {offsets = [0, 8], sizes = [16, 1], strides = [1, 1]} : vector<16x9xf32> to vector<16x1xf32>
    %63 = vector.broadcast %62 : vector<16x1xf32> to vector<16x256xf32>
    %64 = arith.mulf %61, %63 : vector<16x256xf32>
    %65 = arith.addf %50, %64 : vector<16x256xf32>
    %66 = vector.broadcast %0 : vector<1x256xf32> to vector<16x256xf32>
    %67 = arith.mulf %55, %66 : vector<16x256xf32>
    %68 = arith.addf %60, %67 : vector<16x256xf32>
    %69 = vector.broadcast %1 : vector<1x256xf32> to vector<16x256xf32>
    %70 = arith.mulf %65, %69 : vector<16x256xf32>
    %71 = arith.addf %68, %70 : vector<16x256xf32>
    %c0_31 = arith.constant 0 : index
    %c0_32 = arith.constant 0 : index
    %c0_33 = arith.constant 0 : index
    %72 = vector.load %arg6[%c0_31, %c0_32, %c0_33] : memref<3x16x1xf32, #tpu.memory_space<vmem>>, vector<1x16x1xf32>
    %73 = vector.shape_cast %72 : vector<1x16x1xf32> to vector<16x1xf32>
    %74 = vector.broadcast %73 : vector<16x1xf32> to vector<16x256xf32>
    %75 = arith.addf %71, %74 : vector<16x256xf32>
    %cst_34 = arith.constant 0.000000e+00 : f32
    %76 = vector.broadcast %cst_34 : f32 to vector<16x256xf32>
    %77 = arith.maximumf %75, %76 : vector<16x256xf32>
    %c0_35 = arith.constant 0 : index
    %c128_36 = arith.constant 128 : index
    %78 = vector.load %arg18[%c0_35, %c128_36] : memref<32x401xf32, #tpu.memory_space<vmem>>, vector<16x256xf32>
    tpu.vector_store %arg18[%c0_35, %c128_36], %77 {strides = array<i32>} : memref<32x401xf32, #tpu.memory_space<vmem>>, vector<16x256xf32>,
    %c16 = arith.constant 16 : index
    %c128_37 = arith.constant 128 : index
    %79 = vector.load %arg18[%c16, %c128_37] : memref<32x401xf32, #tpu.memory_space<vmem>>, vector<16x256xf32>
    tpu.vector_store %arg18[%c16, %c128_37], %19 {strides = array<i32>} : memref<32x401xf32, #tpu.memory_space<vmem>>, vector<16x256xf32>,
    %c0_38 = arith.constant 0 : index
    %c0_39 = arith.constant 0 : index
    %c0_40 = arith.constant 0 : index
    %80 = vector.load %arg7[%c0_38, %c0_39, %c0_40] : memref<3x32x9xf32, #tpu.memory_space<vmem>>, vector<1x32x9xf32>
    %81 = vector.shape_cast %80 : vector<1x32x9xf32> to vector<32x9xf32>
    %c0_41 = arith.constant 0 : index
    %c111_42 = arith.constant 111 : index
    %82 = vector.load %arg18[%c0_41, %c111_42] : memref<32x401xf32, #tpu.memory_space<vmem>>, vector<32x256xf32>
    %83 = vector.extract_strided_slice %81 {offsets = [0, 0], sizes = [32, 1], strides = [1, 1]} : vector<32x9xf32> to vector<32x1xf32>
    %84 = vector.broadcast %83 : vector<32x1xf32> to vector<32x256xf32>
    %85 = arith.mulf %82, %84 : vector<32x256xf32>
    %c0_43 = arith.constant 0 : index
    %c112_44 = arith.constant 112 : index
    %86 = vector.load %arg18[%c0_43, %c112_44] : memref<32x401xf32, #tpu.memory_space<vmem>>, vector<32x256xf32>
    %87 = vector.extract_strided_slice %81 {offsets = [0, 1], sizes = [32, 1], strides = [1, 1]} : vector<32x9xf32> to vector<32x1xf32>
    %88 = vector.broadcast %87 : vector<32x1xf32> to vector<32x256xf32>
    %89 = arith.mulf %86, %88 : vector<32x256xf32>
    %c0_45 = arith.constant 0 : index
    %c113_46 = arith.constant 113 : index
    %90 = vector.load %arg18[%c0_45, %c113_46] : memref<32x401xf32, #tpu.memory_space<vmem>>, vector<32x256xf32>
    %91 = vector.extract_strided_slice %81 {offsets = [0, 2], sizes = [32, 1], strides = [1, 1]} : vector<32x9xf32> to vector<32x1xf32>
    %92 = vector.broadcast %91 : vector<32x1xf32> to vector<32x256xf32>
    %93 = arith.mulf %90, %92 : vector<32x256xf32>
    %c0_47 = arith.constant 0 : index
    %c127_48 = arith.constant 127 : index
    %94 = vector.load %arg18[%c0_47, %c127_48] : memref<32x401xf32, #tpu.memory_space<vmem>>, vector<32x256xf32>
    %95 = vector.extract_strided_slice %81 {offsets = [0, 3], sizes = [32, 1], strides = [1, 1]} : vector<32x9xf32> to vector<32x1xf32>
    %96 = vector.broadcast %95 : vector<32x1xf32> to vector<32x256xf32>
    %97 = arith.mulf %94, %96 : vector<32x256xf32>
    %98 = arith.addf %85, %97 : vector<32x256xf32>
    %c0_49 = arith.constant 0 : index
    %c128_50 = arith.constant 128 : index
    %99 = vector.load %arg18[%c0_49, %c128_50] : memref<32x401xf32, #tpu.memory_space<vmem>>, vector<32x256xf32>
    %100 = vector.extract_strided_slice %81 {offsets = [0, 4], sizes = [32, 1], strides = [1, 1]} : vector<32x9xf32> to vector<32x1xf32>
    %101 = vector.broadcast %100 : vector<32x1xf32> to vector<32x256xf32>
    %102 = arith.mulf %99, %101 : vector<32x256xf32>
    %103 = arith.addf %89, %102 : vector<32x256xf32>
    %c0_51 = arith.constant 0 : index
    %c129_52 = arith.constant 129 : index
    %104 = vector.load %arg18[%c0_51, %c129_52] : memref<32x401xf32, #tpu.memory_space<vmem>>, vector<32x256xf32>
    %105 = vector.extract_strided_slice %81 {offsets = [0, 5], sizes = [32, 1], strides = [1, 1]} : vector<32x9xf32> to vector<32x1xf32>
    %106 = vector.broadcast %105 : vector<32x1xf32> to vector<32x256xf32>
    %107 = arith.mulf %104, %106 : vector<32x256xf32>
    %108 = arith.addf %93, %107 : vector<32x256xf32>
    %c0_53 = arith.constant 0 : index
    %c143_54 = arith.constant 143 : index
    %109 = vector.load %arg18[%c0_53, %c143_54] : memref<32x401xf32, #tpu.memory_space<vmem>>, vector<32x256xf32>
    %110 = vector.extract_strided_slice %81 {offsets = [0, 6], sizes = [32, 1], strides = [1, 1]} : vector<32x9xf32> to vector<32x1xf32>
    %111 = vector.broadcast %110 : vector<32x1xf32> to vector<32x256xf32>
    %112 = arith.mulf %109, %111 : vector<32x256xf32>
    %113 = arith.addf %98, %112 : vector<32x256xf32>
    %c0_55 = arith.constant 0 : index
    %c144_56 = arith.constant 144 : index
    %114 = vector.load %arg18[%c0_55, %c144_56] : memref<32x401xf32, #tpu.memory_space<vmem>>, vector<32x256xf32>
    %115 = vector.extract_strided_slice %81 {offsets = [0, 7], sizes = [32, 1], strides = [1, 1]} : vector<32x9xf32> to vector<32x1xf32>
    %116 = vector.broadcast %115 : vector<32x1xf32> to vector<32x256xf32>
    %117 = arith.mulf %114, %116 : vector<32x256xf32>
    %118 = arith.addf %103, %117 : vector<32x256xf32>
    %c0_57 = arith.constant 0 : index
    %c145_58 = arith.constant 145 : index
    %119 = vector.load %arg18[%c0_57, %c145_58] : memref<32x401xf32, #tpu.memory_space<vmem>>, vector<32x256xf32>
    %120 = vector.extract_strided_slice %81 {offsets = [0, 8], sizes = [32, 1], strides = [1, 1]} : vector<32x9xf32> to vector<32x1xf32>
    %121 = vector.broadcast %120 : vector<32x1xf32> to vector<32x256xf32>
    %122 = arith.mulf %119, %121 : vector<32x256xf32>
    %123 = arith.addf %108, %122 : vector<32x256xf32>
    %124 = vector.broadcast %0 : vector<1x256xf32> to vector<32x256xf32>
    %125 = arith.mulf %113, %124 : vector<32x256xf32>
    %126 = arith.addf %118, %125 : vector<32x256xf32>
    %127 = vector.broadcast %1 : vector<1x256xf32> to vector<32x256xf32>
    %128 = arith.mulf %123, %127 : vector<32x256xf32>
    %129 = arith.addf %126, %128 : vector<32x256xf32>
    %c0_59 = arith.constant 0 : index
    %c0_60 = arith.constant 0 : index
    %c0_61 = arith.constant 0 : index
    %130 = vector.load %arg8[%c0_59, %c0_60, %c0_61] : memref<3x16x32xf32, #tpu.memory_space<vmem>>, vector<1x16x32xf32>
    %131 = vector.shape_cast %130 : vector<1x16x32xf32> to vector<16x32xf32>
    %cst_62 = arith.constant dense<0.000000e+00> : vector<16x256xf32>
    %132 = tpu.matmul %131, %129, %cst_62 {dimension_numbers = #tpu.dot_dimension_numbers<[1], [0], [0], [1], [0, 0, 1, 1], [], []>} : vector<16x32xf32>, vector<32x256xf32>, vector<16x256xf32> -> vector<16x256xf32>
    %c0_63 = arith.constant 0 : index
    %c0_64 = arith.constant 0 : index
    %c0_65 = arith.constant 0 : index
    %133 = vector.load %arg9[%c0_63, %c0_64, %c0_65] : memref<3x16x1xf32, #tpu.memory_space<vmem>>, vector<1x16x1xf32>
    %134 = vector.shape_cast %133 : vector<1x16x1xf32> to vector<16x1xf32>
    %135 = vector.broadcast %134 : vector<16x1xf32> to vector<16x256xf32>
    %136 = arith.addf %132, %135 : vector<16x256xf32>
    %cst_66 = arith.constant 0.000000e+00 : f32
    %137 = vector.broadcast %cst_66 : f32 to vector<16x256xf32>
    %138 = arith.maximumf %136, %137 : vector<16x256xf32>
    %c0_67 = arith.constant 0 : index
    %c128_68 = arith.constant 128 : index
    %139 = vector.load %arg18[%c0_67, %c128_68] : memref<32x401xf32, #tpu.memory_space<vmem>>, vector<16x256xf32>
    tpu.vector_store %arg18[%c0_67, %c128_68], %138 {strides = array<i32>} : memref<32x401xf32, #tpu.memory_space<vmem>>, vector<16x256xf32>,
    %c16_69 = arith.constant 16 : index
    %c128_70 = arith.constant 128 : index
    %140 = vector.load %arg18[%c16_69, %c128_70] : memref<32x401xf32, #tpu.memory_space<vmem>>, vector<16x256xf32>
    tpu.vector_store %arg18[%c16_69, %c128_70], %20 {strides = array<i32>} : memref<32x401xf32, #tpu.memory_space<vmem>>, vector<16x256xf32>,
    %c0_71 = arith.constant 0 : index
    %c0_72 = arith.constant 0 : index
    %c0_73 = arith.constant 0 : index
    %141 = vector.load %arg10[%c0_71, %c0_72, %c0_73] : memref<3x32x9xf32, #tpu.memory_space<vmem>>, vector<1x32x9xf32>
    %142 = vector.shape_cast %141 : vector<1x32x9xf32> to vector<32x9xf32>
    %c0_74 = arith.constant 0 : index
    %c111_75 = arith.constant 111 : index
    %143 = vector.load %arg18[%c0_74, %c111_75] : memref<32x401xf32, #tpu.memory_space<vmem>>, vector<32x256xf32>
    %144 = vector.extract_strided_slice %142 {offsets = [0, 0], sizes = [32, 1], strides = [1, 1]} : vector<32x9xf32> to vector<32x1xf32>
    %145 = vector.broadcast %144 : vector<32x1xf32> to vector<32x256xf32>
    %146 = arith.mulf %143, %145 : vector<32x256xf32>
    %c0_76 = arith.constant 0 : index
    %c112_77 = arith.constant 112 : index
    %147 = vector.load %arg18[%c0_76, %c112_77] : memref<32x401xf32, #tpu.memory_space<vmem>>, vector<32x256xf32>
    %148 = vector.extract_strided_slice %142 {offsets = [0, 1], sizes = [32, 1], strides = [1, 1]} : vector<32x9xf32> to vector<32x1xf32>
    %149 = vector.broadcast %148 : vector<32x1xf32> to vector<32x256xf32>
    %150 = arith.mulf %147, %149 : vector<32x256xf32>
    %c0_78 = arith.constant 0 : index
    %c113_79 = arith.constant 113 : index
    %151 = vector.load %arg18[%c0_78, %c113_79] : memref<32x401xf32, #tpu.memory_space<vmem>>, vector<32x256xf32>
    %152 = vector.extract_strided_slice %142 {offsets = [0, 2], sizes = [32, 1], strides = [1, 1]} : vector<32x9xf32> to vector<32x1xf32>
    %153 = vector.broadcast %152 : vector<32x1xf32> to vector<32x256xf32>
    %154 = arith.mulf %151, %153 : vector<32x256xf32>
    %c0_80 = arith.constant 0 : index
    %c127_81 = arith.constant 127 : index
    %155 = vector.load %arg18[%c0_80, %c127_81] : memref<32x401xf32, #tpu.memory_space<vmem>>, vector<32x256xf32>
    %156 = vector.extract_strided_slice %142 {offsets = [0, 3], sizes = [32, 1], strides = [1, 1]} : vector<32x9xf32> to vector<32x1xf32>
    %157 = vector.broadcast %156 : vector<32x1xf32> to vector<32x256xf32>
    %158 = arith.mulf %155, %157 : vector<32x256xf32>
    %159 = arith.addf %146, %158 : vector<32x256xf32>
    %c0_82 = arith.constant 0 : index
    %c128_83 = arith.constant 128 : index
    %160 = vector.load %arg18[%c0_82, %c128_83] : memref<32x401xf32, #tpu.memory_space<vmem>>, vector<32x256xf32>
    %161 = vector.extract_strided_slice %142 {offsets = [0, 4], sizes = [32, 1], strides = [1, 1]} : vector<32x9xf32> to vector<32x1xf32>
    %162 = vector.broadcast %161 : vector<32x1xf32> to vector<32x256xf32>
    %163 = arith.mulf %160, %162 : vector<32x256xf32>
    %164 = arith.addf %150, %163 : vector<32x256xf32>
    %c0_84 = arith.constant 0 : index
    %c129_85 = arith.constant 129 : index
    %165 = vector.load %arg18[%c0_84, %c129_85] : memref<32x401xf32, #tpu.memory_space<vmem>>, vector<32x256xf32>
    %166 = vector.extract_strided_slice %142 {offsets = [0, 5], sizes = [32, 1], strides = [1, 1]} : vector<32x9xf32> to vector<32x1xf32>
    %167 = vector.broadcast %166 : vector<32x1xf32> to vector<32x256xf32>
    %168 = arith.mulf %165, %167 : vector<32x256xf32>
    %169 = arith.addf %154, %168 : vector<32x256xf32>
    %c0_86 = arith.constant 0 : index
    %c143_87 = arith.constant 143 : index
    %170 = vector.load %arg18[%c0_86, %c143_87] : memref<32x401xf32, #tpu.memory_space<vmem>>, vector<32x256xf32>
    %171 = vector.extract_strided_slice %142 {offsets = [0, 6], sizes = [32, 1], strides = [1, 1]} : vector<32x9xf32> to vector<32x1xf32>
    %172 = vector.broadcast %171 : vector<32x1xf32> to vector<32x256xf32>
    %173 = arith.mulf %170, %172 : vector<32x256xf32>
    %174 = arith.addf %159, %173 : vector<32x256xf32>
    %c0_88 = arith.constant 0 : index
    %c144_89 = arith.constant 144 : index
    %175 = vector.load %arg18[%c0_88, %c144_89] : memref<32x401xf32, #tpu.memory_space<vmem>>, vector<32x256xf32>
    %176 = vector.extract_strided_slice %142 {offsets = [0, 7], sizes = [32, 1], strides = [1, 1]} : vector<32x9xf32> to vector<32x1xf32>
    %177 = vector.broadcast %176 : vector<32x1xf32> to vector<32x256xf32>
    %178 = arith.mulf %175, %177 : vector<32x256xf32>
    %179 = arith.addf %164, %178 : vector<32x256xf32>
    %c0_90 = arith.constant 0 : index
    %c145_91 = arith.constant 145 : index
    %180 = vector.load %arg18[%c0_90, %c145_91] : memref<32x401xf32, #tpu.memory_space<vmem>>, vector<32x256xf32>
    %181 = vector.extract_strided_slice %142 {offsets = [0, 8], sizes = [32, 1], strides = [1, 1]} : vector<32x9xf32> to vector<32x1xf32>
    %182 = vector.broadcast %181 : vector<32x1xf32> to vector<32x256xf32>
    %183 = arith.mulf %180, %182 : vector<32x256xf32>
    %184 = arith.addf %169, %183 : vector<32x256xf32>
    %185 = vector.broadcast %0 : vector<1x256xf32> to vector<32x256xf32>
    %186 = arith.mulf %174, %185 : vector<32x256xf32>
    %187 = arith.addf %179, %186 : vector<32x256xf32>
    %188 = vector.broadcast %1 : vector<1x256xf32> to vector<32x256xf32>
    %189 = arith.mulf %184, %188 : vector<32x256xf32>
    %190 = arith.addf %187, %189 : vector<32x256xf32>
    %c0_92 = arith.constant 0 : index
    %c0_93 = arith.constant 0 : index
    %c0_94 = arith.constant 0 : index
    %191 = vector.load %arg11[%c0_92, %c0_93, %c0_94] : memref<3x16x32xf32, #tpu.memory_space<vmem>>, vector<1x16x32xf32>
    %192 = vector.shape_cast %191 : vector<1x16x32xf32> to vector<16x32xf32>
    %cst_95 = arith.constant dense<0.000000e+00> : vector<16x256xf32>
    %193 = tpu.matmul %192, %190, %cst_95 {dimension_numbers = #tpu.dot_dimension_numbers<[1], [0], [0], [1], [0, 0, 1, 1], [], []>} : vector<16x32xf32>, vector<32x256xf32>, vector<16x256xf32> -> vector<16x256xf32>
    %c0_96 = arith.constant 0 : index
    %c0_97 = arith.constant 0 : index
    %c0_98 = arith.constant 0 : index
    %194 = vector.load %arg12[%c0_96, %c0_97, %c0_98] : memref<3x16x1xf32, #tpu.memory_space<vmem>>, vector<1x16x1xf32>
    %195 = vector.shape_cast %194 : vector<1x16x1xf32> to vector<16x1xf32>
    %196 = vector.broadcast %195 : vector<16x1xf32> to vector<16x256xf32>
    %197 = arith.addf %193, %196 : vector<16x256xf32>
    %cst_99 = arith.constant 0.000000e+00 : f32
    %198 = vector.broadcast %cst_99 : f32 to vector<16x256xf32>
    %199 = arith.maximumf %197, %198 : vector<16x256xf32>
    %c0_100 = arith.constant 0 : index
    %c0_101 = arith.constant 0 : index
    %c0_102 = arith.constant 0 : index
    %c0_103 = arith.constant 0 : index
    %200 = vector.load %arg13[%c0_100, %c0_101, %c0_102, %c0_103] : memref<3x4x18x16xf32, #tpu.memory_space<vmem>>, vector<1x1x18x16xf32>
    %201 = vector.shape_cast %200 : vector<1x1x18x16xf32> to vector<18x16xf32>
    %cst_104 = arith.constant dense<0.000000e+00> : vector<18x256xf32>
    %202 = tpu.matmul %201, %17, %cst_104 {dimension_numbers = #tpu.dot_dimension_numbers<[1], [0], [0], [1], [0, 0, 1, 1], [], []>} : vector<18x16xf32>, vector<16x256xf32>, vector<18x256xf32> -> vector<18x256xf32>
    %c0_105 = arith.constant 0 : index
    %c1_106 = arith.constant 1 : index
    %c0_107 = arith.constant 0 : index
    %c0_108 = arith.constant 0 : index
    %203 = vector.load %arg13[%c0_105, %c1_106, %c0_107, %c0_108] : memref<3x4x18x16xf32, #tpu.memory_space<vmem>>, vector<1x1x18x16xf32>
    %204 = vector.shape_cast %203 : vector<1x1x18x16xf32> to vector<18x16xf32>
    %cst_109 = arith.constant dense<0.000000e+00> : vector<18x256xf32>
    %205 = tpu.matmul %204, %77, %cst_109 {dimension_numbers = #tpu.dot_dimension_numbers<[1], [0], [0], [1], [0, 0, 1, 1], [], []>} : vector<18x16xf32>, vector<16x256xf32>, vector<18x256xf32> -> vector<18x256xf32>
    %206 = arith.addf %202, %205 : vector<18x256xf32>
    %c0_110 = arith.constant 0 : index
    %c2 = arith.constant 2 : index
    %c0_111 = arith.constant 0 : index
    %c0_112 = arith.constant 0 : index
    %207 = vector.load %arg13[%c0_110, %c2, %c0_111, %c0_112] : memref<3x4x18x16xf32, #tpu.memory_space<vmem>>, vector<1x1x18x16xf32>
    %208 = vector.shape_cast %207 : vector<1x1x18x16xf32> to vector<18x16xf32>
    %cst_113 = arith.constant dense<0.000000e+00> : vector<18x256xf32>
    %209 = tpu.matmul %208, %138, %cst_113 {dimension_numbers = #tpu.dot_dimension_numbers<[1], [0], [0], [1], [0, 0, 1, 1], [], []>} : vector<18x16xf32>, vector<16x256xf32>, vector<18x256xf32> -> vector<18x256xf32>
    %210 = arith.addf %206, %209 : vector<18x256xf32>
    %c0_114 = arith.constant 0 : index
    %c3 = arith.constant 3 : index
    %c0_115 = arith.constant 0 : index
    %c0_116 = arith.constant 0 : index
    %211 = vector.load %arg13[%c0_114, %c3, %c0_115, %c0_116] : memref<3x4x18x16xf32, #tpu.memory_space<vmem>>, vector<1x1x18x16xf32>
    %212 = vector.shape_cast %211 : vector<1x1x18x16xf32> to vector<18x16xf32>
    %cst_117 = arith.constant dense<0.000000e+00> : vector<18x256xf32>
    %213 = tpu.matmul %212, %199, %cst_117 {dimension_numbers = #tpu.dot_dimension_numbers<[1], [0], [0], [1], [0, 0, 1, 1], [], []>} : vector<18x16xf32>, vector<16x256xf32>, vector<18x256xf32> -> vector<18x256xf32>
    %214 = arith.addf %210, %213 : vector<18x256xf32>
    %c0_118 = arith.constant 0 : index
    %c0_119 = arith.constant 0 : index
    %c0_120 = arith.constant 0 : index
    %215 = vector.load %arg14[%c0_118, %c0_119, %c0_120] : memref<3x18x1xf32, #tpu.memory_space<vmem>>, vector<1x18x1xf32>
    %216 = vector.shape_cast %215 : vector<1x18x1xf32> to vector<18x1xf32>
    %217 = vector.broadcast %216 : vector<18x1xf32> to vector<18x256xf32>
    %218 = arith.addf %214, %217 : vector<18x256xf32>
    %cst_121 = arith.constant 0.000000e+00 : f32
    %219 = vector.broadcast %cst_121 : f32 to vector<18x256xf32>
    %220 = arith.maximumf %218, %219 : vector<18x256xf32>
    %cst_122 = arith.constant dense<0xFF800000> : vector<18xf32>
    %221 = vector.multi_reduction <maximumf>, %7, %cst_122 [1] : vector<18x256xf32> to vector<18xf32>
    %222 = vector.shape_cast %221 : vector<18xf32> to vector<18x1xf32>
    %c0_123 = arith.constant 0 : index
    %c0_124 = arith.constant 0 : index
    %c0_125 = arith.constant 0 : index
    %223 = vector.load %arg15[%c0_123, %c0_124, %c0_125] : memref<3x18x2xf32, #tpu.memory_space<vmem>>, vector<1x18x2xf32>
    %224 = vector.shape_cast %223 : vector<1x18x2xf32> to vector<18x2xf32>
    %225 = vector.broadcast %222 : vector<18x1xf32> to vector<18x2xf32>
    %226 = arith.mulf %224, %225 : vector<18x2xf32>
    %cst_126 = arith.constant dense<0.000000e+00> : vector<2xf32>
    %227 = vector.multi_reduction <add>, %226, %cst_126 [0] : vector<18x2xf32> to vector<2xf32>
    %228 = vector.shape_cast %227 : vector<2xf32> to vector<1x2xf32>
    %cst_127 = arith.constant 0.000000e+00 : f32
    %229 = vector.broadcast %cst_127 : f32 to vector<1x2xf32>
    %230 = arith.maximumf %228, %229 : vector<1x2xf32>
    %c0_128 = arith.constant 0 : index
    %c0_129 = arith.constant 0 : index
    %c0_130 = arith.constant 0 : index
    %231 = vector.load %arg16[%c0_128, %c0_129, %c0_130] : memref<3x18x2xf32, #tpu.memory_space<vmem>>, vector<1x18x2xf32>
    %232 = vector.shape_cast %231 : vector<1x18x2xf32> to vector<18x2xf32>
    %233 = vector.broadcast %230 : vector<1x2xf32> to vector<18x2xf32>
    %234 = arith.mulf %232, %233 : vector<18x2xf32>
    %cst_131 = arith.constant dense<0.000000e+00> : vector<18xf32>
    %235 = vector.multi_reduction <add>, %234, %cst_131 [1] : vector<18x2xf32> to vector<18xf32>
    %236 = vector.shape_cast %235 : vector<18xf32> to vector<18x1xf32>
    %cst_132 = arith.constant 0.000000e+00 : f32
    %237 = vector.broadcast %cst_132 : f32 to vector<18x1xf32>
    %238 = arith.subf %237, %236 : vector<18x1xf32>
    %239 = math.exp %238 : vector<18x1xf32>
    %cst_133 = arith.constant 1.000000e+00 : f32
    %240 = vector.broadcast %cst_133 : f32 to vector<18x1xf32>
    %241 = arith.addf %240, %239 : vector<18x1xf32>
    %242 = tpu.reciprocal %241 {approx = true} : vector<18x1xf32> -> vector<18x1xf32>
    %243 = vector.broadcast %242 : vector<18x1xf32> to vector<18x256xf32>
    %244 = arith.mulf %220, %243 : vector<18x256xf32>
    %c1_134 = arith.constant 1 : index
    %c0_135 = arith.constant 0 : index
    %c0_136 = arith.constant 0 : index
    %245 = vector.load %arg3[%c1_134, %c0_135, %c0_136] : memref<3x64x18xf32, #tpu.memory_space<vmem>>, vector<1x64x18xf32>
    %246 = vector.shape_cast %245 : vector<1x64x18xf32> to vector<64x18xf32>
    %cst_137 = arith.constant dense<0.000000e+00> : vector<64x256xf32>
    %247 = tpu.matmul %246, %244, %cst_137 {dimension_numbers = #tpu.dot_dimension_numbers<[1], [0], [0], [1], [0, 0, 1, 1], [], []>} : vector<64x18xf32>, vector<18x256xf32>, vector<64x256xf32> -> vector<64x256xf32>
    %c1_138 = arith.constant 1 : index
    %c0_139 = arith.constant 0 : index
    %c0_140 = arith.constant 0 : index
    %248 = vector.load %arg4[%c1_138, %c0_139, %c0_140] : memref<3x64x1xf32, #tpu.memory_space<vmem>>, vector<1x64x1xf32>
    %249 = vector.shape_cast %248 : vector<1x64x1xf32> to vector<64x1xf32>
    %250 = vector.broadcast %249 : vector<64x1xf32> to vector<64x256xf32>
    %251 = arith.addf %247, %250 : vector<64x256xf32>
    %cst_141 = arith.constant 0.000000e+00 : f32
    %252 = vector.broadcast %cst_141 : f32 to vector<64x256xf32>
    %253 = arith.maximumf %251, %252 : vector<64x256xf32>
    %254 = vector.extract_strided_slice %253 {offsets = [0, 0], sizes = [16, 256], strides = [1, 1]} : vector<64x256xf32> to vector<16x256xf32>
    %255 = vector.extract_strided_slice %253 {offsets = [16, 0], sizes = [16, 256], strides = [1, 1]} : vector<64x256xf32> to vector<16x256xf32>
    %256 = vector.extract_strided_slice %253 {offsets = [32, 0], sizes = [16, 256], strides = [1, 1]} : vector<64x256xf32> to vector<16x256xf32>
    %257 = vector.extract_strided_slice %253 {offsets = [48, 0], sizes = [16, 256], strides = [1, 1]} : vector<64x256xf32> to vector<16x256xf32>
    %c0_142 = arith.constant 0 : index
    %c128_143 = arith.constant 128 : index
    %258 = vector.load %arg18[%c0_142, %c128_143] : memref<32x401xf32, #tpu.memory_space<vmem>>, vector<16x256xf32>
    tpu.vector_store %arg18[%c0_142, %c128_143], %255 {strides = array<i32>} : memref<32x401xf32, #tpu.memory_space<vmem>>, vector<16x256xf32>,
    %c1_144 = arith.constant 1 : index
    %c0_145 = arith.constant 0 : index
    %c0_146 = arith.constant 0 : index
    %259 = vector.load %arg5[%c1_144, %c0_145, %c0_146] : memref<3x16x9xf32, #tpu.memory_space<vmem>>, vector<1x16x9xf32>
    %260 = vector.shape_cast %259 : vector<1x16x9xf32> to vector<16x9xf32>
    %c0_147 = arith.constant 0 : index
    %c111_148 = arith.constant 111 : index
    %261 = vector.load %arg18[%c0_147, %c111_148] : memref<32x401xf32, #tpu.memory_space<vmem>>, vector<16x256xf32>
    %262 = vector.extract_strided_slice %260 {offsets = [0, 0], sizes = [16, 1], strides = [1, 1]} : vector<16x9xf32> to vector<16x1xf32>
    %263 = vector.broadcast %262 : vector<16x1xf32> to vector<16x256xf32>
    %264 = arith.mulf %261, %263 : vector<16x256xf32>
    %c0_149 = arith.constant 0 : index
    %c112_150 = arith.constant 112 : index
    %265 = vector.load %arg18[%c0_149, %c112_150] : memref<32x401xf32, #tpu.memory_space<vmem>>, vector<16x256xf32>
    %266 = vector.extract_strided_slice %260 {offsets = [0, 1], sizes = [16, 1], strides = [1, 1]} : vector<16x9xf32> to vector<16x1xf32>
    %267 = vector.broadcast %266 : vector<16x1xf32> to vector<16x256xf32>
    %268 = arith.mulf %265, %267 : vector<16x256xf32>
    %c0_151 = arith.constant 0 : index
    %c113_152 = arith.constant 113 : index
    %269 = vector.load %arg18[%c0_151, %c113_152] : memref<32x401xf32, #tpu.memory_space<vmem>>, vector<16x256xf32>
    %270 = vector.extract_strided_slice %260 {offsets = [0, 2], sizes = [16, 1], strides = [1, 1]} : vector<16x9xf32> to vector<16x1xf32>
    %271 = vector.broadcast %270 : vector<16x1xf32> to vector<16x256xf32>
    %272 = arith.mulf %269, %271 : vector<16x256xf32>
    %c0_153 = arith.constant 0 : index
    %c127_154 = arith.constant 127 : index
    %273 = vector.load %arg18[%c0_153, %c127_154] : memref<32x401xf32, #tpu.memory_space<vmem>>, vector<16x256xf32>
    %274 = vector.extract_strided_slice %260 {offsets = [0, 3], sizes = [16, 1], strides = [1, 1]} : vector<16x9xf32> to vector<16x1xf32>
    %275 = vector.broadcast %274 : vector<16x1xf32> to vector<16x256xf32>
    %276 = arith.mulf %273, %275 : vector<16x256xf32>
    %277 = arith.addf %264, %276 : vector<16x256xf32>
    %c0_155 = arith.constant 0 : index
    %c128_156 = arith.constant 128 : index
    %278 = vector.load %arg18[%c0_155, %c128_156] : memref<32x401xf32, #tpu.memory_space<vmem>>, vector<16x256xf32>
    %279 = vector.extract_strided_slice %260 {offsets = [0, 4], sizes = [16, 1], strides = [1, 1]} : vector<16x9xf32> to vector<16x1xf32>
    %280 = vector.broadcast %279 : vector<16x1xf32> to vector<16x256xf32>
    %281 = arith.mulf %278, %280 : vector<16x256xf32>
    %282 = arith.addf %268, %281 : vector<16x256xf32>
    %c0_157 = arith.constant 0 : index
    %c129_158 = arith.constant 129 : index
    %283 = vector.load %arg18[%c0_157, %c129_158] : memref<32x401xf32, #tpu.memory_space<vmem>>, vector<16x256xf32>
    %284 = vector.extract_strided_slice %260 {offsets = [0, 5], sizes = [16, 1], strides = [1, 1]} : vector<16x9xf32> to vector<16x1xf32>
    %285 = vector.broadcast %284 : vector<16x1xf32> to vector<16x256xf32>
    %286 = arith.mulf %283, %285 : vector<16x256xf32>
    %287 = arith.addf %272, %286 : vector<16x256xf32>
    %c0_159 = arith.constant 0 : index
    %c143_160 = arith.constant 143 : index
    %288 = vector.load %arg18[%c0_159, %c143_160] : memref<32x401xf32, #tpu.memory_space<vmem>>, vector<16x256xf32>
    %289 = vector.extract_strided_slice %260 {offsets = [0, 6], sizes = [16, 1], strides = [1, 1]} : vector<16x9xf32> to vector<16x1xf32>
    %290 = vector.broadcast %289 : vector<16x1xf32> to vector<16x256xf32>
    %291 = arith.mulf %288, %290 : vector<16x256xf32>
    %292 = arith.addf %277, %291 : vector<16x256xf32>
    %c0_161 = arith.constant 0 : index
    %c144_162 = arith.constant 144 : index
    %293 = vector.load %arg18[%c0_161, %c144_162] : memref<32x401xf32, #tpu.memory_space<vmem>>, vector<16x256xf32>
    %294 = vector.extract_strided_slice %260 {offsets = [0, 7], sizes = [16, 1], strides = [1, 1]} : vector<16x9xf32> to vector<16x1xf32>
    %295 = vector.broadcast %294 : vector<16x1xf32> to vector<16x256xf32>
    %296 = arith.mulf %293, %295 : vector<16x256xf32>
    %297 = arith.addf %282, %296 : vector<16x256xf32>
    %c0_163 = arith.constant 0 : index
    %c145_164 = arith.constant 145 : index
    %298 = vector.load %arg18[%c0_163, %c145_164] : memref<32x401xf32, #tpu.memory_space<vmem>>, vector<16x256xf32>
    %299 = vector.extract_strided_slice %260 {offsets = [0, 8], sizes = [16, 1], strides = [1, 1]} : vector<16x9xf32> to vector<16x1xf32>
    %300 = vector.broadcast %299 : vector<16x1xf32> to vector<16x256xf32>
    %301 = arith.mulf %298, %300 : vector<16x256xf32>
    %302 = arith.addf %287, %301 : vector<16x256xf32>
    %303 = vector.broadcast %0 : vector<1x256xf32> to vector<16x256xf32>
    %304 = arith.mulf %292, %303 : vector<16x256xf32>
    %305 = arith.addf %297, %304 : vector<16x256xf32>
    %306 = vector.broadcast %1 : vector<1x256xf32> to vector<16x256xf32>
    %307 = arith.mulf %302, %306 : vector<16x256xf32>
    %308 = arith.addf %305, %307 : vector<16x256xf32>
    %c1_165 = arith.constant 1 : index
    %c0_166 = arith.constant 0 : index
    %c0_167 = arith.constant 0 : index
    %309 = vector.load %arg6[%c1_165, %c0_166, %c0_167] : memref<3x16x1xf32, #tpu.memory_space<vmem>>, vector<1x16x1xf32>
    %310 = vector.shape_cast %309 : vector<1x16x1xf32> to vector<16x1xf32>
    %311 = vector.broadcast %310 : vector<16x1xf32> to vector<16x256xf32>
    %312 = arith.addf %308, %311 : vector<16x256xf32>
    %cst_168 = arith.constant 0.000000e+00 : f32
    %313 = vector.broadcast %cst_168 : f32 to vector<16x256xf32>
    %314 = arith.maximumf %312, %313 : vector<16x256xf32>
    %c0_169 = arith.constant 0 : index
    %c128_170 = arith.constant 128 : index
    %315 = vector.load %arg18[%c0_169, %c128_170] : memref<32x401xf32, #tpu.memory_space<vmem>>, vector<16x256xf32>
    tpu.vector_store %arg18[%c0_169, %c128_170], %314 {strides = array<i32>} : memref<32x401xf32, #tpu.memory_space<vmem>>, vector<16x256xf32>,
    %c16_171 = arith.constant 16 : index
    %c128_172 = arith.constant 128 : index
    %316 = vector.load %arg18[%c16_171, %c128_172] : memref<32x401xf32, #tpu.memory_space<vmem>>, vector<16x256xf32>
    tpu.vector_store %arg18[%c16_171, %c128_172], %256 {strides = array<i32>} : memref<32x401xf32, #tpu.memory_space<vmem>>, vector<16x256xf32>,
    %c1_173 = arith.constant 1 : index
    %c0_174 = arith.constant 0 : index
    %c0_175 = arith.constant 0 : index
    %317 = vector.load %arg7[%c1_173, %c0_174, %c0_175] : memref<3x32x9xf32, #tpu.memory_space<vmem>>, vector<1x32x9xf32>
    %318 = vector.shape_cast %317 : vector<1x32x9xf32> to vector<32x9xf32>
    %c0_176 = arith.constant 0 : index
    %c111_177 = arith.constant 111 : index
    %319 = vector.load %arg18[%c0_176, %c111_177] : memref<32x401xf32, #tpu.memory_space<vmem>>, vector<32x256xf32>
    %320 = vector.extract_strided_slice %318 {offsets = [0, 0], sizes = [32, 1], strides = [1, 1]} : vector<32x9xf32> to vector<32x1xf32>
    %321 = vector.broadcast %320 : vector<32x1xf32> to vector<32x256xf32>
    %322 = arith.mulf %319, %321 : vector<32x256xf32>
    %c0_178 = arith.constant 0 : index
    %c112_179 = arith.constant 112 : index
    %323 = vector.load %arg18[%c0_178, %c112_179] : memref<32x401xf32, #tpu.memory_space<vmem>>, vector<32x256xf32>
    %324 = vector.extract_strided_slice %318 {offsets = [0, 1], sizes = [32, 1], strides = [1, 1]} : vector<32x9xf32> to vector<32x1xf32>
    %325 = vector.broadcast %324 : vector<32x1xf32> to vector<32x256xf32>
    %326 = arith.mulf %323, %325 : vector<32x256xf32>
    %c0_180 = arith.constant 0 : index
    %c113_181 = arith.constant 113 : index
    %327 = vector.load %arg18[%c0_180, %c113_181] : memref<32x401xf32, #tpu.memory_space<vmem>>, vector<32x256xf32>
    %328 = vector.extract_strided_slice %318 {offsets = [0, 2], sizes = [32, 1], strides = [1, 1]} : vector<32x9xf32> to vector<32x1xf32>
    %329 = vector.broadcast %328 : vector<32x1xf32> to vector<32x256xf32>
    %330 = arith.mulf %327, %329 : vector<32x256xf32>
    %c0_182 = arith.constant 0 : index
    %c127_183 = arith.constant 127 : index
    %331 = vector.load %arg18[%c0_182, %c127_183] : memref<32x401xf32, #tpu.memory_space<vmem>>, vector<32x256xf32>
    %332 = vector.extract_strided_slice %318 {offsets = [0, 3], sizes = [32, 1], strides = [1, 1]} : vector<32x9xf32> to vector<32x1xf32>
    %333 = vector.broadcast %332 : vector<32x1xf32> to vector<32x256xf32>
    %334 = arith.mulf %331, %333 : vector<32x256xf32>
    %335 = arith.addf %322, %334 : vector<32x256xf32>
    %c0_184 = arith.constant 0 : index
    %c128_185 = arith.constant 128 : index
    %336 = vector.load %arg18[%c0_184, %c128_185] : memref<32x401xf32, #tpu.memory_space<vmem>>, vector<32x256xf32>
    %337 = vector.extract_strided_slice %318 {offsets = [0, 4], sizes = [32, 1], strides = [1, 1]} : vector<32x9xf32> to vector<32x1xf32>
    %338 = vector.broadcast %337 : vector<32x1xf32> to vector<32x256xf32>
    %339 = arith.mulf %336, %338 : vector<32x256xf32>
    %340 = arith.addf %326, %339 : vector<32x256xf32>
    %c0_186 = arith.constant 0 : index
    %c129_187 = arith.constant 129 : index
    %341 = vector.load %arg18[%c0_186, %c129_187] : memref<32x401xf32, #tpu.memory_space<vmem>>, vector<32x256xf32>
    %342 = vector.extract_strided_slice %318 {offsets = [0, 5], sizes = [32, 1], strides = [1, 1]} : vector<32x9xf32> to vector<32x1xf32>
    %343 = vector.broadcast %342 : vector<32x1xf32> to vector<32x256xf32>
    %344 = arith.mulf %341, %343 : vector<32x256xf32>
    %345 = arith.addf %330, %344 : vector<32x256xf32>
    %c0_188 = arith.constant 0 : index
    %c143_189 = arith.constant 143 : index
    %346 = vector.load %arg18[%c0_188, %c143_189] : memref<32x401xf32, #tpu.memory_space<vmem>>, vector<32x256xf32>
    %347 = vector.extract_strided_slice %318 {offsets = [0, 6], sizes = [32, 1], strides = [1, 1]} : vector<32x9xf32> to vector<32x1xf32>
    %348 = vector.broadcast %347 : vector<32x1xf32> to vector<32x256xf32>
    %349 = arith.mulf %346, %348 : vector<32x256xf32>
    %350 = arith.addf %335, %349 : vector<32x256xf32>
    %c0_190 = arith.constant 0 : index
    %c144_191 = arith.constant 144 : index
    %351 = vector.load %arg18[%c0_190, %c144_191] : memref<32x401xf32, #tpu.memory_space<vmem>>, vector<32x256xf32>
    %352 = vector.extract_strided_slice %318 {offsets = [0, 7], sizes = [32, 1], strides = [1, 1]} : vector<32x9xf32> to vector<32x1xf32>
    %353 = vector.broadcast %352 : vector<32x1xf32> to vector<32x256xf32>
    %354 = arith.mulf %351, %353 : vector<32x256xf32>
    %355 = arith.addf %340, %354 : vector<32x256xf32>
    %c0_192 = arith.constant 0 : index
    %c145_193 = arith.constant 145 : index
    %356 = vector.load %arg18[%c0_192, %c145_193] : memref<32x401xf32, #tpu.memory_space<vmem>>, vector<32x256xf32>
    %357 = vector.extract_strided_slice %318 {offsets = [0, 8], sizes = [32, 1], strides = [1, 1]} : vector<32x9xf32> to vector<32x1xf32>
    %358 = vector.broadcast %357 : vector<32x1xf32> to vector<32x256xf32>
    %359 = arith.mulf %356, %358 : vector<32x256xf32>
    %360 = arith.addf %345, %359 : vector<32x256xf32>
    %361 = vector.broadcast %0 : vector<1x256xf32> to vector<32x256xf32>
    %362 = arith.mulf %350, %361 : vector<32x256xf32>
    %363 = arith.addf %355, %362 : vector<32x256xf32>
    %364 = vector.broadcast %1 : vector<1x256xf32> to vector<32x256xf32>
    %365 = arith.mulf %360, %364 : vector<32x256xf32>
    %366 = arith.addf %363, %365 : vector<32x256xf32>
    %c1_194 = arith.constant 1 : index
    %c0_195 = arith.constant 0 : index
    %c0_196 = arith.constant 0 : index
    %367 = vector.load %arg8[%c1_194, %c0_195, %c0_196] : memref<3x16x32xf32, #tpu.memory_space<vmem>>, vector<1x16x32xf32>
    %368 = vector.shape_cast %367 : vector<1x16x32xf32> to vector<16x32xf32>
    %cst_197 = arith.constant dense<0.000000e+00> : vector<16x256xf32>
    %369 = tpu.matmul %368, %366, %cst_197 {dimension_numbers = #tpu.dot_dimension_numbers<[1], [0], [0], [1], [0, 0, 1, 1], [], []>} : vector<16x32xf32>, vector<32x256xf32>, vector<16x256xf32> -> vector<16x256xf32>
    %c1_198 = arith.constant 1 : index
    %c0_199 = arith.constant 0 : index
    %c0_200 = arith.constant 0 : index
    %370 = vector.load %arg9[%c1_198, %c0_199, %c0_200] : memref<3x16x1xf32, #tpu.memory_space<vmem>>, vector<1x16x1xf32>
    %371 = vector.shape_cast %370 : vector<1x16x1xf32> to vector<16x1xf32>
    %372 = vector.broadcast %371 : vector<16x1xf32> to vector<16x256xf32>
    %373 = arith.addf %369, %372 : vector<16x256xf32>
    %cst_201 = arith.constant 0.000000e+00 : f32
    %374 = vector.broadcast %cst_201 : f32 to vector<16x256xf32>
    %375 = arith.maximumf %373, %374 : vector<16x256xf32>
    %c0_202 = arith.constant 0 : index
    %c128_203 = arith.constant 128 : index
    %376 = vector.load %arg18[%c0_202, %c128_203] : memref<32x401xf32, #tpu.memory_space<vmem>>, vector<16x256xf32>
    tpu.vector_store %arg18[%c0_202, %c128_203], %375 {strides = array<i32>} : memref<32x401xf32, #tpu.memory_space<vmem>>, vector<16x256xf32>,
    %c16_204 = arith.constant 16 : index
    %c128_205 = arith.constant 128 : index
    %377 = vector.load %arg18[%c16_204, %c128_205] : memref<32x401xf32, #tpu.memory_space<vmem>>, vector<16x256xf32>
    tpu.vector_store %arg18[%c16_204, %c128_205], %257 {strides = array<i32>} : memref<32x401xf32, #tpu.memory_space<vmem>>, vector<16x256xf32>,
    %c1_206 = arith.constant 1 : index
    %c0_207 = arith.constant 0 : index
    %c0_208 = arith.constant 0 : index
    %378 = vector.load %arg10[%c1_206, %c0_207, %c0_208] : memref<3x32x9xf32, #tpu.memory_space<vmem>>, vector<1x32x9xf32>
    %379 = vector.shape_cast %378 : vector<1x32x9xf32> to vector<32x9xf32>
    %c0_209 = arith.constant 0 : index
    %c111_210 = arith.constant 111 : index
    %380 = vector.load %arg18[%c0_209, %c111_210] : memref<32x401xf32, #tpu.memory_space<vmem>>, vector<32x256xf32>
    %381 = vector.extract_strided_slice %379 {offsets = [0, 0], sizes = [32, 1], strides = [1, 1]} : vector<32x9xf32> to vector<32x1xf32>
    %382 = vector.broadcast %381 : vector<32x1xf32> to vector<32x256xf32>
    %383 = arith.mulf %380, %382 : vector<32x256xf32>
    %c0_211 = arith.constant 0 : index
    %c112_212 = arith.constant 112 : index
    %384 = vector.load %arg18[%c0_211, %c112_212] : memref<32x401xf32, #tpu.memory_space<vmem>>, vector<32x256xf32>
    %385 = vector.extract_strided_slice %379 {offsets = [0, 1], sizes = [32, 1], strides = [1, 1]} : vector<32x9xf32> to vector<32x1xf32>
    %386 = vector.broadcast %385 : vector<32x1xf32> to vector<32x256xf32>
    %387 = arith.mulf %384, %386 : vector<32x256xf32>
    %c0_213 = arith.constant 0 : index
    %c113_214 = arith.constant 113 : index
    %388 = vector.load %arg18[%c0_213, %c113_214] : memref<32x401xf32, #tpu.memory_space<vmem>>, vector<32x256xf32>
    %389 = vector.extract_strided_slice %379 {offsets = [0, 2], sizes = [32, 1], strides = [1, 1]} : vector<32x9xf32> to vector<32x1xf32>
    %390 = vector.broadcast %389 : vector<32x1xf32> to vector<32x256xf32>
    %391 = arith.mulf %388, %390 : vector<32x256xf32>
    %c0_215 = arith.constant 0 : index
    %c127_216 = arith.constant 127 : index
    %392 = vector.load %arg18[%c0_215, %c127_216] : memref<32x401xf32, #tpu.memory_space<vmem>>, vector<32x256xf32>
    %393 = vector.extract_strided_slice %379 {offsets = [0, 3], sizes = [32, 1], strides = [1, 1]} : vector<32x9xf32> to vector<32x1xf32>
    %394 = vector.broadcast %393 : vector<32x1xf32> to vector<32x256xf32>
    %395 = arith.mulf %392, %394 : vector<32x256xf32>
    %396 = arith.addf %383, %395 : vector<32x256xf32>
    %c0_217 = arith.constant 0 : index
    %c128_218 = arith.constant 128 : index
    %397 = vector.load %arg18[%c0_217, %c128_218] : memref<32x401xf32, #tpu.memory_space<vmem>>, vector<32x256xf32>
    %398 = vector.extract_strided_slice %379 {offsets = [0, 4], sizes = [32, 1], strides = [1, 1]} : vector<32x9xf32> to vector<32x1xf32>
    %399 = vector.broadcast %398 : vector<32x1xf32> to vector<32x256xf32>
    %400 = arith.mulf %397, %399 : vector<32x256xf32>
    %401 = arith.addf %387, %400 : vector<32x256xf32>
    %c0_219 = arith.constant 0 : index
    %c129_220 = arith.constant 129 : index
    %402 = vector.load %arg18[%c0_219, %c129_220] : memref<32x401xf32, #tpu.memory_space<vmem>>, vector<32x256xf32>
    %403 = vector.extract_strided_slice %379 {offsets = [0, 5], sizes = [32, 1], strides = [1, 1]} : vector<32x9xf32> to vector<32x1xf32>
    %404 = vector.broadcast %403 : vector<32x1xf32> to vector<32x256xf32>
    %405 = arith.mulf %402, %404 : vector<32x256xf32>
    %406 = arith.addf %391, %405 : vector<32x256xf32>
    %c0_221 = arith.constant 0 : index
    %c143_222 = arith.constant 143 : index
    %407 = vector.load %arg18[%c0_221, %c143_222] : memref<32x401xf32, #tpu.memory_space<vmem>>, vector<32x256xf32>
    %408 = vector.extract_strided_slice %379 {offsets = [0, 6], sizes = [32, 1], strides = [1, 1]} : vector<32x9xf32> to vector<32x1xf32>
    %409 = vector.broadcast %408 : vector<32x1xf32> to vector<32x256xf32>
    %410 = arith.mulf %407, %409 : vector<32x256xf32>
    %411 = arith.addf %396, %410 : vector<32x256xf32>
    %c0_223 = arith.constant 0 : index
    %c144_224 = arith.constant 144 : index
    %412 = vector.load %arg18[%c0_223, %c144_224] : memref<32x401xf32, #tpu.memory_space<vmem>>, vector<32x256xf32>
    %413 = vector.extract_strided_slice %379 {offsets = [0, 7], sizes = [32, 1], strides = [1, 1]} : vector<32x9xf32> to vector<32x1xf32>
    %414 = vector.broadcast %413 : vector<32x1xf32> to vector<32x256xf32>
    %415 = arith.mulf %412, %414 : vector<32x256xf32>
    %416 = arith.addf %401, %415 : vector<32x256xf32>
    %c0_225 = arith.constant 0 : index
    %c145_226 = arith.constant 145 : index
    %417 = vector.load %arg18[%c0_225, %c145_226] : memref<32x401xf32, #tpu.memory_space<vmem>>, vector<32x256xf32>
    %418 = vector.extract_strided_slice %379 {offsets = [0, 8], sizes = [32, 1], strides = [1, 1]} : vector<32x9xf32> to vector<32x1xf32>
    %419 = vector.broadcast %418 : vector<32x1xf32> to vector<32x256xf32>
    %420 = arith.mulf %417, %419 : vector<32x256xf32>
    %421 = arith.addf %406, %420 : vector<32x256xf32>
    %422 = vector.broadcast %0 : vector<1x256xf32> to vector<32x256xf32>
    %423 = arith.mulf %411, %422 : vector<32x256xf32>
    %424 = arith.addf %416, %423 : vector<32x256xf32>
    %425 = vector.broadcast %1 : vector<1x256xf32> to vector<32x256xf32>
    %426 = arith.mulf %421, %425 : vector<32x256xf32>
    %427 = arith.addf %424, %426 : vector<32x256xf32>
    %c1_227 = arith.constant 1 : index
    %c0_228 = arith.constant 0 : index
    %c0_229 = arith.constant 0 : index
    %428 = vector.load %arg11[%c1_227, %c0_228, %c0_229] : memref<3x16x32xf32, #tpu.memory_space<vmem>>, vector<1x16x32xf32>
    %429 = vector.shape_cast %428 : vector<1x16x32xf32> to vector<16x32xf32>
    %cst_230 = arith.constant dense<0.000000e+00> : vector<16x256xf32>
    %430 = tpu.matmul %429, %427, %cst_230 {dimension_numbers = #tpu.dot_dimension_numbers<[1], [0], [0], [1], [0, 0, 1, 1], [], []>} : vector<16x32xf32>, vector<32x256xf32>, vector<16x256xf32> -> vector<16x256xf32>
    %c1_231 = arith.constant 1 : index
    %c0_232 = arith.constant 0 : index
    %c0_233 = arith.constant 0 : index
    %431 = vector.load %arg12[%c1_231, %c0_232, %c0_233] : memref<3x16x1xf32, #tpu.memory_space<vmem>>, vector<1x16x1xf32>
    %432 = vector.shape_cast %431 : vector<1x16x1xf32> to vector<16x1xf32>
    %433 = vector.broadcast %432 : vector<16x1xf32> to vector<16x256xf32>
    %434 = arith.addf %430, %433 : vector<16x256xf32>
    %cst_234 = arith.constant 0.000000e+00 : f32
    %435 = vector.broadcast %cst_234 : f32 to vector<16x256xf32>
    %436 = arith.maximumf %434, %435 : vector<16x256xf32>
    %c1_235 = arith.constant 1 : index
    %c0_236 = arith.constant 0 : index
    %c0_237 = arith.constant 0 : index
    %c0_238 = arith.constant 0 : index
    %437 = vector.load %arg13[%c1_235, %c0_236, %c0_237, %c0_238] : memref<3x4x18x16xf32, #tpu.memory_space<vmem>>, vector<1x1x18x16xf32>
    %438 = vector.shape_cast %437 : vector<1x1x18x16xf32> to vector<18x16xf32>
    %cst_239 = arith.constant dense<0.000000e+00> : vector<18x256xf32>
    %439 = tpu.matmul %438, %254, %cst_239 {dimension_numbers = #tpu.dot_dimension_numbers<[1], [0], [0], [1], [0, 0, 1, 1], [], []>} : vector<18x16xf32>, vector<16x256xf32>, vector<18x256xf32> -> vector<18x256xf32>
    %c1_240 = arith.constant 1 : index
    %c1_241 = arith.constant 1 : index
    %c0_242 = arith.constant 0 : index
    %c0_243 = arith.constant 0 : index
    %440 = vector.load %arg13[%c1_240, %c1_241, %c0_242, %c0_243] : memref<3x4x18x16xf32, #tpu.memory_space<vmem>>, vector<1x1x18x16xf32>
    %441 = vector.shape_cast %440 : vector<1x1x18x16xf32> to vector<18x16xf32>
    %cst_244 = arith.constant dense<0.000000e+00> : vector<18x256xf32>
    %442 = tpu.matmul %441, %314, %cst_244 {dimension_numbers = #tpu.dot_dimension_numbers<[1], [0], [0], [1], [0, 0, 1, 1], [], []>} : vector<18x16xf32>, vector<16x256xf32>, vector<18x256xf32> -> vector<18x256xf32>
    %443 = arith.addf %439, %442 : vector<18x256xf32>
    %c1_245 = arith.constant 1 : index
    %c2_246 = arith.constant 2 : index
    %c0_247 = arith.constant 0 : index
    %c0_248 = arith.constant 0 : index
    %444 = vector.load %arg13[%c1_245, %c2_246, %c0_247, %c0_248] : memref<3x4x18x16xf32, #tpu.memory_space<vmem>>, vector<1x1x18x16xf32>
    %445 = vector.shape_cast %444 : vector<1x1x18x16xf32> to vector<18x16xf32>
    %cst_249 = arith.constant dense<0.000000e+00> : vector<18x256xf32>
    %446 = tpu.matmul %445, %375, %cst_249 {dimension_numbers = #tpu.dot_dimension_numbers<[1], [0], [0], [1], [0, 0, 1, 1], [], []>} : vector<18x16xf32>, vector<16x256xf32>, vector<18x256xf32> -> vector<18x256xf32>
    %447 = arith.addf %443, %446 : vector<18x256xf32>
    %c1_250 = arith.constant 1 : index
    %c3_251 = arith.constant 3 : index
    %c0_252 = arith.constant 0 : index
    %c0_253 = arith.constant 0 : index
    %448 = vector.load %arg13[%c1_250, %c3_251, %c0_252, %c0_253] : memref<3x4x18x16xf32, #tpu.memory_space<vmem>>, vector<1x1x18x16xf32>
    %449 = vector.shape_cast %448 : vector<1x1x18x16xf32> to vector<18x16xf32>
    %cst_254 = arith.constant dense<0.000000e+00> : vector<18x256xf32>
    %450 = tpu.matmul %449, %436, %cst_254 {dimension_numbers = #tpu.dot_dimension_numbers<[1], [0], [0], [1], [0, 0, 1, 1], [], []>} : vector<18x16xf32>, vector<16x256xf32>, vector<18x256xf32> -> vector<18x256xf32>
    %451 = arith.addf %447, %450 : vector<18x256xf32>
    %c1_255 = arith.constant 1 : index
    %c0_256 = arith.constant 0 : index
    %c0_257 = arith.constant 0 : index
    %452 = vector.load %arg14[%c1_255, %c0_256, %c0_257] : memref<3x18x1xf32, #tpu.memory_space<vmem>>, vector<1x18x1xf32>
    %453 = vector.shape_cast %452 : vector<1x18x1xf32> to vector<18x1xf32>
    %454 = vector.broadcast %453 : vector<18x1xf32> to vector<18x256xf32>
    %455 = arith.addf %451, %454 : vector<18x256xf32>
    %cst_258 = arith.constant 0.000000e+00 : f32
    %456 = vector.broadcast %cst_258 : f32 to vector<18x256xf32>
    %457 = arith.maximumf %455, %456 : vector<18x256xf32>
    %cst_259 = arith.constant dense<0xFF800000> : vector<18xf32>
    %458 = vector.multi_reduction <maximumf>, %244, %cst_259 [1] : vector<18x256xf32> to vector<18xf32>
    %459 = vector.shape_cast %458 : vector<18xf32> to vector<18x1xf32>
    %c1_260 = arith.constant 1 : index
    %c0_261 = arith.constant 0 : index
    %c0_262 = arith.constant 0 : index
    %460 = vector.load %arg15[%c1_260, %c0_261, %c0_262] : memref<3x18x2xf32, #tpu.memory_space<vmem>>, vector<1x18x2xf32>
    %461 = vector.shape_cast %460 : vector<1x18x2xf32> to vector<18x2xf32>
    %462 = vector.broadcast %459 : vector<18x1xf32> to vector<18x2xf32>
    %463 = arith.mulf %461, %462 : vector<18x2xf32>
    %cst_263 = arith.constant dense<0.000000e+00> : vector<2xf32>
    %464 = vector.multi_reduction <add>, %463, %cst_263 [0] : vector<18x2xf32> to vector<2xf32>
    %465 = vector.shape_cast %464 : vector<2xf32> to vector<1x2xf32>
    %cst_264 = arith.constant 0.000000e+00 : f32
    %466 = vector.broadcast %cst_264 : f32 to vector<1x2xf32>
    %467 = arith.maximumf %465, %466 : vector<1x2xf32>
    %c1_265 = arith.constant 1 : index
    %c0_266 = arith.constant 0 : index
    %c0_267 = arith.constant 0 : index
    %468 = vector.load %arg16[%c1_265, %c0_266, %c0_267] : memref<3x18x2xf32, #tpu.memory_space<vmem>>, vector<1x18x2xf32>
    %469 = vector.shape_cast %468 : vector<1x18x2xf32> to vector<18x2xf32>
    %470 = vector.broadcast %467 : vector<1x2xf32> to vector<18x2xf32>
    %471 = arith.mulf %469, %470 : vector<18x2xf32>
    %cst_268 = arith.constant dense<0.000000e+00> : vector<18xf32>
    %472 = vector.multi_reduction <add>, %471, %cst_268 [1] : vector<18x2xf32> to vector<18xf32>
    %473 = vector.shape_cast %472 : vector<18xf32> to vector<18x1xf32>
    %cst_269 = arith.constant 0.000000e+00 : f32
    %474 = vector.broadcast %cst_269 : f32 to vector<18x1xf32>
    %475 = arith.subf %474, %473 : vector<18x1xf32>
    %476 = math.exp %475 : vector<18x1xf32>
    %cst_270 = arith.constant 1.000000e+00 : f32
    %477 = vector.broadcast %cst_270 : f32 to vector<18x1xf32>
    %478 = arith.addf %477, %476 : vector<18x1xf32>
    %479 = tpu.reciprocal %478 {approx = true} : vector<18x1xf32> -> vector<18x1xf32>
    %480 = vector.broadcast %479 : vector<18x1xf32> to vector<18x256xf32>
    %481 = arith.mulf %457, %480 : vector<18x256xf32>
    %c2_271 = arith.constant 2 : index
    %c0_272 = arith.constant 0 : index
    %c0_273 = arith.constant 0 : index
    %482 = vector.load %arg3[%c2_271, %c0_272, %c0_273] : memref<3x64x18xf32, #tpu.memory_space<vmem>>, vector<1x64x18xf32>
    %483 = vector.shape_cast %482 : vector<1x64x18xf32> to vector<64x18xf32>
    %cst_274 = arith.constant dense<0.000000e+00> : vector<64x256xf32>
    %484 = tpu.matmul %483, %481, %cst_274 {dimension_numbers = #tpu.dot_dimension_numbers<[1], [0], [0], [1], [0, 0, 1, 1], [], []>} : vector<64x18xf32>, vector<18x256xf32>, vector<64x256xf32> -> vector<64x256xf32>
    %c2_275 = arith.constant 2 : index
    %c0_276 = arith.constant 0 : index
    %c0_277 = arith.constant 0 : index
    %485 = vector.load %arg4[%c2_275, %c0_276, %c0_277] : memref<3x64x1xf32, #tpu.memory_space<vmem>>, vector<1x64x1xf32>
    %486 = vector.shape_cast %485 : vector<1x64x1xf32> to vector<64x1xf32>
    %487 = vector.broadcast %486 : vector<64x1xf32> to vector<64x256xf32>
    %488 = arith.addf %484, %487 : vector<64x256xf32>
    %cst_278 = arith.constant 0.000000e+00 : f32
    %489 = vector.broadcast %cst_278 : f32 to vector<64x256xf32>
    %490 = arith.maximumf %488, %489 : vector<64x256xf32>
    %491 = vector.extract_strided_slice %490 {offsets = [0, 0], sizes = [16, 256], strides = [1, 1]} : vector<64x256xf32> to vector<16x256xf32>
    %492 = vector.extract_strided_slice %490 {offsets = [16, 0], sizes = [16, 256], strides = [1, 1]} : vector<64x256xf32> to vector<16x256xf32>
    %493 = vector.extract_strided_slice %490 {offsets = [32, 0], sizes = [16, 256], strides = [1, 1]} : vector<64x256xf32> to vector<16x256xf32>
    %494 = vector.extract_strided_slice %490 {offsets = [48, 0], sizes = [16, 256], strides = [1, 1]} : vector<64x256xf32> to vector<16x256xf32>
    %c0_279 = arith.constant 0 : index
    %c128_280 = arith.constant 128 : index
    %495 = vector.load %arg18[%c0_279, %c128_280] : memref<32x401xf32, #tpu.memory_space<vmem>>, vector<16x256xf32>
    tpu.vector_store %arg18[%c0_279, %c128_280], %492 {strides = array<i32>} : memref<32x401xf32, #tpu.memory_space<vmem>>, vector<16x256xf32>,
    %c2_281 = arith.constant 2 : index
    %c0_282 = arith.constant 0 : index
    %c0_283 = arith.constant 0 : index
    %496 = vector.load %arg5[%c2_281, %c0_282, %c0_283] : memref<3x16x9xf32, #tpu.memory_space<vmem>>, vector<1x16x9xf32>
    %497 = vector.shape_cast %496 : vector<1x16x9xf32> to vector<16x9xf32>
    %c0_284 = arith.constant 0 : index
    %c111_285 = arith.constant 111 : index
    %498 = vector.load %arg18[%c0_284, %c111_285] : memref<32x401xf32, #tpu.memory_space<vmem>>, vector<16x256xf32>
    %499 = vector.extract_strided_slice %497 {offsets = [0, 0], sizes = [16, 1], strides = [1, 1]} : vector<16x9xf32> to vector<16x1xf32>
    %500 = vector.broadcast %499 : vector<16x1xf32> to vector<16x256xf32>
    %501 = arith.mulf %498, %500 : vector<16x256xf32>
    %c0_286 = arith.constant 0 : index
    %c112_287 = arith.constant 112 : index
    %502 = vector.load %arg18[%c0_286, %c112_287] : memref<32x401xf32, #tpu.memory_space<vmem>>, vector<16x256xf32>
    %503 = vector.extract_strided_slice %497 {offsets = [0, 1], sizes = [16, 1], strides = [1, 1]} : vector<16x9xf32> to vector<16x1xf32>
    %504 = vector.broadcast %503 : vector<16x1xf32> to vector<16x256xf32>
    %505 = arith.mulf %502, %504 : vector<16x256xf32>
    %c0_288 = arith.constant 0 : index
    %c113_289 = arith.constant 113 : index
    %506 = vector.load %arg18[%c0_288, %c113_289] : memref<32x401xf32, #tpu.memory_space<vmem>>, vector<16x256xf32>
    %507 = vector.extract_strided_slice %497 {offsets = [0, 2], sizes = [16, 1], strides = [1, 1]} : vector<16x9xf32> to vector<16x1xf32>
    %508 = vector.broadcast %507 : vector<16x1xf32> to vector<16x256xf32>
    %509 = arith.mulf %506, %508 : vector<16x256xf32>
    %c0_290 = arith.constant 0 : index
    %c127_291 = arith.constant 127 : index
    %510 = vector.load %arg18[%c0_290, %c127_291] : memref<32x401xf32, #tpu.memory_space<vmem>>, vector<16x256xf32>
    %511 = vector.extract_strided_slice %497 {offsets = [0, 3], sizes = [16, 1], strides = [1, 1]} : vector<16x9xf32> to vector<16x1xf32>
    %512 = vector.broadcast %511 : vector<16x1xf32> to vector<16x256xf32>
    %513 = arith.mulf %510, %512 : vector<16x256xf32>
    %514 = arith.addf %501, %513 : vector<16x256xf32>
    %c0_292 = arith.constant 0 : index
    %c128_293 = arith.constant 128 : index
    %515 = vector.load %arg18[%c0_292, %c128_293] : memref<32x401xf32, #tpu.memory_space<vmem>>, vector<16x256xf32>
    %516 = vector.extract_strided_slice %497 {offsets = [0, 4], sizes = [16, 1], strides = [1, 1]} : vector<16x9xf32> to vector<16x1xf32>
    %517 = vector.broadcast %516 : vector<16x1xf32> to vector<16x256xf32>
    %518 = arith.mulf %515, %517 : vector<16x256xf32>
    %519 = arith.addf %505, %518 : vector<16x256xf32>
    %c0_294 = arith.constant 0 : index
    %c129_295 = arith.constant 129 : index
    %520 = vector.load %arg18[%c0_294, %c129_295] : memref<32x401xf32, #tpu.memory_space<vmem>>, vector<16x256xf32>
    %521 = vector.extract_strided_slice %497 {offsets = [0, 5], sizes = [16, 1], strides = [1, 1]} : vector<16x9xf32> to vector<16x1xf32>
    %522 = vector.broadcast %521 : vector<16x1xf32> to vector<16x256xf32>
    %523 = arith.mulf %520, %522 : vector<16x256xf32>
    %524 = arith.addf %509, %523 : vector<16x256xf32>
    %c0_296 = arith.constant 0 : index
    %c143_297 = arith.constant 143 : index
    %525 = vector.load %arg18[%c0_296, %c143_297] : memref<32x401xf32, #tpu.memory_space<vmem>>, vector<16x256xf32>
    %526 = vector.extract_strided_slice %497 {offsets = [0, 6], sizes = [16, 1], strides = [1, 1]} : vector<16x9xf32> to vector<16x1xf32>
    %527 = vector.broadcast %526 : vector<16x1xf32> to vector<16x256xf32>
    %528 = arith.mulf %525, %527 : vector<16x256xf32>
    %529 = arith.addf %514, %528 : vector<16x256xf32>
    %c0_298 = arith.constant 0 : index
    %c144_299 = arith.constant 144 : index
    %530 = vector.load %arg18[%c0_298, %c144_299] : memref<32x401xf32, #tpu.memory_space<vmem>>, vector<16x256xf32>
    %531 = vector.extract_strided_slice %497 {offsets = [0, 7], sizes = [16, 1], strides = [1, 1]} : vector<16x9xf32> to vector<16x1xf32>
    %532 = vector.broadcast %531 : vector<16x1xf32> to vector<16x256xf32>
    %533 = arith.mulf %530, %532 : vector<16x256xf32>
    %534 = arith.addf %519, %533 : vector<16x256xf32>
    %c0_300 = arith.constant 0 : index
    %c145_301 = arith.constant 145 : index
    %535 = vector.load %arg18[%c0_300, %c145_301] : memref<32x401xf32, #tpu.memory_space<vmem>>, vector<16x256xf32>
    %536 = vector.extract_strided_slice %497 {offsets = [0, 8], sizes = [16, 1], strides = [1, 1]} : vector<16x9xf32> to vector<16x1xf32>
    %537 = vector.broadcast %536 : vector<16x1xf32> to vector<16x256xf32>
    %538 = arith.mulf %535, %537 : vector<16x256xf32>
    %539 = arith.addf %524, %538 : vector<16x256xf32>
    %540 = vector.broadcast %0 : vector<1x256xf32> to vector<16x256xf32>
    %541 = arith.mulf %529, %540 : vector<16x256xf32>
    %542 = arith.addf %534, %541 : vector<16x256xf32>
    %543 = vector.broadcast %1 : vector<1x256xf32> to vector<16x256xf32>
    %544 = arith.mulf %539, %543 : vector<16x256xf32>
    %545 = arith.addf %542, %544 : vector<16x256xf32>
    %c2_302 = arith.constant 2 : index
    %c0_303 = arith.constant 0 : index
    %c0_304 = arith.constant 0 : index
    %546 = vector.load %arg6[%c2_302, %c0_303, %c0_304] : memref<3x16x1xf32, #tpu.memory_space<vmem>>, vector<1x16x1xf32>
    %547 = vector.shape_cast %546 : vector<1x16x1xf32> to vector<16x1xf32>
    %548 = vector.broadcast %547 : vector<16x1xf32> to vector<16x256xf32>
    %549 = arith.addf %545, %548 : vector<16x256xf32>
    %cst_305 = arith.constant 0.000000e+00 : f32
    %550 = vector.broadcast %cst_305 : f32 to vector<16x256xf32>
    %551 = arith.maximumf %549, %550 : vector<16x256xf32>
    %c0_306 = arith.constant 0 : index
    %c128_307 = arith.constant 128 : index
    %552 = vector.load %arg18[%c0_306, %c128_307] : memref<32x401xf32, #tpu.memory_space<vmem>>, vector<16x256xf32>
    tpu.vector_store %arg18[%c0_306, %c128_307], %551 {strides = array<i32>} : memref<32x401xf32, #tpu.memory_space<vmem>>, vector<16x256xf32>,
    %c16_308 = arith.constant 16 : index
    %c128_309 = arith.constant 128 : index
    %553 = vector.load %arg18[%c16_308, %c128_309] : memref<32x401xf32, #tpu.memory_space<vmem>>, vector<16x256xf32>
    tpu.vector_store %arg18[%c16_308, %c128_309], %493 {strides = array<i32>} : memref<32x401xf32, #tpu.memory_space<vmem>>, vector<16x256xf32>,
    %c2_310 = arith.constant 2 : index
    %c0_311 = arith.constant 0 : index
    %c0_312 = arith.constant 0 : index
    %554 = vector.load %arg7[%c2_310, %c0_311, %c0_312] : memref<3x32x9xf32, #tpu.memory_space<vmem>>, vector<1x32x9xf32>
    %555 = vector.shape_cast %554 : vector<1x32x9xf32> to vector<32x9xf32>
    %c0_313 = arith.constant 0 : index
    %c111_314 = arith.constant 111 : index
    %556 = vector.load %arg18[%c0_313, %c111_314] : memref<32x401xf32, #tpu.memory_space<vmem>>, vector<32x256xf32>
    %557 = vector.extract_strided_slice %555 {offsets = [0, 0], sizes = [32, 1], strides = [1, 1]} : vector<32x9xf32> to vector<32x1xf32>
    %558 = vector.broadcast %557 : vector<32x1xf32> to vector<32x256xf32>
    %559 = arith.mulf %556, %558 : vector<32x256xf32>
    %c0_315 = arith.constant 0 : index
    %c112_316 = arith.constant 112 : index
    %560 = vector.load %arg18[%c0_315, %c112_316] : memref<32x401xf32, #tpu.memory_space<vmem>>, vector<32x256xf32>
    %561 = vector.extract_strided_slice %555 {offsets = [0, 1], sizes = [32, 1], strides = [1, 1]} : vector<32x9xf32> to vector<32x1xf32>
    %562 = vector.broadcast %561 : vector<32x1xf32> to vector<32x256xf32>
    %563 = arith.mulf %560, %562 : vector<32x256xf32>
    %c0_317 = arith.constant 0 : index
    %c113_318 = arith.constant 113 : index
    %564 = vector.load %arg18[%c0_317, %c113_318] : memref<32x401xf32, #tpu.memory_space<vmem>>, vector<32x256xf32>
    %565 = vector.extract_strided_slice %555 {offsets = [0, 2], sizes = [32, 1], strides = [1, 1]} : vector<32x9xf32> to vector<32x1xf32>
    %566 = vector.broadcast %565 : vector<32x1xf32> to vector<32x256xf32>
    %567 = arith.mulf %564, %566 : vector<32x256xf32>
    %c0_319 = arith.constant 0 : index
    %c127_320 = arith.constant 127 : index
    %568 = vector.load %arg18[%c0_319, %c127_320] : memref<32x401xf32, #tpu.memory_space<vmem>>, vector<32x256xf32>
    %569 = vector.extract_strided_slice %555 {offsets = [0, 3], sizes = [32, 1], strides = [1, 1]} : vector<32x9xf32> to vector<32x1xf32>
    %570 = vector.broadcast %569 : vector<32x1xf32> to vector<32x256xf32>
    %571 = arith.mulf %568, %570 : vector<32x256xf32>
    %572 = arith.addf %559, %571 : vector<32x256xf32>
    %c0_321 = arith.constant 0 : index
    %c128_322 = arith.constant 128 : index
    %573 = vector.load %arg18[%c0_321, %c128_322] : memref<32x401xf32, #tpu.memory_space<vmem>>, vector<32x256xf32>
    %574 = vector.extract_strided_slice %555 {offsets = [0, 4], sizes = [32, 1], strides = [1, 1]} : vector<32x9xf32> to vector<32x1xf32>
    %575 = vector.broadcast %574 : vector<32x1xf32> to vector<32x256xf32>
    %576 = arith.mulf %573, %575 : vector<32x256xf32>
    %577 = arith.addf %563, %576 : vector<32x256xf32>
    %c0_323 = arith.constant 0 : index
    %c129_324 = arith.constant 129 : index
    %578 = vector.load %arg18[%c0_323, %c129_324] : memref<32x401xf32, #tpu.memory_space<vmem>>, vector<32x256xf32>
    %579 = vector.extract_strided_slice %555 {offsets = [0, 5], sizes = [32, 1], strides = [1, 1]} : vector<32x9xf32> to vector<32x1xf32>
    %580 = vector.broadcast %579 : vector<32x1xf32> to vector<32x256xf32>
    %581 = arith.mulf %578, %580 : vector<32x256xf32>
    %582 = arith.addf %567, %581 : vector<32x256xf32>
    %c0_325 = arith.constant 0 : index
    %c143_326 = arith.constant 143 : index
    %583 = vector.load %arg18[%c0_325, %c143_326] : memref<32x401xf32, #tpu.memory_space<vmem>>, vector<32x256xf32>
    %584 = vector.extract_strided_slice %555 {offsets = [0, 6], sizes = [32, 1], strides = [1, 1]} : vector<32x9xf32> to vector<32x1xf32>
    %585 = vector.broadcast %584 : vector<32x1xf32> to vector<32x256xf32>
    %586 = arith.mulf %583, %585 : vector<32x256xf32>
    %587 = arith.addf %572, %586 : vector<32x256xf32>
    %c0_327 = arith.constant 0 : index
    %c144_328 = arith.constant 144 : index
    %588 = vector.load %arg18[%c0_327, %c144_328] : memref<32x401xf32, #tpu.memory_space<vmem>>, vector<32x256xf32>
    %589 = vector.extract_strided_slice %555 {offsets = [0, 7], sizes = [32, 1], strides = [1, 1]} : vector<32x9xf32> to vector<32x1xf32>
    %590 = vector.broadcast %589 : vector<32x1xf32> to vector<32x256xf32>
    %591 = arith.mulf %588, %590 : vector<32x256xf32>
    %592 = arith.addf %577, %591 : vector<32x256xf32>
    %c0_329 = arith.constant 0 : index
    %c145_330 = arith.constant 145 : index
    %593 = vector.load %arg18[%c0_329, %c145_330] : memref<32x401xf32, #tpu.memory_space<vmem>>, vector<32x256xf32>
    %594 = vector.extract_strided_slice %555 {offsets = [0, 8], sizes = [32, 1], strides = [1, 1]} : vector<32x9xf32> to vector<32x1xf32>
    %595 = vector.broadcast %594 : vector<32x1xf32> to vector<32x256xf32>
    %596 = arith.mulf %593, %595 : vector<32x256xf32>
    %597 = arith.addf %582, %596 : vector<32x256xf32>
    %598 = vector.broadcast %0 : vector<1x256xf32> to vector<32x256xf32>
    %599 = arith.mulf %587, %598 : vector<32x256xf32>
    %600 = arith.addf %592, %599 : vector<32x256xf32>
    %601 = vector.broadcast %1 : vector<1x256xf32> to vector<32x256xf32>
    %602 = arith.mulf %597, %601 : vector<32x256xf32>
    %603 = arith.addf %600, %602 : vector<32x256xf32>
    %c2_331 = arith.constant 2 : index
    %c0_332 = arith.constant 0 : index
    %c0_333 = arith.constant 0 : index
    %604 = vector.load %arg8[%c2_331, %c0_332, %c0_333] : memref<3x16x32xf32, #tpu.memory_space<vmem>>, vector<1x16x32xf32>
    %605 = vector.shape_cast %604 : vector<1x16x32xf32> to vector<16x32xf32>
    %cst_334 = arith.constant dense<0.000000e+00> : vector<16x256xf32>
    %606 = tpu.matmul %605, %603, %cst_334 {dimension_numbers = #tpu.dot_dimension_numbers<[1], [0], [0], [1], [0, 0, 1, 1], [], []>} : vector<16x32xf32>, vector<32x256xf32>, vector<16x256xf32> -> vector<16x256xf32>
    %c2_335 = arith.constant 2 : index
    %c0_336 = arith.constant 0 : index
    %c0_337 = arith.constant 0 : index
    %607 = vector.load %arg9[%c2_335, %c0_336, %c0_337] : memref<3x16x1xf32, #tpu.memory_space<vmem>>, vector<1x16x1xf32>
    %608 = vector.shape_cast %607 : vector<1x16x1xf32> to vector<16x1xf32>
    %609 = vector.broadcast %608 : vector<16x1xf32> to vector<16x256xf32>
    %610 = arith.addf %606, %609 : vector<16x256xf32>
    %cst_338 = arith.constant 0.000000e+00 : f32
    %611 = vector.broadcast %cst_338 : f32 to vector<16x256xf32>
    %612 = arith.maximumf %610, %611 : vector<16x256xf32>
    %c0_339 = arith.constant 0 : index
    %c128_340 = arith.constant 128 : index
    %613 = vector.load %arg18[%c0_339, %c128_340] : memref<32x401xf32, #tpu.memory_space<vmem>>, vector<16x256xf32>
    tpu.vector_store %arg18[%c0_339, %c128_340], %612 {strides = array<i32>} : memref<32x401xf32, #tpu.memory_space<vmem>>, vector<16x256xf32>,
    %c16_341 = arith.constant 16 : index
    %c128_342 = arith.constant 128 : index
    %614 = vector.load %arg18[%c16_341, %c128_342] : memref<32x401xf32, #tpu.memory_space<vmem>>, vector<16x256xf32>
    tpu.vector_store %arg18[%c16_341, %c128_342], %494 {strides = array<i32>} : memref<32x401xf32, #tpu.memory_space<vmem>>, vector<16x256xf32>,
    %c2_343 = arith.constant 2 : index
    %c0_344 = arith.constant 0 : index
    %c0_345 = arith.constant 0 : index
    %615 = vector.load %arg10[%c2_343, %c0_344, %c0_345] : memref<3x32x9xf32, #tpu.memory_space<vmem>>, vector<1x32x9xf32>
    %616 = vector.shape_cast %615 : vector<1x32x9xf32> to vector<32x9xf32>
    %c0_346 = arith.constant 0 : index
    %c111_347 = arith.constant 111 : index
    %617 = vector.load %arg18[%c0_346, %c111_347] : memref<32x401xf32, #tpu.memory_space<vmem>>, vector<32x256xf32>
    %618 = vector.extract_strided_slice %616 {offsets = [0, 0], sizes = [32, 1], strides = [1, 1]} : vector<32x9xf32> to vector<32x1xf32>
    %619 = vector.broadcast %618 : vector<32x1xf32> to vector<32x256xf32>
    %620 = arith.mulf %617, %619 : vector<32x256xf32>
    %c0_348 = arith.constant 0 : index
    %c112_349 = arith.constant 112 : index
    %621 = vector.load %arg18[%c0_348, %c112_349] : memref<32x401xf32, #tpu.memory_space<vmem>>, vector<32x256xf32>
    %622 = vector.extract_strided_slice %616 {offsets = [0, 1], sizes = [32, 1], strides = [1, 1]} : vector<32x9xf32> to vector<32x1xf32>
    %623 = vector.broadcast %622 : vector<32x1xf32> to vector<32x256xf32>
    %624 = arith.mulf %621, %623 : vector<32x256xf32>
    %c0_350 = arith.constant 0 : index
    %c113_351 = arith.constant 113 : index
    %625 = vector.load %arg18[%c0_350, %c113_351] : memref<32x401xf32, #tpu.memory_space<vmem>>, vector<32x256xf32>
    %626 = vector.extract_strided_slice %616 {offsets = [0, 2], sizes = [32, 1], strides = [1, 1]} : vector<32x9xf32> to vector<32x1xf32>
    %627 = vector.broadcast %626 : vector<32x1xf32> to vector<32x256xf32>
    %628 = arith.mulf %625, %627 : vector<32x256xf32>
    %c0_352 = arith.constant 0 : index
    %c127_353 = arith.constant 127 : index
    %629 = vector.load %arg18[%c0_352, %c127_353] : memref<32x401xf32, #tpu.memory_space<vmem>>, vector<32x256xf32>
    %630 = vector.extract_strided_slice %616 {offsets = [0, 3], sizes = [32, 1], strides = [1, 1]} : vector<32x9xf32> to vector<32x1xf32>
    %631 = vector.broadcast %630 : vector<32x1xf32> to vector<32x256xf32>
    %632 = arith.mulf %629, %631 : vector<32x256xf32>
    %633 = arith.addf %620, %632 : vector<32x256xf32>
    %c0_354 = arith.constant 0 : index
    %c128_355 = arith.constant 128 : index
    %634 = vector.load %arg18[%c0_354, %c128_355] : memref<32x401xf32, #tpu.memory_space<vmem>>, vector<32x256xf32>
    %635 = vector.extract_strided_slice %616 {offsets = [0, 4], sizes = [32, 1], strides = [1, 1]} : vector<32x9xf32> to vector<32x1xf32>
    %636 = vector.broadcast %635 : vector<32x1xf32> to vector<32x256xf32>
    %637 = arith.mulf %634, %636 : vector<32x256xf32>
    %638 = arith.addf %624, %637 : vector<32x256xf32>
    %c0_356 = arith.constant 0 : index
    %c129_357 = arith.constant 129 : index
    %639 = vector.load %arg18[%c0_356, %c129_357] : memref<32x401xf32, #tpu.memory_space<vmem>>, vector<32x256xf32>
    %640 = vector.extract_strided_slice %616 {offsets = [0, 5], sizes = [32, 1], strides = [1, 1]} : vector<32x9xf32> to vector<32x1xf32>
    %641 = vector.broadcast %640 : vector<32x1xf32> to vector<32x256xf32>
    %642 = arith.mulf %639, %641 : vector<32x256xf32>
    %643 = arith.addf %628, %642 : vector<32x256xf32>
    %c0_358 = arith.constant 0 : index
    %c143_359 = arith.constant 143 : index
    %644 = vector.load %arg18[%c0_358, %c143_359] : memref<32x401xf32, #tpu.memory_space<vmem>>, vector<32x256xf32>
    %645 = vector.extract_strided_slice %616 {offsets = [0, 6], sizes = [32, 1], strides = [1, 1]} : vector<32x9xf32> to vector<32x1xf32>
    %646 = vector.broadcast %645 : vector<32x1xf32> to vector<32x256xf32>
    %647 = arith.mulf %644, %646 : vector<32x256xf32>
    %648 = arith.addf %633, %647 : vector<32x256xf32>
    %c0_360 = arith.constant 0 : index
    %c144_361 = arith.constant 144 : index
    %649 = vector.load %arg18[%c0_360, %c144_361] : memref<32x401xf32, #tpu.memory_space<vmem>>, vector<32x256xf32>
    %650 = vector.extract_strided_slice %616 {offsets = [0, 7], sizes = [32, 1], strides = [1, 1]} : vector<32x9xf32> to vector<32x1xf32>
    %651 = vector.broadcast %650 : vector<32x1xf32> to vector<32x256xf32>
    %652 = arith.mulf %649, %651 : vector<32x256xf32>
    %653 = arith.addf %638, %652 : vector<32x256xf32>
    %c0_362 = arith.constant 0 : index
    %c145_363 = arith.constant 145 : index
    %654 = vector.load %arg18[%c0_362, %c145_363] : memref<32x401xf32, #tpu.memory_space<vmem>>, vector<32x256xf32>
    %655 = vector.extract_strided_slice %616 {offsets = [0, 8], sizes = [32, 1], strides = [1, 1]} : vector<32x9xf32> to vector<32x1xf32>
    %656 = vector.broadcast %655 : vector<32x1xf32> to vector<32x256xf32>
    %657 = arith.mulf %654, %656 : vector<32x256xf32>
    %658 = arith.addf %643, %657 : vector<32x256xf32>
    %659 = vector.broadcast %0 : vector<1x256xf32> to vector<32x256xf32>
    %660 = arith.mulf %648, %659 : vector<32x256xf32>
    %661 = arith.addf %653, %660 : vector<32x256xf32>
    %662 = vector.broadcast %1 : vector<1x256xf32> to vector<32x256xf32>
    %663 = arith.mulf %658, %662 : vector<32x256xf32>
    %664 = arith.addf %661, %663 : vector<32x256xf32>
    %c2_364 = arith.constant 2 : index
    %c0_365 = arith.constant 0 : index
    %c0_366 = arith.constant 0 : index
    %665 = vector.load %arg11[%c2_364, %c0_365, %c0_366] : memref<3x16x32xf32, #tpu.memory_space<vmem>>, vector<1x16x32xf32>
    %666 = vector.shape_cast %665 : vector<1x16x32xf32> to vector<16x32xf32>
    %cst_367 = arith.constant dense<0.000000e+00> : vector<16x256xf32>
    %667 = tpu.matmul %666, %664, %cst_367 {dimension_numbers = #tpu.dot_dimension_numbers<[1], [0], [0], [1], [0, 0, 1, 1], [], []>} : vector<16x32xf32>, vector<32x256xf32>, vector<16x256xf32> -> vector<16x256xf32>
    %c2_368 = arith.constant 2 : index
    %c0_369 = arith.constant 0 : index
    %c0_370 = arith.constant 0 : index
    %668 = vector.load %arg12[%c2_368, %c0_369, %c0_370] : memref<3x16x1xf32, #tpu.memory_space<vmem>>, vector<1x16x1xf32>
    %669 = vector.shape_cast %668 : vector<1x16x1xf32> to vector<16x1xf32>
    %670 = vector.broadcast %669 : vector<16x1xf32> to vector<16x256xf32>
    %671 = arith.addf %667, %670 : vector<16x256xf32>
    %cst_371 = arith.constant 0.000000e+00 : f32
    %672 = vector.broadcast %cst_371 : f32 to vector<16x256xf32>
    %673 = arith.maximumf %671, %672 : vector<16x256xf32>
    %c2_372 = arith.constant 2 : index
    %c0_373 = arith.constant 0 : index
    %c0_374 = arith.constant 0 : index
    %c0_375 = arith.constant 0 : index
    %674 = vector.load %arg13[%c2_372, %c0_373, %c0_374, %c0_375] : memref<3x4x18x16xf32, #tpu.memory_space<vmem>>, vector<1x1x18x16xf32>
    %675 = vector.shape_cast %674 : vector<1x1x18x16xf32> to vector<18x16xf32>
    %cst_376 = arith.constant dense<0.000000e+00> : vector<18x256xf32>
    %676 = tpu.matmul %675, %491, %cst_376 {dimension_numbers = #tpu.dot_dimension_numbers<[1], [0], [0], [1], [0, 0, 1, 1], [], []>} : vector<18x16xf32>, vector<16x256xf32>, vector<18x256xf32> -> vector<18x256xf32>
    %c2_377 = arith.constant 2 : index
    %c1_378 = arith.constant 1 : index
    %c0_379 = arith.constant 0 : index
    %c0_380 = arith.constant 0 : index
    %677 = vector.load %arg13[%c2_377, %c1_378, %c0_379, %c0_380] : memref<3x4x18x16xf32, #tpu.memory_space<vmem>>, vector<1x1x18x16xf32>
    %678 = vector.shape_cast %677 : vector<1x1x18x16xf32> to vector<18x16xf32>
    %cst_381 = arith.constant dense<0.000000e+00> : vector<18x256xf32>
    %679 = tpu.matmul %678, %551, %cst_381 {dimension_numbers = #tpu.dot_dimension_numbers<[1], [0], [0], [1], [0, 0, 1, 1], [], []>} : vector<18x16xf32>, vector<16x256xf32>, vector<18x256xf32> -> vector<18x256xf32>
    %680 = arith.addf %676, %679 : vector<18x256xf32>
    %c2_382 = arith.constant 2 : index
    %c2_383 = arith.constant 2 : index
    %c0_384 = arith.constant 0 : index
    %c0_385 = arith.constant 0 : index
    %681 = vector.load %arg13[%c2_382, %c2_383, %c0_384, %c0_385] : memref<3x4x18x16xf32, #tpu.memory_space<vmem>>, vector<1x1x18x16xf32>
    %682 = vector.shape_cast %681 : vector<1x1x18x16xf32> to vector<18x16xf32>
    %cst_386 = arith.constant dense<0.000000e+00> : vector<18x256xf32>
    %683 = tpu.matmul %682, %612, %cst_386 {dimension_numbers = #tpu.dot_dimension_numbers<[1], [0], [0], [1], [0, 0, 1, 1], [], []>} : vector<18x16xf32>, vector<16x256xf32>, vector<18x256xf32> -> vector<18x256xf32>
    %684 = arith.addf %680, %683 : vector<18x256xf32>
    %c2_387 = arith.constant 2 : index
    %c3_388 = arith.constant 3 : index
    %c0_389 = arith.constant 0 : index
    %c0_390 = arith.constant 0 : index
    %685 = vector.load %arg13[%c2_387, %c3_388, %c0_389, %c0_390] : memref<3x4x18x16xf32, #tpu.memory_space<vmem>>, vector<1x1x18x16xf32>
    %686 = vector.shape_cast %685 : vector<1x1x18x16xf32> to vector<18x16xf32>
    %cst_391 = arith.constant dense<0.000000e+00> : vector<18x256xf32>
    %687 = tpu.matmul %686, %673, %cst_391 {dimension_numbers = #tpu.dot_dimension_numbers<[1], [0], [0], [1], [0, 0, 1, 1], [], []>} : vector<18x16xf32>, vector<16x256xf32>, vector<18x256xf32> -> vector<18x256xf32>
    %688 = arith.addf %684, %687 : vector<18x256xf32>
    %c2_392 = arith.constant 2 : index
    %c0_393 = arith.constant 0 : index
    %c0_394 = arith.constant 0 : index
    %689 = vector.load %arg14[%c2_392, %c0_393, %c0_394] : memref<3x18x1xf32, #tpu.memory_space<vmem>>, vector<1x18x1xf32>
    %690 = vector.shape_cast %689 : vector<1x18x1xf32> to vector<18x1xf32>
    %691 = vector.broadcast %690 : vector<18x1xf32> to vector<18x256xf32>
    %692 = arith.addf %688, %691 : vector<18x256xf32>
    %cst_395 = arith.constant 0.000000e+00 : f32
    %693 = vector.broadcast %cst_395 : f32 to vector<18x256xf32>
    %694 = arith.maximumf %692, %693 : vector<18x256xf32>
    %cst_396 = arith.constant dense<0xFF800000> : vector<18xf32>
    %695 = vector.multi_reduction <maximumf>, %481, %cst_396 [1] : vector<18x256xf32> to vector<18xf32>
    %696 = vector.shape_cast %695 : vector<18xf32> to vector<18x1xf32>
    %c2_397 = arith.constant 2 : index
    %c0_398 = arith.constant 0 : index
    %c0_399 = arith.constant 0 : index
    %697 = vector.load %arg15[%c2_397, %c0_398, %c0_399] : memref<3x18x2xf32, #tpu.memory_space<vmem>>, vector<1x18x2xf32>
    %698 = vector.shape_cast %697 : vector<1x18x2xf32> to vector<18x2xf32>
    %699 = vector.broadcast %696 : vector<18x1xf32> to vector<18x2xf32>
    %700 = arith.mulf %698, %699 : vector<18x2xf32>
    %cst_400 = arith.constant dense<0.000000e+00> : vector<2xf32>
    %701 = vector.multi_reduction <add>, %700, %cst_400 [0] : vector<18x2xf32> to vector<2xf32>
    %702 = vector.shape_cast %701 : vector<2xf32> to vector<1x2xf32>
    %cst_401 = arith.constant 0.000000e+00 : f32
    %703 = vector.broadcast %cst_401 : f32 to vector<1x2xf32>
    %704 = arith.maximumf %702, %703 : vector<1x2xf32>
    %c2_402 = arith.constant 2 : index
    %c0_403 = arith.constant 0 : index
    %c0_404 = arith.constant 0 : index
    %705 = vector.load %arg16[%c2_402, %c0_403, %c0_404] : memref<3x18x2xf32, #tpu.memory_space<vmem>>, vector<1x18x2xf32>
    %706 = vector.shape_cast %705 : vector<1x18x2xf32> to vector<18x2xf32>
    %707 = vector.broadcast %704 : vector<1x2xf32> to vector<18x2xf32>
    %708 = arith.mulf %706, %707 : vector<18x2xf32>
    %cst_405 = arith.constant dense<0.000000e+00> : vector<18xf32>
    %709 = vector.multi_reduction <add>, %708, %cst_405 [1] : vector<18x2xf32> to vector<18xf32>
    %710 = vector.shape_cast %709 : vector<18xf32> to vector<18x1xf32>
    %cst_406 = arith.constant 0.000000e+00 : f32
    %711 = vector.broadcast %cst_406 : f32 to vector<18x1xf32>
    %712 = arith.subf %711, %710 : vector<18x1xf32>
    %713 = math.exp %712 : vector<18x1xf32>
    %cst_407 = arith.constant 1.000000e+00 : f32
    %714 = vector.broadcast %cst_407 : f32 to vector<18x1xf32>
    %715 = arith.addf %714, %713 : vector<18x1xf32>
    %716 = tpu.reciprocal %715 {approx = true} : vector<18x1xf32> -> vector<18x1xf32>
    %717 = vector.broadcast %716 : vector<18x1xf32> to vector<18x256xf32>
    %718 = arith.mulf %694, %717 : vector<18x256xf32>
    %c0_408 = arith.constant 0 : index
    %c0_409 = arith.constant 0 : index
    %c0_410 = arith.constant 0 : index
    %719 = vector.load %arg17[%c0_408, %c0_409, %c0_410] : memref<1x18x256xf32, #tpu.memory_space<vmem>>, vector<1x18x256xf32>
    %720 = vector.shape_cast %719 : vector<1x18x256xf32> to vector<18x256xf32>
    %721 = vector.shape_cast %718 : vector<18x256xf32> to vector<1x18x256xf32>
    tpu.vector_store %arg17[%c0_408, %c0_409, %c0_410], %721 {strides = array<i32>} : memref<1x18x256xf32, #tpu.memory_space<vmem>>, vector<1x18x256xf32>,
    return
  }
  func.func @transform_0(%arg0: i32) -> (i32, i32, i32) {
    %c0_i32 = arith.constant 0 : i32
    %c0_i32_0 = arith.constant 0 : i32
    %c0_i32_1 = arith.constant 0 : i32
    return %arg0, %c0_i32, %c0_i32_0 : i32, i32, i32
  }
  func.func @transform_1(%arg0: i32) -> (i32, i32) {
    %c0_i32 = arith.constant 0 : i32
    %c0_i32_0 = arith.constant 0 : i32
    %c0_i32_1 = arith.constant 0 : i32
    return %c0_i32, %c0_i32_0 : i32, i32
  }
  func.func @transform_2(%arg0: i32) -> (i32, i32, i32) {
    %c0_i32 = arith.constant 0 : i32
    %c0_i32_0 = arith.constant 0 : i32
    %c0_i32_1 = arith.constant 0 : i32
    %c0_i32_2 = arith.constant 0 : i32
    return %c0_i32, %c0_i32_0, %c0_i32_1 : i32, i32, i32
  }
  func.func @transform_3(%arg0: i32) -> (i32, i32, i32) {
    %c0_i32 = arith.constant 0 : i32
    %c0_i32_0 = arith.constant 0 : i32
    %c0_i32_1 = arith.constant 0 : i32
    %c0_i32_2 = arith.constant 0 : i32
    return %c0_i32, %c0_i32_0, %c0_i32_1 : i32, i32, i32
  }
  func.func @transform_4(%arg0: i32) -> (i32, i32, i32) {
    %c0_i32 = arith.constant 0 : i32
    %c0_i32_0 = arith.constant 0 : i32
    %c0_i32_1 = arith.constant 0 : i32
    %c0_i32_2 = arith.constant 0 : i32
    return %c0_i32, %c0_i32_0, %c0_i32_1 : i32, i32, i32
  }
  func.func @transform_5(%arg0: i32) -> (i32, i32, i32) {
    %c0_i32 = arith.constant 0 : i32
    %c0_i32_0 = arith.constant 0 : i32
    %c0_i32_1 = arith.constant 0 : i32
    %c0_i32_2 = arith.constant 0 : i32
    return %c0_i32, %c0_i32_0, %c0_i32_1 : i32, i32, i32
  }
  func.func @transform_6(%arg0: i32) -> (i32, i32, i32) {
    %c0_i32 = arith.constant 0 : i32
    %c0_i32_0 = arith.constant 0 : i32
    %c0_i32_1 = arith.constant 0 : i32
    %c0_i32_2 = arith.constant 0 : i32
    return %c0_i32, %c0_i32_0, %c0_i32_1 : i32, i32, i32
  }
  func.func @transform_7(%arg0: i32) -> (i32, i32, i32) {
    %c0_i32 = arith.constant 0 : i32
    %c0_i32_0 = arith.constant 0 : i32
    %c0_i32_1 = arith.constant 0 : i32
    %c0_i32_2 = arith.constant 0 : i32
    return %c0_i32, %c0_i32_0, %c0_i32_1 : i32, i32, i32
  }
  func.func @transform_8(%arg0: i32) -> (i32, i32, i32) {
    %c0_i32 = arith.constant 0 : i32
    %c0_i32_0 = arith.constant 0 : i32
    %c0_i32_1 = arith.constant 0 : i32
    %c0_i32_2 = arith.constant 0 : i32
    return %c0_i32, %c0_i32_0, %c0_i32_1 : i32, i32, i32
  }
  func.func @transform_9(%arg0: i32) -> (i32, i32, i32) {
    %c0_i32 = arith.constant 0 : i32
    %c0_i32_0 = arith.constant 0 : i32
    %c0_i32_1 = arith.constant 0 : i32
    %c0_i32_2 = arith.constant 0 : i32
    return %c0_i32, %c0_i32_0, %c0_i32_1 : i32, i32, i32
  }
  func.func @transform_10(%arg0: i32) -> (i32, i32, i32) {
    %c0_i32 = arith.constant 0 : i32
    %c0_i32_0 = arith.constant 0 : i32
    %c0_i32_1 = arith.constant 0 : i32
    %c0_i32_2 = arith.constant 0 : i32
    return %c0_i32, %c0_i32_0, %c0_i32_1 : i32, i32, i32
  }
  func.func @transform_11(%arg0: i32) -> (i32, i32, i32) {
    %c0_i32 = arith.constant 0 : i32
    %c0_i32_0 = arith.constant 0 : i32
    %c0_i32_1 = arith.constant 0 : i32
    %c0_i32_2 = arith.constant 0 : i32
    return %c0_i32, %c0_i32_0, %c0_i32_1 : i32, i32, i32
  }
  func.func @transform_12(%arg0: i32) -> (i32, i32, i32, i32) {
    %c0_i32 = arith.constant 0 : i32
    %c0_i32_0 = arith.constant 0 : i32
    %c0_i32_1 = arith.constant 0 : i32
    %c0_i32_2 = arith.constant 0 : i32
    %c0_i32_3 = arith.constant 0 : i32
    return %c0_i32, %c0_i32_0, %c0_i32_1, %c0_i32_2 : i32, i32, i32, i32
  }
  func.func @transform_13(%arg0: i32) -> (i32, i32, i32) {
    %c0_i32 = arith.constant 0 : i32
    %c0_i32_0 = arith.constant 0 : i32
    %c0_i32_1 = arith.constant 0 : i32
    %c0_i32_2 = arith.constant 0 : i32
    return %c0_i32, %c0_i32_0, %c0_i32_1 : i32, i32, i32
  }
  func.func @transform_14(%arg0: i32) -> (i32, i32, i32) {
    %c0_i32 = arith.constant 0 : i32
    %c0_i32_0 = arith.constant 0 : i32
    %c0_i32_1 = arith.constant 0 : i32
    %c0_i32_2 = arith.constant 0 : i32
    return %c0_i32, %c0_i32_0, %c0_i32_1 : i32, i32, i32
  }
  func.func @transform_15(%arg0: i32) -> (i32, i32, i32) {
    %c0_i32 = arith.constant 0 : i32
    %c0_i32_0 = arith.constant 0 : i32
    %c0_i32_1 = arith.constant 0 : i32
    %c0_i32_2 = arith.constant 0 : i32
    return %c0_i32, %c0_i32_0, %c0_i32_1 : i32, i32, i32
  }
  func.func @transform_16(%arg0: i32) -> (i32, i32, i32) {
    %c0_i32 = arith.constant 0 : i32
    %c0_i32_0 = arith.constant 0 : i32
    %c0_i32_1 = arith.constant 0 : i32
    return %arg0, %c0_i32, %c0_i32_0 : i32, i32, i32
  }
}

</mosaic_0001>

<llo_original>
// kernel: lfe3_forward.1
$region0: #{lfe3_forward.1}
  #allocation0 [shape = 'u32[]', space=smem, size = 0x4, offset = 0x4, fixed_abs, tag = 'smem constant byte address 0x4 - core index']
  #allocation1 [shape = 'u32[144,128]{1,0:T(1,128)}', space=vmem, size = 0x12000, scoped, tag = 'internal scratch']
  #allocation2 [shape = 'f32[32,401]{1,0:T(8,128)}', space=vmem, size = 0x10000, scoped, tag = 'scratch operand']
  %s0 = inlined_call_operand.vmem [shape: f32[2,18,256], index: 0, kind: input, shape index: {}]
  %s1 = inlined_call_operand.vmem [shape: f32[2,256], index: 1, kind: input, shape index: {}]
  %s2 = inlined_call_operand.vmem [shape: f32[3,64,18], index: 2, kind: input, shape index: {}]
  %s3 = inlined_call_operand.vmem [shape: f32[3,64,1], index: 3, kind: input, shape index: {}]
  %s4 = inlined_call_operand.vmem [shape: f32[3,16,9], index: 4, kind: input, shape index: {}]
  %s5 = inlined_call_operand.vmem [shape: f32[3,16,1], index: 5, kind: input, shape index: {}]
  %s6 = inlined_call_operand.vmem [shape: f32[3,32,9], index: 6, kind: input, shape index: {}]
  %s7 = inlined_call_operand.vmem [shape: f32[3,16,32], index: 7, kind: input, shape index: {}]
  %s8 = inlined_call_operand.vmem [shape: f32[3,16,1], index: 8, kind: input, shape index: {}]
  %s9 = inlined_call_operand.vmem [shape: f32[3,32,9], index: 9, kind: input, shape index: {}]
  %s10 = inlined_call_operand.vmem [shape: f32[3,16,32], index: 10, kind: input, shape index: {}]
  %s11 = inlined_call_operand.vmem [shape: f32[3,16,1], index: 11, kind: input, shape index: {}]
  %s12 = inlined_call_operand.vmem [shape: f32[3,4,18,16], index: 12, kind: input, shape index: {}]
  %s13 = inlined_call_operand.vmem [shape: f32[3,18,1], index: 13, kind: input, shape index: {}]
  %s14 = inlined_call_operand.vmem [shape: f32[3,18,2], index: 14, kind: input, shape index: {}]
  %s15 = inlined_call_operand.vmem [shape: f32[3,18,2], index: 15, kind: input, shape index: {}]
  %s16 = inlined_call_operand.vmem [shape: f32[2,18,256], index: 16, kind: output, shape index: {}]
  %s17 = sld [smem:[#allocation0]]
  $region97: #{lfe3_forward.1} parent=0
    _
  %s19 = ssub.s32 1, %s17
  %s20 = scalar_select 0, %s19, %s17
  loop: start=0, step=1, limit=4
  $region2: #{lfe3_forward.1} parent=0 // loop_pre_header
    _
  $region3: #{lfe3_forward.1} parent=0 // loop_header
    %s22 = sphi 0, %s26
    %p23 = scmp.ge.s32.totalorder %s22, 4
    %s32 = sphi 0, %s34
    %s35 = sphi 0, %s32
    %s36 = sphi 0, %s35
    %s52 = sphi 0, %s36
    %s56 = sphi 0, %s56
    %s58 = sphi 0, %s56
    %s59 = sphi 0, %s58
    %s73 = sphi 0, %s59
    %s77 = sphi 0, %s77
    %s79 = sphi 0, %s77
    %s80 = sphi 0, %s79
    %s94 = sphi 0, %s80
    %s98 = sphi 0, %s98
    %s100 = sphi 0, %s98
    %s101 = sphi 0, %s100
    %s115 = sphi 0, %s101
    %s119 = sphi 0, %s119
    %s121 = sphi 0, %s119
    %s122 = sphi 0, %s121
    %s136 = sphi 0, %s122
    %s140 = sphi 0, %s140
    %s142 = sphi 0, %s140
    %s143 = sphi 0, %s142
    %s157 = sphi 0, %s143
    %s161 = sphi 0, %s161
    %s163 = sphi 0, %s161
    %s164 = sphi 0, %s163
    %s178 = sphi 0, %s164
    %s182 = sphi 0, %s182
    %s184 = sphi 0, %s182
    %s185 = sphi 0, %s184
    %s199 = sphi 0, %s185
    %s203 = sphi 0, %s203
    %s205 = sphi 0, %s203
    %s206 = sphi 0, %s205
    %s220 = sphi 0, %s206
    %s224 = sphi 0, %s224
    %s226 = sphi 0, %s224
    %s227 = sphi 0, %s226
    %s241 = sphi 0, %s227
    %s245 = sphi 0, %s245
    %s247 = sphi 0, %s245
    %s248 = sphi 0, %s247
    %s262 = sphi 0, %s248
    %s266 = sphi 0, %s266
    %s268 = sphi 0, %s266
    %s269 = sphi 0, %s268
    %s283 = sphi 0, %s269
    %s287 = sphi 0, %s287
    %s289 = sphi 0, %s287
    %s290 = sphi 0, %s289
    %s304 = sphi 0, %s290
    %s308 = sphi 0, %s308
    %s310 = sphi 0, %s308
    %s311 = sphi 0, %s310
    %s325 = sphi 0, %s311
    %s329 = sphi 0, %s329
    %s331 = sphi 0, %s329
    %s332 = sphi 0, %s331
    %s346 = sphi 0, %s332
    %s350 = sphi 0, %s350
    %s352 = sphi 0, %s350
    %s353 = sphi 0, %s352
    %s367 = sphi 0, %s353
    %s373 = sphi 0, %s375
    %s376 = sphi 0, %s373
    %s377 = sphi 0, %s376
    %s393 = sphi 0, %s377
  $region4: #{lfe3_forward.1} parent=0 // loop_header_branch
    %25 = sbr.rel (%p23) target = $region8
  $region5: #{lfe3_forward.1} parent=0 // loop_body
    %s27 = ssub.s32 %s22, 1
    %s28 = ssub.s32 %s22, 2
    %s29 = sadd.s32 %s22, 1
    %s30 = ssub.s32 %s22, %s29
    %p31 = scmp.eq.s32.totalorder %s30, 0
    %s33 = sadd.s32 %s32, 1
    %s34 = scalar_select %p31, %s32, %s33
    %p37 = pneg %p31
    %p38 = scmp.eq.s32.totalorder %s22, 1
    %p39 = por %p37, %p38
    %p40 = scmp.ne.s32.totalorder %s32, %s35
    %p41 = scmp.eq.s32.totalorder %s22, 0
    %p42 = por %p40, %p41
    %p43 = scmp.ne.s32.totalorder %s32, %s35
    %p44 = scmp.eq.s32.totalorder %s27, 1
    %p45 = por %p43, %p44
    %p46 = scmp.ne.s32.totalorder %s35, %s36
    %p47 = scmp.eq.s32.totalorder %s27, 0
    %p48 = por %p46, %p47
    %p49 = scmp.ne.s32.totalorder %s35, %s36
    %p50 = scmp.eq.s32.totalorder %s28, 1
    %p51 = por %p49, %p50
    %p53 = scmp.ne.s32.totalorder %s36, %s52
    %p54 = scmp.eq.s32.totalorder %s28, 0
    %p55 = por %p53, %p54
    %s57 = sadd.s32 %s56, 1
    %p60 = scmp.eq.s32.totalorder %s22, 1
    %p61 = scmp.ne.s32.totalorder %s56, %s58
    %p62 = scmp.eq.s32.totalorder %s22, 0
    %p63 = por %p61, %p62
    %p64 = scmp.ne.s32.totalorder %s56, %s58
    %p65 = scmp.eq.s32.totalorder %s27, 1
    %p66 = por %p64, %p65
    %p67 = scmp.ne.s32.totalorder %s58, %s59
    %p68 = scmp.eq.s32.totalorder %s27, 0
    %p69 = por %p67, %p68
    %p70 = scmp.ne.s32.totalorder %s58, %s59
    %p71 = scmp.eq.s32.totalorder %s28, 1
    %p72 = por %p70, %p71
    %p74 = scmp.ne.s32.totalorder %s59, %s73
    %p75 = scmp.eq.s32.totalorder %s28, 0
    %p76 = por %p74, %p75
    %s78 = sadd.s32 %s77, 1
    %p81 = scmp.eq.s32.totalorder %s22, 1
    %p82 = scmp.ne.s32.totalorder %s77, %s79
    %p83 = scmp.eq.s32.totalorder %s22, 0
    %p84 = por %p82, %p83
    %p85 = scmp.ne.s32.totalorder %s77, %s79
    %p86 = scmp.eq.s32.totalorder %s27, 1
    %p87 = por %p85, %p86
    %p88 = scmp.ne.s32.totalorder %s79, %s80
    %p89 = scmp.eq.s32.totalorder %s27, 0
    %p90 = por %p88, %p89
    %p91 = scmp.ne.s32.totalorder %s79, %s80
    %p92 = scmp.eq.s32.totalorder %s28, 1
    %p93 = por %p91, %p92
    %p95 = scmp.ne.s32.totalorder %s80, %s94
    %p96 = scmp.eq.s32.totalorder %s28, 0
    %p97 = por %p95, %p96
    %s99 = sadd.s32 %s98, 1
    %p102 = scmp.eq.s32.totalorder %s22, 1
    %p103 = scmp.ne.s32.totalorder %s98, %s100
    %p104 = scmp.eq.s32.totalorder %s22, 0
    %p105 = por %p103, %p104
    %p106 = scmp.ne.s32.totalorder %s98, %s100
    %p107 = scmp.eq.s32.totalorder %s27, 1
    %p108 = por %p106, %p107
    %p109 = scmp.ne.s32.totalorder %s100, %s101
    %p110 = scmp.eq.s32.totalorder %s27, 0
    %p111 = por %p109, %p110
    %p112 = scmp.ne.s32.totalorder %s100, %s101
    %p113 = scmp.eq.s32.totalorder %s28, 1
    %p114 = por %p112, %p113
    %p116 = scmp.ne.s32.totalorder %s101, %s115
    %p117 = scmp.eq.s32.totalorder %s28, 0
    %p118 = por %p116, %p117
    %s120 = sadd.s32 %s119, 1
    %p123 = scmp.eq.s32.totalorder %s22, 1
    %p124 = scmp.ne.s32.totalorder %s119, %s121
    %p125 = scmp.eq.s32.totalorder %s22, 0
    %p126 = por %p124, %p125
    %p127 = scmp.ne.s32.totalorder %s119, %s121
    %p128 = scmp.eq.s32.totalorder %s27, 1
    %p129 = por %p127, %p128
    %p130 = scmp.ne.s32.totalorder %s121, %s122
    %p131 = scmp.eq.s32.totalorder %s27, 0
    %p132 = por %p130, %p131
    %p133 = scmp.ne.s32.totalorder %s121, %s122
    %p134 = scmp.eq.s32.totalorder %s28, 1
    %p135 = por %p133, %p134
    %p137 = scmp.ne.s32.totalorder %s122, %s136
    %p138 = scmp.eq.s32.totalorder %s28, 0
    %p139 = por %p137, %p138
    %s141 = sadd.s32 %s140, 1
    %p144 = scmp.eq.s32.totalorder %s22, 1
    %p145 = scmp.ne.s32.totalorder %s140, %s142
    %p146 = scmp.eq.s32.totalorder %s22, 0
    %p147 = por %p145, %p146
    %p148 = scmp.ne.s32.totalorder %s140, %s142
    %p149 = scmp.eq.s32.totalorder %s27, 1
    %p150 = por %p148, %p149
    %p151 = scmp.ne.s32.totalorder %s142, %s143
    %p152 = scmp.eq.s32.totalorder %s27, 0
    %p153 = por %p151, %p152
    %p154 = scmp.ne.s32.totalorder %s142, %s143
    %p155 = scmp.eq.s32.totalorder %s28, 1
    %p156 = por %p154, %p155
    %p158 = scmp.ne.s32.totalorder %s143, %s157
    %p159 = scmp.eq.s32.totalorder %s28, 0
    %p160 = por %p158, %p159
    %s162 = sadd.s32 %s161, 1
    %p165 = scmp.eq.s32.totalorder %s22, 1
    %p166 = scmp.ne.s32.totalorder %s161, %s163
    %p167 = scmp.eq.s32.totalorder %s22, 0
    %p168 = por %p166, %p167
    %p169 = scmp.ne.s32.totalorder %s161, %s163
    %p170 = scmp.eq.s32.totalorder %s27, 1
    %p171 = por %p169, %p170
    %p172 = scmp.ne.s32.totalorder %s163, %s164
    %p173 = scmp.eq.s32.totalorder %s27, 0
    %p174 = por %p172, %p173
    %p175 = scmp.ne.s32.totalorder %s163, %s164
    %p176 = scmp.eq.s32.totalorder %s28, 1
    %p177 = por %p175, %p176
    %p179 = scmp.ne.s32.totalorder %s164, %s178
    %p180 = scmp.eq.s32.totalorder %s28, 0
    %p181 = por %p179, %p180
    %s183 = sadd.s32 %s182, 1
    %p186 = scmp.eq.s32.totalorder %s22, 1
    %p187 = scmp.ne.s32.totalorder %s182, %s184
    %p188 = scmp.eq.s32.totalorder %s22, 0
    %p189 = por %p187, %p188
    %p190 = scmp.ne.s32.totalorder %s182, %s184
    %p191 = scmp.eq.s32.totalorder %s27, 1
    %p192 = por %p190, %p191
    %p193 = scmp.ne.s32.totalorder %s184, %s185
    %p194 = scmp.eq.s32.totalorder %s27, 0
    %p195 = por %p193, %p194
    %p196 = scmp.ne.s32.totalorder %s184, %s185
    %p197 = scmp.eq.s32.totalorder %s28, 1
    %p198 = por %p196, %p197
    %p200 = scmp.ne.s32.totalorder %s185, %s199
    %p201 = scmp.eq.s32.totalorder %s28, 0
    %p202 = por %p200, %p201
    %s204 = sadd.s32 %s203, 1
    %p207 = scmp.eq.s32.totalorder %s22, 1
    %p208 = scmp.ne.s32.totalorder %s203, %s205
    %p209 = scmp.eq.s32.totalorder %s22, 0
    %p210 = por %p208, %p209
    %p211 = scmp.ne.s32.totalorder %s203, %s205
    %p212 = scmp.eq.s32.totalorder %s27, 1
    %p213 = por %p211, %p212
    %p214 = scmp.ne.s32.totalorder %s205, %s206
    %p215 = scmp.eq.s32.totalorder %s27, 0
    %p216 = por %p214, %p215
    %p217 = scmp.ne.s32.totalorder %s205, %s206
    %p218 = scmp.eq.s32.totalorder %s28, 1
    %p219 = por %p217, %p218
    %p221 = scmp.ne.s32.totalorder %s206, %s220
    %p222 = scmp.eq.s32.totalorder %s28, 0
    %p223 = por %p221, %p222
    %s225 = sadd.s32 %s224, 1
    %p228 = scmp.eq.s32.totalorder %s22, 1
    %p229 = scmp.ne.s32.totalorder %s224, %s226
    %p230 = scmp.eq.s32.totalorder %s22, 0
    %p231 = por %p229, %p230
    %p232 = scmp.ne.s32.totalorder %s224, %s226
    %p233 = scmp.eq.s32.totalorder %s27, 1
    %p234 = por %p232, %p233
    %p235 = scmp.ne.s32.totalorder %s226, %s227
    %p236 = scmp.eq.s32.totalorder %s27, 0
    %p237 = por %p235, %p236
    %p238 = scmp.ne.s32.totalorder %s226, %s227
    %p239 = scmp.eq.s32.totalorder %s28, 1
    %p240 = por %p238, %p239
    %p242 = scmp.ne.s32.totalorder %s227, %s241
    %p243 = scmp.eq.s32.totalorder %s28, 0
    %p244 = por %p242, %p243
    %s246 = sadd.s32 %s245, 1
    %p249 = scmp.eq.s32.totalorder %s22, 1
    %p250 = scmp.ne.s32.totalorder %s245, %s247
    %p251 = scmp.eq.s32.totalorder %s22, 0
    %p252 = por %p250, %p251
    %p253 = scmp.ne.s32.totalorder %s245, %s247
    %p254 = scmp.eq.s32.totalorder %s27, 1
    %p255 = por %p253, %p254
    %p256 = scmp.ne.s32.totalorder %s247, %s248
    %p257 = scmp.eq.s32.totalorder %s27, 0
    %p258 = por %p256, %p257
    %p259 = scmp.ne.s32.totalorder %s247, %s248
    %p260 = scmp.eq.s32.totalorder %s28, 1
    %p261 = por %p259, %p260
    %p263 = scmp.ne.s32.totalorder %s248, %s262
    %p264 = scmp.eq.s32.totalorder %s28, 0
    %p265 = por %p263, %p264
    %s267 = sadd.s32 %s266, 1
    %p270 = scmp.eq.s32.totalorder %s22, 1
    %p271 = scmp.ne.s32.totalorder %s266, %s268
    %p272 = scmp.eq.s32.totalorder %s22, 0
    %p273 = por %p271, %p272
    %p274 = scmp.ne.s32.totalorder %s266, %s268
    %p275 = scmp.eq.s32.totalorder %s27, 1
    %p276 = por %p274, %p275
    %p277 = scmp.ne.s32.totalorder %s268, %s269
    %p278 = scmp.eq.s32.totalorder %s27, 0
    %p279 = por %p277, %p278
    %p280 = scmp.ne.s32.totalorder %s268, %s269
    %p281 = scmp.eq.s32.totalorder %s28, 1
    %p282 = por %p280, %p281
    %p284 = scmp.ne.s32.totalorder %s269, %s283
    %p285 = scmp.eq.s32.totalorder %s28, 0
    %p286 = por %p284, %p285
    %s288 = sadd.s32 %s287, 1
    %p291 = scmp.eq.s32.totalorder %s22, 1
    %p292 = scmp.ne.s32.totalorder %s287, %s289
    %p293 = scmp.eq.s32.totalorder %s22, 0
    %p294 = por %p292, %p293
    %p295 = scmp.ne.s32.totalorder %s287, %s289
    %p296 = scmp.eq.s32.totalorder %s27, 1
    %p297 = por %p295, %p296
    %p298 = scmp.ne.s32.totalorder %s289, %s290
    %p299 = scmp.eq.s32.totalorder %s27, 0
    %p300 = por %p298, %p299
    %p301 = scmp.ne.s32.totalorder %s289, %s290
    %p302 = scmp.eq.s32.totalorder %s28, 1
    %p303 = por %p301, %p302
    %p305 = scmp.ne.s32.totalorder %s290, %s304
    %p306 = scmp.eq.s32.totalorder %s28, 0
    %p307 = por %p305, %p306
    %s309 = sadd.s32 %s308, 1
    %p312 = scmp.eq.s32.totalorder %s22, 1
    %p313 = scmp.ne.s32.totalorder %s308, %s310
    %p314 = scmp.eq.s32.totalorder %s22, 0
    %p315 = por %p313, %p314
    %p316 = scmp.ne.s32.totalorder %s308, %s310
    %p317 = scmp.eq.s32.totalorder %s27, 1
    %p318 = por %p316, %p317
    %p319 = scmp.ne.s32.totalorder %s310, %s311
    %p320 = scmp.eq.s32.totalorder %s27, 0
    %p321 = por %p319, %p320
    %p322 = scmp.ne.s32.totalorder %s310, %s311
    %p323 = scmp.eq.s32.totalorder %s28, 1
    %p324 = por %p322, %p323
    %p326 = scmp.ne.s32.totalorder %s311, %s325
    %p327 = scmp.eq.s32.totalorder %s28, 0
    %p328 = por %p326, %p327
    %s330 = sadd.s32 %s329, 1
    %p333 = scmp.eq.s32.totalorder %s22, 1
    %p334 = scmp.ne.s32.totalorder %s329, %s331
    %p335 = scmp.eq.s32.totalorder %s22, 0
    %p336 = por %p334, %p335
    %p337 = scmp.ne.s32.totalorder %s329, %s331
    %p338 = scmp.eq.s32.totalorder %s27, 1
    %p339 = por %p337, %p338
    %p340 = scmp.ne.s32.totalorder %s331, %s332
    %p341 = scmp.eq.s32.totalorder %s27, 0
    %p342 = por %p340, %p341
    %p343 = scmp.ne.s32.totalorder %s331, %s332
    %p344 = scmp.eq.s32.totalorder %s28, 1
    %p345 = por %p343, %p344
    %p347 = scmp.ne.s32.totalorder %s332, %s346
    %p348 = scmp.eq.s32.totalorder %s28, 0
    %p349 = por %p347, %p348
    %s351 = sadd.s32 %s350, 1
    %p354 = scmp.eq.s32.totalorder %s22, 1
    %p355 = scmp.ne.s32.totalorder %s350, %s352
    %p356 = scmp.eq.s32.totalorder %s22, 0
    %p357 = por %p355, %p356
    %p358 = scmp.ne.s32.totalorder %s350, %s352
    %p359 = scmp.eq.s32.totalorder %s27, 1
    %p360 = por %p358, %p359
    %p361 = scmp.ne.s32.totalorder %s352, %s353
    %p362 = scmp.eq.s32.totalorder %s27, 0
    %p363 = por %p361, %p362
    %p364 = scmp.ne.s32.totalorder %s352, %s353
    %p365 = scmp.eq.s32.totalorder %s28, 1
    %p366 = por %p364, %p365
    %p368 = scmp.ne.s32.totalorder %s353, %s367
    %p369 = scmp.eq.s32.totalorder %s28, 0
    %p370 = por %p368, %p369
    %s371 = ssub.s32 %s22, %s29
    %p372 = scmp.eq.s32.totalorder %s371, 0
    %s374 = sadd.s32 %s373, 1
    %s375 = scalar_select %p372, %s373, %s374
    %p378 = pneg %p372
    %p379 = scmp.eq.s32.totalorder %s22, 1
    %p380 = por %p378, %p379
    %p381 = scmp.ne.s32.totalorder %s373, %s376
    %p382 = scmp.eq.s32.totalorder %s22, 0
    %p383 = por %p381, %p382
    %p384 = scmp.ne.s32.totalorder %s373, %s376
    %p385 = scmp.eq.s32.totalorder %s27, 1
    %p386 = por %p384, %p385
    %p387 = scmp.ne.s32.totalorder %s376, %s377
    %p388 = scmp.eq.s32.totalorder %s27, 0
    %p389 = por %p387, %p388
    %p390 = scmp.ne.s32.totalorder %s376, %s377
    %p391 = scmp.eq.s32.totalorder %s28, 1
    %p392 = por %p390, %p391
    %p394 = scmp.ne.s32.totalorder %s377, %s393
    %p395 = scmp.eq.s32.totalorder %s28, 0
    %p396 = por %p394, %p395
    %p397 = scmp.le.s32.totalorder 1, %s22
    %p398 = scmp.lt.s32.totalorder %s22, 3
    %p399 = pnand %p397, %p398
    %p400 = pneg %p399
    // Predicated region
    $region9: #{lfe3_forward.1} parent=5 // pred_check
      _
    $region10: #{lfe3_forward.1} parent=5 // pred_check_branch
      %402 = sbr.rel (%p399) target = $region12
    $region11: #{lfe3_forward.1} parent=5 // pred_region
      %s403 = ssub.s32 %s22, 1
      // Predicated region
      $region13: #{lfe3_forward.1} parent=11 // pred_check
        %p404 = pneg %p69
      $region14: #{lfe3_forward.1} parent=11 // pred_check_branch
        %406 = sbr.rel (%p404) target = $region16
      $region15: #{lfe3_forward.1} parent=11 // pred_region
        _
      $region16: #{lfe3_forward.1} parent=11 // pred_fallthru
        _
      // Predicated region
      $region17: #{lfe3_forward.1} parent=11 // pred_check
        %p407 = pneg %p90
      $region18: #{lfe3_forward.1} parent=11 // pred_check_branch
        %409 = sbr.rel (%p407) target = $region20
      $region19: #{lfe3_forward.1} parent=11 // pred_region
        _
      $region20: #{lfe3_forward.1} parent=11 // pred_fallthru
        _
      // Predicated region
      $region21: #{lfe3_forward.1} parent=11 // pred_check
        %p410 = pneg %p111
      $region22: #{lfe3_forward.1} parent=11 // pred_check_branch
        %412 = sbr.rel (%p410) target = $region24
      $region23: #{lfe3_forward.1} parent=11 // pred_region
        _
      $region24: #{lfe3_forward.1} parent=11 // pred_fallthru
        _
      // Predicated region
      $region25: #{lfe3_forward.1} parent=11 // pred_check
        %p413 = pneg %p132
      $region26: #{lfe3_forward.1} parent=11 // pred_check_branch
        %415 = sbr.rel (%p413) target = $region28
      $region27: #{lfe3_forward.1} parent=11 // pred_region
        _
      $region28: #{lfe3_forward.1} parent=11 // pred_fallthru
        _
      // Predicated region
      $region29: #{lfe3_forward.1} parent=11 // pred_check
        %p416 = pneg %p153
      $region30: #{lfe3_forward.1} parent=11 // pred_check_branch
        %418 = sbr.rel (%p416) target = $region32
      $region31: #{lfe3_forward.1} parent=11 // pred_region
        _
      $region32: #{lfe3_forward.1} parent=11 // pred_fallthru
        _
      // Predicated region
      $region33: #{lfe3_forward.1} parent=11 // pred_check
        %p419 = pneg %p174
      $region34: #{lfe3_forward.1} parent=11 // pred_check_branch
        %421 = sbr.rel (%p419) target = $region36
      $region35: #{lfe3_forward.1} parent=11 // pred_region
        _
      $region36: #{lfe3_forward.1} parent=11 // pred_fallthru
        _
      // Predicated region
      $region37: #{lfe3_forward.1} parent=11 // pred_check
        %p422 = pneg %p195
      $region38: #{lfe3_forward.1} parent=11 // pred_check_branch
        %424 = sbr.rel (%p422) target = $region40
      $region39: #{lfe3_forward.1} parent=11 // pred_region
        _
      $region40: #{lfe3_forward.1} parent=11 // pred_fallthru
        _
      // Predicated region
      $region41: #{lfe3_forward.1} parent=11 // pred_check
        %p425 = pneg %p216
      $region42: #{lfe3_forward.1} parent=11 // pred_check_branch
        %427 = sbr.rel (%p425) target = $region44
      $region43: #{lfe3_forward.1} parent=11 // pred_region
        _
      $region44: #{lfe3_forward.1} parent=11 // pred_fallthru
        _
      // Predicated region
      $region45: #{lfe3_forward.1} parent=11 // pred_check
        %p428 = pneg %p237
      $region46: #{lfe3_forward.1} parent=11 // pred_check_branch
        %430 = sbr.rel (%p428) target = $region48
      $region47: #{lfe3_forward.1} parent=11 // pred_region
        _
      $region48: #{lfe3_forward.1} parent=11 // pred_fallthru
        _
      // Predicated region
      $region49: #{lfe3_forward.1} parent=11 // pred_check
        %p431 = pneg %p258
      $region50: #{lfe3_forward.1} parent=11 // pred_check_branch
        %433 = sbr.rel (%p431) target = $region52
      $region51: #{lfe3_forward.1} parent=11 // pred_region
        _
      $region52: #{lfe3_forward.1} parent=11 // pred_fallthru
        _
      // Predicated region
      $region53: #{lfe3_forward.1} parent=11 // pred_check
        %p434 = pneg %p279
      $region54: #{lfe3_forward.1} parent=11 // pred_check_branch
        %436 = sbr.rel (%p434) target = $region56
      $region55: #{lfe3_forward.1} parent=11 // pred_region
        _
      $region56: #{lfe3_forward.1} parent=11 // pred_fallthru
        _
      // Predicated region
      $region57: #{lfe3_forward.1} parent=11 // pred_check
        %p437 = pneg %p300
      $region58: #{lfe3_forward.1} parent=11 // pred_check_branch
        %439 = sbr.rel (%p437) target = $region60
      $region59: #{lfe3_forward.1} parent=11 // pred_region
        _
      $region60: #{lfe3_forward.1} parent=11 // pred_fallthru
        _
      // Predicated region
      $region61: #{lfe3_forward.1} parent=11 // pred_check
        %p440 = pneg %p321
      $region62: #{lfe3_forward.1} parent=11 // pred_check_branch
        %442 = sbr.rel (%p440) target = $region64
      $region63: #{lfe3_forward.1} parent=11 // pred_region
        _
      $region64: #{lfe3_forward.1} parent=11 // pred_fallthru
        _
      // Predicated region
      $region65: #{lfe3_forward.1} parent=11 // pred_check
        %p443 = pneg %p342
      $region66: #{lfe3_forward.1} parent=11 // pred_check_branch
        %445 = sbr.rel (%p443) target = $region68
      $region67: #{lfe3_forward.1} parent=11 // pred_region
        _
      $region68: #{lfe3_forward.1} parent=11 // pred_fallthru
        _
      // Predicated region
      $region69: #{lfe3_forward.1} parent=11 // pred_check
        %p446 = pneg %p363
      $region70: #{lfe3_forward.1} parent=11 // pred_check_branch
        %448 = sbr.rel (%p446) target = $region72
      $region71: #{lfe3_forward.1} parent=11 // pred_region
        _
      $region72: #{lfe3_forward.1} parent=11 // pred_fallthru
        _
    $region12: #{lfe3_forward.1} parent=5 // pred_fallthru
      _
    %p449 = scmp.lt.s32.totalorder %s22, 2
    // Predicated region
    $region73: #{lfe3_forward.1} parent=5 // pred_check
      %p450 = pneg %p449
    $region74: #{lfe3_forward.1} parent=5 // pred_check_branch
      %452 = sbr.rel (%p450) target = $region76
    $region75: #{lfe3_forward.1} parent=5 // pred_region
      // Predicated region
      $region77: #{lfe3_forward.1} parent=75 // pred_check
        %p453 = pneg %p42
      $region78: #{lfe3_forward.1} parent=75 // pred_check_branch
        %455 = sbr.rel (%p453) target = $region80
      $region79: #{lfe3_forward.1} parent=75 // pred_region
        %p456 = scmp.lt.s32.totalorder %s22, 1
        %s457 = scalar_select %p456, %s22, 1
        %s458 = smul.addr %s457, 6
        %s459 = smul.addr %s458, 8
        %s460 = scalar_lea.vmem %s0, %s459
      $region80: #{lfe3_forward.1} parent=75 // pred_fallthru
        _
    $region76: #{lfe3_forward.1} parent=5 // pred_fallthru
      _
    %p461 = scmp.le.s32.totalorder 1, %s22
    %p462 = scmp.lt.s32.totalorder %s22, 3
    %p463 = pnand %p461, %p462
    %p464 = pneg %p463
    // Predicated region
    $region81: #{lfe3_forward.1} parent=5 // pred_check
      _
    $region82: #{lfe3_forward.1} parent=5 // pred_check_branch
      %466 = sbr.rel (%p463) target = $region84
    $region83: #{lfe3_forward.1} parent=5 // pred_region
      %s467 = ssub.s32 %s22, 1
      %p468 = scmp.lt.s32.totalorder %s27, 1
      %s469 = scalar_select %p468, %s27, 1
      %s470 = smul.addr %s469, 6
      %s471 = smul.addr %s470, 8
      %s472 = scalar_lea.vmem %s0, %s471
      %p473 = pneg %p48
      %p474 = pneg %p45
      %p475 = pneg %p69
      %p476 = pneg %p66
      %p477 = pneg %p90
      %p478 = pneg %p87
      %p479 = pneg %p111
      %p480 = pneg %p108
      %p481 = pneg %p132
      %p482 = pneg %p129
      %p483 = pneg %p153
      %p484 = pneg %p150
      %p485 = pneg %p174
      %p486 = pneg %p171
      %p487 = pneg %p195
      %p488 = pneg %p192
      %p489 = pneg %p216
      %p490 = pneg %p213
      %p491 = pneg %p237
      %p492 = pneg %p234
      %p493 = pneg %p258
      %p494 = pneg %p255
      %p495 = pneg %p279
      %p496 = pneg %p276
      %p497 = pneg %p300
      %p498 = pneg %p297
      %p499 = pneg %p321
      %p500 = pneg %p318
      %p501 = pneg %p342
      %p502 = pneg %p339
      %p503 = pneg %p363
      %p504 = pneg %p360
      %p505 = pneg %p389
      %p506 = pneg %p386
      %p507 = scmp.lt.s32.totalorder %s27, 1
      %s508 = scalar_select %p507, %s27, 1
      %s509 = smul.addr %s508, 6
      %s510 = smul.addr %s509, 8
      %s511 = scalar_lea.vmem %s16, %s510
      %p512 = scmp.lt.s32.totalorder %s27, 1
      %s513 = scalar_select %p512, %s27, 1
      %s514 = smul.addr %s513, 6
      %s515 = smul.addr %s514, 8
      %s516 = scalar_lea.vmem %s0, %s515
      %p517 = scmp.lt.s32.totalorder %s27, 1
      %s518 = scalar_select %p517, %s27, 1
      %s519 = smul.addr %s518, 6
      %s520 = smul.addr %s519, 8
      %s521 = scalar_lea.vmem %s16, %s520
      %v522 = vld [vmem:[%s1] ss:$2 sm:$0x3]
      %s523 = scalar_lea.vmem %s1, 1
      %v524 = vld [vmem:[%s523] ss:$2 sm:$0x3]
      %vm525 = vcmask 1048440
      %526 = vst.msk [vmem:[#allocation2] sm:$0xff] %vm525, 0.0
      %527 = vst.msk [vmem:[#allocation2 + $0x20] sm:$0xff] %vm525, 0.0
      %528 = vst.msk [vmem:[#allocation2 + $0x40] sm:$0xff] %vm525, 0.0
      %529 = vst.msk [vmem:[#allocation2 + $0x60] sm:$0xff] %vm525, 0.0
      %vm530 = vcmask 138240
      %531 = vst.msk [vmem:[#allocation2 + $0x18] sm:$0xff] %vm530, 0.0
      %532 = vst.msk [vmem:[#allocation2 + $0x38] sm:$0xff] %vm530, 0.0
      %533 = vst.msk [vmem:[#allocation2 + $0x58] sm:$0xff] %vm530, 0.0
      %534 = vst.msk [vmem:[#allocation2 + $0x78] sm:$0xff] %vm530, 0.0
      %v535 = vld [vmem:[%s516] sm:$0xff]
      %v536 = vld [vmem:[%s516 + $0x8] sm:$0xff]
      %v537 = vld [vmem:[%s516 + $0x10] sm:$0xff]
      %v538 = vld [vmem:[%s516 + $0x18] sm:$0xff]
      %v539 = vld [vmem:[%s516 + $0x20] sm:$0x3]
      %v540 = vld [vmem:[%s516 + $0x28] sm:$0x3]
      %v541 = vld [vmem:[%s2] sm:$0xff]
      %v542 = vld [vmem:[%s2 + $0x8] sm:$0xff]
      %v543 = vld [vmem:[%s2 + $0x10] sm:$0xff]
      %v544 = vld [vmem:[%s2 + $0x18] sm:$0xff]
      %v545 = vld [vmem:[%s2 + $0x20] sm:$0xff]
      %v546 = vld [vmem:[%s2 + $0x28] sm:$0xff]
      %v547 = vld [vmem:[%s2 + $0x30] sm:$0xff]
      %v548 = vld [vmem:[%s2 + $0x38] sm:$0xff]
      %v549 = vld [vmem:[%s3] sm:$0xff]
      %v550 = vld [vmem:[%s3 + $0x8] sm:$0xff]
      %v551 = vld [vmem:[%s3 + $0x10] sm:$0xff]
      %v552 = vld [vmem:[%s3 + $0x18] sm:$0xff]
      %v553 = vld [vmem:[%s3 + $0x20] sm:$0xff]
      %v554 = vld [vmem:[%s3 + $0x28] sm:$0xff]
      %v555 = vld [vmem:[%s3 + $0x30] sm:$0xff]
      %v556 = vld [vmem:[%s3 + $0x38] sm:$0xff]
      %558 = vset.pattern.permute.xlu0 0
      %559 = vperm.xlu0 %558, %v549
      %v560 = vpop.permute.xlu0 %559
      %563 = vset.pattern.permute.xlu0 0
      %564 = vperm.xlu0 %563, %v550
      %v565 = vpop.permute.xlu0 %564
      %568 = vset.pattern.permute.xlu0 0
      %569 = vperm.xlu0 %568, %v551
      %v570 = vpop.permute.xlu0 %569
      %573 = vset.pattern.permute.xlu0 0
      %574 = vperm.xlu0 %573, %v552
      %v575 = vpop.permute.xlu0 %574
      %578 = vset.pattern.permute.xlu0 0
      %579 = vperm.xlu0 %578, %v553
      %v580 = vpop.permute.xlu0 %579
      %583 = vset.pattern.permute.xlu0 0
      %584 = vperm.xlu0 %583, %v554
      %v585 = vpop.permute.xlu0 %584
      %588 = vset.pattern.permute.xlu0 0
      %589 = vperm.xlu0 %588, %v555
      %v590 = vpop.permute.xlu0 %589
      %593 = vset.pattern.permute.xlu0 0
      %594 = vperm.xlu0 %593, %v556
      %v595 = vpop.permute.xlu0 %594
      %vm597 = vcmask 146432
      %v599 = vsel %vm597, %v541, 0
      %v602 = vsel %vm597, %v542, 0
      %v605 = vsel %vm597, %v543, 0
      %v608 = vsel %vm597, %v544, 0
      %v611 = vsel %vm597, %v545, 0
      %v614 = vsel %vm597, %v546, 0
      %v617 = vsel %vm597, %v547, 0
      %v620 = vsel %vm597, %v548, 0
      %vm622 = vcmask 1041408
      %v624 = vsel %vm622, %v539, 0
      %v627 = vsel %vm622, %v540, 0
      %629 = vmatprep.subr.mxu0 %v536
      %630 = vmatpush1.msra.mxu0 %v535
      %631 = vmatprep.subr.mxu0 %v538
      %632 = vmatpush1.msra.mxu0 %v537
      %633 = vmatprep.subr.mxu0 %v627
      %634 = vmatpush1.msra.mxu0 %v624
      %635 = vmatprep.subr.mxu0 0.0
      %636 = vmatpush1.msra.mxu0 0.0
      %637 = vmatprep.subr.mxu0 0.0
      %638 = vmatpush1.msra.mxu0 0.0
      %639 = vmatprep.subr.mxu0 0.0
      %640 = vmatpush1.msra.mxu0 0.0
      %641 = vmatprep.subr.mxu0 0.0
      %642 = vmatpush1.msra.mxu0 0.0
      %643 = vmatprep.subr.mxu0 0.0
      %644 = vmatpush1.msra.mxu0 0.0
      %645 = vmatprep.subr.mxu0 0.0
      %646 = vmatpush1.msra.mxu0 0.0
      %647 = vmatprep.subr.mxu0 0.0
      %648 = vmatpush1.msra.mxu0 0.0
      %649 = vmatprep.subr.mxu0 0.0
      %650 = vmatpush1.msra.mxu0 0.0
      %651 = vmatprep.subr.mxu0 0.0
      %652 = vmatpush1.msra.mxu0 0.0
      %653 = vmatprep.subr.mxu0 0.0
      %654 = vmatpush1.msra.mxu0 0.0
      %655 = vmatprep.subr.mxu0 0.0
      %656 = vmatpush1.msra.mxu0 0.0
      %657 = vmatprep.subr.mxu0 0.0
      %658 = vmatpush1.msra.mxu0 0.0
      %659 = vmatprep.subr.mxu0 0.0
      %660 = vmatpush1.msra.mxu0 0.0
      %661 = vmatprep.subr.mxu0 0.0
      %662 = vmatpush1.msra.mxu0 0.0
      %663 = vmatprep.subr.mxu0 0.0
      %664 = vmatpush1.msra.mxu0 0.0
      %665 = vmatprep.subr.mxu0 0.0
      %666 = vmatpush1.msra.mxu0 0.0
      %667 = vmatprep.subr.mxu0 0.0
      %668 = vmatpush1.msra.mxu0 0.0
      %669 = vmatprep.subr.mxu0 0.0
      %670 = vmatpush1.msra.mxu0 0.0
      %671 = vmatprep.subr.mxu0 0.0
      %672 = vmatpush1.msra.mxu0 0.0
      %673 = vmatprep.subr.mxu0 0.0
      %674 = vmatpush1.msra.mxu0 0.0
      %675 = vmatprep.subr.mxu0 0.0
      %676 = vmatpush1.msra.mxu0 0.0
      %677 = vmatprep.subr.mxu0 0.0
      %678 = vmatpush1.msra.mxu0 0.0
      %679 = vmatprep.subr.mxu0 0.0
      %680 = vmatpush1.msra.mxu0 0.0
      %681 = vmatprep.subr.mxu0 0.0
      %682 = vmatpush1.msra.mxu0 0.0
      %683 = vmatprep.subr.mxu0 0.0
      %684 = vmatpush1.msra.mxu0 0.0
      %685 = vmatprep.subr.mxu0 0.0
      %686 = vmatpush1.msra.mxu0 0.0
      %687 = vmatprep.subr.mxu0 0.0
      %688 = vmatpush1.msra.mxu0 0.0
      %689 = vmatprep.subr.mxu0 0.0
      %690 = vmatpush1.msra.mxu0 0.0
      %691 = vmatprep.subr.mxu0 0.0
      %692 = vmatpush1.msra.mxu0 0.0
      %693 = vmatprep.mubr.f32.mxu0 0.0
      %694 = vmatmul.mubr.f32.gmra.mrb[0].mxu0 %v599
      %v695 = vpop.f32.mrb[0].mxu0
      %v696 = vadd.f32 %v560, %v695
      %v697 = vpop.f32.mrb[0].mxu0
      %v698 = vadd.f32 %v560, %v697
      %699 = vmatprep.mubr.f32.mxu0 0.0
      %700 = vmatmul.mubr.f32.gmra.mrb[0].mxu0 %v602
      %v701 = vpop.f32.mrb[0].mxu0
      %v702 = vadd.f32 %v565, %v701
      %v703 = vpop.f32.mrb[0].mxu0
      %v704 = vadd.f32 %v565, %v703
      %705 = vmatprep.mubr.f32.mxu0 0.0
      %706 = vmatmul.mubr.f32.gmra.mrb[0].mxu0 %v605
      %v707 = vpop.f32.mrb[0].mxu0
      %v708 = vadd.f32 %v570, %v707
      %v709 = vpop.f32.mrb[0].mxu0
      %v710 = vadd.f32 %v570, %v709
      %711 = vmatprep.mubr.f32.mxu0 0.0
      %712 = vmatmul.mubr.f32.gmra.mrb[0].mxu0 %v608
      %v713 = vpop.f32.mrb[0].mxu0
      %v714 = vadd.f32 %v575, %v713
      %v715 = vpop.f32.mrb[0].mxu0
      %v716 = vadd.f32 %v575, %v715
      %717 = vmatprep.mubr.f32.mxu0 0.0
      %718 = vmatmul.mubr.f32.gmra.mrb[0].mxu0 %v611
      %v719 = vpop.f32.mrb[0].mxu0
      %v720 = vadd.f32 %v580, %v719
      %v721 = vpop.f32.mrb[0].mxu0
      %v722 = vadd.f32 %v580, %v721
      %723 = vmatprep.mubr.f32.mxu0 0.0
      %724 = vmatmul.mubr.f32.gmra.mrb[0].mxu0 %v614
      %v725 = vpop.f32.mrb[0].mxu0
      %v726 = vadd.f32 %v585, %v725
      %v727 = vpop.f32.mrb[0].mxu0
      %v728 = vadd.f32 %v585, %v727
      %729 = vmatprep.mubr.f32.mxu0 0.0
      %730 = vmatmul.mubr.f32.gmra.mrb[0].mxu0 %v617
      %v731 = vpop.f32.mrb[0].mxu0
      %v732 = vadd.f32 %v590, %v731
      %v733 = vpop.f32.mrb[0].mxu0
      %v734 = vadd.f32 %v590, %v733
      %735 = vmatprep.mubr.f32.mxu0 0.0
      %736 = vmatmul.mubr.f32.gmra.mrb[0].mxu0 %v620
      %v737 = vpop.f32.mrb[0].mxu0
      %v738 = vadd.f32 %v595, %v737
      %v739 = vpop.f32.mrb[0].mxu0
      %v740 = vadd.f32 %v595, %v739
      %741 = vdwg.mxu0
      %v742 = vmax.f32 %v696, 0.0
      %v743 = vmax.f32 %v698, 0.0
      %v744 = vmax.f32 %v702, 0.0
      %v745 = vmax.f32 %v704, 0.0
      %v746 = vmax.f32 %v708, 0.0
      %v747 = vmax.f32 %v710, 0.0
      %v748 = vmax.f32 %v714, 0.0
      %v749 = vmax.f32 %v716, 0.0
      %v750 = vmax.f32 %v720, 0.0
      %v751 = vmax.f32 %v722, 0.0
      %v752 = vmax.f32 %v726, 0.0
      %v753 = vmax.f32 %v728, 0.0
      %v754 = vmax.f32 %v732, 0.0
      %v755 = vmax.f32 %v734, 0.0
      %v756 = vmax.f32 %v738, 0.0
      %v757 = vmax.f32 %v740, 0.0
      %758 = vst [vmem:[#allocation2 + $0x8] sm:$0xff] %v746
      %759 = vst [vmem:[#allocation2 + $0x10] sm:$0xff] %v747
      %760 = vst [vmem:[#allocation2 + $0x28] sm:$0xff] %v748
      %761 = vst [vmem:[#allocation2 + $0x30] sm:$0xff] %v749
      %v762 = vld [vmem:[%s4] sm:$0xff]
      %v763 = vld [vmem:[%s4 + $0x8] sm:$0xff]
      %v764 = vld [vmem:[#allocation2] sm:$0xff]
      %v765 = vld [vmem:[#allocation2 + $0x8] sm:$0xff]
      %v766 = vld [vmem:[#allocation2 + $0x10] sm:$0xff]
      %v767 = vld [vmem:[#allocation2 + $0x20] sm:$0xff]
      %v768 = vld [vmem:[#allocation2 + $0x28] sm:$0xff]
      %v769 = vld [vmem:[#allocation2 + $0x30] sm:$0xff]
      %771 = vset.pattern.permute.xlu0 0
      %772 = vperm.xlu0 %771, %v762
      %v773 = vpop.permute.xlu0 %772
      %776 = vset.pattern.permute.xlu0 0
      %777 = vperm.xlu0 %776, %v763
      %v778 = vpop.permute.xlu0 %777
      %v780 = vmul.f32 %v764, %v773
      %v781 = vmul.f32 %v765, %v773
      %v782 = vmul.f32 %v766, %v773
      %v783 = vmul.f32 %v767, %v778
      %v784 = vmul.f32 %v768, %v778
      %v785 = vmul.f32 %v769, %v778
      %786 = vset.pattern.permute.xlu0 1
      %787 = vperm.xlu0 %786, %v762
      %v788 = vpop.permute.xlu0 %787
      %790 = vset.pattern.permute.xlu0 1
      %791 = vperm.xlu0 %790, %v763
      %v792 = vpop.permute.xlu0 %791
      %v794 = vmul.f32 %v764, %v788
      %v795 = vmul.f32 %v765, %v788
      %v796 = vmul.f32 %v766, %v788
      %v797 = vmul.f32 %v767, %v792
      %v798 = vmul.f32 %v768, %v792
      %v799 = vmul.f32 %v769, %v792
      %800 = vset.pattern.permute.xlu0 2
      %801 = vperm.xlu0 %800, %v762
      %v802 = vpop.permute.xlu0 %801
      %804 = vset.pattern.permute.xlu0 2
      %805 = vperm.xlu0 %804, %v763
      %v806 = vpop.permute.xlu0 %805
      %v808 = vmul.f32 %v764, %v802
      %v809 = vmul.f32 %v765, %v802
      %v810 = vmul.f32 %v766, %v802
      %v811 = vmul.f32 %v767, %v806
      %v812 = vmul.f32 %v768, %v806
      %v813 = vmul.f32 %v769, %v806
      %814 = vset.pattern.permute.xlu0 3
      %815 = vperm.xlu0 %814, %v762
      %v816 = vpop.permute.xlu0 %815
      %818 = vset.pattern.permute.xlu0 3
      %819 = vperm.xlu0 %818, %v763
      %v820 = vpop.permute.xlu0 %819
      %v822 = vmul.f32 %v764, %v816
      %v823 = vmul.f32 %v765, %v816
      %v824 = vmul.f32 %v766, %v816
      %v825 = vmul.f32 %v767, %v820
      %v826 = vmul.f32 %v768, %v820
      %v827 = vmul.f32 %v769, %v820
      %834 = vrot.lane.b32.xlu0 %v822, 112
      %v835 = vpop.permute.xlu0 %834
      %836 = vrot.lane.b32.xlu0 %v823, 112
      %v837 = vpop.permute.xlu0 %836
      %838 = vrot.lane.b32.xlu0 %v824, 112
      %v839 = vpop.permute.xlu0 %838
      %840 = vrot.lane.b32.xlu0 %v825, 112
      %v841 = vpop.permute.xlu0 %840
      %842 = vrot.lane.b32.xlu0 %v826, 112
      %v843 = vpop.permute.xlu0 %842
      %844 = vrot.lane.b32.xlu0 %v827, 112
      %v845 = vpop.permute.xlu0 %844
      %vm846 = vcmask 916480
      %v847 = vsel %vm846, %v835, %v837
      %v848 = vsel %vm846, %v837, %v839
      %v849 = vsel %vm846, %v841, %v843
      %v850 = vsel %vm846, %v843, %v845
      %v857 = vadd.f32 %v780, %v847
      %v858 = vadd.f32 %v781, %v848
      %v859 = vadd.f32 %v782, %v839
      %v860 = vadd.f32 %v783, %v849
      %v861 = vadd.f32 %v784, %v850
      %v862 = vadd.f32 %v785, %v845
      %863 = vset.pattern.permute.xlu0 4
      %864 = vperm.xlu0 %863, %v762
      %v865 = vpop.permute.xlu0 %864
      %867 = vset.pattern.permute.xlu0 4
      %868 = vperm.xlu0 %867, %v763
      %v869 = vpop.permute.xlu0 %868
      %v871 = vmul.f32 %v765, %v865
      %v872 = vmul.f32 %v766, %v865
      %v873 = vmul.f32 %v768, %v869
      %v874 = vmul.f32 %v769, %v869
      %879 = vrot.lane.b32.xlu0 %v871, 112
      %v880 = vpop.permute.xlu0 %879
      %881 = vrot.lane.b32.xlu0 %v872, 112
      %v882 = vpop.permute.xlu0 %881
      %883 = vrot.lane.b32.xlu0 %v873, 112
      %v884 = vpop.permute.xlu0 %883
      %885 = vrot.lane.b32.xlu0 %v874, 112
      %v886 = vpop.permute.xlu0 %885
      %v887 = vsel %vm846, %v880, %v882
      %v888 = vsel %vm846, %v884, %v886
      %v895 = vadd.f32 %v794, %v880
      %v896 = vadd.f32 %v795, %v887
      %v897 = vadd.f32 %v796, %v882
      %v898 = vadd.f32 %v797, %v884
      %v899 = vadd.f32 %v798, %v888
      %v900 = vadd.f32 %v799, %v886
      %v901 = vld [vmem:[#allocation2 + $0x8] sm:$0xff]
      %v902 = vld [vmem:[#allocation2 + $0x10] sm:$0xff]
      %v903 = vld [vmem:[#allocation2 + $0x18] sm:$0xff]
      %v904 = vld [vmem:[#allocation2 + $0x28] sm:$0xff]
      %v905 = vld [vmem:[#allocation2 + $0x30] sm:$0xff]
      %v906 = vld [vmem:[#allocation2 + $0x38] sm:$0xff]
      %907 = vset.pattern.permute.xlu0 5
      %908 = vperm.xlu0 %907, %v762
      %v909 = vpop.permute.xlu0 %908
      %911 = vset.pattern.permute.xlu0 5
      %912 = vperm.xlu0 %911, %v763
      %v913 = vpop.permute.xlu0 %912
      %v915 = vmul.f32 %v901, %v909
      %v916 = vmul.f32 %v902, %v909
      %v917 = vmul.f32 %v903, %v909
      %v918 = vmul.f32 %v904, %v913
      %v919 = vmul.f32 %v905, %v913
      %v920 = vmul.f32 %v906, %v913
      %927 = vrot.lane.b32.xlu0 %v915, 112
      %v928 = vpop.permute.xlu0 %927
      %929 = vrot.lane.b32.xlu0 %v916, 112
      %v930 = vpop.permute.xlu0 %929
      %931 = vrot.lane.b32.xlu0 %v917, 112
      %v932 = vpop.permute.xlu0 %931
      %933 = vrot.lane.b32.xlu0 %v918, 112
      %v934 = vpop.permute.xlu0 %933
      %935 = vrot.lane.b32.xlu0 %v919, 112
      %v936 = vpop.permute.xlu0 %935
      %937 = vrot.lane.b32.xlu0 %v920, 112
      %v938 = vpop.permute.xlu0 %937
      %v939 = vsel %vm846, %v928, %v930
      %v940 = vsel %vm846, %v930, %v932
      %v941 = vsel %vm846, %v934, %v936
      %v942 = vsel %vm846, %v936, %v938
      %v949 = vadd.f32 %v808, %v928
      %v950 = vadd.f32 %v809, %v939
      %v951 = vadd.f32 %v810, %v940
      %v952 = vadd.f32 %v811, %v934
      %v953 = vadd.f32 %v812, %v941
      %v954 = vadd.f32 %v813, %v942
      %955 = vset.pattern.permute.xlu0 6
      %956 = vperm.xlu0 %955, %v762
      %v957 = vpop.permute.xlu0 %956
      %959 = vset.pattern.permute.xlu0 6
      %960 = vperm.xlu0 %959, %v763
      %v961 = vpop.permute.xlu0 %960
      %v963 = vmul.f32 %v901, %v957
      %v964 = vmul.f32 %v902, %v957
      %v965 = vmul.f32 %v903, %v957
      %v966 = vmul.f32 %v904, %v961
      %v967 = vmul.f32 %v905, %v961
      %v968 = vmul.f32 %v906, %v961
      %975 = vrot.lane.b32.xlu0 %v963, 96
      %v976 = vpop.permute.xlu0 %975
      %977 = vrot.lane.b32.xlu0 %v964, 96
      %v978 = vpop.permute.xlu0 %977
      %979 = vrot.lane.b32.xlu0 %v965, 96
      %v980 = vpop.permute.xlu0 %979
      %981 = vrot.lane.b32.xlu0 %v966, 96
      %v982 = vpop.permute.xlu0 %981
      %983 = vrot.lane.b32.xlu0 %v967, 96
      %v984 = vpop.permute.xlu0 %983
      %985 = vrot.lane.b32.xlu0 %v968, 96
      %v986 = vpop.permute.xlu0 %985
      %vm987 = vcmask 785408
      %v988 = vsel %vm987, %v976, %v978
      %v989 = vsel %vm987, %v978, %v980
      %v990 = vsel %vm987, %v982, %v984
      %v991 = vsel %vm987, %v984, %v986
      %v998 = vadd.f32 %v857, %v976
      %v999 = vadd.f32 %v858, %v988
      %v1000 = vadd.f32 %v859, %v989
      %v1001 = vadd.f32 %v860, %v982
      %v1002 = vadd.f32 %v861, %v990
      %v1003 = vadd.f32 %v862, %v991
      %1004 = vset.pattern.permute.xlu0 7
      %1005 = vperm.xlu0 %1004, %v762
      %v1006 = vpop.permute.xlu0 %1005
      %1008 = vset.pattern.permute.xlu0 7
      %1009 = vperm.xlu0 %1008, %v763
      %v1010 = vpop.permute.xlu0 %1009
      %v1012 = vmul.f32 %v901, %v1006
      %v1013 = vmul.f32 %v902, %v1006
      %v1014 = vmul.f32 %v903, %v1006
      %v1015 = vmul.f32 %v904, %v1010
      %v1016 = vmul.f32 %v905, %v1010
      %v1017 = vmul.f32 %v906, %v1010
      %1024 = vrot.lane.b32.xlu0 %v1012, 96
      %v1025 = vpop.permute.xlu0 %1024
      %1026 = vrot.lane.b32.xlu0 %v1013, 96
      %v1027 = vpop.permute.xlu0 %1026
      %1028 = vrot.lane.b32.xlu0 %v1014, 96
      %v1029 = vpop.permute.xlu0 %1028
      %1030 = vrot.lane.b32.xlu0 %v1015, 96
      %v1031 = vpop.permute.xlu0 %1030
      %1032 = vrot.lane.b32.xlu0 %v1016, 96
      %v1033 = vpop.permute.xlu0 %1032
      %1034 = vrot.lane.b32.xlu0 %v1017, 96
      %v1035 = vpop.permute.xlu0 %1034
      %v1036 = vsel %vm987, %v1025, %v1027
      %v1037 = vsel %vm987, %v1027, %v1029
      %v1038 = vsel %vm987, %v1031, %v1033
      %v1039 = vsel %vm987, %v1033, %v1035
      %v1046 = vadd.f32 %v895, %v1025
      %v1047 = vadd.f32 %v896, %v1036
      %v1048 = vadd.f32 %v897, %v1037
      %v1049 = vadd.f32 %v898, %v1031
      %v1050 = vadd.f32 %v899, %v1038
      %v1051 = vadd.f32 %v900, %v1039
      %1052 = vset.pattern.permute.xlu0 8
      %1053 = vperm.xlu0 %1052, %v762
      %v1054 = vpop.permute.xlu0 %1053
      %1056 = vset.pattern.permute.xlu0 8
      %1057 = vperm.xlu0 %1056, %v763
      %v1058 = vpop.permute.xlu0 %1057
      %v1060 = vmul.f32 %v901, %v1054
      %v1061 = vmul.f32 %v902, %v1054
      %v1062 = vmul.f32 %v903, %v1054
      %v1063 = vmul.f32 %v904, %v1058
      %v1064 = vmul.f32 %v905, %v1058
      %v1065 = vmul.f32 %v906, %v1058
      %1072 = vrot.lane.b32.xlu0 %v1060, 96
      %v1073 = vpop.permute.xlu0 %1072
      %1074 = vrot.lane.b32.xlu0 %v1061, 96
      %v1075 = vpop.permute.xlu0 %1074
      %1076 = vrot.lane.b32.xlu0 %v1062, 96
      %v1077 = vpop.permute.xlu0 %1076
      %1078 = vrot.lane.b32.xlu0 %v1063, 96
      %v1079 = vpop.permute.xlu0 %1078
      %1080 = vrot.lane.b32.xlu0 %v1064, 96
      %v1081 = vpop.permute.xlu0 %1080
      %1082 = vrot.lane.b32.xlu0 %v1065, 96
      %v1083 = vpop.permute.xlu0 %1082
      %v1084 = vsel %vm987, %v1073, %v1075
      %v1085 = vsel %vm987, %v1075, %v1077
      %v1086 = vsel %vm987, %v1079, %v1081
      %v1087 = vsel %vm987, %v1081, %v1083
      %v1094 = vadd.f32 %v949, %v1073
      %v1095 = vadd.f32 %v950, %v1084
      %v1096 = vadd.f32 %v951, %v1085
      %v1097 = vadd.f32 %v952, %v1079
      %v1098 = vadd.f32 %v953, %v1086
      %v1099 = vadd.f32 %v954, %v1087
      %v1101 = vlaneseq
      %v1102 = vshrl.u32 %v1101, 7
      %v1103 = vsub.s32 0, %v1102
      %v1104 = vrot.slane %v522, %v1103
      %v1105 = vlaneseq
      %v1106 = vshrl.u32 %v1105, 7
      %v1107 = vsub.s32 1, %v1106
      %v1108 = vrot.slane %v522, %v1107
      %1109 = vrot.lane.b32.xlu0 %v1104, 111
      %v1110 = vpop.permute.xlu0 %1109
      %1111 = vrot.lane.b32.xlu0 %v1108, 111
      %v1112 = vpop.permute.xlu0 %1111
      %vm1113 = vcmask 908288
      %v1114 = vsel %vm1113, %v1110, %v1112
      %v1118 = vmul.f32 %v998, %v1110
      %v1119 = vmul.f32 %v999, %v1114
      %v1120 = vmul.f32 %v1000, %v1112
      %v1121 = vmul.f32 %v1001, %v1110
      %v1122 = vmul.f32 %v1002, %v1114
      %v1123 = vmul.f32 %v1003, %v1112
      %1130 = vrot.lane.b32.xlu0 %v1118, 1
      %v1131 = vpop.permute.xlu0 %1130
      %1132 = vrot.lane.b32.xlu0 %v1119, 1
      %v1133 = vpop.permute.xlu0 %1132
      %1134 = vrot.lane.b32.xlu0 %v1120, 1
      %v1135 = vpop.permute.xlu0 %1134
      %1136 = vrot.lane.b32.xlu0 %v1121, 1
      %v1137 = vpop.permute.xlu0 %1136
      %1138 = vrot.lane.b32.xlu0 %v1122, 1
      %v1139 = vpop.permute.xlu0 %1138
      %1140 = vrot.lane.b32.xlu0 %v1123, 1
      %v1141 = vpop.permute.xlu0 %1140
      %vm1142 = vcmask 7168
      %v1143 = vsel %vm1142, %v1131, %v1133
      %v1144 = vsel %vm1142, %v1133, %v1135
      %v1145 = vsel %vm1142, %v1137, %v1139
      %v1146 = vsel %vm1142, %v1139, %v1141
      %v1153 = vadd.f32 %v1046, %v1131
      %v1154 = vadd.f32 %v1047, %v1143
      %v1155 = vadd.f32 %v1048, %v1144
      %v1156 = vadd.f32 %v1049, %v1137
      %v1157 = vadd.f32 %v1050, %v1145
      %v1158 = vadd.f32 %v1051, %v1146
      %v1160 = vlaneseq
      %v1161 = vshrl.u32 %v1160, 7
      %v1162 = vsub.s32 0, %v1161
      %v1163 = vrot.slane %v524, %v1162
      %v1164 = vlaneseq
      %v1165 = vshrl.u32 %v1164, 7
      %v1166 = vsub.s32 1, %v1165
      %v1167 = vrot.slane %v524, %v1166
      %1168 = vrot.lane.b32.xlu0 %v1163, 113
      %v1169 = vpop.permute.xlu0 %1168
      %1170 = vrot.lane.b32.xlu0 %v1167, 113
      %v1171 = vpop.permute.xlu0 %1170
      %vm1172 = vcmask 924672
      %v1173 = vsel %vm1172, %v1169, %v1171
      %v1177 = vmul.f32 %v1094, %v1169
      %v1178 = vmul.f32 %v1095, %v1173
      %v1179 = vmul.f32 %v1096, %v1171
      %v1180 = vmul.f32 %v1097, %v1169
      %v1181 = vmul.f32 %v1098, %v1173
      %v1182 = vmul.f32 %v1099, %v1171
      %1189 = vrot.lane.b32.xlu0 %v1177, 127
      %v1190 = vpop.permute.xlu0 %1189
      %1191 = vrot.lane.b32.xlu0 %v1178, 127
      %v1192 = vpop.permute.xlu0 %1191
      %1193 = vrot.lane.b32.xlu0 %v1179, 127
      %v1194 = vpop.permute.xlu0 %1193
      %1195 = vrot.lane.b32.xlu0 %v1180, 127
      %v1196 = vpop.permute.xlu0 %1195
      %1197 = vrot.lane.b32.xlu0 %v1181, 127
      %v1198 = vpop.permute.xlu0 %1197
      %1199 = vrot.lane.b32.xlu0 %v1182, 127
      %v1200 = vpop.permute.xlu0 %1199
      %vm1201 = vcmask 1039360
      %v1202 = vsel %vm1201, %v1190, %v1192
      %v1203 = vsel %vm1201, %v1192, %v1194
      %v1204 = vsel %vm1201, %v1196, %v1198
      %v1205 = vsel %vm1201, %v1198, %v1200
      %v1212 = vadd.f32 %v1153, %v1202
      %v1213 = vadd.f32 %v1154, %v1203
      %v1214 = vadd.f32 %v1155, %v1194
      %v1215 = vadd.f32 %v1156, %v1204
      %v1216 = vadd.f32 %v1157, %v1205
      %v1217 = vadd.f32 %v1158, %v1200
      %v1218 = vld [vmem:[%s5] sm:$0xff]
      %v1219 = vld [vmem:[%s5 + $0x8] sm:$0xff]
      %1221 = vset.pattern.permute.xlu0 0
      %1222 = vperm.xlu0 %1221, %v1218
      %v1223 = vpop.permute.xlu0 %1222
      %1226 = vset.pattern.permute.xlu0 0
      %1227 = vperm.xlu0 %1226, %v1219
      %v1228 = vpop.permute.xlu0 %1227
      %v1230 = vadd.f32 %v1212, %v1223
      %v1231 = vadd.f32 %v1213, %v1223
      %v1232 = vadd.f32 %v1214, %v1223
      %v1233 = vadd.f32 %v1215, %v1228
      %v1234 = vadd.f32 %v1216, %v1228
      %v1235 = vadd.f32 %v1217, %v1228
      %v1236 = vmax.f32 %v1230, 0.0
      %v1237 = vmax.f32 %v1231, 0.0
      %v1238 = vmax.f32 %v1232, 0.0
      %v1239 = vmax.f32 %v1233, 0.0
      %v1240 = vmax.f32 %v1234, 0.0
      %v1241 = vmax.f32 %v1235, 0.0
      %1248 = vrot.lane.b32.xlu0 %v1236, 16
      %v1249 = vpop.permute.xlu0 %1248
      %1250 = vrot.lane.b32.xlu0 %v1237, 16
      %v1251 = vpop.permute.xlu0 %1250
      %1252 = vrot.lane.b32.xlu0 %v1238, 16
      %v1253 = vpop.permute.xlu0 %1252
      %1254 = vrot.lane.b32.xlu0 %v1239, 16
      %v1255 = vpop.permute.xlu0 %1254
      %1256 = vrot.lane.b32.xlu0 %v1240, 16
      %v1257 = vpop.permute.xlu0 %1256
      %1258 = vrot.lane.b32.xlu0 %v1241, 16
      %v1259 = vpop.permute.xlu0 %1258
      %vm1260 = vcmask 130048
      %v1261 = vsel %vm1260, %v1249, %v1251
      %v1262 = vsel %vm1260, %v1251, %v1253
      %v1263 = vsel %vm1260, %v1255, %v1257
      %v1264 = vsel %vm1260, %v1257, %v1259
      %1269 = vst [vmem:[#allocation2 + $0x8] sm:$0xff] %v1261
      %1270 = vst [vmem:[#allocation2 + $0x10] sm:$0xff] %v1262
      %1271 = vst [vmem:[#allocation2 + $0x28] sm:$0xff] %v1263
      %1272 = vst [vmem:[#allocation2 + $0x30] sm:$0xff] %v1264
      %1273 = vst [vmem:[#allocation2 + $0x48] sm:$0xff] %v750
      %1274 = vst [vmem:[#allocation2 + $0x50] sm:$0xff] %v751
      %1275 = vst [vmem:[#allocation2 + $0x68] sm:$0xff] %v752
      %1276 = vst [vmem:[#allocation2 + $0x70] sm:$0xff] %v753
      %v1277 = vld [vmem:[%s6] sm:$0xff]
      %v1278 = vld [vmem:[%s6 + $0x8] sm:$0xff]
      %v1279 = vld [vmem:[%s6 + $0x10] sm:$0xff]
      %v1280 = vld [vmem:[%s6 + $0x18] sm:$0xff]
      %v1281 = vld [vmem:[#allocation2] sm:$0xff]
      %v1282 = vld [vmem:[#allocation2 + $0x8] sm:$0xff]
      %v1283 = vld [vmem:[#allocation2 + $0x10] sm:$0xff]
      %v1284 = vld [vmem:[#allocation2 + $0x20] sm:$0xff]
      %v1285 = vld [vmem:[#allocation2 + $0x28] sm:$0xff]
      %v1286 = vld [vmem:[#allocation2 + $0x30] sm:$0xff]
      %v1287 = vld [vmem:[#allocation2 + $0x40] sm:$0xff]
      %v1288 = vld [vmem:[#allocation2 + $0x48] sm:$0xff]
      %v1289 = vld [vmem:[#allocation2 + $0x50] sm:$0xff]
      %v1290 = vld [vmem:[#allocation2 + $0x60] sm:$0xff]
      %v1291 = vld [vmem:[#allocation2 + $0x68] sm:$0xff]
      %v1292 = vld [vmem:[#allocation2 + $0x70] sm:$0xff]
      %1294 = vset.pattern.permute.xlu0 0
      %1295 = vperm.xlu0 %1294, %v1277
      %v1296 = vpop.permute.xlu0 %1295
      %1299 = vset.pattern.permute.xlu0 0
      %1300 = vperm.xlu0 %1299, %v1278
      %v1301 = vpop.permute.xlu0 %1300
      %1304 = vset.pattern.permute.xlu0 0
      %1305 = vperm.xlu0 %1304, %v1279
      %v1306 = vpop.permute.xlu0 %1305
      %1309 = vset.pattern.permute.xlu0 0
      %1310 = vperm.xlu0 %1309, %v1280
      %v1311 = vpop.permute.xlu0 %1310
      %v1313 = vmul.f32 %v1281, %v1296
      %v1314 = vmul.f32 %v1282, %v1296
      %v1315 = vmul.f32 %v1283, %v1296
      %v1316 = vmul.f32 %v1284, %v1301
      %v1317 = vmul.f32 %v1285, %v1301
      %v1318 = vmul.f32 %v1286, %v1301
      %v1319 = vmul.f32 %v1287, %v1306
      %v1320 = vmul.f32 %v1288, %v1306
      %v1321 = vmul.f32 %v1289, %v1306
      %v1322 = vmul.f32 %v1290, %v1311
      %v1323 = vmul.f32 %v1291, %v1311
      %v1324 = vmul.f32 %v1292, %v1311
      %1325 = vset.pattern.permute.xlu0 1
      %1326 = vperm.xlu0 %1325, %v1277
      %v1327 = vpop.permute.xlu0 %1326
      %1329 = vset.pattern.permute.xlu0 1
      %1330 = vperm.xlu0 %1329, %v1278
      %v1331 = vpop.permute.xlu0 %1330
      %1333 = vset.pattern.permute.xlu0 1
      %1334 = vperm.xlu0 %1333, %v1279
      %v1335 = vpop.permute.xlu0 %1334
      %1337 = vset.pattern.permute.xlu0 1
      %1338 = vperm.xlu0 %1337, %v1280
      %v1339 = vpop.permute.xlu0 %1338
      %v1341 = vmul.f32 %v1281, %v1327
      %v1342 = vmul.f32 %v1282, %v1327
      %v1343 = vmul.f32 %v1283, %v1327
      %v1344 = vmul.f32 %v1284, %v1331
      %v1345 = vmul.f32 %v1285, %v1331
      %v1346 = vmul.f32 %v1286, %v1331
      %v1347 = vmul.f32 %v1287, %v1335
      %v1348 = vmul.f32 %v1288, %v1335
      %v1349 = vmul.f32 %v1289, %v1335
      %v1350 = vmul.f32 %v1290, %v1339
      %v1351 = vmul.f32 %v1291, %v1339
      %v1352 = vmul.f32 %v1292, %v1339
      %1353 = vset.pattern.permute.xlu0 2
      %1354 = vperm.xlu0 %1353, %v1277
      %v1355 = vpop.permute.xlu0 %1354
      %1357 = vset.pattern.permute.xlu0 2
      %1358 = vperm.xlu0 %1357, %v1278
      %v1359 = vpop.permute.xlu0 %1358
      %1361 = vset.pattern.permute.xlu0 2
      %1362 = vperm.xlu0 %1361, %v1279
      %v1363 = vpop.permute.xlu0 %1362
      %1365 = vset.pattern.permute.xlu0 2
      %1366 = vperm.xlu0 %1365, %v1280
      %v1367 = vpop.permute.xlu0 %1366
      %v1369 = vmul.f32 %v1281, %v1355
      %v1370 = vmul.f32 %v1282, %v1355
      %v1371 = vmul.f32 %v1283, %v1355
      %v1372 = vmul.f32 %v1284, %v1359
      %v1373 = vmul.f32 %v1285, %v1359
      %v1374 = vmul.f32 %v1286, %v1359
      %v1375 = vmul.f32 %v1287, %v1363
      %v1376 = vmul.f32 %v1288, %v1363
      %v1377 = vmul.f32 %v1289, %v1363
      %v1378 = vmul.f32 %v1290, %v1367
      %v1379 = vmul.f32 %v1291, %v1367
      %v1380 = vmul.f32 %v1292, %v1367
      %1381 = vset.pattern.permute.xlu0 3
      %1382 = vperm.xlu0 %1381, %v1277
      %v1383 = vpop.permute.xlu0 %1382
      %1385 = vset.pattern.permute.xlu0 3
      %1386 = vperm.xlu0 %1385, %v1278
      %v1387 = vpop.permute.xlu0 %1386
      %1389 = vset.pattern.permute.xlu0 3
      %1390 = vperm.xlu0 %1389, %v1279
      %v1391 = vpop.permute.xlu0 %1390
      %1393 = vset.pattern.permute.xlu0 3
      %1394 = vperm.xlu0 %1393, %v1280
      %v1395 = vpop.permute.xlu0 %1394
      %v1397 = vmul.f32 %v1281, %v1383
      %v1398 = vmul.f32 %v1282, %v1383
      %v1399 = vmul.f32 %v1283, %v1383
      %v1400 = vmul.f32 %v1284, %v1387
      %v1401 = vmul.f32 %v1285, %v1387
      %v1402 = vmul.f32 %v1286, %v1387
      %v1403 = vmul.f32 %v1287, %v1391
      %v1404 = vmul.f32 %v1288, %v1391
      %v1405 = vmul.f32 %v1289, %v1391
      %v1406 = vmul.f32 %v1290, %v1395
      %v1407 = vmul.f32 %v1291, %v1395
      %v1408 = vmul.f32 %v1292, %v1395
      %1421 = vrot.lane.b32.xlu0 %v1397, 112
      %v1422 = vpop.permute.xlu0 %1421
      %1423 = vrot.lane.b32.xlu0 %v1398, 112
      %v1424 = vpop.permute.xlu0 %1423
      %1425 = vrot.lane.b32.xlu0 %v1399, 112
      %v1426 = vpop.permute.xlu0 %1425
      %1427 = vrot.lane.b32.xlu0 %v1400, 112
      %v1428 = vpop.permute.xlu0 %1427
      %1429 = vrot.lane.b32.xlu0 %v1401, 112
      %v1430 = vpop.permute.xlu0 %1429
      %1431 = vrot.lane.b32.xlu0 %v1402, 112
      %v1432 = vpop.permute.xlu0 %1431
      %1433 = vrot.lane.b32.xlu0 %v1403, 112
      %v1434 = vpop.permute.xlu0 %1433
      %1435 = vrot.lane.b32.xlu0 %v1404, 112
      %v1436 = vpop.permute.xlu0 %1435
      %1437 = vrot.lane.b32.xlu0 %v1405, 112
      %v1438 = vpop.permute.xlu0 %1437
      %1439 = vrot.lane.b32.xlu0 %v1406, 112
      %v1440 = vpop.permute.xlu0 %1439
      %1441 = vrot.lane.b32.xlu0 %v1407, 112
      %v1442 = vpop.permute.xlu0 %1441
      %1443 = vrot.lane.b32.xlu0 %v1408, 112
      %v1444 = vpop.permute.xlu0 %1443
      %v1445 = vsel %vm846, %v1422, %v1424
      %v1446 = vsel %vm846, %v1424, %v1426
      %v1447 = vsel %vm846, %v1428, %v1430
      %v1448 = vsel %vm846, %v1430, %v1432
      %v1449 = vsel %vm846, %v1434, %v1436
      %v1450 = vsel %vm846, %v1436, %v1438
      %v1451 = vsel %vm846, %v1440, %v1442
      %v1452 = vsel %vm846, %v1442, %v1444
      %v1465 = vadd.f32 %v1313, %v1445
      %v1466 = vadd.f32 %v1314, %v1446
      %v1467 = vadd.f32 %v1315, %v1426
      %v1468 = vadd.f32 %v1316, %v1447
      %v1469 = vadd.f32 %v1317, %v1448
      %v1470 = vadd.f32 %v1318, %v1432
      %v1471 = vadd.f32 %v1319, %v1449
      %v1472 = vadd.f32 %v1320, %v1450
      %v1473 = vadd.f32 %v1321, %v1438
      %v1474 = vadd.f32 %v1322, %v1451
      %v1475 = vadd.f32 %v1323, %v1452
      %v1476 = vadd.f32 %v1324, %v1444
      %1477 = vset.pattern.permute.xlu0 4
      %1478 = vperm.xlu0 %1477, %v1277
      %v1479 = vpop.permute.xlu0 %1478
      %1481 = vset.pattern.permute.xlu0 4
      %1482 = vperm.xlu0 %1481, %v1278
      %v1483 = vpop.permute.xlu0 %1482
      %1485 = vset.pattern.permute.xlu0 4
      %1486 = vperm.xlu0 %1485, %v1279
      %v1487 = vpop.permute.xlu0 %1486
      %1489 = vset.pattern.permute.xlu0 4
      %1490 = vperm.xlu0 %1489, %v1280
      %v1491 = vpop.permute.xlu0 %1490
      %v1493 = vmul.f32 %v1282, %v1479
      %v1494 = vmul.f32 %v1283, %v1479
      %v1495 = vmul.f32 %v1285, %v1483
      %v1496 = vmul.f32 %v1286, %v1483
      %v1497 = vmul.f32 %v1288, %v1487
      %v1498 = vmul.f32 %v1289, %v1487
      %v1499 = vmul.f32 %v1291, %v1491
      %v1500 = vmul.f32 %v1292, %v1491
      %1509 = vrot.lane.b32.xlu0 %v1493, 112
      %v1510 = vpop.permute.xlu0 %1509
      %1511 = vrot.lane.b32.xlu0 %v1494, 112
      %v1512 = vpop.permute.xlu0 %1511
      %1513 = vrot.lane.b32.xlu0 %v1495, 112
      %v1514 = vpop.permute.xlu0 %1513
      %1515 = vrot.lane.b32.xlu0 %v1496, 112
      %v1516 = vpop.permute.xlu0 %1515
      %1517 = vrot.lane.b32.xlu0 %v1497, 112
      %v1518 = vpop.permute.xlu0 %1517
      %1519 = vrot.lane.b32.xlu0 %v1498, 112
      %v1520 = vpop.permute.xlu0 %1519
      %1521 = vrot.lane.b32.xlu0 %v1499, 112
      %v1522 = vpop.permute.xlu0 %1521
      %1523 = vrot.lane.b32.xlu0 %v1500, 112
      %v1524 = vpop.permute.xlu0 %1523
      %v1525 = vsel %vm846, %v1510, %v1512
      %v1526 = vsel %vm846, %v1514, %v1516
      %v1527 = vsel %vm846, %v1518, %v1520
      %v1528 = vsel %vm846, %v1522, %v1524
      %v1541 = vadd.f32 %v1341, %v1510
      %v1542 = vadd.f32 %v1342, %v1525
      %v1543 = vadd.f32 %v1343, %v1512
      %v1544 = vadd.f32 %v1344, %v1514
      %v1545 = vadd.f32 %v1345, %v1526
      %v1546 = vadd.f32 %v1346, %v1516
      %v1547 = vadd.f32 %v1347, %v1518
      %v1548 = vadd.f32 %v1348, %v1527
      %v1549 = vadd.f32 %v1349, %v1520
      %v1550 = vadd.f32 %v1350, %v1522
      %v1551 = vadd.f32 %v1351, %v1528
      %v1552 = vadd.f32 %v1352, %v1524
      %v1553 = vld [vmem:[#allocation2 + $0x8] sm:$0xff]
      %v1554 = vld [vmem:[#allocation2 + $0x10] sm:$0xff]
      %v1555 = vld [vmem:[#allocation2 + $0x18] sm:$0xff]
      %v1556 = vld [vmem:[#allocation2 + $0x28] sm:$0xff]
      %v1557 = vld [vmem:[#allocation2 + $0x30] sm:$0xff]
      %v1558 = vld [vmem:[#allocation2 + $0x38] sm:$0xff]
      %v1559 = vld [vmem:[#allocation2 + $0x48] sm:$0xff]
      %v1560 = vld [vmem:[#allocation2 + $0x50] sm:$0xff]
      %v1561 = vld [vmem:[#allocation2 + $0x58] sm:$0xff]
      %v1562 = vld [vmem:[#allocation2 + $0x68] sm:$0xff]
      %v1563 = vld [vmem:[#allocation2 + $0x70] sm:$0xff]
      %v1564 = vld [vmem:[#allocation2 + $0x78] sm:$0xff]
      %1565 = vset.pattern.permute.xlu0 5
      %1566 = vperm.xlu0 %1565, %v1277
      %v1567 = vpop.permute.xlu0 %1566
      %1569 = vset.pattern.permute.xlu0 5
      %1570 = vperm.xlu0 %1569, %v1278
      %v1571 = vpop.permute.xlu0 %1570
      %1573 = vset.pattern.permute.xlu0 5
      %1574 = vperm.xlu0 %1573, %v1279
      %v1575 = vpop.permute.xlu0 %1574
      %1577 = vset.pattern.permute.xlu0 5
      %1578 = vperm.xlu0 %1577, %v1280
      %v1579 = vpop.permute.xlu0 %1578
      %v1581 = vmul.f32 %v1553, %v1567
      %v1582 = vmul.f32 %v1554, %v1567
      %v1583 = vmul.f32 %v1555, %v1567
      %v1584 = vmul.f32 %v1556, %v1571
      %v1585 = vmul.f32 %v1557, %v1571
      %v1586 = vmul.f32 %v1558, %v1571
      %v1587 = vmul.f32 %v1559, %v1575
      %v1588 = vmul.f32 %v1560, %v1575
      %v1589 = vmul.f32 %v1561, %v1575
      %v1590 = vmul.f32 %v1562, %v1579
      %v1591 = vmul.f32 %v1563, %v1579
      %v1592 = vmul.f32 %v1564, %v1579
      %1605 = vrot.lane.b32.xlu0 %v1581, 112
      %v1606 = vpop.permute.xlu0 %1605
      %1607 = vrot.lane.b32.xlu0 %v1582, 112
      %v1608 = vpop.permute.xlu0 %1607
      %1609 = vrot.lane.b32.xlu0 %v1583, 112
      %v1610 = vpop.permute.xlu0 %1609
      %1611 = vrot.lane.b32.xlu0 %v1584, 112
      %v1612 = vpop.permute.xlu0 %1611
      %1613 = vrot.lane.b32.xlu0 %v1585, 112
      %v1614 = vpop.permute.xlu0 %1613
      %1615 = vrot.lane.b32.xlu0 %v1586, 112
      %v1616 = vpop.permute.xlu0 %1615
      %1617 = vrot.lane.b32.xlu0 %v1587, 112
      %v1618 = vpop.permute.xlu0 %1617
      %1619 = vrot.lane.b32.xlu0 %v1588, 112
      %v1620 = vpop.permute.xlu0 %1619
      %1621 = vrot.lane.b32.xlu0 %v1589, 112
      %v1622 = vpop.permute.xlu0 %1621
      %1623 = vrot.lane.b32.xlu0 %v1590, 112
      %v1624 = vpop.permute.xlu0 %1623
      %1625 = vrot.lane.b32.xlu0 %v1591, 112
      %v1626 = vpop.permute.xlu0 %1625
      %1627 = vrot.lane.b32.xlu0 %v1592, 112
      %v1628 = vpop.permute.xlu0 %1627
      %v1629 = vsel %vm846, %v1606, %v1608
      %v1630 = vsel %vm846, %v1608, %v1610
      %v1631 = vsel %vm846, %v1612, %v1614
      %v1632 = vsel %vm846, %v1614, %v1616
      %v1633 = vsel %vm846, %v1618, %v1620
      %v1634 = vsel %vm846, %v1620, %v1622
      %v1635 = vsel %vm846, %v1624, %v1626
      %v1636 = vsel %vm846, %v1626, %v1628
      %v1649 = vadd.f32 %v1369, %v1606
      %v1650 = vadd.f32 %v1370, %v1629
      %v1651 = vadd.f32 %v1371, %v1630
      %v1652 = vadd.f32 %v1372, %v1612
      %v1653 = vadd.f32 %v1373, %v1631
      %v1654 = vadd.f32 %v1374, %v1632
      %v1655 = vadd.f32 %v1375, %v1618
      %v1656 = vadd.f32 %v1376, %v1633
      %v1657 = vadd.f32 %v1377, %v1634
      %v1658 = vadd.f32 %v1378, %v1624
      %v1659 = vadd.f32 %v1379, %v1635
      %v1660 = vadd.f32 %v1380, %v1636
      %1661 = vset.pattern.permute.xlu0 6
      %1662 = vperm.xlu0 %1661, %v1277
      %v1663 = vpop.permute.xlu0 %1662
      %1665 = vset.pattern.permute.xlu0 6
      %1666 = vperm.xlu0 %1665, %v1278
      %v1667 = vpop.permute.xlu0 %1666
      %1669 = vset.pattern.permute.xlu0 6
      %1670 = vperm.xlu0 %1669, %v1279
      %v1671 = vpop.permute.xlu0 %1670
      %1673 = vset.pattern.permute.xlu0 6
      %1674 = vperm.xlu0 %1673, %v1280
      %v1675 = vpop.permute.xlu0 %1674
      %v1677 = vmul.f32 %v1553, %v1663
      %v1678 = vmul.f32 %v1554, %v1663
      %v1679 = vmul.f32 %v1555, %v1663
      %v1680 = vmul.f32 %v1556, %v1667
      %v1681 = vmul.f32 %v1557, %v1667
      %v1682 = vmul.f32 %v1558, %v1667
      %v1683 = vmul.f32 %v1559, %v1671
      %v1684 = vmul.f32 %v1560, %v1671
      %v1685 = vmul.f32 %v1561, %v1671
      %v1686 = vmul.f32 %v1562, %v1675
      %v1687 = vmul.f32 %v1563, %v1675
      %v1688 = vmul.f32 %v1564, %v1675
      %1701 = vrot.lane.b32.xlu0 %v1677, 96
      %v1702 = vpop.permute.xlu0 %1701
      %1703 = vrot.lane.b32.xlu0 %v1678, 96
      %v1704 = vpop.permute.xlu0 %1703
      %1705 = vrot.lane.b32.xlu0 %v1679, 96
      %v1706 = vpop.permute.xlu0 %1705
      %1707 = vrot.lane.b32.xlu0 %v1680, 96
      %v1708 = vpop.permute.xlu0 %1707
      %1709 = vrot.lane.b32.xlu0 %v1681, 96
      %v1710 = vpop.permute.xlu0 %1709
      %1711 = vrot.lane.b32.xlu0 %v1682, 96
      %v1712 = vpop.permute.xlu0 %1711
      %1713 = vrot.lane.b32.xlu0 %v1683, 96
      %v1714 = vpop.permute.xlu0 %1713
      %1715 = vrot.lane.b32.xlu0 %v1684, 96
      %v1716 = vpop.permute.xlu0 %1715
      %1717 = vrot.lane.b32.xlu0 %v1685, 96
      %v1718 = vpop.permute.xlu0 %1717
      %1719 = vrot.lane.b32.xlu0 %v1686, 96
      %v1720 = vpop.permute.xlu0 %1719
      %1721 = vrot.lane.b32.xlu0 %v1687, 96
      %v1722 = vpop.permute.xlu0 %1721
      %1723 = vrot.lane.b32.xlu0 %v1688, 96
      %v1724 = vpop.permute.xlu0 %1723
      %v1725 = vsel %vm987, %v1702, %v1704
      %v1726 = vsel %vm987, %v1704, %v1706
      %v1727 = vsel %vm987, %v1708, %v1710
      %v1728 = vsel %vm987, %v1710, %v1712
      %v1729 = vsel %vm987, %v1714, %v1716
      %v1730 = vsel %vm987, %v1716, %v1718
      %v1731 = vsel %vm987, %v1720, %v1722
      %v1732 = vsel %vm987, %v1722, %v1724
      %v1745 = vadd.f32 %v1465, %v1702
      %v1746 = vadd.f32 %v1466, %v1725
      %v1747 = vadd.f32 %v1467, %v1726
      %v1748 = vadd.f32 %v1468, %v1708
      %v1749 = vadd.f32 %v1469, %v1727
      %v1750 = vadd.f32 %v1470, %v1728
      %v1751 = vadd.f32 %v1471, %v1714
      %v1752 = vadd.f32 %v1472, %v1729
      %v1753 = vadd.f32 %v1473, %v1730
      %v1754 = vadd.f32 %v1474, %v1720
      %v1755 = vadd.f32 %v1475, %v1731
      %v1756 = vadd.f32 %v1476, %v1732
      %1757 = vset.pattern.permute.xlu0 7
      %1758 = vperm.xlu0 %1757, %v1277
      %v1759 = vpop.permute.xlu0 %1758
      %1761 = vset.pattern.permute.xlu0 7
      %1762 = vperm.xlu0 %1761, %v1278
      %v1763 = vpop.permute.xlu0 %1762
      %1765 = vset.pattern.permute.xlu0 7
      %1766 = vperm.xlu0 %1765, %v1279
      %v1767 = vpop.permute.xlu0 %1766
      %1769 = vset.pattern.permute.xlu0 7
      %1770 = vperm.xlu0 %1769, %v1280
      %v1771 = vpop.permute.xlu0 %1770
      %v1773 = vmul.f32 %v1553, %v1759
      %v1774 = vmul.f32 %v1554, %v1759
      %v1775 = vmul.f32 %v1555, %v1759
      %v1776 = vmul.f32 %v1556, %v1763
      %v1777 = vmul.f32 %v1557, %v1763
      %v1778 = vmul.f32 %v1558, %v1763
      %v1779 = vmul.f32 %v1559, %v1767
      %v1780 = vmul.f32 %v1560, %v1767
      %v1781 = vmul.f32 %v1561, %v1767
      %v1782 = vmul.f32 %v1562, %v1771
      %v1783 = vmul.f32 %v1563, %v1771
      %v1784 = vmul.f32 %v1564, %v1771
      %1797 = vrot.lane.b32.xlu0 %v1773, 96
      %v1798 = vpop.permute.xlu0 %1797
      %1799 = vrot.lane.b32.xlu0 %v1774, 96
      %v1800 = vpop.permute.xlu0 %1799
      %1801 = vrot.lane.b32.xlu0 %v1775, 96
      %v1802 = vpop.permute.xlu0 %1801
      %1803 = vrot.lane.b32.xlu0 %v1776, 96
      %v1804 = vpop.permute.xlu0 %1803
      %1805 = vrot.lane.b32.xlu0 %v1777, 96
      %v1806 = vpop.permute.xlu0 %1805
      %1807 = vrot.lane.b32.xlu0 %v1778, 96
      %v1808 = vpop.permute.xlu0 %1807
      %1809 = vrot.lane.b32.xlu0 %v1779, 96
      %v1810 = vpop.permute.xlu0 %1809
      %1811 = vrot.lane.b32.xlu0 %v1780, 96
      %v1812 = vpop.permute.xlu0 %1811
      %1813 = vrot.lane.b32.xlu0 %v1781, 96
      %v1814 = vpop.permute.xlu0 %1813
      %1815 = vrot.lane.b32.xlu0 %v1782, 96
      %v1816 = vpop.permute.xlu0 %1815
      %1817 = vrot.lane.b32.xlu0 %v1783, 96
      %v1818 = vpop.permute.xlu0 %1817
      %1819 = vrot.lane.b32.xlu0 %v1784, 96
      %v1820 = vpop.permute.xlu0 %1819
      %v1821 = vsel %vm987, %v1798, %v1800
      %v1822 = vsel %vm987, %v1800, %v1802
      %v1823 = vsel %vm987, %v1804, %v1806
      %v1824 = vsel %vm987, %v1806, %v1808
      %v1825 = vsel %vm987, %v1810, %v1812
      %v1826 = vsel %vm987, %v1812, %v1814
      %v1827 = vsel %vm987, %v1816, %v1818
      %v1828 = vsel %vm987, %v1818, %v1820
      %v1841 = vadd.f32 %v1541, %v1798
      %v1842 = vadd.f32 %v1542, %v1821
      %v1843 = vadd.f32 %v1543, %v1822
      %v1844 = vadd.f32 %v1544, %v1804
      %v1845 = vadd.f32 %v1545, %v1823
      %v1846 = vadd.f32 %v1546, %v1824
      %v1847 = vadd.f32 %v1547, %v1810
      %v1848 = vadd.f32 %v1548, %v1825
      %v1849 = vadd.f32 %v1549, %v1826
      %v1850 = vadd.f32 %v1550, %v1816
      %v1851 = vadd.f32 %v1551, %v1827
      %v1852 = vadd.f32 %v1552, %v1828
      %1853 = vset.pattern.permute.xlu0 8
      %1854 = vperm.xlu0 %1853, %v1277
      %v1855 = vpop.permute.xlu0 %1854
      %1857 = vset.pattern.permute.xlu0 8
      %1858 = vperm.xlu0 %1857, %v1278
      %v1859 = vpop.permute.xlu0 %1858
      %1861 = vset.pattern.permute.xlu0 8
      %1862 = vperm.xlu0 %1861, %v1279
      %v1863 = vpop.permute.xlu0 %1862
      %1865 = vset.pattern.permute.xlu0 8
      %1866 = vperm.xlu0 %1865, %v1280
      %v1867 = vpop.permute.xlu0 %1866
      %v1869 = vmul.f32 %v1553, %v1855
      %v1870 = vmul.f32 %v1554, %v1855
      %v1871 = vmul.f32 %v1555, %v1855
      %v1872 = vmul.f32 %v1556, %v1859
      %v1873 = vmul.f32 %v1557, %v1859
      %v1874 = vmul.f32 %v1558, %v1859
      %v1875 = vmul.f32 %v1559, %v1863
      %v1876 = vmul.f32 %v1560, %v1863
      %v1877 = vmul.f32 %v1561, %v1863
      %v1878 = vmul.f32 %v1562, %v1867
      %v1879 = vmul.f32 %v1563, %v1867
      %v1880 = vmul.f32 %v1564, %v1867
      %1893 = vrot.lane.b32.xlu0 %v1869, 96
      %v1894 = vpop.permute.xlu0 %1893
      %1895 = vrot.lane.b32.xlu0 %v1870, 96
      %v1896 = vpop.permute.xlu0 %1895
      %1897 = vrot.lane.b32.xlu0 %v1871, 96
      %v1898 = vpop.permute.xlu0 %1897
      %1899 = vrot.lane.b32.xlu0 %v1872, 96
      %v1900 = vpop.permute.xlu0 %1899
      %1901 = vrot.lane.b32.xlu0 %v1873, 96
      %v1902 = vpop.permute.xlu0 %1901
      %1903 = vrot.lane.b32.xlu0 %v1874, 96
      %v1904 = vpop.permute.xlu0 %1903
      %1905 = vrot.lane.b32.xlu0 %v1875, 96
      %v1906 = vpop.permute.xlu0 %1905
      %1907 = vrot.lane.b32.xlu0 %v1876, 96
      %v1908 = vpop.permute.xlu0 %1907
      %1909 = vrot.lane.b32.xlu0 %v1877, 96
      %v1910 = vpop.permute.xlu0 %1909
      %1911 = vrot.lane.b32.xlu0 %v1878, 96
      %v1912 = vpop.permute.xlu0 %1911
      %1913 = vrot.lane.b32.xlu0 %v1879, 96
      %v1914 = vpop.permute.xlu0 %1913
      %1915 = vrot.lane.b32.xlu0 %v1880, 96
      %v1916 = vpop.permute.xlu0 %1915
      %v1917 = vsel %vm987, %v1894, %v1896
      %v1918 = vsel %vm987, %v1896, %v1898
      %v1919 = vsel %vm987, %v1900, %v1902
      %v1920 = vsel %vm987, %v1902, %v1904
      %v1921 = vsel %vm987, %v1906, %v1908
      %v1922 = vsel %vm987, %v1908, %v1910
      %v1923 = vsel %vm987, %v1912, %v1914
      %v1924 = vsel %vm987, %v1914, %v1916
      %v1937 = vadd.f32 %v1649, %v1894
      %v1938 = vadd.f32 %v1650, %v1917
      %v1939 = vadd.f32 %v1651, %v1918
      %v1940 = vadd.f32 %v1652, %v1900
      %v1941 = vadd.f32 %v1653, %v1919
      %v1942 = vadd.f32 %v1654, %v1920
      %v1943 = vadd.f32 %v1655, %v1906
      %v1944 = vadd.f32 %v1656, %v1921
      %v1945 = vadd.f32 %v1657, %v1922
      %v1946 = vadd.f32 %v1658, %v1912
      %v1947 = vadd.f32 %v1659, %v1923
      %v1948 = vadd.f32 %v1660, %v1924
      %v1949 = vmul.f32 %v1745, %v1110
      %v1950 = vmul.f32 %v1746, %v1114
      %v1951 = vmul.f32 %v1747, %v1112
      %v1952 = vmul.f32 %v1748, %v1110
      %v1953 = vmul.f32 %v1749, %v1114
      %v1954 = vmul.f32 %v1750, %v1112
      %v1955 = vmul.f32 %v1751, %v1110
      %v1956 = vmul.f32 %v1752, %v1114
      %v1957 = vmul.f32 %v1753, %v1112
      %v1958 = vmul.f32 %v1754, %v1110
      %v1959 = vmul.f32 %v1755, %v1114
      %v1960 = vmul.f32 %v1756, %v1112
      %1973 = vrot.lane.b32.xlu0 %v1949, 1
      %v1974 = vpop.permute.xlu0 %1973
      %1975 = vrot.lane.b32.xlu0 %v1950, 1
      %v1976 = vpop.permute.xlu0 %1975
      %1977 = vrot.lane.b32.xlu0 %v1951, 1
      %v1978 = vpop.permute.xlu0 %1977
      %1979 = vrot.lane.b32.xlu0 %v1952, 1
      %v1980 = vpop.permute.xlu0 %1979
      %1981 = vrot.lane.b32.xlu0 %v1953, 1
      %v1982 = vpop.permute.xlu0 %1981
      %1983 = vrot.lane.b32.xlu0 %v1954, 1
      %v1984 = vpop.permute.xlu0 %1983
      %1985 = vrot.lane.b32.xlu0 %v1955, 1
      %v1986 = vpop.permute.xlu0 %1985
      %1987 = vrot.lane.b32.xlu0 %v1956, 1
      %v1988 = vpop.permute.xlu0 %1987
      %1989 = vrot.lane.b32.xlu0 %v1957, 1
      %v1990 = vpop.permute.xlu0 %1989
      %1991 = vrot.lane.b32.xlu0 %v1958, 1
      %v1992 = vpop.permute.xlu0 %1991
      %1993 = vrot.lane.b32.xlu0 %v1959, 1
      %v1994 = vpop.permute.xlu0 %1993
      %1995 = vrot.lane.b32.xlu0 %v1960, 1
      %v1996 = vpop.permute.xlu0 %1995
      %v1997 = vsel %vm1142, %v1974, %v1976
      %v1998 = vsel %vm1142, %v1976, %v1978
      %v1999 = vsel %vm1142, %v1980, %v1982
      %v2000 = vsel %vm1142, %v1982, %v1984
      %v2001 = vsel %vm1142, %v1986, %v1988
      %v2002 = vsel %vm1142, %v1988, %v1990
      %v2003 = vsel %vm1142, %v1992, %v1994
      %v2004 = vsel %vm1142, %v1994, %v1996
      %v2017 = vadd.f32 %v1841, %v1974
      %v2018 = vadd.f32 %v1842, %v1997
      %v2019 = vadd.f32 %v1843, %v1998
      %v2020 = vadd.f32 %v1844, %v1980
      %v2021 = vadd.f32 %v1845, %v1999
      %v2022 = vadd.f32 %v1846, %v2000
      %v2023 = vadd.f32 %v1847, %v1986
      %v2024 = vadd.f32 %v1848, %v2001
      %v2025 = vadd.f32 %v1849, %v2002
      %v2026 = vadd.f32 %v1850, %v1992
      %v2027 = vadd.f32 %v1851, %v2003
      %v2028 = vadd.f32 %v1852, %v2004
      %v2029 = vmul.f32 %v1937, %v1169
      %v2030 = vmul.f32 %v1938, %v1173
      %v2031 = vmul.f32 %v1939, %v1171
      %v2032 = vmul.f32 %v1940, %v1169
      %v2033 = vmul.f32 %v1941, %v1173
      %v2034 = vmul.f32 %v1942, %v1171
      %v2035 = vmul.f32 %v1943, %v1169
      %v2036 = vmul.f32 %v1944, %v1173
      %v2037 = vmul.f32 %v1945, %v1171
      %v2038 = vmul.f32 %v1946, %v1169
      %v2039 = vmul.f32 %v1947, %v1173
      %v2040 = vmul.f32 %v1948, %v1171
      %2053 = vrot.lane.b32.xlu0 %v2029, 127
      %v2054 = vpop.permute.xlu0 %2053
      %2055 = vrot.lane.b32.xlu0 %v2030, 127
      %v2056 = vpop.permute.xlu0 %2055
      %2057 = vrot.lane.b32.xlu0 %v2031, 127
      %v2058 = vpop.permute.xlu0 %2057
      %2059 = vrot.lane.b32.xlu0 %v2032, 127
      %v2060 = vpop.permute.xlu0 %2059
      %2061 = vrot.lane.b32.xlu0 %v2033, 127
      %v2062 = vpop.permute.xlu0 %2061
      %2063 = vrot.lane.b32.xlu0 %v2034, 127
      %v2064 = vpop.permute.xlu0 %2063
      %2065 = vrot.lane.b32.xlu0 %v2035, 127
      %v2066 = vpop.permute.xlu0 %2065
      %2067 = vrot.lane.b32.xlu0 %v2036, 127
      %v2068 = vpop.permute.xlu0 %2067
      %2069 = vrot.lane.b32.xlu0 %v2037, 127
      %v2070 = vpop.permute.xlu0 %2069
      %2071 = vrot.lane.b32.xlu0 %v2038, 127
      %v2072 = vpop.permute.xlu0 %2071
      %2073 = vrot.lane.b32.xlu0 %v2039, 127
      %v2074 = vpop.permute.xlu0 %2073
      %2075 = vrot.lane.b32.xlu0 %v2040, 127
      %v2076 = vpop.permute.xlu0 %2075
      %v2077 = vsel %vm1201, %v2054, %v2056
      %v2078 = vsel %vm1201, %v2056, %v2058
      %v2079 = vsel %vm1201, %v2060, %v2062
      %v2080 = vsel %vm1201, %v2062, %v2064
      %v2081 = vsel %vm1201, %v2066, %v2068
      %v2082 = vsel %vm1201, %v2068, %v2070
      %v2083 = vsel %vm1201, %v2072, %v2074
      %v2084 = vsel %vm1201, %v2074, %v2076
      %v2097 = vadd.f32 %v2017, %v2077
      %v2098 = vadd.f32 %v2018, %v2078
      %v2099 = vadd.f32 %v2019, %v2058
      %v2100 = vadd.f32 %v2020, %v2079
      %v2101 = vadd.f32 %v2021, %v2080
      %v2102 = vadd.f32 %v2022, %v2064
      %v2103 = vadd.f32 %v2023, %v2081
      %v2104 = vadd.f32 %v2024, %v2082
      %v2105 = vadd.f32 %v2025, %v2070
      %v2106 = vadd.f32 %v2026, %v2083
      %v2107 = vadd.f32 %v2027, %v2084
      %v2108 = vadd.f32 %v2028, %v2076
      %v2109 = vld [vmem:[%s7] sm:$0xff]
      %v2110 = vld [vmem:[%s7 + $0x8] sm:$0xff]
      %v2111 = vld [vmem:[%s8] sm:$0xff]
      %v2112 = vld [vmem:[%s8 + $0x8] sm:$0xff]
      %2114 = vset.pattern.permute.xlu0 0
      %2115 = vperm.xlu0 %2114, %v2111
      %v2116 = vpop.permute.xlu0 %2115
      %2119 = vset.pattern.permute.xlu0 0
      %2120 = vperm.xlu0 %2119, %v2112
      %v2121 = vpop.permute.xlu0 %2120
      %2135 = vrot.lane.b32.xlu0 %v2097, 16
      %v2136 = vpop.permute.xlu0 %2135
      %2137 = vrot.lane.b32.xlu0 %v2098, 16
      %v2138 = vpop.permute.xlu0 %2137
      %2139 = vrot.lane.b32.xlu0 %v2099, 16
      %v2140 = vpop.permute.xlu0 %2139
      %2141 = vrot.lane.b32.xlu0 %v2100, 16
      %v2142 = vpop.permute.xlu0 %2141
      %2143 = vrot.lane.b32.xlu0 %v2101, 16
      %v2144 = vpop.permute.xlu0 %2143
      %2145 = vrot.lane.b32.xlu0 %v2102, 16
      %v2146 = vpop.permute.xlu0 %2145
      %2147 = vrot.lane.b32.xlu0 %v2103, 16
      %v2148 = vpop.permute.xlu0 %2147
      %2149 = vrot.lane.b32.xlu0 %v2104, 16
      %v2150 = vpop.permute.xlu0 %2149
      %2151 = vrot.lane.b32.xlu0 %v2105, 16
      %v2152 = vpop.permute.xlu0 %2151
      %2153 = vrot.lane.b32.xlu0 %v2106, 16
      %v2154 = vpop.permute.xlu0 %2153
      %2155 = vrot.lane.b32.xlu0 %v2107, 16
      %v2156 = vpop.permute.xlu0 %2155
      %2157 = vrot.lane.b32.xlu0 %v2108, 16
      %v2158 = vpop.permute.xlu0 %2157
      %v2159 = vsel %vm1260, %v2136, %v2138
      %v2160 = vsel %vm1260, %v2138, %v2140
      %v2161 = vsel %vm1260, %v2142, %v2144
      %v2162 = vsel %vm1260, %v2144, %v2146
      %v2163 = vsel %vm1260, %v2148, %v2150
      %v2164 = vsel %vm1260, %v2150, %v2152
      %v2165 = vsel %vm1260, %v2154, %v2156
      %v2166 = vsel %vm1260, %v2156, %v2158
      %vm2175 = vcmask 261120
      %v2177 = vsel %vm2175, %v2109, 0
      %v2180 = vsel %vm2175, %v2110, 0
      %2182 = vmatprep.subr.mxu0 %v2160
      %2183 = vmatpush1.msra.mxu0 %v2159
      %2184 = vmatprep.subr.mxu0 %v2162
      %2185 = vmatpush1.msra.mxu0 %v2161
      %2186 = vmatprep.subr.mxu0 %v2164
      %2187 = vmatpush1.msra.mxu0 %v2163
      %2188 = vmatprep.subr.mxu0 %v2166
      %2189 = vmatpush1.msra.mxu0 %v2165
      %2190 = vmatprep.subr.mxu0 0.0
      %2191 = vmatpush1.msra.mxu0 0.0
      %2192 = vmatprep.subr.mxu0 0.0
      %2193 = vmatpush1.msra.mxu0 0.0
      %2194 = vmatprep.subr.mxu0 0.0
      %2195 = vmatpush1.msra.mxu0 0.0
      %2196 = vmatprep.subr.mxu0 0.0
      %2197 = vmatpush1.msra.mxu0 0.0
      %2198 = vmatprep.subr.mxu0 0.0
      %2199 = vmatpush1.msra.mxu0 0.0
      %2200 = vmatprep.subr.mxu0 0.0
      %2201 = vmatpush1.msra.mxu0 0.0
      %2202 = vmatprep.subr.mxu0 0.0
      %2203 = vmatpush1.msra.mxu0 0.0
      %2204 = vmatprep.subr.mxu0 0.0
      %2205 = vmatpush1.msra.mxu0 0.0
      %2206 = vmatprep.subr.mxu0 0.0
      %2207 = vmatpush1.msra.mxu0 0.0
      %2208 = vmatprep.subr.mxu0 0.0
      %2209 = vmatpush1.msra.mxu0 0.0
      %2210 = vmatprep.subr.mxu0 0.0
      %2211 = vmatpush1.msra.mxu0 0.0
      %2212 = vmatprep.subr.mxu0 0.0
      %2213 = vmatpush1.msra.mxu0 0.0
      %2214 = vmatprep.subr.mxu0 0.0
      %2215 = vmatpush1.msra.mxu0 0.0
      %2216 = vmatprep.subr.mxu0 0.0
      %2217 = vmatpush1.msra.mxu0 0.0
      %2218 = vmatprep.subr.mxu0 0.0
      %2219 = vmatpush1.msra.mxu0 0.0
      %2220 = vmatprep.subr.mxu0 0.0
      %2221 = vmatpush1.msra.mxu0 0.0
      %2222 = vmatprep.subr.mxu0 0.0
      %2223 = vmatpush1.msra.mxu0 0.0
      %2224 = vmatprep.subr.mxu0 0.0
      %2225 = vmatpush1.msra.mxu0 0.0
      %2226 = vmatprep.subr.mxu0 0.0
      %2227 = vmatpush1.msra.mxu0 0.0
      %2228 = vmatprep.subr.mxu0 0.0
      %2229 = vmatpush1.msra.mxu0 0.0
      %2230 = vmatprep.subr.mxu0 0.0
      %2231 = vmatpush1.msra.mxu0 0.0
      %2232 = vmatprep.subr.mxu0 0.0
      %2233 = vmatpush1.msra.mxu0 0.0
      %2234 = vmatprep.subr.mxu0 0.0
      %2235 = vmatpush1.msra.mxu0 0.0
      %2236 = vmatprep.subr.mxu0 0.0
      %2237 = vmatpush1.msra.mxu0 0.0
      %2238 = vmatprep.subr.mxu0 0.0
      %2239 = vmatpush1.msra.mxu0 0.0
      %2240 = vmatprep.subr.mxu0 0.0
      %2241 = vmatpush1.msra.mxu0 0.0
      %2242 = vmatprep.subr.mxu0 0.0
      %2243 = vmatpush1.msra.mxu0 0.0
      %2244 = vmatprep.subr.mxu0 0.0
      %2245 = vmatpush1.msra.mxu0 0.0
      %2246 = vmatprep.mubr.f32.mxu0 0.0
      %2247 = vmatmul.mubr.f32.gmra.mrb[0].mxu0 %v2177
      %v2248 = vpop.f32.mrb[0].mxu0
      %v2249 = vadd.f32 %v2116, %v2248
      %v2250 = vpop.f32.mrb[0].mxu0
      %v2251 = vadd.f32 %v2116, %v2250
      %2252 = vmatprep.mubr.f32.mxu0 0.0
      %2253 = vmatmul.mubr.f32.gmra.mrb[0].mxu0 %v2180
      %v2254 = vpop.f32.mrb[0].mxu0
      %v2255 = vadd.f32 %v2121, %v2254
      %v2256 = vpop.f32.mrb[0].mxu0
      %v2257 = vadd.f32 %v2121, %v2256
      %2258 = vdwg.mxu0
      %v2259 = vmax.f32 %v2249, 0.0
      %v2260 = vmax.f32 %v2251, 0.0
      %v2261 = vmax.f32 %v2255, 0.0
      %v2262 = vmax.f32 %v2257, 0.0
      %2263 = vst [vmem:[#allocation2 + $0x8] sm:$0xff] %v2259
      %2264 = vst [vmem:[#allocation2 + $0x10] sm:$0xff] %v2260
      %2265 = vst [vmem:[#allocation2 + $0x28] sm:$0xff] %v2261
      %2266 = vst [vmem:[#allocation2 + $0x30] sm:$0xff] %v2262
      %2267 = vst [vmem:[#allocation2 + $0x48] sm:$0xff] %v754
      %2268 = vst [vmem:[#allocation2 + $0x50] sm:$0xff] %v755
      %2269 = vst [vmem:[#allocation2 + $0x68] sm:$0xff] %v756
      %2270 = vst [vmem:[#allocation2 + $0x70] sm:$0xff] %v757
      %v2271 = vld [vmem:[%s9] sm:$0xff]
      %v2272 = vld [vmem:[%s9 + $0x8] sm:$0xff]
      %v2273 = vld [vmem:[%s9 + $0x10] sm:$0xff]
      %v2274 = vld [vmem:[%s9 + $0x18] sm:$0xff]
      %v2275 = vld [vmem:[#allocation2] sm:$0xff]
      %v2276 = vld [vmem:[#allocation2 + $0x8] sm:$0xff]
      %v2277 = vld [vmem:[#allocation2 + $0x10] sm:$0xff]
      %v2278 = vld [vmem:[#allocation2 + $0x20] sm:$0xff]
      %v2279 = vld [vmem:[#allocation2 + $0x28] sm:$0xff]
      %v2280 = vld [vmem:[#allocation2 + $0x30] sm:$0xff]
      %v2281 = vld [vmem:[#allocation2 + $0x40] sm:$0xff]
      %v2282 = vld [vmem:[#allocation2 + $0x48] sm:$0xff]
      %v2283 = vld [vmem:[#allocation2 + $0x50] sm:$0xff]
      %v2284 = vld [vmem:[#allocation2 + $0x60] sm:$0xff]
      %v2285 = vld [vmem:[#allocation2 + $0x68] sm:$0xff]
      %v2286 = vld [vmem:[#allocation2 + $0x70] sm:$0xff]
      %2288 = vset.pattern.permute.xlu0 0
      %2289 = vperm.xlu0 %2288, %v2271
      %v2290 = vpop.permute.xlu0 %2289
      %2293 = vset.pattern.permute.xlu0 0
      %2294 = vperm.xlu0 %2293, %v2272
      %v2295 = vpop.permute.xlu0 %2294
      %2298 = vset.pattern.permute.xlu0 0
      %2299 = vperm.xlu0 %2298, %v2273
      %v2300 = vpop.permute.xlu0 %2299
      %2303 = vset.pattern.permute.xlu0 0
      %2304 = vperm.xlu0 %2303, %v2274
      %v2305 = vpop.permute.xlu0 %2304
      %v2307 = vmul.f32 %v2275, %v2290
      %v2308 = vmul.f32 %v2276, %v2290
      %v2309 = vmul.f32 %v2277, %v2290
      %v2310 = vmul.f32 %v2278, %v2295
      %v2311 = vmul.f32 %v2279, %v2295
      %v2312 = vmul.f32 %v2280, %v2295
      %v2313 = vmul.f32 %v2281, %v2300
      %v2314 = vmul.f32 %v2282, %v2300
      %v2315 = vmul.f32 %v2283, %v2300
      %v2316 = vmul.f32 %v2284, %v2305
      %v2317 = vmul.f32 %v2285, %v2305
      %v2318 = vmul.f32 %v2286, %v2305
      %2319 = vset.pattern.permute.xlu0 1
      %2320 = vperm.xlu0 %2319, %v2271
      %v2321 = vpop.permute.xlu0 %2320
      %2323 = vset.pattern.permute.xlu0 1
      %2324 = vperm.xlu0 %2323, %v2272
      %v2325 = vpop.permute.xlu0 %2324
      %2327 = vset.pattern.permute.xlu0 1
      %2328 = vperm.xlu0 %2327, %v2273
      %v2329 = vpop.permute.xlu0 %2328
      %2331 = vset.pattern.permute.xlu0 1
      %2332 = vperm.xlu0 %2331, %v2274
      %v2333 = vpop.permute.xlu0 %2332
      %v2335 = vmul.f32 %v2275, %v2321
      %v2336 = vmul.f32 %v2276, %v2321
      %v2337 = vmul.f32 %v2277, %v2321
      %v2338 = vmul.f32 %v2278, %v2325
      %v2339 = vmul.f32 %v2279, %v2325
      %v2340 = vmul.f32 %v2280, %v2325
      %v2341 = vmul.f32 %v2281, %v2329
      %v2342 = vmul.f32 %v2282, %v2329
      %v2343 = vmul.f32 %v2283, %v2329
      %v2344 = vmul.f32 %v2284, %v2333
      %v2345 = vmul.f32 %v2285, %v2333
      %v2346 = vmul.f32 %v2286, %v2333
      %2347 = vset.pattern.permute.xlu0 2
      %2348 = vperm.xlu0 %2347, %v2271
      %v2349 = vpop.permute.xlu0 %2348
      %2351 = vset.pattern.permute.xlu0 2
      %2352 = vperm.xlu0 %2351, %v2272
      %v2353 = vpop.permute.xlu0 %2352
      %2355 = vset.pattern.permute.xlu0 2
      %2356 = vperm.xlu0 %2355, %v2273
      %v2357 = vpop.permute.xlu0 %2356
      %2359 = vset.pattern.permute.xlu0 2
      %2360 = vperm.xlu0 %2359, %v2274
      %v2361 = vpop.permute.xlu0 %2360
      %v2363 = vmul.f32 %v2275, %v2349
      %v2364 = vmul.f32 %v2276, %v2349
      %v2365 = vmul.f32 %v2277, %v2349
      %v2366 = vmul.f32 %v2278, %v2353
      %v2367 = vmul.f32 %v2279, %v2353
      %v2368 = vmul.f32 %v2280, %v2353
      %v2369 = vmul.f32 %v2281, %v2357
      %v2370 = vmul.f32 %v2282, %v2357
      %v2371 = vmul.f32 %v2283, %v2357
      %v2372 = vmul.f32 %v2284, %v2361
      %v2373 = vmul.f32 %v2285, %v2361
      %v2374 = vmul.f32 %v2286, %v2361
      %2375 = vset.pattern.permute.xlu0 3
      %2376 = vperm.xlu0 %2375, %v2271
      %v2377 = vpop.permute.xlu0 %2376
      %2379 = vset.pattern.permute.xlu0 3
      %2380 = vperm.xlu0 %2379, %v2272
      %v2381 = vpop.permute.xlu0 %2380
      %2383 = vset.pattern.permute.xlu0 3
      %2384 = vperm.xlu0 %2383, %v2273
      %v2385 = vpop.permute.xlu0 %2384
      %2387 = vset.pattern.permute.xlu0 3
      %2388 = vperm.xlu0 %2387, %v2274
      %v2389 = vpop.permute.xlu0 %2388
      %v2391 = vmul.f32 %v2275, %v2377
      %v2392 = vmul.f32 %v2276, %v2377
      %v2393 = vmul.f32 %v2277, %v2377
      %v2394 = vmul.f32 %v2278, %v2381
      %v2395 = vmul.f32 %v2279, %v2381
      %v2396 = vmul.f32 %v2280, %v2381
      %v2397 = vmul.f32 %v2281, %v2385
      %v2398 = vmul.f32 %v2282, %v2385
      %v2399 = vmul.f32 %v2283, %v2385
      %v2400 = vmul.f32 %v2284, %v2389
      %v2401 = vmul.f32 %v2285, %v2389
      %v2402 = vmul.f32 %v2286, %v2389
      %2415 = vrot.lane.b32.xlu0 %v2391, 112
      %v2416 = vpop.permute.xlu0 %2415
      %2417 = vrot.lane.b32.xlu0 %v2392, 112
      %v2418 = vpop.permute.xlu0 %2417
      %2419 = vrot.lane.b32.xlu0 %v2393, 112
      %v2420 = vpop.permute.xlu0 %2419
      %2421 = vrot.lane.b32.xlu0 %v2394, 112
      %v2422 = vpop.permute.xlu0 %2421
      %2423 = vrot.lane.b32.xlu0 %v2395, 112
      %v2424 = vpop.permute.xlu0 %2423
      %2425 = vrot.lane.b32.xlu0 %v2396, 112
      %v2426 = vpop.permute.xlu0 %2425
      %2427 = vrot.lane.b32.xlu0 %v2397, 112
      %v2428 = vpop.permute.xlu0 %2427
      %2429 = vrot.lane.b32.xlu0 %v2398, 112
      %v2430 = vpop.permute.xlu0 %2429
      %2431 = vrot.lane.b32.xlu0 %v2399, 112
      %v2432 = vpop.permute.xlu0 %2431
      %2433 = vrot.lane.b32.xlu0 %v2400, 112
      %v2434 = vpop.permute.xlu0 %2433
      %2435 = vrot.lane.b32.xlu0 %v2401, 112
      %v2436 = vpop.permute.xlu0 %2435
      %2437 = vrot.lane.b32.xlu0 %v2402, 112
      %v2438 = vpop.permute.xlu0 %2437
      %v2439 = vsel %vm846, %v2416, %v2418
      %v2440 = vsel %vm846, %v2418, %v2420
      %v2441 = vsel %vm846, %v2422, %v2424
      %v2442 = vsel %vm846, %v2424, %v2426
      %v2443 = vsel %vm846, %v2428, %v2430
      %v2444 = vsel %vm846, %v2430, %v2432
      %v2445 = vsel %vm846, %v2434, %v2436
      %v2446 = vsel %vm846, %v2436, %v2438
      %v2459 = vadd.f32 %v2307, %v2439
      %v2460 = vadd.f32 %v2308, %v2440
      %v2461 = vadd.f32 %v2309, %v2420
      %v2462 = vadd.f32 %v2310, %v2441
      %v2463 = vadd.f32 %v2311, %v2442
      %v2464 = vadd.f32 %v2312, %v2426
      %v2465 = vadd.f32 %v2313, %v2443
      %v2466 = vadd.f32 %v2314, %v2444
      %v2467 = vadd.f32 %v2315, %v2432
      %v2468 = vadd.f32 %v2316, %v2445
      %v2469 = vadd.f32 %v2317, %v2446
      %v2470 = vadd.f32 %v2318, %v2438
      %2471 = vset.pattern.permute.xlu0 4
      %2472 = vperm.xlu0 %2471, %v2271
      %v2473 = vpop.permute.xlu0 %2472
      %2475 = vset.pattern.permute.xlu0 4
      %2476 = vperm.xlu0 %2475, %v2272
      %v2477 = vpop.permute.xlu0 %2476
      %2479 = vset.pattern.permute.xlu0 4
      %2480 = vperm.xlu0 %2479, %v2273
      %v2481 = vpop.permute.xlu0 %2480
      %2483 = vset.pattern.permute.xlu0 4
      %2484 = vperm.xlu0 %2483, %v2274
      %v2485 = vpop.permute.xlu0 %2484
      %v2487 = vmul.f32 %v2276, %v2473
      %v2488 = vmul.f32 %v2277, %v2473
      %v2489 = vmul.f32 %v2279, %v2477
      %v2490 = vmul.f32 %v2280, %v2477
      %v2491 = vmul.f32 %v2282, %v2481
      %v2492 = vmul.f32 %v2283, %v2481
      %v2493 = vmul.f32 %v2285, %v2485
      %v2494 = vmul.f32 %v2286, %v2485
      %2503 = vrot.lane.b32.xlu0 %v2487, 112
      %v2504 = vpop.permute.xlu0 %2503
      %2505 = vrot.lane.b32.xlu0 %v2488, 112
      %v2506 = vpop.permute.xlu0 %2505
      %2507 = vrot.lane.b32.xlu0 %v2489, 112
      %v2508 = vpop.permute.xlu0 %2507
      %2509 = vrot.lane.b32.xlu0 %v2490, 112
      %v2510 = vpop.permute.xlu0 %2509
      %2511 = vrot.lane.b32.xlu0 %v2491, 112
      %v2512 = vpop.permute.xlu0 %2511
      %2513 = vrot.lane.b32.xlu0 %v2492, 112
      %v2514 = vpop.permute.xlu0 %2513
      %2515 = vrot.lane.b32.xlu0 %v2493, 112
      %v2516 = vpop.permute.xlu0 %2515
      %2517 = vrot.lane.b32.xlu0 %v2494, 112
      %v2518 = vpop.permute.xlu0 %2517
      %v2519 = vsel %vm846, %v2504, %v2506
      %v2520 = vsel %vm846, %v2508, %v2510
      %v2521 = vsel %vm846, %v2512, %v2514
      %v2522 = vsel %vm846, %v2516, %v2518
      %v2535 = vadd.f32 %v2335, %v2504
      %v2536 = vadd.f32 %v2336, %v2519
      %v2537 = vadd.f32 %v2337, %v2506
      %v2538 = vadd.f32 %v2338, %v2508
      %v2539 = vadd.f32 %v2339, %v2520
      %v2540 = vadd.f32 %v2340, %v2510
      %v2541 = vadd.f32 %v2341, %v2512
      %v2542 = vadd.f32 %v2342, %v2521
      %v2543 = vadd.f32 %v2343, %v2514
      %v2544 = vadd.f32 %v2344, %v2516
      %v2545 = vadd.f32 %v2345, %v2522
      %v2546 = vadd.f32 %v2346, %v2518
      %v2547 = vld [vmem:[#allocation2 + $0x8] sm:$0xff]
      %v2548 = vld [vmem:[#allocation2 + $0x10] sm:$0xff]
      %v2549 = vld [vmem:[#allocation2 + $0x18] sm:$0xff]
      %v2550 = vld [vmem:[#allocation2 + $0x28] sm:$0xff]
      %v2551 = vld [vmem:[#allocation2 + $0x30] sm:$0xff]
      %v2552 = vld [vmem:[#allocation2 + $0x38] sm:$0xff]
      %v2553 = vld [vmem:[#allocation2 + $0x48] sm:$0xff]
      %v2554 = vld [vmem:[#allocation2 + $0x50] sm:$0xff]
      %v2555 = vld [vmem:[#allocation2 + $0x58] sm:$0xff]
      %v2556 = vld [vmem:[#allocation2 + $0x68] sm:$0xff]
      %v2557 = vld [vmem:[#allocation2 + $0x70] sm:$0xff]
      %v2558 = vld [vmem:[#allocation2 + $0x78] sm:$0xff]
      %2559 = vset.pattern.permute.xlu0 5
      %2560 = vperm.xlu0 %2559, %v2271
      %v2561 = vpop.permute.xlu0 %2560
      %2563 = vset.pattern.permute.xlu0 5
      %2564 = vperm.xlu0 %2563, %v2272
      %v2565 = vpop.permute.xlu0 %2564
      %2567 = vset.pattern.permute.xlu0 5
      %2568 = vperm.xlu0 %2567, %v2273
      %v2569 = vpop.permute.xlu0 %2568
      %2571 = vset.pattern.permute.xlu0 5
      %2572 = vperm.xlu0 %2571, %v2274
      %v2573 = vpop.permute.xlu0 %2572
      %v2575 = vmul.f32 %v2547, %v2561
      %v2576 = vmul.f32 %v2548, %v2561
      %v2577 = vmul.f32 %v2549, %v2561
      %v2578 = vmul.f32 %v2550, %v2565
      %v2579 = vmul.f32 %v2551, %v2565
      %v2580 = vmul.f32 %v2552, %v2565
      %v2581 = vmul.f32 %v2553, %v2569
      %v2582 = vmul.f32 %v2554, %v2569
      %v2583 = vmul.f32 %v2555, %v2569
      %v2584 = vmul.f32 %v2556, %v2573
      %v2585 = vmul.f32 %v2557, %v2573
      %v2586 = vmul.f32 %v2558, %v2573
      %2599 = vrot.lane.b32.xlu0 %v2575, 112
      %v2600 = vpop.permute.xlu0 %2599
      %2601 = vrot.lane.b32.xlu0 %v2576, 112
      %v2602 = vpop.permute.xlu0 %2601
      %2603 = vrot.lane.b32.xlu0 %v2577, 112
      %v2604 = vpop.permute.xlu0 %2603
      %2605 = vrot.lane.b32.xlu0 %v2578, 112
      %v2606 = vpop.permute.xlu0 %2605
      %2607 = vrot.lane.b32.xlu0 %v2579, 112
      %v2608 = vpop.permute.xlu0 %2607
      %2609 = vrot.lane.b32.xlu0 %v2580, 112
      %v2610 = vpop.permute.xlu0 %2609
      %2611 = vrot.lane.b32.xlu0 %v2581, 112
      %v2612 = vpop.permute.xlu0 %2611
      %2613 = vrot.lane.b32.xlu0 %v2582, 112
      %v2614 = vpop.permute.xlu0 %2613
      %2615 = vrot.lane.b32.xlu0 %v2583, 112
      %v2616 = vpop.permute.xlu0 %2615
      %2617 = vrot.lane.b32.xlu0 %v2584, 112
      %v2618 = vpop.permute.xlu0 %2617
      %2619 = vrot.lane.b32.xlu0 %v2585, 112
      %v2620 = vpop.permute.xlu0 %2619
      %2621 = vrot.lane.b32.xlu0 %v2586, 112
      %v2622 = vpop.permute.xlu0 %2621
      %v2623 = vsel %vm846, %v2600, %v2602
      %v2624 = vsel %vm846, %v2602, %v2604
      %v2625 = vsel %vm846, %v2606, %v2608
      %v2626 = vsel %vm846, %v2608, %v2610
      %v2627 = vsel %vm846, %v2612, %v2614
      %v2628 = vsel %vm846, %v2614, %v2616
      %v2629 = vsel %vm846, %v2618, %v2620
      %v2630 = vsel %vm846, %v2620, %v2622
      %v2643 = vadd.f32 %v2363, %v2600
      %v2644 = vadd.f32 %v2364, %v2623
      %v2645 = vadd.f32 %v2365, %v2624
      %v2646 = vadd.f32 %v2366, %v2606
      %v2647 = vadd.f32 %v2367, %v2625
      %v2648 = vadd.f32 %v2368, %v2626
      %v2649 = vadd.f32 %v2369, %v2612
      %v2650 = vadd.f32 %v2370, %v2627
      %v2651 = vadd.f32 %v2371, %v2628
      %v2652 = vadd.f32 %v2372, %v2618
      %v2653 = vadd.f32 %v2373, %v2629
      %v2654 = vadd.f32 %v2374, %v2630
      %2655 = vset.pattern.permute.xlu0 6
      %2656 = vperm.xlu0 %2655, %v2271
      %v2657 = vpop.permute.xlu0 %2656
      %2659 = vset.pattern.permute.xlu0 6
      %2660 = vperm.xlu0 %2659, %v2272
      %v2661 = vpop.permute.xlu0 %2660
      %2663 = vset.pattern.permute.xlu0 6
      %2664 = vperm.xlu0 %2663, %v2273
      %v2665 = vpop.permute.xlu0 %2664
      %2667 = vset.pattern.permute.xlu0 6
      %2668 = vperm.xlu0 %2667, %v2274
      %v2669 = vpop.permute.xlu0 %2668
      %v2671 = vmul.f32 %v2547, %v2657
      %v2672 = vmul.f32 %v2548, %v2657
      %v2673 = vmul.f32 %v2549, %v2657
      %v2674 = vmul.f32 %v2550, %v2661
      %v2675 = vmul.f32 %v2551, %v2661
      %v2676 = vmul.f32 %v2552, %v2661
      %v2677 = vmul.f32 %v2553, %v2665
      %v2678 = vmul.f32 %v2554, %v2665
      %v2679 = vmul.f32 %v2555, %v2665
      %v2680 = vmul.f32 %v2556, %v2669
      %v2681 = vmul.f32 %v2557, %v2669
      %v2682 = vmul.f32 %v2558, %v2669
      %2695 = vrot.lane.b32.xlu0 %v2671, 96
      %v2696 = vpop.permute.xlu0 %2695
      %2697 = vrot.lane.b32.xlu0 %v2672, 96
      %v2698 = vpop.permute.xlu0 %2697
      %2699 = vrot.lane.b32.xlu0 %v2673, 96
      %v2700 = vpop.permute.xlu0 %2699
      %2701 = vrot.lane.b32.xlu0 %v2674, 96
      %v2702 = vpop.permute.xlu0 %2701
      %2703 = vrot.lane.b32.xlu0 %v2675, 96
      %v2704 = vpop.permute.xlu0 %2703
      %2705 = vrot.lane.b32.xlu0 %v2676, 96
      %v2706 = vpop.permute.xlu0 %2705
      %2707 = vrot.lane.b32.xlu0 %v2677, 96
      %v2708 = vpop.permute.xlu0 %2707
      %2709 = vrot.lane.b32.xlu0 %v2678, 96
      %v2710 = vpop.permute.xlu0 %2709
      %2711 = vrot.lane.b32.xlu0 %v2679, 96
      %v2712 = vpop.permute.xlu0 %2711
      %2713 = vrot.lane.b32.xlu0 %v2680, 96
      %v2714 = vpop.permute.xlu0 %2713
      %2715 = vrot.lane.b32.xlu0 %v2681, 96
      %v2716 = vpop.permute.xlu0 %2715
      %2717 = vrot.lane.b32.xlu0 %v2682, 96
      %v2718 = vpop.permute.xlu0 %2717
      %v2719 = vsel %vm987, %v2696, %v2698
      %v2720 = vsel %vm987, %v2698, %v2700
      %v2721 = vsel %vm987, %v2702, %v2704
      %v2722 = vsel %vm987, %v2704, %v2706
      %v2723 = vsel %vm987, %v2708, %v2710
      %v2724 = vsel %vm987, %v2710, %v2712
      %v2725 = vsel %vm987, %v2714, %v2716
      %v2726 = vsel %vm987, %v2716, %v2718
      %v2739 = vadd.f32 %v2459, %v2696
      %v2740 = vadd.f32 %v2460, %v2719
      %v2741 = vadd.f32 %v2461, %v2720
      %v2742 = vadd.f32 %v2462, %v2702
      %v2743 = vadd.f32 %v2463, %v2721
      %v2744 = vadd.f32 %v2464, %v2722
      %v2745 = vadd.f32 %v2465, %v2708
      %v2746 = vadd.f32 %v2466, %v2723
      %v2747 = vadd.f32 %v2467, %v2724
      %v2748 = vadd.f32 %v2468, %v2714
      %v2749 = vadd.f32 %v2469, %v2725
      %v2750 = vadd.f32 %v2470, %v2726
      %2751 = vset.pattern.permute.xlu0 7
      %2752 = vperm.xlu0 %2751, %v2271
      %v2753 = vpop.permute.xlu0 %2752
      %2755 = vset.pattern.permute.xlu0 7
      %2756 = vperm.xlu0 %2755, %v2272
      %v2757 = vpop.permute.xlu0 %2756
      %2759 = vset.pattern.permute.xlu0 7
      %2760 = vperm.xlu0 %2759, %v2273
      %v2761 = vpop.permute.xlu0 %2760
      %2763 = vset.pattern.permute.xlu0 7
      %2764 = vperm.xlu0 %2763, %v2274
      %v2765 = vpop.permute.xlu0 %2764
      %v2767 = vmul.f32 %v2547, %v2753
      %v2768 = vmul.f32 %v2548, %v2753
      %v2769 = vmul.f32 %v2549, %v2753
      %v2770 = vmul.f32 %v2550, %v2757
      %v2771 = vmul.f32 %v2551, %v2757
      %v2772 = vmul.f32 %v2552, %v2757
      %v2773 = vmul.f32 %v2553, %v2761
      %v2774 = vmul.f32 %v2554, %v2761
      %v2775 = vmul.f32 %v2555, %v2761
      %v2776 = vmul.f32 %v2556, %v2765
      %v2777 = vmul.f32 %v2557, %v2765
      %v2778 = vmul.f32 %v2558, %v2765
      %2791 = vrot.lane.b32.xlu0 %v2767, 96
      %v2792 = vpop.permute.xlu0 %2791
      %2793 = vrot.lane.b32.xlu0 %v2768, 96
      %v2794 = vpop.permute.xlu0 %2793
      %2795 = vrot.lane.b32.xlu0 %v2769, 96
      %v2796 = vpop.permute.xlu0 %2795
      %2797 = vrot.lane.b32.xlu0 %v2770, 96
      %v2798 = vpop.permute.xlu0 %2797
      %2799 = vrot.lane.b32.xlu0 %v2771, 96
      %v2800 = vpop.permute.xlu0 %2799
      %2801 = vrot.lane.b32.xlu0 %v2772, 96
      %v2802 = vpop.permute.xlu0 %2801
      %2803 = vrot.lane.b32.xlu0 %v2773, 96
      %v2804 = vpop.permute.xlu0 %2803
      %2805 = vrot.lane.b32.xlu0 %v2774, 96
      %v2806 = vpop.permute.xlu0 %2805
      %2807 = vrot.lane.b32.xlu0 %v2775, 96
      %v2808 = vpop.permute.xlu0 %2807
      %2809 = vrot.lane.b32.xlu0 %v2776, 96
      %v2810 = vpop.permute.xlu0 %2809
      %2811 = vrot.lane.b32.xlu0 %v2777, 96
      %v2812 = vpop.permute.xlu0 %2811
      %2813 = vrot.lane.b32.xlu0 %v2778, 96
      %v2814 = vpop.permute.xlu0 %2813
      %v2815 = vsel %vm987, %v2792, %v2794
      %v2816 = vsel %vm987, %v2794, %v2796
      %v2817 = vsel %vm987, %v2798, %v2800
      %v2818 = vsel %vm987, %v2800, %v2802
      %v2819 = vsel %vm987, %v2804, %v2806
      %v2820 = vsel %vm987, %v2806, %v2808
      %v2821 = vsel %vm987, %v2810, %v2812
      %v2822 = vsel %vm987, %v2812, %v2814
      %v2835 = vadd.f32 %v2535, %v2792
      %v2836 = vadd.f32 %v2536, %v2815
      %v2837 = vadd.f32 %v2537, %v2816
      %v2838 = vadd.f32 %v2538, %v2798
      %v2839 = vadd.f32 %v2539, %v2817
      %v2840 = vadd.f32 %v2540, %v2818
      %v2841 = vadd.f32 %v2541, %v2804
      %v2842 = vadd.f32 %v2542, %v2819
      %v2843 = vadd.f32 %v2543, %v2820
      %v2844 = vadd.f32 %v2544, %v2810
      %v2845 = vadd.f32 %v2545, %v2821
      %v2846 = vadd.f32 %v2546, %v2822
      %2847 = vset.pattern.permute.xlu0 8
      %2848 = vperm.xlu0 %2847, %v2271
      %v2849 = vpop.permute.xlu0 %2848
      %2851 = vset.pattern.permute.xlu0 8
      %2852 = vperm.xlu0 %2851, %v2272
      %v2853 = vpop.permute.xlu0 %2852
      %2855 = vset.pattern.permute.xlu0 8
      %2856 = vperm.xlu0 %2855, %v2273
      %v2857 = vpop.permute.xlu0 %2856
      %2859 = vset.pattern.permute.xlu0 8
      %2860 = vperm.xlu0 %2859, %v2274
      %v2861 = vpop.permute.xlu0 %2860
      %v2863 = vmul.f32 %v2547, %v2849
      %v2864 = vmul.f32 %v2548, %v2849
      %v2865 = vmul.f32 %v2549, %v2849
      %v2866 = vmul.f32 %v2550, %v2853
      %v2867 = vmul.f32 %v2551, %v2853
      %v2868 = vmul.f32 %v2552, %v2853
      %v2869 = vmul.f32 %v2553, %v2857
      %v2870 = vmul.f32 %v2554, %v2857
      %v2871 = vmul.f32 %v2555, %v2857
      %v2872 = vmul.f32 %v2556, %v2861
      %v2873 = vmul.f32 %v2557, %v2861
      %v2874 = vmul.f32 %v2558, %v2861
      %2887 = vrot.lane.b32.xlu0 %v2863, 96
      %v2888 = vpop.permute.xlu0 %2887
      %2889 = vrot.lane.b32.xlu0 %v2864, 96
      %v2890 = vpop.permute.xlu0 %2889
      %2891 = vrot.lane.b32.xlu0 %v2865, 96
      %v2892 = vpop.permute.xlu0 %2891
      %2893 = vrot.lane.b32.xlu0 %v2866, 96
      %v2894 = vpop.permute.xlu0 %2893
      %2895 = vrot.lane.b32.xlu0 %v2867, 96
      %v2896 = vpop.permute.xlu0 %2895
      %2897 = vrot.lane.b32.xlu0 %v2868, 96
      %v2898 = vpop.permute.xlu0 %2897
      %2899 = vrot.lane.b32.xlu0 %v2869, 96
      %v2900 = vpop.permute.xlu0 %2899
      %2901 = vrot.lane.b32.xlu0 %v2870, 96
      %v2902 = vpop.permute.xlu0 %2901
      %2903 = vrot.lane.b32.xlu0 %v2871, 96
      %v2904 = vpop.permute.xlu0 %2903
      %2905 = vrot.lane.b32.xlu0 %v2872, 96
      %v2906 = vpop.permute.xlu0 %2905
      %2907 = vrot.lane.b32.xlu0 %v2873, 96
      %v2908 = vpop.permute.xlu0 %2907
      %2909 = vrot.lane.b32.xlu0 %v2874, 96
      %v2910 = vpop.permute.xlu0 %2909
      %v2911 = vsel %vm987, %v2888, %v2890
      %v2912 = vsel %vm987, %v2890, %v2892
      %v2913 = vsel %vm987, %v2894, %v2896
      %v2914 = vsel %vm987, %v2896, %v2898
      %v2915 = vsel %vm987, %v2900, %v2902
      %v2916 = vsel %vm987, %v2902, %v2904
      %v2917 = vsel %vm987, %v2906, %v2908
      %v2918 = vsel %vm987, %v2908, %v2910
      %v2931 = vadd.f32 %v2643, %v2888
      %v2932 = vadd.f32 %v2644, %v2911
      %v2933 = vadd.f32 %v2645, %v2912
      %v2934 = vadd.f32 %v2646, %v2894
      %v2935 = vadd.f32 %v2647, %v2913
      %v2936 = vadd.f32 %v2648, %v2914
      %v2937 = vadd.f32 %v2649, %v2900
      %v2938 = vadd.f32 %v2650, %v2915
      %v2939 = vadd.f32 %v2651, %v2916
      %v2940 = vadd.f32 %v2652, %v2906
      %v2941 = vadd.f32 %v2653, %v2917
      %v2942 = vadd.f32 %v2654, %v2918
      %v2943 = vmul.f32 %v2739, %v1110
      %v2944 = vmul.f32 %v2740, %v1114
      %v2945 = vmul.f32 %v2741, %v1112
      %v2946 = vmul.f32 %v2742, %v1110
      %v2947 = vmul.f32 %v2743, %v1114
      %v2948 = vmul.f32 %v2744, %v1112
      %v2949 = vmul.f32 %v2745, %v1110
      %v2950 = vmul.f32 %v2746, %v1114
      %v2951 = vmul.f32 %v2747, %v1112
      %v2952 = vmul.f32 %v2748, %v1110
      %v2953 = vmul.f32 %v2749, %v1114
      %v2954 = vmul.f32 %v2750, %v1112
      %2967 = vrot.lane.b32.xlu0 %v2943, 1
      %v2968 = vpop.permute.xlu0 %2967
      %2969 = vrot.lane.b32.xlu0 %v2944, 1
      %v2970 = vpop.permute.xlu0 %2969
      %2971 = vrot.lane.b32.xlu0 %v2945, 1
      %v2972 = vpop.permute.xlu0 %2971
      %2973 = vrot.lane.b32.xlu0 %v2946, 1
      %v2974 = vpop.permute.xlu0 %2973
      %2975 = vrot.lane.b32.xlu0 %v2947, 1
      %v2976 = vpop.permute.xlu0 %2975
      %2977 = vrot.lane.b32.xlu0 %v2948, 1
      %v2978 = vpop.permute.xlu0 %2977
      %2979 = vrot.lane.b32.xlu0 %v2949, 1
      %v2980 = vpop.permute.xlu0 %2979
      %2981 = vrot.lane.b32.xlu0 %v2950, 1
      %v2982 = vpop.permute.xlu0 %2981
      %2983 = vrot.lane.b32.xlu0 %v2951, 1
      %v2984 = vpop.permute.xlu0 %2983
      %2985 = vrot.lane.b32.xlu0 %v2952, 1
      %v2986 = vpop.permute.xlu0 %2985
      %2987 = vrot.lane.b32.xlu0 %v2953, 1
      %v2988 = vpop.permute.xlu0 %2987
      %2989 = vrot.lane.b32.xlu0 %v2954, 1
      %v2990 = vpop.permute.xlu0 %2989
      %v2991 = vsel %vm1142, %v2968, %v2970
      %v2992 = vsel %vm1142, %v2970, %v2972
      %v2993 = vsel %vm1142, %v2974, %v2976
      %v2994 = vsel %vm1142, %v2976, %v2978
      %v2995 = vsel %vm1142, %v2980, %v2982
      %v2996 = vsel %vm1142, %v2982, %v2984
      %v2997 = vsel %vm1142, %v2986, %v2988
      %v2998 = vsel %vm1142, %v2988, %v2990
      %v3011 = vadd.f32 %v2835, %v2968
      %v3012 = vadd.f32 %v2836, %v2991
      %v3013 = vadd.f32 %v2837, %v2992
      %v3014 = vadd.f32 %v2838, %v2974
      %v3015 = vadd.f32 %v2839, %v2993
      %v3016 = vadd.f32 %v2840, %v2994
      %v3017 = vadd.f32 %v2841, %v2980
      %v3018 = vadd.f32 %v2842, %v2995
      %v3019 = vadd.f32 %v2843, %v2996
      %v3020 = vadd.f32 %v2844, %v2986
      %v3021 = vadd.f32 %v2845, %v2997
      %v3022 = vadd.f32 %v2846, %v2998
      %v3023 = vmul.f32 %v2931, %v1169
      %v3024 = vmul.f32 %v2932, %v1173
      %v3025 = vmul.f32 %v2933, %v1171
      %v3026 = vmul.f32 %v2934, %v1169
      %v3027 = vmul.f32 %v2935, %v1173
      %v3028 = vmul.f32 %v2936, %v1171
      %v3029 = vmul.f32 %v2937, %v1169
      %v3030 = vmul.f32 %v2938, %v1173
      %v3031 = vmul.f32 %v2939, %v1171
      %v3032 = vmul.f32 %v2940, %v1169
      %v3033 = vmul.f32 %v2941, %v1173
      %v3034 = vmul.f32 %v2942, %v1171
      %3047 = vrot.lane.b32.xlu0 %v3023, 127
      %v3048 = vpop.permute.xlu0 %3047
      %3049 = vrot.lane.b32.xlu0 %v3024, 127
      %v3050 = vpop.permute.xlu0 %3049
      %3051 = vrot.lane.b32.xlu0 %v3025, 127
      %v3052 = vpop.permute.xlu0 %3051
      %3053 = vrot.lane.b32.xlu0 %v3026, 127
      %v3054 = vpop.permute.xlu0 %3053
      %3055 = vrot.lane.b32.xlu0 %v3027, 127
      %v3056 = vpop.permute.xlu0 %3055
      %3057 = vrot.lane.b32.xlu0 %v3028, 127
      %v3058 = vpop.permute.xlu0 %3057
      %3059 = vrot.lane.b32.xlu0 %v3029, 127
      %v3060 = vpop.permute.xlu0 %3059
      %3061 = vrot.lane.b32.xlu0 %v3030, 127
      %v3062 = vpop.permute.xlu0 %3061
      %3063 = vrot.lane.b32.xlu0 %v3031, 127
      %v3064 = vpop.permute.xlu0 %3063
      %3065 = vrot.lane.b32.xlu0 %v3032, 127
      %v3066 = vpop.permute.xlu0 %3065
      %3067 = vrot.lane.b32.xlu0 %v3033, 127
      %v3068 = vpop.permute.xlu0 %3067
      %3069 = vrot.lane.b32.xlu0 %v3034, 127
      %v3070 = vpop.permute.xlu0 %3069
      %v3071 = vsel %vm1201, %v3048, %v3050
      %v3072 = vsel %vm1201, %v3050, %v3052
      %v3073 = vsel %vm1201, %v3054, %v3056
      %v3074 = vsel %vm1201, %v3056, %v3058
      %v3075 = vsel %vm1201, %v3060, %v3062
      %v3076 = vsel %vm1201, %v3062, %v3064
      %v3077 = vsel %vm1201, %v3066, %v3068
      %v3078 = vsel %vm1201, %v3068, %v3070
      %v3091 = vadd.f32 %v3011, %v3071
      %v3092 = vadd.f32 %v3012, %v3072
      %v3093 = vadd.f32 %v3013, %v3052
      %v3094 = vadd.f32 %v3014, %v3073
      %v3095 = vadd.f32 %v3015, %v3074
      %v3096 = vadd.f32 %v3016, %v3058
      %v3097 = vadd.f32 %v3017, %v3075
      %v3098 = vadd.f32 %v3018, %v3076
      %v3099 = vadd.f32 %v3019, %v3064
      %v3100 = vadd.f32 %v3020, %v3077
      %v3101 = vadd.f32 %v3021, %v3078
      %v3102 = vadd.f32 %v3022, %v3070
      %v3103 = vld [vmem:[%s10] sm:$0xff]
      %v3104 = vld [vmem:[%s10 + $0x8] sm:$0xff]
      %v3105 = vld [vmem:[%s11] sm:$0xff]
      %v3106 = vld [vmem:[%s11 + $0x8] sm:$0xff]
      %3108 = vset.pattern.permute.xlu0 0
      %3109 = vperm.xlu0 %3108, %v3105
      %v3110 = vpop.permute.xlu0 %3109
      %3113 = vset.pattern.permute.xlu0 0
      %3114 = vperm.xlu0 %3113, %v3106
      %v3115 = vpop.permute.xlu0 %3114
      %3129 = vrot.lane.b32.xlu0 %v3091, 16
      %v3130 = vpop.permute.xlu0 %3129
      %3131 = vrot.lane.b32.xlu0 %v3092, 16
      %v3132 = vpop.permute.xlu0 %3131
      %3133 = vrot.lane.b32.xlu0 %v3093, 16
      %v3134 = vpop.permute.xlu0 %3133
      %3135 = vrot.lane.b32.xlu0 %v3094, 16
      %v3136 = vpop.permute.xlu0 %3135
      %3137 = vrot.lane.b32.xlu0 %v3095, 16
      %v3138 = vpop.permute.xlu0 %3137
      %3139 = vrot.lane.b32.xlu0 %v3096, 16
      %v3140 = vpop.permute.xlu0 %3139
      %3141 = vrot.lane.b32.xlu0 %v3097, 16
      %v3142 = vpop.permute.xlu0 %3141
      %3143 = vrot.lane.b32.xlu0 %v3098, 16
      %v3144 = vpop.permute.xlu0 %3143
      %3145 = vrot.lane.b32.xlu0 %v3099, 16
      %v3146 = vpop.permute.xlu0 %3145
      %3147 = vrot.lane.b32.xlu0 %v3100, 16
      %v3148 = vpop.permute.xlu0 %3147
      %3149 = vrot.lane.b32.xlu0 %v3101, 16
      %v3150 = vpop.permute.xlu0 %3149
      %3151 = vrot.lane.b32.xlu0 %v3102, 16
      %v3152 = vpop.permute.xlu0 %3151
      %v3153 = vsel %vm1260, %v3130, %v3132
      %v3154 = vsel %vm1260, %v3132, %v3134
      %v3155 = vsel %vm1260, %v3136, %v3138
      %v3156 = vsel %vm1260, %v3138, %v3140
      %v3157 = vsel %vm1260, %v3142, %v3144
      %v3158 = vsel %vm1260, %v3144, %v3146
      %v3159 = vsel %vm1260, %v3148, %v3150
      %v3160 = vsel %vm1260, %v3150, %v3152
      %v3170 = vsel %vm2175, %v3103, 0
      %v3173 = vsel %vm2175, %v3104, 0
      %3175 = vmatprep.subr.mxu0 %v3154
      %3176 = vmatpush1.msra.mxu0 %v3153
      %3177 = vmatprep.subr.mxu0 %v3156
      %3178 = vmatpush1.msra.mxu0 %v3155
      %3179 = vmatprep.subr.mxu0 %v3158
      %3180 = vmatpush1.msra.mxu0 %v3157
      %3181 = vmatprep.subr.mxu0 %v3160
      %3182 = vmatpush1.msra.mxu0 %v3159
      %3183 = vmatprep.subr.mxu0 0.0
      %3184 = vmatpush1.msra.mxu0 0.0
      %3185 = vmatprep.subr.mxu0 0.0
      %3186 = vmatpush1.msra.mxu0 0.0
      %3187 = vmatprep.subr.mxu0 0.0
      %3188 = vmatpush1.msra.mxu0 0.0
      %3189 = vmatprep.subr.mxu0 0.0
      %3190 = vmatpush1.msra.mxu0 0.0
      %3191 = vmatprep.subr.mxu0 0.0
      %3192 = vmatpush1.msra.mxu0 0.0
      %3193 = vmatprep.subr.mxu0 0.0
      %3194 = vmatpush1.msra.mxu0 0.0
      %3195 = vmatprep.subr.mxu0 0.0
      %3196 = vmatpush1.msra.mxu0 0.0
      %3197 = vmatprep.subr.mxu0 0.0
      %3198 = vmatpush1.msra.mxu0 0.0
      %3199 = vmatprep.subr.mxu0 0.0
      %3200 = vmatpush1.msra.mxu0 0.0
      %3201 = vmatprep.subr.mxu0 0.0
      %3202 = vmatpush1.msra.mxu0 0.0
      %3203 = vmatprep.subr.mxu0 0.0
      %3204 = vmatpush1.msra.mxu0 0.0
      %3205 = vmatprep.subr.mxu0 0.0
      %3206 = vmatpush1.msra.mxu0 0.0
      %3207 = vmatprep.subr.mxu0 0.0
      %3208 = vmatpush1.msra.mxu0 0.0
      %3209 = vmatprep.subr.mxu0 0.0
      %3210 = vmatpush1.msra.mxu0 0.0
      %3211 = vmatprep.subr.mxu0 0.0
      %3212 = vmatpush1.msra.mxu0 0.0
      %3213 = vmatprep.subr.mxu0 0.0
      %3214 = vmatpush1.msra.mxu0 0.0
      %3215 = vmatprep.subr.mxu0 0.0
      %3216 = vmatpush1.msra.mxu0 0.0
      %3217 = vmatprep.subr.mxu0 0.0
      %3218 = vmatpush1.msra.mxu0 0.0
      %3219 = vmatprep.subr.mxu0 0.0
      %3220 = vmatpush1.msra.mxu0 0.0
      %3221 = vmatprep.subr.mxu0 0.0
      %3222 = vmatpush1.msra.mxu0 0.0
      %3223 = vmatprep.subr.mxu0 0.0
      %3224 = vmatpush1.msra.mxu0 0.0
      %3225 = vmatprep.subr.mxu0 0.0
      %3226 = vmatpush1.msra.mxu0 0.0
      %3227 = vmatprep.subr.mxu0 0.0
      %3228 = vmatpush1.msra.mxu0 0.0
      %3229 = vmatprep.subr.mxu0 0.0
      %3230 = vmatpush1.msra.mxu0 0.0
      %3231 = vmatprep.subr.mxu0 0.0
      %3232 = vmatpush1.msra.mxu0 0.0
      %3233 = vmatprep.subr.mxu0 0.0
      %3234 = vmatpush1.msra.mxu0 0.0
      %3235 = vmatprep.subr.mxu0 0.0
      %3236 = vmatpush1.msra.mxu0 0.0
      %3237 = vmatprep.subr.mxu0 0.0
      %3238 = vmatpush1.msra.mxu0 0.0
      %3239 = vmatprep.mubr.f32.mxu0 0.0
      %3240 = vmatmul.mubr.f32.gmra.mrb[0].mxu0 %v3170
      %v3241 = vpop.f32.mrb[0].mxu0
      %v3242 = vadd.f32 %v3110, %v3241
      %v3243 = vpop.f32.mrb[0].mxu0
      %v3244 = vadd.f32 %v3110, %v3243
      %3245 = vmatprep.mubr.f32.mxu0 0.0
      %3246 = vmatmul.mubr.f32.gmra.mrb[0].mxu0 %v3173
      %v3247 = vpop.f32.mrb[0].mxu0
      %v3248 = vadd.f32 %v3115, %v3247
      %v3249 = vpop.f32.mrb[0].mxu0
      %v3250 = vadd.f32 %v3115, %v3249
      %3251 = vdwg.mxu0
      %v3252 = vmax.f32 %v3242, 0.0
      %v3253 = vmax.f32 %v3244, 0.0
      %v3254 = vmax.f32 %v3248, 0.0
      %v3255 = vmax.f32 %v3250, 0.0
      %v3256 = vld [vmem:[%s12] sm:$0xff]
      %v3257 = vld [vmem:[%s12 + $0x8] sm:$0xff]
      %v3258 = vld [vmem:[%s12 + $0x10] sm:$0x3]
      %s3259 = scalar_lea.vmem %s12, 24
      %v3260 = vld [vmem:[%s3259] sm:$0xff]
      %v3261 = vld [vmem:[%s3259 + $0x8] sm:$0xff]
      %v3262 = vld [vmem:[%s3259 + $0x10] sm:$0x3]
      %v3264 = vsel %vm1260, %v3260, 0
      %v3267 = vsel %vm1260, %v3261, 0
      %v3270 = vsel %vm1260, %v3262, 0
      %3272 = vmatprep.subr.mxu0 %v1262
      %3273 = vmatpush1.msra.mxu0 %v1261
      %3274 = vmatprep.subr.mxu0 %v1264
      %3275 = vmatpush1.msra.mxu0 %v1263
      %3276 = vmatprep.subr.mxu0 0.0
      %3277 = vmatpush1.msra.mxu0 0.0
      %3278 = vmatprep.subr.mxu0 0.0
      %3279 = vmatpush1.msra.mxu0 0.0
      %3280 = vmatprep.subr.mxu0 0.0
      %3281 = vmatpush1.msra.mxu0 0.0
      %3282 = vmatprep.subr.mxu0 0.0
      %3283 = vmatpush1.msra.mxu0 0.0
      %3284 = vmatprep.subr.mxu0 0.0
      %3285 = vmatpush1.msra.mxu0 0.0
      %3286 = vmatprep.subr.mxu0 0.0
      %3287 = vmatpush1.msra.mxu0 0.0
      %3288 = vmatprep.subr.mxu0 0.0
      %3289 = vmatpush1.msra.mxu0 0.0
      %3290 = vmatprep.subr.mxu0 0.0
      %3291 = vmatpush1.msra.mxu0 0.0
      %3292 = vmatprep.subr.mxu0 0.0
      %3293 = vmatpush1.msra.mxu0 0.0
      %3294 = vmatprep.subr.mxu0 0.0
      %3295 = vmatpush1.msra.mxu0 0.0
      %3296 = vmatprep.subr.mxu0 0.0
      %3297 = vmatpush1.msra.mxu0 0.0
      %3298 = vmatprep.subr.mxu0 0.0
      %3299 = vmatpush1.msra.mxu0 0.0
      %3300 = vmatprep.subr.mxu0 0.0
      %3301 = vmatpush1.msra.mxu0 0.0
      %3302 = vmatprep.subr.mxu0 0.0
      %3303 = vmatpush1.msra.mxu0 0.0
      %3304 = vmatprep.subr.mxu0 0.0
      %3305 = vmatpush1.msra.mxu0 0.0
      %3306 = vmatprep.subr.mxu0 0.0
      %3307 = vmatpush1.msra.mxu0 0.0
      %3308 = vmatprep.subr.mxu0 0.0
      %3309 = vmatpush1.msra.mxu0 0.0
      %3310 = vmatprep.subr.mxu0 0.0
      %3311 = vmatpush1.msra.mxu0 0.0
      %3312 = vmatprep.subr.mxu0 0.0
      %3313 = vmatpush1.msra.mxu0 0.0
      %3314 = vmatprep.subr.mxu0 0.0
      %3315 = vmatpush1.msra.mxu0 0.0
      %3316 = vmatprep.subr.mxu0 0.0
      %3317 = vmatpush1.msra.mxu0 0.0
      %3318 = vmatprep.subr.mxu0 0.0
      %3319 = vmatpush1.msra.mxu0 0.0
      %3320 = vmatprep.subr.mxu0 0.0
      %3321 = vmatpush1.msra.mxu0 0.0
      %3322 = vmatprep.subr.mxu0 0.0
      %3323 = vmatpush1.msra.mxu0 0.0
      %3324 = vmatprep.subr.mxu0 0.0
      %3325 = vmatpush1.msra.mxu0 0.0
      %3326 = vmatprep.subr.mxu0 0.0
      %3327 = vmatpush1.msra.mxu0 0.0
      %3328 = vmatprep.subr.mxu0 0.0
      %3329 = vmatpush1.msra.mxu0 0.0
      %3330 = vmatprep.subr.mxu0 0.0
      %3331 = vmatpush1.msra.mxu0 0.0
      %3332 = vmatprep.subr.mxu0 0.0
      %3333 = vmatpush1.msra.mxu0 0.0
      %3334 = vmatprep.subr.mxu0 0.0
      %3335 = vmatpush1.msra.mxu0 0.0
      %3336 = vmatprep.mubr.f32.mxu0 0.0
      %3337 = vmatmul.mubr.f32.gmra.mrb[0].mxu0 %v3264
      %v3338 = vpop.f32.mrb[0].mxu0
      %v3339 = vadd.f32 0.0, %v3338
      %v3340 = vpop.f32.mrb[0].mxu0
      %v3341 = vadd.f32 0.0, %v3340
      %3342 = vmatprep.mubr.f32.mxu0 0.0
      %3343 = vmatmul.mubr.f32.gmra.mrb[0].mxu0 %v3267
      %v3344 = vpop.f32.mrb[0].mxu0
      %v3345 = vadd.f32 0.0, %v3344
      %v3346 = vpop.f32.mrb[0].mxu0
      %v3347 = vadd.f32 0.0, %v3346
      %3348 = vmatprep.mubr.f32.mxu0 0.0
      %3349 = vmatmul.mubr.f32.gmra.mrb[0].mxu0 %v3270
      %v3350 = vpop.f32.mrb[0].mxu0
      %v3351 = vadd.f32 0.0, %v3350
      %v3352 = vpop.f32.mrb[0].mxu0
      %v3353 = vadd.f32 0.0, %v3352
      %3354 = vdwg.mxu0
      %v3356 = vsel %vm1260, %v3256, 0
      %v3359 = vsel %vm1260, %v3257, 0
      %v3362 = vsel %vm1260, %v3258, 0
      %3364 = vmatprep.subr.mxu0 %v743
      %3365 = vmatpush1.msra.mxu0 %v742
      %3366 = vmatprep.subr.mxu0 %v745
      %3367 = vmatpush1.msra.mxu0 %v744
      %3368 = vmatprep.subr.mxu0 0.0
      %3369 = vmatpush1.msra.mxu0 0.0
      %3370 = vmatprep.subr.mxu0 0.0
      %3371 = vmatpush1.msra.mxu0 0.0
      %3372 = vmatprep.subr.mxu0 0.0
      %3373 = vmatpush1.msra.mxu0 0.0
      %3374 = vmatprep.subr.mxu0 0.0
      %3375 = vmatpush1.msra.mxu0 0.0
      %3376 = vmatprep.subr.mxu0 0.0
      %3377 = vmatpush1.msra.mxu0 0.0
      %3378 = vmatprep.subr.mxu0 0.0
      %3379 = vmatpush1.msra.mxu0 0.0
      %3380 = vmatprep.subr.mxu0 0.0
      %3381 = vmatpush1.msra.mxu0 0.0
      %3382 = vmatprep.subr.mxu0 0.0
      %3383 = vmatpush1.msra.mxu0 0.0
      %3384 = vmatprep.subr.mxu0 0.0
      %3385 = vmatpush1.msra.mxu0 0.0
      %3386 = vmatprep.subr.mxu0 0.0
      %3387 = vmatpush1.msra.mxu0 0.0
      %3388 = vmatprep.subr.mxu0 0.0
      %3389 = vmatpush1.msra.mxu0 0.0
      %3390 = vmatprep.subr.mxu0 0.0
      %3391 = vmatpush1.msra.mxu0 0.0
      %3392 = vmatprep.subr.mxu0 0.0
      %3393 = vmatpush1.msra.mxu0 0.0
      %3394 = vmatprep.subr.mxu0 0.0
      %3395 = vmatpush1.msra.mxu0 0.0
      %3396 = vmatprep.subr.mxu0 0.0
      %3397 = vmatpush1.msra.mxu0 0.0
      %3398 = vmatprep.subr.mxu0 0.0
      %3399 = vmatpush1.msra.mxu0 0.0
      %3400 = vmatprep.subr.mxu0 0.0
      %3401 = vmatpush1.msra.mxu0 0.0
      %3402 = vmatprep.subr.mxu0 0.0
      %3403 = vmatpush1.msra.mxu0 0.0
      %3404 = vmatprep.subr.mxu0 0.0
      %3405 = vmatpush1.msra.mxu0 0.0
      %3406 = vmatprep.subr.mxu0 0.0
      %3407 = vmatpush1.msra.mxu0 0.0
      %3408 = vmatprep.subr.mxu0 0.0
      %3409 = vmatpush1.msra.mxu0 0.0
      %3410 = vmatprep.subr.mxu0 0.0
      %3411 = vmatpush1.msra.mxu0 0.0
      %3412 = vmatprep.subr.mxu0 0.0
      %3413 = vmatpush1.msra.mxu0 0.0
      %3414 = vmatprep.subr.mxu0 0.0
      %3415 = vmatpush1.msra.mxu0 0.0
      %3416 = vmatprep.subr.mxu0 0.0
      %3417 = vmatpush1.msra.mxu0 0.0
      %3418 = vmatprep.subr.mxu0 0.0
      %3419 = vmatpush1.msra.mxu0 0.0
      %3420 = vmatprep.subr.mxu0 0.0
      %3421 = vmatpush1.msra.mxu0 0.0
      %3422 = vmatprep.subr.mxu0 0.0
      %3423 = vmatpush1.msra.mxu0 0.0
      %3424 = vmatprep.subr.mxu0 0.0
      %3425 = vmatpush1.msra.mxu0 0.0
      %3426 = vmatprep.subr.mxu0 0.0
      %3427 = vmatpush1.msra.mxu0 0.0
      %3428 = vmatprep.mubr.f32.mxu0 0.0
      %3429 = vmatmul.mubr.f32.gmra.mrb[0].mxu0 %v3356
      %v3430 = vpop.f32.mrb[0].mxu0
      %v3431 = vadd.f32 %v3339, %v3430
      %v3432 = vpop.f32.mrb[0].mxu0
      %v3433 = vadd.f32 %v3341, %v3432
      %3434 = vmatprep.mubr.f32.mxu0 0.0
      %3435 = vmatmul.mubr.f32.gmra.mrb[0].mxu0 %v3359
      %v3436 = vpop.f32.mrb[0].mxu0
      %v3437 = vadd.f32 %v3345, %v3436
      %v3438 = vpop.f32.mrb[0].mxu0
      %v3439 = vadd.f32 %v3347, %v3438
      %3440 = vmatprep.mubr.f32.mxu0 0.0
      %3441 = vmatmul.mubr.f32.gmra.mrb[0].mxu0 %v3362
      %v3442 = vpop.f32.mrb[0].mxu0
      %v3443 = vadd.f32 %v3351, %v3442
      %v3444 = vpop.f32.mrb[0].mxu0
      %v3445 = vadd.f32 %v3353, %v3444
      %3446 = vdwg.mxu0
      %s3447 = scalar_lea.vmem %s12, 48
      %v3448 = vld [vmem:[%s3447] sm:$0xff]
      %v3449 = vld [vmem:[%s3447 + $0x8] sm:$0xff]
      %v3450 = vld [vmem:[%s3447 + $0x10] sm:$0x3]
      %v3452 = vsel %vm1260, %v3448, 0
      %v3455 = vsel %vm1260, %v3449, 0
      %v3458 = vsel %vm1260, %v3450, 0
      %3460 = vmatprep.subr.mxu0 %v2260
      %3461 = vmatpush1.msra.mxu0 %v2259
      %3462 = vmatprep.subr.mxu0 %v2262
      %3463 = vmatpush1.msra.mxu0 %v2261
      %3464 = vmatprep.subr.mxu0 0.0
      %3465 = vmatpush1.msra.mxu0 0.0
      %3466 = vmatprep.subr.mxu0 0.0
      %3467 = vmatpush1.msra.mxu0 0.0
      %3468 = vmatprep.subr.mxu0 0.0
      %3469 = vmatpush1.msra.mxu0 0.0
      %3470 = vmatprep.subr.mxu0 0.0
      %3471 = vmatpush1.msra.mxu0 0.0
      %3472 = vmatprep.subr.mxu0 0.0
      %3473 = vmatpush1.msra.mxu0 0.0
      %3474 = vmatprep.subr.mxu0 0.0
      %3475 = vmatpush1.msra.mxu0 0.0
      %3476 = vmatprep.subr.mxu0 0.0
      %3477 = vmatpush1.msra.mxu0 0.0
      %3478 = vmatprep.subr.mxu0 0.0
      %3479 = vmatpush1.msra.mxu0 0.0
      %3480 = vmatprep.subr.mxu0 0.0
      %3481 = vmatpush1.msra.mxu0 0.0
      %3482 = vmatprep.subr.mxu0 0.0
      %3483 = vmatpush1.msra.mxu0 0.0
      %3484 = vmatprep.subr.mxu0 0.0
      %3485 = vmatpush1.msra.mxu0 0.0
      %3486 = vmatprep.subr.mxu0 0.0
      %3487 = vmatpush1.msra.mxu0 0.0
      %3488 = vmatprep.subr.mxu0 0.0
      %3489 = vmatpush1.msra.mxu0 0.0
      %3490 = vmatprep.subr.mxu0 0.0
      %3491 = vmatpush1.msra.mxu0 0.0
      %3492 = vmatprep.subr.mxu0 0.0
      %3493 = vmatpush1.msra.mxu0 0.0
      %3494 = vmatprep.subr.mxu0 0.0
      %3495 = vmatpush1.msra.mxu0 0.0
      %3496 = vmatprep.subr.mxu0 0.0
      %3497 = vmatpush1.msra.mxu0 0.0
      %3498 = vmatprep.subr.mxu0 0.0
      %3499 = vmatpush1.msra.mxu0 0.0
      %3500 = vmatprep.subr.mxu0 0.0
      %3501 = vmatpush1.msra.mxu0 0.0
      %3502 = vmatprep.subr.mxu0 0.0
      %3503 = vmatpush1.msra.mxu0 0.0
      %3504 = vmatprep.subr.mxu0 0.0
      %3505 = vmatpush1.msra.mxu0 0.0
      %3506 = vmatprep.subr.mxu0 0.0
      %3507 = vmatpush1.msra.mxu0 0.0
      %3508 = vmatprep.subr.mxu0 0.0
      %3509 = vmatpush1.msra.mxu0 0.0
      %3510 = vmatprep.subr.mxu0 0.0
      %3511 = vmatpush1.msra.mxu0 0.0
      %3512 = vmatprep.subr.mxu0 0.0
      %3513 = vmatpush1.msra.mxu0 0.0
      %3514 = vmatprep.subr.mxu0 0.0
      %3515 = vmatpush1.msra.mxu0 0.0
      %3516 = vmatprep.subr.mxu0 0.0
      %3517 = vmatpush1.msra.mxu0 0.0
      %3518 = vmatprep.subr.mxu0 0.0
      %3519 = vmatpush1.msra.mxu0 0.0
      %3520 = vmatprep.subr.mxu0 0.0
      %3521 = vmatpush1.msra.mxu0 0.0
      %3522 = vmatprep.subr.mxu0 0.0
      %3523 = vmatpush1.msra.mxu0 0.0
      %3524 = vmatprep.mubr.f32.mxu0 0.0
      %3525 = vmatmul.mubr.f32.gmra.mrb[0].mxu0 %v3452
      %v3526 = vpop.f32.mrb[0].mxu0
      %v3527 = vadd.f32 0.0, %v3526
      %v3528 = vpop.f32.mrb[0].mxu0
      %v3529 = vadd.f32 0.0, %v3528
      %3530 = vmatprep.mubr.f32.mxu0 0.0
      %3531 = vmatmul.mubr.f32.gmra.mrb[0].mxu0 %v3455
      %v3532 = vpop.f32.mrb[0].mxu0
      %v3533 = vadd.f32 0.0, %v3532
      %v3534 = vpop.f32.mrb[0].mxu0
      %v3535 = vadd.f32 0.0, %v3534
      %3536 = vmatprep.mubr.f32.mxu0 0.0
      %3537 = vmatmul.mubr.f32.gmra.mrb[0].mxu0 %v3458
      %v3538 = vpop.f32.mrb[0].mxu0
      %v3539 = vadd.f32 0.0, %v3538
      %v3540 = vpop.f32.mrb[0].mxu0
      %v3541 = vadd.f32 0.0, %v3540
      %3542 = vdwg.mxu0
      %v3543 = vadd.f32 %v3431, %v3527
      %v3544 = vadd.f32 %v3433, %v3529
      %v3545 = vadd.f32 %v3437, %v3533
      %v3546 = vadd.f32 %v3439, %v3535
      %v3547 = vadd.f32 %v3443, %v3539
      %v3548 = vadd.f32 %v3445, %v3541
      %s3549 = scalar_lea.vmem %s12, 72
      %v3550 = vld [vmem:[%s3549] sm:$0xff]
      %v3551 = vld [vmem:[%s3549 + $0x8] sm:$0xff]
      %v3552 = vld [vmem:[%s3549 + $0x10] sm:$0x3]
      %v3554 = vsel %vm1260, %v3550, 0
      %v3557 = vsel %vm1260, %v3551, 0
      %v3560 = vsel %vm1260, %v3552, 0
      %3562 = vmatprep.subr.mxu0 %v3253
      %3563 = vmatpush1.msra.mxu0 %v3252
      %3564 = vmatprep.subr.mxu0 %v3255
      %3565 = vmatpush1.msra.mxu0 %v3254
      %3566 = vmatprep.subr.mxu0 0.0
      %3567 = vmatpush1.msra.mxu0 0.0
      %3568 = vmatprep.subr.mxu0 0.0
      %3569 = vmatpush1.msra.mxu0 0.0
      %3570 = vmatprep.subr.mxu0 0.0
      %3571 = vmatpush1.msra.mxu0 0.0
      %3572 = vmatprep.subr.mxu0 0.0
      %3573 = vmatpush1.msra.mxu0 0.0
      %3574 = vmatprep.subr.mxu0 0.0
      %3575 = vmatpush1.msra.mxu0 0.0
      %3576 = vmatprep.subr.mxu0 0.0
      %3577 = vmatpush1.msra.mxu0 0.0
      %3578 = vmatprep.subr.mxu0 0.0
      %3579 = vmatpush1.msra.mxu0 0.0
      %3580 = vmatprep.subr.mxu0 0.0
      %3581 = vmatpush1.msra.mxu0 0.0
      %3582 = vmatprep.subr.mxu0 0.0
      %3583 = vmatpush1.msra.mxu0 0.0
      %3584 = vmatprep.subr.mxu0 0.0
      %3585 = vmatpush1.msra.mxu0 0.0
      %3586 = vmatprep.subr.mxu0 0.0
      %3587 = vmatpush1.msra.mxu0 0.0
      %3588 = vmatprep.subr.mxu0 0.0
      %3589 = vmatpush1.msra.mxu0 0.0
      %3590 = vmatprep.subr.mxu0 0.0
      %3591 = vmatpush1.msra.mxu0 0.0
      %3592 = vmatprep.subr.mxu0 0.0
      %3593 = vmatpush1.msra.mxu0 0.0
      %3594 = vmatprep.subr.mxu0 0.0
      %3595 = vmatpush1.msra.mxu0 0.0
      %3596 = vmatprep.subr.mxu0 0.0
      %3597 = vmatpush1.msra.mxu0 0.0
      %3598 = vmatprep.subr.mxu0 0.0
      %3599 = vmatpush1.msra.mxu0 0.0
      %3600 = vmatprep.subr.mxu0 0.0
      %3601 = vmatpush1.msra.mxu0 0.0
      %3602 = vmatprep.subr.mxu0 0.0
      %3603 = vmatpush1.msra.mxu0 0.0
      %3604 = vmatprep.subr.mxu0 0.0
      %3605 = vmatpush1.msra.mxu0 0.0
      %3606 = vmatprep.subr.mxu0 0.0
      %3607 = vmatpush1.msra.mxu0 0.0
      %3608 = vmatprep.subr.mxu0 0.0
      %3609 = vmatpush1.msra.mxu0 0.0
      %3610 = vmatprep.subr.mxu0 0.0
      %3611 = vmatpush1.msra.mxu0 0.0
      %3612 = vmatprep.subr.mxu0 0.0
      %3613 = vmatpush1.msra.mxu0 0.0
      %3614 = vmatprep.subr.mxu0 0.0
      %3615 = vmatpush1.msra.mxu0 0.0
      %3616 = vmatprep.subr.mxu0 0.0
      %3617 = vmatpush1.msra.mxu0 0.0
      %3618 = vmatprep.subr.mxu0 0.0
      %3619 = vmatpush1.msra.mxu0 0.0
      %3620 = vmatprep.subr.mxu0 0.0
      %3621 = vmatpush1.msra.mxu0 0.0
      %3622 = vmatprep.subr.mxu0 0.0
      %3623 = vmatpush1.msra.mxu0 0.0
      %3624 = vmatprep.subr.mxu0 0.0
      %3625 = vmatpush1.msra.mxu0 0.0
      %3626 = vmatprep.mubr.f32.mxu0 0.0
      %3627 = vmatmul.mubr.f32.gmra.mrb[0].mxu0 %v3554
      %v3628 = vpop.f32.mrb[0].mxu0
      %v3629 = vadd.f32 0.0, %v3628
      %v3630 = vpop.f32.mrb[0].mxu0
      %v3631 = vadd.f32 0.0, %v3630
      %3632 = vmatprep.mubr.f32.mxu0 0.0
      %3633 = vmatmul.mubr.f32.gmra.mrb[0].mxu0 %v3557
      %v3634 = vpop.f32.mrb[0].mxu0
      %v3635 = vadd.f32 0.0, %v3634
      %v3636 = vpop.f32.mrb[0].mxu0
      %v3637 = vadd.f32 0.0, %v3636
      %3638 = vmatprep.mubr.f32.mxu0 0.0
      %3639 = vmatmul.mubr.f32.gmra.mrb[0].mxu0 %v3560
      %v3640 = vpop.f32.mrb[0].mxu0
      %v3641 = vadd.f32 0.0, %v3640
      %v3642 = vpop.f32.mrb[0].mxu0
      %v3643 = vadd.f32 0.0, %v3642
      %3644 = vdwg.mxu0
      %v3645 = vadd.f32 %v3543, %v3629
      %v3646 = vadd.f32 %v3544, %v3631
      %v3647 = vadd.f32 %v3545, %v3635
      %v3648 = vadd.f32 %v3546, %v3637
      %v3649 = vadd.f32 %v3547, %v3641
      %v3650 = vadd.f32 %v3548, %v3643
      %v3651 = vld [vmem:[%s13] sm:$0xff]
      %v3652 = vld [vmem:[%s13 + $0x8] sm:$0xff]
      %v3653 = vld [vmem:[%s13 + $0x10] sm:$0x3]
      %3655 = vset.pattern.permute.xlu0 0
      %3656 = vperm.xlu0 %3655, %v3651
      %v3657 = vpop.permute.xlu0 %3656
      %3660 = vset.pattern.permute.xlu0 0
      %3661 = vperm.xlu0 %3660, %v3652
      %v3662 = vpop.permute.xlu0 %3661
      %3665 = vset.pattern.permute.xlu0 0
      %3666 = vperm.xlu0 %3665, %v3653
      %v3667 = vpop.permute.xlu0 %3666
      %v3669 = vadd.f32 %v3645, %v3657
      %v3670 = vadd.f32 %v3646, %v3657
      %v3671 = vadd.f32 %v3647, %v3662
      %v3672 = vadd.f32 %v3648, %v3662
      %v3673 = vadd.f32 %v3649, %v3667
      %v3674 = vadd.f32 %v3650, %v3667
      %v3675 = vmax.f32 %v3669, 0.0
      %v3676 = vmax.f32 %v3670, 0.0
      %v3677 = vmax.f32 %v3671, 0.0
      %v3678 = vmax.f32 %v3672, 0.0
      %v3679 = vmax.f32 %v3673, 0.0
      %v3680 = vmax.f32 %v3674, 0.0
      %v3681 = vmax.f32 %v535, %v536
      %3682 = vmax.xlane.f32.xlu0 %v3681
      %v3683 = vpop.xlane.xlu0 %3682
      %v3684 = vmax.f32 %v537, %v538
      %3685 = vmax.xlane.f32.xlu0 %v3684
      %v3686 = vpop.xlane.xlu0 %3685
      %v3687 = vsel %vm622, %v539, -inf
      %v3688 = vsel %vm622, %v540, -inf
      %v3689 = vmax.f32 %v3687, %v3688
      %3690 = vmax.xlane.f32.xlu0 %v3689
      %v3691 = vpop.xlane.xlu0 %3690
      %v3692 = vld [vmem:[%s14] sm:$0xff]
      %v3693 = vld [vmem:[%s14 + $0x8] sm:$0xff]
      %v3694 = vld [vmem:[%s14 + $0x10] sm:$0x3]
      %v3695 = vmul.f32 %v3692, %v3683
      %v3696 = vmul.f32 %v3693, %v3686
      %v3697 = vmul.f32 %v3694, %v3691
      %vm3698 = vcmask 15360
      %v3699 = vsel %vm3698, %v3695, 0.0
      %v3700 = vsel %vm3698, %v3696, 0.0
      %v3701 = vadd.f32 %v3699, %v3700
      %vm3702 = vcmask 9216
      %v3703 = vsel %vm3702, %v3697, 0.0
      %v3704 = vadd.f32 %v3701, %v3703
      %v3705 = vrot.slane %v3704, 4
      %v3706 = vadd.f32 %v3704, %v3705
      %v3707 = vrot.slane %v3706, 2
      %v3708 = vadd.f32 %v3706, %v3707
      %v3709 = vrot.slane %v3708, 1
      %v3710 = vadd.f32 %v3708, %v3709
      %v3711 = vmax.f32 %v3710, 0.0
      %v3712 = vld [vmem:[%s15] sm:$0xff]
      %v3713 = vld [vmem:[%s15 + $0x8] sm:$0xff]
      %v3714 = vld [vmem:[%s15 + $0x10] sm:$0x3]
      %v3715 = vmul.f32 %v3712, %v3711
      %v3716 = vmul.f32 %v3713, %v3711
      %v3717 = vmul.f32 %v3714, %v3711
      %v3718 = vsel %vm3698, %v3715, 0.0
      %3719 = vadd.xlane.f32.xlu0 %v3718
      %v3720 = vpop.xlane.xlu0 %3719
      %v3721 = vsel %vm3698, %v3716, 0.0
      %3722 = vadd.xlane.f32.xlu0 %v3721
      %v3723 = vpop.xlane.xlu0 %3722
      %v3724 = vsel %vm3702, %v3717, 0.0
      %3725 = vadd.xlane.f32.xlu0 %v3724
      %v3726 = vpop.xlane.xlu0 %3725
      %v3727 = vsub.f32 0.0, %v3720
      %v3728 = vsub.f32 0.0, %v3723
      %v3729 = vsub.f32 0.0, %v3726
      %v3730 = vmul.f32 %v3727, 1.442695
      %v3731 = vpow.pop %v3730
      %v3732 = vmul.f32 %v3728, 1.442695
      %v3733 = vpow.pop %v3732
      %v3734 = vmul.f32 %v3729, 1.442695
      %v3735 = vpow.pop %v3734
      %v3736 = vadd.f32 %v3731, 1.0
      %v3737 = vadd.f32 %v3733, 1.0
      %v3738 = vadd.f32 %v3735, 1.0
      %v3739 = vrcp.pop %v3736
      %v3740 = vrcp.pop %v3737
      %v3741 = vrcp.pop %v3738
      %v3742 = vmul.f32 %v3675, %v3739
      %v3743 = vmul.f32 %v3676, %v3739
      %v3744 = vmul.f32 %v3677, %v3740
      %v3745 = vmul.f32 %v3678, %v3740
      %v3746 = vmul.f32 %v3679, %v3741
      %v3747 = vmul.f32 %v3680, %v3741
      %s3748 = scalar_lea.vmem %s2, 64
      %v3749 = vld [vmem:[%s3748] sm:$0xff]
      %v3750 = vld [vmem:[%s3748 + $0x8] sm:$0xff]
      %v3751 = vld [vmem:[%s3748 + $0x10] sm:$0xff]
      %v3752 = vld [vmem:[%s3748 + $0x18] sm:$0xff]
      %v3753 = vld [vmem:[%s3748 + $0x20] sm:$0xff]
      %v3754 = vld [vmem:[%s3748 + $0x28] sm:$0xff]
      %v3755 = vld [vmem:[%s3748 + $0x30] sm:$0xff]
      %v3756 = vld [vmem:[%s3748 + $0x38] sm:$0xff]
      %s3757 = scalar_lea.vmem %s3, 64
      %v3758 = vld [vmem:[%s3757] sm:$0xff]
      %v3759 = vld [vmem:[%s3757 + $0x8] sm:$0xff]
      %v3760 = vld [vmem:[%s3757 + $0x10] sm:$0xff]
      %v3761 = vld [vmem:[%s3757 + $0x18] sm:$0xff]
      %v3762 = vld [vmem:[%s3757 + $0x20] sm:$0xff]
      %v3763 = vld [vmem:[%s3757 + $0x28] sm:$0xff]
      %v3764 = vld [vmem:[%s3757 + $0x30] sm:$0xff]
      %v3765 = vld [vmem:[%s3757 + $0x38] sm:$0xff]
      %3767 = vset.pattern.permute.xlu0 0
      %3768 = vperm.xlu0 %3767, %v3758
      %v3769 = vpop.permute.xlu0 %3768
      %3772 = vset.pattern.permute.xlu0 0
      %3773 = vperm.xlu0 %3772, %v3759
      %v3774 = vpop.permute.xlu0 %3773
      %3777 = vset.pattern.permute.xlu0 0
      %3778 = vperm.xlu0 %3777, %v3760
      %v3779 = vpop.permute.xlu0 %3778
      %3782 = vset.pattern.permute.xlu0 0
      %3783 = vperm.xlu0 %3782, %v3761
      %v3784 = vpop.permute.xlu0 %3783
      %3787 = vset.pattern.permute.xlu0 0
      %3788 = vperm.xlu0 %3787, %v3762
      %v3789 = vpop.permute.xlu0 %3788
      %3792 = vset.pattern.permute.xlu0 0
      %3793 = vperm.xlu0 %3792, %v3763
      %v3794 = vpop.permute.xlu0 %3793
      %3797 = vset.pattern.permute.xlu0 0
      %3798 = vperm.xlu0 %3797, %v3764
      %v3799 = vpop.permute.xlu0 %3798
      %3802 = vset.pattern.permute.xlu0 0
      %3803 = vperm.xlu0 %3802, %v3765
      %v3804 = vpop.permute.xlu0 %3803
      %v3807 = vsel %vm597, %v3749, 0
      %v3810 = vsel %vm597, %v3750, 0
      %v3813 = vsel %vm597, %v3751, 0
      %v3816 = vsel %vm597, %v3752, 0
      %v3819 = vsel %vm597, %v3753, 0
      %v3822 = vsel %vm597, %v3754, 0
      %v3825 = vsel %vm597, %v3755, 0
      %v3828 = vsel %vm597, %v3756, 0
      %v3831 = vsel %vm622, %v3746, 0
      %v3834 = vsel %vm622, %v3747, 0
      %3836 = vmatprep.subr.mxu0 %v3743
      %3837 = vmatpush1.msra.mxu0 %v3742
      %3838 = vmatprep.subr.mxu0 %v3745
      %3839 = vmatpush1.msra.mxu0 %v3744
      %3840 = vmatprep.subr.mxu0 %v3834
      %3841 = vmatpush1.msra.mxu0 %v3831
      %3842 = vmatprep.subr.mxu0 0.0
      %3843 = vmatpush1.msra.mxu0 0.0
      %3844 = vmatprep.subr.mxu0 0.0
      %3845 = vmatpush1.msra.mxu0 0.0
      %3846 = vmatprep.subr.mxu0 0.0
      %3847 = vmatpush1.msra.mxu0 0.0
      %3848 = vmatprep.subr.mxu0 0.0
      %3849 = vmatpush1.msra.mxu0 0.0
      %3850 = vmatprep.subr.mxu0 0.0
      %3851 = vmatpush1.msra.mxu0 0.0
      %3852 = vmatprep.subr.mxu0 0.0
      %3853 = vmatpush1.msra.mxu0 0.0
      %3854 = vmatprep.subr.mxu0 0.0
      %3855 = vmatpush1.msra.mxu0 0.0
      %3856 = vmatprep.subr.mxu0 0.0
      %3857 = vmatpush1.msra.mxu0 0.0
      %3858 = vmatprep.subr.mxu0 0.0
      %3859 = vmatpush1.msra.mxu0 0.0
      %3860 = vmatprep.subr.mxu0 0.0
      %3861 = vmatpush1.msra.mxu0 0.0
      %3862 = vmatprep.subr.mxu0 0.0
      %3863 = vmatpush1.msra.mxu0 0.0
      %3864 = vmatprep.subr.mxu0 0.0
      %3865 = vmatpush1.msra.mxu0 0.0
      %3866 = vmatprep.subr.mxu0 0.0
      %3867 = vmatpush1.msra.mxu0 0.0
      %3868 = vmatprep.subr.mxu0 0.0
      %3869 = vmatpush1.msra.mxu0 0.0
      %3870 = vmatprep.subr.mxu0 0.0
      %3871 = vmatpush1.msra.mxu0 0.0
      %3872 = vmatprep.subr.mxu0 0.0
      %3873 = vmatpush1.msra.mxu0 0.0
      %3874 = vmatprep.subr.mxu0 0.0
      %3875 = vmatpush1.msra.mxu0 0.0
      %3876 = vmatprep.subr.mxu0 0.0
      %3877 = vmatpush1.msra.mxu0 0.0
      %3878 = vmatprep.subr.mxu0 0.0
      %3879 = vmatpush1.msra.mxu0 0.0
      %3880 = vmatprep.subr.mxu0 0.0
      %3881 = vmatpush1.msra.mxu0 0.0
      %3882 = vmatprep.subr.mxu0 0.0
      %3883 = vmatpush1.msra.mxu0 0.0
      %3884 = vmatprep.subr.mxu0 0.0
      %3885 = vmatpush1.msra.mxu0 0.0
      %3886 = vmatprep.subr.mxu0 0.0
      %3887 = vmatpush1.msra.mxu0 0.0
      %3888 = vmatprep.subr.mxu0 0.0
      %3889 = vmatpush1.msra.mxu0 0.0
      %3890 = vmatprep.subr.mxu0 0.0
      %3891 = vmatpush1.msra.mxu0 0.0
      %3892 = vmatprep.subr.mxu0 0.0
      %3893 = vmatpush1.msra.mxu0 0.0
      %3894 = vmatprep.subr.mxu0 0.0
      %3895 = vmatpush1.msra.mxu0 0.0
      %3896 = vmatprep.subr.mxu0 0.0
      %3897 = vmatpush1.msra.mxu0 0.0
      %3898 = vmatprep.subr.mxu0 0.0
      %3899 = vmatpush1.msra.mxu0 0.0
      %3900 = vmatprep.mubr.f32.mxu0 0.0
      %3901 = vmatmul.mubr.f32.gmra.mrb[0].mxu0 %v3807
      %v3902 = vpop.f32.mrb[0].mxu0
      %v3903 = vadd.f32 %v3769, %v3902
      %v3904 = vpop.f32.mrb[0].mxu0
      %v3905 = vadd.f32 %v3769, %v3904
      %3906 = vmatprep.mubr.f32.mxu0 0.0
      %3907 = vmatmul.mubr.f32.gmra.mrb[0].mxu0 %v3810
      %v3908 = vpop.f32.mrb[0].mxu0
      %v3909 = vadd.f32 %v3774, %v3908
      %v3910 = vpop.f32.mrb[0].mxu0
      %v3911 = vadd.f32 %v3774, %v3910
      %3912 = vmatprep.mubr.f32.mxu0 0.0
      %3913 = vmatmul.mubr.f32.gmra.mrb[0].mxu0 %v3813
      %v3914 = vpop.f32.mrb[0].mxu0
      %v3915 = vadd.f32 %v3779, %v3914
      %v3916 = vpop.f32.mrb[0].mxu0
      %v3917 = vadd.f32 %v3779, %v3916
      %3918 = vmatprep.mubr.f32.mxu0 0.0
      %3919 = vmatmul.mubr.f32.gmra.mrb[0].mxu0 %v3816
      %v3920 = vpop.f32.mrb[0].mxu0
      %v3921 = vadd.f32 %v3784, %v3920
      %v3922 = vpop.f32.mrb[0].mxu0
      %v3923 = vadd.f32 %v3784, %v3922
      %3924 = vmatprep.mubr.f32.mxu0 0.0
      %3925 = vmatmul.mubr.f32.gmra.mrb[0].mxu0 %v3819
      %v3926 = vpop.f32.mrb[0].mxu0
      %v3927 = vadd.f32 %v3789, %v3926
      %v3928 = vpop.f32.mrb[0].mxu0
      %v3929 = vadd.f32 %v3789, %v3928
      %3930 = vmatprep.mubr.f32.mxu0 0.0
      %3931 = vmatmul.mubr.f32.gmra.mrb[0].mxu0 %v3822
      %v3932 = vpop.f32.mrb[0].mxu0
      %v3933 = vadd.f32 %v3794, %v3932
      %v3934 = vpop.f32.mrb[0].mxu0
      %v3935 = vadd.f32 %v3794, %v3934
      %3936 = vmatprep.mubr.f32.mxu0 0.0
      %3937 = vmatmul.mubr.f32.gmra.mrb[0].mxu0 %v3825
      %v3938 = vpop.f32.mrb[0].mxu0
      %v3939 = vadd.f32 %v3799, %v3938
      %v3940 = vpop.f32.mrb[0].mxu0
      %v3941 = vadd.f32 %v3799, %v3940
      %3942 = vmatprep.mubr.f32.mxu0 0.0
      %3943 = vmatmul.mubr.f32.gmra.mrb[0].mxu0 %v3828
      %v3944 = vpop.f32.mrb[0].mxu0
      %v3945 = vadd.f32 %v3804, %v3944
      %v3946 = vpop.f32.mrb[0].mxu0
      %v3947 = vadd.f32 %v3804, %v3946
      %3948 = vdwg.mxu0
      %v3949 = vmax.f32 %v3903, 0.0
      %v3950 = vmax.f32 %v3905, 0.0
      %v3951 = vmax.f32 %v3909, 0.0
      %v3952 = vmax.f32 %v3911, 0.0
      %v3953 = vmax.f32 %v3915, 0.0
      %v3954 = vmax.f32 %v3917, 0.0
      %v3955 = vmax.f32 %v3921, 0.0
      %v3956 = vmax.f32 %v3923, 0.0
      %v3957 = vmax.f32 %v3927, 0.0
      %v3958 = vmax.f32 %v3929, 0.0
      %v3959 = vmax.f32 %v3933, 0.0
      %v3960 = vmax.f32 %v3935, 0.0
      %v3961 = vmax.f32 %v3939, 0.0
      %v3962 = vmax.f32 %v3941, 0.0
      %v3963 = vmax.f32 %v3945, 0.0
      %v3964 = vmax.f32 %v3947, 0.0
      %3965 = vst [vmem:[#allocation2 + $0x8] sm:$0xff] %v3953
      %3966 = vst [vmem:[#allocation2 + $0x10] sm:$0xff] %v3954
      %3967 = vst [vmem:[#allocation2 + $0x28] sm:$0xff] %v3955
      %3968 = vst [vmem:[#allocation2 + $0x30] sm:$0xff] %v3956
      %s3969 = scalar_lea.vmem %s4, 16
      %v3970 = vld [vmem:[%s3969] sm:$0xff]
      %v3971 = vld [vmem:[%s3969 + $0x8] sm:$0xff]
      %v3972 = vld [vmem:[#allocation2] sm:$0xff]
      %v3973 = vld [vmem:[#allocation2 + $0x8] sm:$0xff]
      %v3974 = vld [vmem:[#allocation2 + $0x10] sm:$0xff]
      %v3975 = vld [vmem:[#allocation2 + $0x20] sm:$0xff]
      %v3976 = vld [vmem:[#allocation2 + $0x28] sm:$0xff]
      %v3977 = vld [vmem:[#allocation2 + $0x30] sm:$0xff]
      %3979 = vset.pattern.permute.xlu0 0
      %3980 = vperm.xlu0 %3979, %v3970
      %v3981 = vpop.permute.xlu0 %3980
      %3984 = vset.pattern.permute.xlu0 0
      %3985 = vperm.xlu0 %3984, %v3971
      %v3986 = vpop.permute.xlu0 %3985
      %v3988 = vmul.f32 %v3972, %v3981
      %v3989 = vmul.f32 %v3973, %v3981
      %v3990 = vmul.f32 %v3974, %v3981
      %v3991 = vmul.f32 %v3975, %v3986
      %v3992 = vmul.f32 %v3976, %v3986
      %v3993 = vmul.f32 %v3977, %v3986
      %3994 = vset.pattern.permute.xlu0 1
      %3995 = vperm.xlu0 %3994, %v3970
      %v3996 = vpop.permute.xlu0 %3995
      %3998 = vset.pattern.permute.xlu0 1
      %3999 = vperm.xlu0 %3998, %v3971
      %v4000 = vpop.permute.xlu0 %3999
      %v4002 = vmul.f32 %v3972, %v3996
      %v4003 = vmul.f32 %v3973, %v3996
      %v4004 = vmul.f32 %v3974, %v3996
      %v4005 = vmul.f32 %v3975, %v4000
      %v4006 = vmul.f32 %v3976, %v4000
      %v4007 = vmul.f32 %v3977, %v4000
      %4008 = vset.pattern.permute.xlu0 2
      %4009 = vperm.xlu0 %4008, %v3970
      %v4010 = vpop.permute.xlu0 %4009
      %4012 = vset.pattern.permute.xlu0 2
      %4013 = vperm.xlu0 %4012, %v3971
      %v4014 = vpop.permute.xlu0 %4013
      %v4016 = vmul.f32 %v3972, %v4010
      %v4017 = vmul.f32 %v3973, %v4010
      %v4018 = vmul.f32 %v3974, %v4010
      %v4019 = vmul.f32 %v3975, %v4014
      %v4020 = vmul.f32 %v3976, %v4014
      %v4021 = vmul.f32 %v3977, %v4014
      %4022 = vset.pattern.permute.xlu0 3
      %4023 = vperm.xlu0 %4022, %v3970
      %v4024 = vpop.permute.xlu0 %4023
      %4026 = vset.pattern.permute.xlu0 3
      %4027 = vperm.xlu0 %4026, %v3971
      %v4028 = vpop.permute.xlu0 %4027
      %v4030 = vmul.f32 %v3972, %v4024
      %v4031 = vmul.f32 %v3973, %v4024
      %v4032 = vmul.f32 %v3974, %v4024
      %v4033 = vmul.f32 %v3975, %v4028
      %v4034 = vmul.f32 %v3976, %v4028
      %v4035 = vmul.f32 %v3977, %v4028
      %4042 = vrot.lane.b32.xlu0 %v4030, 112
      %v4043 = vpop.permute.xlu0 %4042
      %4044 = vrot.lane.b32.xlu0 %v4031, 112
      %v4045 = vpop.permute.xlu0 %4044
      %4046 = vrot.lane.b32.xlu0 %v4032, 112
      %v4047 = vpop.permute.xlu0 %4046
      %4048 = vrot.lane.b32.xlu0 %v4033, 112
      %v4049 = vpop.permute.xlu0 %4048
      %4050 = vrot.lane.b32.xlu0 %v4034, 112
      %v4051 = vpop.permute.xlu0 %4050
      %4052 = vrot.lane.b32.xlu0 %v4035, 112
      %v4053 = vpop.permute.xlu0 %4052
      %v4054 = vsel %vm846, %v4043, %v4045
      %v4055 = vsel %vm846, %v4045, %v4047
      %v4056 = vsel %vm846, %v4049, %v4051
      %v4057 = vsel %vm846, %v4051, %v4053
      %v4064 = vadd.f32 %v3988, %v4054
      %v4065 = vadd.f32 %v3989, %v4055
      %v4066 = vadd.f32 %v3990, %v4047
      %v4067 = vadd.f32 %v3991, %v4056
      %v4068 = vadd.f32 %v3992, %v4057
      %v4069 = vadd.f32 %v3993, %v4053
      %4070 = vset.pattern.permute.xlu0 4
      %4071 = vperm.xlu0 %4070, %v3970
      %v4072 = vpop.permute.xlu0 %4071
      %4074 = vset.pattern.permute.xlu0 4
      %4075 = vperm.xlu0 %4074, %v3971
      %v4076 = vpop.permute.xlu0 %4075
      %v4078 = vmul.f32 %v3973, %v4072
      %v4079 = vmul.f32 %v3974, %v4072
      %v4080 = vmul.f32 %v3976, %v4076
      %v4081 = vmul.f32 %v3977, %v4076
      %4086 = vrot.lane.b32.xlu0 %v4078, 112
      %v4087 = vpop.permute.xlu0 %4086
      %4088 = vrot.lane.b32.xlu0 %v4079, 112
      %v4089 = vpop.permute.xlu0 %4088
      %4090 = vrot.lane.b32.xlu0 %v4080, 112
      %v4091 = vpop.permute.xlu0 %4090
      %4092 = vrot.lane.b32.xlu0 %v4081, 112
      %v4093 = vpop.permute.xlu0 %4092
      %v4094 = vsel %vm846, %v4087, %v4089
      %v4095 = vsel %vm846, %v4091, %v4093
      %v4102 = vadd.f32 %v4002, %v4087
      %v4103 = vadd.f32 %v4003, %v4094
      %v4104 = vadd.f32 %v4004, %v4089
      %v4105 = vadd.f32 %v4005, %v4091
      %v4106 = vadd.f32 %v4006, %v4095
      %v4107 = vadd.f32 %v4007, %v4093
      %v4108 = vld [vmem:[#allocation2 + $0x8] sm:$0xff]
      %v4109 = vld [vmem:[#allocation2 + $0x10] sm:$0xff]
      %v4110 = vld [vmem:[#allocation2 + $0x18] sm:$0xff]
      %v4111 = vld [vmem:[#allocation2 + $0x28] sm:$0xff]
      %v4112 = vld [vmem:[#allocation2 + $0x30] sm:$0xff]
      %v4113 = vld [vmem:[#allocation2 + $0x38] sm:$0xff]
      %4114 = vset.pattern.permute.xlu0 5
      %4115 = vperm.xlu0 %4114, %v3970
      %v4116 = vpop.permute.xlu0 %4115
      %4118 = vset.pattern.permute.xlu0 5
      %4119 = vperm.xlu0 %4118, %v3971
      %v4120 = vpop.permute.xlu0 %4119
      %v4122 = vmul.f32 %v4108, %v4116
      %v4123 = vmul.f32 %v4109, %v4116
      %v4124 = vmul.f32 %v4110, %v4116
      %v4125 = vmul.f32 %v4111, %v4120
      %v4126 = vmul.f32 %v4112, %v4120
      %v4127 = vmul.f32 %v4113, %v4120
      %4134 = vrot.lane.b32.xlu0 %v4122, 112
      %v4135 = vpop.permute.xlu0 %4134
      %4136 = vrot.lane.b32.xlu0 %v4123, 112
      %v4137 = vpop.permute.xlu0 %4136
      %4138 = vrot.lane.b32.xlu0 %v4124, 112
      %v4139 = vpop.permute.xlu0 %4138
      %4140 = vrot.lane.b32.xlu0 %v4125, 112
      %v4141 = vpop.permute.xlu0 %4140
      %4142 = vrot.lane.b32.xlu0 %v4126, 112
      %v4143 = vpop.permute.xlu0 %4142
      %4144 = vrot.lane.b32.xlu0 %v4127, 112
      %v4145 = vpop.permute.xlu0 %4144
      %v4146 = vsel %vm846, %v4135, %v4137
      %v4147 = vsel %vm846, %v4137, %v4139
      %v4148 = vsel %vm846, %v4141, %v4143
      %v4149 = vsel %vm846, %v4143, %v4145
      %v4156 = vadd.f32 %v4016, %v4135
      %v4157 = vadd.f32 %v4017, %v4146
      %v4158 = vadd.f32 %v4018, %v4147
      %v4159 = vadd.f32 %v4019, %v4141
      %v4160 = vadd.f32 %v4020, %v4148
      %v4161 = vadd.f32 %v4021, %v4149
      %4162 = vset.pattern.permute.xlu0 6
      %4163 = vperm.xlu0 %4162, %v3970
      %v4164 = vpop.permute.xlu0 %4163
      %4166 = vset.pattern.permute.xlu0 6
      %4167 = vperm.xlu0 %4166, %v3971
      %v4168 = vpop.permute.xlu0 %4167
      %v4170 = vmul.f32 %v4108, %v4164
      %v4171 = vmul.f32 %v4109, %v4164
      %v4172 = vmul.f32 %v4110, %v4164
      %v4173 = vmul.f32 %v4111, %v4168
      %v4174 = vmul.f32 %v4112, %v4168
      %v4175 = vmul.f32 %v4113, %v4168
      %4182 = vrot.lane.b32.xlu0 %v4170, 96
      %v4183 = vpop.permute.xlu0 %4182
      %4184 = vrot.lane.b32.xlu0 %v4171, 96
      %v4185 = vpop.permute.xlu0 %4184
      %4186 = vrot.lane.b32.xlu0 %v4172, 96
      %v4187 = vpop.permute.xlu0 %4186
      %4188 = vrot.lane.b32.xlu0 %v4173, 96
      %v4189 = vpop.permute.xlu0 %4188
      %4190 = vrot.lane.b32.xlu0 %v4174, 96
      %v4191 = vpop.permute.xlu0 %4190
      %4192 = vrot.lane.b32.xlu0 %v4175, 96
      %v4193 = vpop.permute.xlu0 %4192
      %v4194 = vsel %vm987, %v4183, %v4185
      %v4195 = vsel %vm987, %v4185, %v4187
      %v4196 = vsel %vm987, %v4189, %v4191
      %v4197 = vsel %vm987, %v4191, %v4193
      %v4204 = vadd.f32 %v4064, %v4183
      %v4205 = vadd.f32 %v4065, %v4194
      %v4206 = vadd.f32 %v4066, %v4195
      %v4207 = vadd.f32 %v4067, %v4189
      %v4208 = vadd.f32 %v4068, %v4196
      %v4209 = vadd.f32 %v4069, %v4197
      %4210 = vset.pattern.permute.xlu0 7
      %4211 = vperm.xlu0 %4210, %v3970
      %v4212 = vpop.permute.xlu0 %4211
      %4214 = vset.pattern.permute.xlu0 7
      %4215 = vperm.xlu0 %4214, %v3971
      %v4216 = vpop.permute.xlu0 %4215
      %v4218 = vmul.f32 %v4108, %v4212
      %v4219 = vmul.f32 %v4109, %v4212
      %v4220 = vmul.f32 %v4110, %v4212
      %v4221 = vmul.f32 %v4111, %v4216
      %v4222 = vmul.f32 %v4112, %v4216
      %v4223 = vmul.f32 %v4113, %v4216
      %4230 = vrot.lane.b32.xlu0 %v4218, 96
      %v4231 = vpop.permute.xlu0 %4230
      %4232 = vrot.lane.b32.xlu0 %v4219, 96
      %v4233 = vpop.permute.xlu0 %4232
      %4234 = vrot.lane.b32.xlu0 %v4220, 96
      %v4235 = vpop.permute.xlu0 %4234
      %4236 = vrot.lane.b32.xlu0 %v4221, 96
      %v4237 = vpop.permute.xlu0 %4236
      %4238 = vrot.lane.b32.xlu0 %v4222, 96
      %v4239 = vpop.permute.xlu0 %4238
      %4240 = vrot.lane.b32.xlu0 %v4223, 96
      %v4241 = vpop.permute.xlu0 %4240
      %v4242 = vsel %vm987, %v4231, %v4233
      %v4243 = vsel %vm987, %v4233, %v4235
      %v4244 = vsel %vm987, %v4237, %v4239
      %v4245 = vsel %vm987, %v4239, %v4241
      %v4252 = vadd.f32 %v4102, %v4231
      %v4253 = vadd.f32 %v4103, %v4242
      %v4254 = vadd.f32 %v4104, %v4243
      %v4255 = vadd.f32 %v4105, %v4237
      %v4256 = vadd.f32 %v4106, %v4244
      %v4257 = vadd.f32 %v4107, %v4245
      %4258 = vset.pattern.permute.xlu0 8
      %4259 = vperm.xlu0 %4258, %v3970
      %v4260 = vpop.permute.xlu0 %4259
      %4262 = vset.pattern.permute.xlu0 8
      %4263 = vperm.xlu0 %4262, %v3971
      %v4264 = vpop.permute.xlu0 %4263
      %v4266 = vmul.f32 %v4108, %v4260
      %v4267 = vmul.f32 %v4109, %v4260
      %v4268 = vmul.f32 %v4110, %v4260
      %v4269 = vmul.f32 %v4111, %v4264
      %v4270 = vmul.f32 %v4112, %v4264
      %v4271 = vmul.f32 %v4113, %v4264
      %4278 = vrot.lane.b32.xlu0 %v4266, 96
      %v4279 = vpop.permute.xlu0 %4278
      %4280 = vrot.lane.b32.xlu0 %v4267, 96
      %v4281 = vpop.permute.xlu0 %4280
      %4282 = vrot.lane.b32.xlu0 %v4268, 96
      %v4283 = vpop.permute.xlu0 %4282
      %4284 = vrot.lane.b32.xlu0 %v4269, 96
      %v4285 = vpop.permute.xlu0 %4284
      %4286 = vrot.lane.b32.xlu0 %v4270, 96
      %v4287 = vpop.permute.xlu0 %4286
      %4288 = vrot.lane.b32.xlu0 %v4271, 96
      %v4289 = vpop.permute.xlu0 %4288
      %v4290 = vsel %vm987, %v4279, %v4281
      %v4291 = vsel %vm987, %v4281, %v4283
      %v4292 = vsel %vm987, %v4285, %v4287
      %v4293 = vsel %vm987, %v4287, %v4289
      %v4300 = vadd.f32 %v4156, %v4279
      %v4301 = vadd.f32 %v4157, %v4290
      %v4302 = vadd.f32 %v4158, %v4291
      %v4303 = vadd.f32 %v4159, %v4285
      %v4304 = vadd.f32 %v4160, %v4292
      %v4305 = vadd.f32 %v4161, %v4293
      %v4306 = vmul.f32 %v4204, %v1110
      %v4307 = vmul.f32 %v4205, %v1114
      %v4308 = vmul.f32 %v4206, %v1112
      %v4309 = vmul.f32 %v4207, %v1110
      %v4310 = vmul.f32 %v4208, %v1114
      %v4311 = vmul.f32 %v4209, %v1112
      %4318 = vrot.lane.b32.xlu0 %v4306, 1
      %v4319 = vpop.permute.xlu0 %4318
      %4320 = vrot.lane.b32.xlu0 %v4307, 1
      %v4321 = vpop.permute.xlu0 %4320
      %4322 = vrot.lane.b32.xlu0 %v4308, 1
      %v4323 = vpop.permute.xlu0 %4322
      %4324 = vrot.lane.b32.xlu0 %v4309, 1
      %v4325 = vpop.permute.xlu0 %4324
      %4326 = vrot.lane.b32.xlu0 %v4310, 1
      %v4327 = vpop.permute.xlu0 %4326
      %4328 = vrot.lane.b32.xlu0 %v4311, 1
      %v4329 = vpop.permute.xlu0 %4328
      %v4330 = vsel %vm1142, %v4319, %v4321
      %v4331 = vsel %vm1142, %v4321, %v4323
      %v4332 = vsel %vm1142, %v4325, %v4327
      %v4333 = vsel %vm1142, %v4327, %v4329
      %v4340 = vadd.f32 %v4252, %v4319
      %v4341 = vadd.f32 %v4253, %v4330
      %v4342 = vadd.f32 %v4254, %v4331
      %v4343 = vadd.f32 %v4255, %v4325
      %v4344 = vadd.f32 %v4256, %v4332
      %v4345 = vadd.f32 %v4257, %v4333
      %v4346 = vmul.f32 %v4300, %v1169
      %v4347 = vmul.f32 %v4301, %v1173
      %v4348 = vmul.f32 %v4302, %v1171
      %v4349 = vmul.f32 %v4303, %v1169
      %v4350 = vmul.f32 %v4304, %v1173
      %v4351 = vmul.f32 %v4305, %v1171
      %4358 = vrot.lane.b32.xlu0 %v4346, 127
      %v4359 = vpop.permute.xlu0 %4358
      %4360 = vrot.lane.b32.xlu0 %v4347, 127
      %v4361 = vpop.permute.xlu0 %4360
      %4362 = vrot.lane.b32.xlu0 %v4348, 127
      %v4363 = vpop.permute.xlu0 %4362
      %4364 = vrot.lane.b32.xlu0 %v4349, 127
      %v4365 = vpop.permute.xlu0 %4364
      %4366 = vrot.lane.b32.xlu0 %v4350, 127
      %v4367 = vpop.permute.xlu0 %4366
      %4368 = vrot.lane.b32.xlu0 %v4351, 127
      %v4369 = vpop.permute.xlu0 %4368
      %v4370 = vsel %vm1201, %v4359, %v4361
      %v4371 = vsel %vm1201, %v4361, %v4363
      %v4372 = vsel %vm1201, %v4365, %v4367
      %v4373 = vsel %vm1201, %v4367, %v4369
      %v4380 = vadd.f32 %v4340, %v4370
      %v4381 = vadd.f32 %v4341, %v4371
      %v4382 = vadd.f32 %v4342, %v4363
      %v4383 = vadd.f32 %v4343, %v4372
      %v4384 = vadd.f32 %v4344, %v4373
      %v4385 = vadd.f32 %v4345, %v4369
      %s4386 = scalar_lea.vmem %s5, 16
      %v4387 = vld [vmem:[%s4386] sm:$0xff]
      %v4388 = vld [vmem:[%s4386 + $0x8] sm:$0xff]
      %4390 = vset.pattern.permute.xlu0 0
      %4391 = vperm.xlu0 %4390, %v4387
      %v4392 = vpop.permute.xlu0 %4391
      %4395 = vset.pattern.permute.xlu0 0
      %4396 = vperm.xlu0 %4395, %v4388
      %v4397 = vpop.permute.xlu0 %4396
      %v4399 = vadd.f32 %v4380, %v4392
      %v4400 = vadd.f32 %v4381, %v4392
      %v4401 = vadd.f32 %v4382, %v4392
      %v4402 = vadd.f32 %v4383, %v4397
      %v4403 = vadd.f32 %v4384, %v4397
      %v4404 = vadd.f32 %v4385, %v4397
      %v4405 = vmax.f32 %v4399, 0.0
      %v4406 = vmax.f32 %v4400, 0.0
      %v4407 = vmax.f32 %v4401, 0.0
      %v4408 = vmax.f32 %v4402, 0.0
      %v4409 = vmax.f32 %v4403, 0.0
      %v4410 = vmax.f32 %v4404, 0.0
      %4417 = vrot.lane.b32.xlu0 %v4405, 16
      %v4418 = vpop.permute.xlu0 %4417
      %4419 = vrot.lane.b32.xlu0 %v4406, 16
      %v4420 = vpop.permute.xlu0 %4419
      %4421 = vrot.lane.b32.xlu0 %v4407, 16
      %v4422 = vpop.permute.xlu0 %4421
      %4423 = vrot.lane.b32.xlu0 %v4408, 16
      %v4424 = vpop.permute.xlu0 %4423
      %4425 = vrot.lane.b32.xlu0 %v4409, 16
      %v4426 = vpop.permute.xlu0 %4425
      %4427 = vrot.lane.b32.xlu0 %v4410, 16
      %v4428 = vpop.permute.xlu0 %4427
      %v4429 = vsel %vm1260, %v4418, %v4420
      %v4430 = vsel %vm1260, %v4420, %v4422
      %v4431 = vsel %vm1260, %v4424, %v4426
      %v4432 = vsel %vm1260, %v4426, %v4428
      %4437 = vst [vmem:[#allocation2 + $0x8] sm:$0xff] %v4429
      %4438 = vst [vmem:[#allocation2 + $0x10] sm:$0xff] %v4430
      %4439 = vst [vmem:[#allocation2 + $0x28] sm:$0xff] %v4431
      %4440 = vst [vmem:[#allocation2 + $0x30] sm:$0xff] %v4432
      %4441 = vst [vmem:[#allocation2 + $0x48] sm:$0xff] %v3957
      %4442 = vst [vmem:[#allocation2 + $0x50] sm:$0xff] %v3958
      %4443 = vst [vmem:[#allocation2 + $0x68] sm:$0xff] %v3959
      %4444 = vst [vmem:[#allocation2 + $0x70] sm:$0xff] %v3960
      %s4445 = scalar_lea.vmem %s6, 32
      %v4446 = vld [vmem:[%s4445] sm:$0xff]
      %v4447 = vld [vmem:[%s4445 + $0x8] sm:$0xff]
      %v4448 = vld [vmem:[%s4445 + $0x10] sm:$0xff]
      %v4449 = vld [vmem:[%s4445 + $0x18] sm:$0xff]
      %v4450 = vld [vmem:[#allocation2] sm:$0xff]
      %v4451 = vld [vmem:[#allocation2 + $0x8] sm:$0xff]
      %v4452 = vld [vmem:[#allocation2 + $0x10] sm:$0xff]
      %v4453 = vld [vmem:[#allocation2 + $0x20] sm:$0xff]
      %v4454 = vld [vmem:[#allocation2 + $0x28] sm:$0xff]
      %v4455 = vld [vmem:[#allocation2 + $0x30] sm:$0xff]
      %v4456 = vld [vmem:[#allocation2 + $0x40] sm:$0xff]
      %v4457 = vld [vmem:[#allocation2 + $0x48] sm:$0xff]
      %v4458 = vld [vmem:[#allocation2 + $0x50] sm:$0xff]
      %v4459 = vld [vmem:[#allocation2 + $0x60] sm:$0xff]
      %v4460 = vld [vmem:[#allocation2 + $0x68] sm:$0xff]
      %v4461 = vld [vmem:[#allocation2 + $0x70] sm:$0xff]
      %4463 = vset.pattern.permute.xlu0 0
      %4464 = vperm.xlu0 %4463, %v4446
      %v4465 = vpop.permute.xlu0 %4464
      %4468 = vset.pattern.permute.xlu0 0
      %4469 = vperm.xlu0 %4468, %v4447
      %v4470 = vpop.permute.xlu0 %4469
      %4473 = vset.pattern.permute.xlu0 0
      %4474 = vperm.xlu0 %4473, %v4448
      %v4475 = vpop.permute.xlu0 %4474
      %4478 = vset.pattern.permute.xlu0 0
      %4479 = vperm.xlu0 %4478, %v4449
      %v4480 = vpop.permute.xlu0 %4479
      %v4482 = vmul.f32 %v4450, %v4465
      %v4483 = vmul.f32 %v4451, %v4465
      %v4484 = vmul.f32 %v4452, %v4465
      %v4485 = vmul.f32 %v4453, %v4470
      %v4486 = vmul.f32 %v4454, %v4470
      %v4487 = vmul.f32 %v4455, %v4470
      %v4488 = vmul.f32 %v4456, %v4475
      %v4489 = vmul.f32 %v4457, %v4475
      %v4490 = vmul.f32 %v4458, %v4475
      %v4491 = vmul.f32 %v4459, %v4480
      %v4492 = vmul.f32 %v4460, %v4480
      %v4493 = vmul.f32 %v4461, %v4480
      %4494 = vset.pattern.permute.xlu0 1
      %4495 = vperm.xlu0 %4494, %v4446
      %v4496 = vpop.permute.xlu0 %4495
      %4498 = vset.pattern.permute.xlu0 1
      %4499 = vperm.xlu0 %4498, %v4447
      %v4500 = vpop.permute.xlu0 %4499
      %4502 = vset.pattern.permute.xlu0 1
      %4503 = vperm.xlu0 %4502, %v4448
      %v4504 = vpop.permute.xlu0 %4503
      %4506 = vset.pattern.permute.xlu0 1
      %4507 = vperm.xlu0 %4506, %v4449
      %v4508 = vpop.permute.xlu0 %4507
      %v4510 = vmul.f32 %v4450, %v4496
      %v4511 = vmul.f32 %v4451, %v4496
      %v4512 = vmul.f32 %v4452, %v4496
      %v4513 = vmul.f32 %v4453, %v4500
      %v4514 = vmul.f32 %v4454, %v4500
      %v4515 = vmul.f32 %v4455, %v4500
      %v4516 = vmul.f32 %v4456, %v4504
      %v4517 = vmul.f32 %v4457, %v4504
      %v4518 = vmul.f32 %v4458, %v4504
      %v4519 = vmul.f32 %v4459, %v4508
      %v4520 = vmul.f32 %v4460, %v4508
      %v4521 = vmul.f32 %v4461, %v4508
      %4522 = vset.pattern.permute.xlu0 2
      %4523 = vperm.xlu0 %4522, %v4446
      %v4524 = vpop.permute.xlu0 %4523
      %4526 = vset.pattern.permute.xlu0 2
      %4527 = vperm.xlu0 %4526, %v4447
      %v4528 = vpop.permute.xlu0 %4527
      %4530 = vset.pattern.permute.xlu0 2
      %4531 = vperm.xlu0 %4530, %v4448
      %v4532 = vpop.permute.xlu0 %4531
      %4534 = vset.pattern.permute.xlu0 2
      %4535 = vperm.xlu0 %4534, %v4449
      %v4536 = vpop.permute.xlu0 %4535
      %v4538 = vmul.f32 %v4450, %v4524
      %v4539 = vmul.f32 %v4451, %v4524
      %v4540 = vmul.f32 %v4452, %v4524
      %v4541 = vmul.f32 %v4453, %v4528
      %v4542 = vmul.f32 %v4454, %v4528
      %v4543 = vmul.f32 %v4455, %v4528
      %v4544 = vmul.f32 %v4456, %v4532
      %v4545 = vmul.f32 %v4457, %v4532
      %v4546 = vmul.f32 %v4458, %v4532
      %v4547 = vmul.f32 %v4459, %v4536
      %v4548 = vmul.f32 %v4460, %v4536
      %v4549 = vmul.f32 %v4461, %v4536
      %4550 = vset.pattern.permute.xlu0 3
      %4551 = vperm.xlu0 %4550, %v4446
      %v4552 = vpop.permute.xlu0 %4551
      %4554 = vset.pattern.permute.xlu0 3
      %4555 = vperm.xlu0 %4554, %v4447
      %v4556 = vpop.permute.xlu0 %4555
      %4558 = vset.pattern.permute.xlu0 3
      %4559 = vperm.xlu0 %4558, %v4448
      %v4560 = vpop.permute.xlu0 %4559
      %4562 = vset.pattern.permute.xlu0 3
      %4563 = vperm.xlu0 %4562, %v4449
      %v4564 = vpop.permute.xlu0 %4563
      %v4566 = vmul.f32 %v4450, %v4552
      %v4567 = vmul.f32 %v4451, %v4552
      %v4568 = vmul.f32 %v4452, %v4552
      %v4569 = vmul.f32 %v4453, %v4556
      %v4570 = vmul.f32 %v4454, %v4556
      %v4571 = vmul.f32 %v4455, %v4556
      %v4572 = vmul.f32 %v4456, %v4560
      %v4573 = vmul.f32 %v4457, %v4560
      %v4574 = vmul.f32 %v4458, %v4560
      %v4575 = vmul.f32 %v4459, %v4564
      %v4576 = vmul.f32 %v4460, %v4564
      %v4577 = vmul.f32 %v4461, %v4564
      %4590 = vrot.lane.b32.xlu0 %v4566, 112
      %v4591 = vpop.permute.xlu0 %4590
      %4592 = vrot.lane.b32.xlu0 %v4567, 112
      %v4593 = vpop.permute.xlu0 %4592
      %4594 = vrot.lane.b32.xlu0 %v4568, 112
      %v4595 = vpop.permute.xlu0 %4594
      %4596 = vrot.lane.b32.xlu0 %v4569, 112
      %v4597 = vpop.permute.xlu0 %4596
      %4598 = vrot.lane.b32.xlu0 %v4570, 112
      %v4599 = vpop.permute.xlu0 %4598
      %4600 = vrot.lane.b32.xlu0 %v4571, 112
      %v4601 = vpop.permute.xlu0 %4600
      %4602 = vrot.lane.b32.xlu0 %v4572, 112
      %v4603 = vpop.permute.xlu0 %4602
      %4604 = vrot.lane.b32.xlu0 %v4573, 112
      %v4605 = vpop.permute.xlu0 %4604
      %4606 = vrot.lane.b32.xlu0 %v4574, 112
      %v4607 = vpop.permute.xlu0 %4606
      %4608 = vrot.lane.b32.xlu0 %v4575, 112
      %v4609 = vpop.permute.xlu0 %4608
      %4610 = vrot.lane.b32.xlu0 %v4576, 112
      %v4611 = vpop.permute.xlu0 %4610
      %4612 = vrot.lane.b32.xlu0 %v4577, 112
      %v4613 = vpop.permute.xlu0 %4612
      %v4614 = vsel %vm846, %v4591, %v4593
      %v4615 = vsel %vm846, %v4593, %v4595
      %v4616 = vsel %vm846, %v4597, %v4599
      %v4617 = vsel %vm846, %v4599, %v4601
      %v4618 = vsel %vm846, %v4603, %v4605
      %v4619 = vsel %vm846, %v4605, %v4607
      %v4620 = vsel %vm846, %v4609, %v4611
      %v4621 = vsel %vm846, %v4611, %v4613
      %v4634 = vadd.f32 %v4482, %v4614
      %v4635 = vadd.f32 %v4483, %v4615
      %v4636 = vadd.f32 %v4484, %v4595
      %v4637 = vadd.f32 %v4485, %v4616
      %v4638 = vadd.f32 %v4486, %v4617
      %v4639 = vadd.f32 %v4487, %v4601
      %v4640 = vadd.f32 %v4488, %v4618
      %v4641 = vadd.f32 %v4489, %v4619
      %v4642 = vadd.f32 %v4490, %v4607
      %v4643 = vadd.f32 %v4491, %v4620
      %v4644 = vadd.f32 %v4492, %v4621
      %v4645 = vadd.f32 %v4493, %v4613
      %4646 = vset.pattern.permute.xlu0 4
      %4647 = vperm.xlu0 %4646, %v4446
      %v4648 = vpop.permute.xlu0 %4647
      %4650 = vset.pattern.permute.xlu0 4
      %4651 = vperm.xlu0 %4650, %v4447
      %v4652 = vpop.permute.xlu0 %4651
      %4654 = vset.pattern.permute.xlu0 4
      %4655 = vperm.xlu0 %4654, %v4448
      %v4656 = vpop.permute.xlu0 %4655
      %4658 = vset.pattern.permute.xlu0 4
      %4659 = vperm.xlu0 %4658, %v4449
      %v4660 = vpop.permute.xlu0 %4659
      %v4662 = vmul.f32 %v4451, %v4648
      %v4663 = vmul.f32 %v4452, %v4648
      %v4664 = vmul.f32 %v4454, %v4652
      %v4665 = vmul.f32 %v4455, %v4652
      %v4666 = vmul.f32 %v4457, %v4656
      %v4667 = vmul.f32 %v4458, %v4656
      %v4668 = vmul.f32 %v4460, %v4660
      %v4669 = vmul.f32 %v4461, %v4660
      %4678 = vrot.lane.b32.xlu0 %v4662, 112
      %v4679 = vpop.permute.xlu0 %4678
      %4680 = vrot.lane.b32.xlu0 %v4663, 112
      %v4681 = vpop.permute.xlu0 %4680
      %4682 = vrot.lane.b32.xlu0 %v4664, 112
      %v4683 = vpop.permute.xlu0 %4682
      %4684 = vrot.lane.b32.xlu0 %v4665, 112
      %v4685 = vpop.permute.xlu0 %4684
      %4686 = vrot.lane.b32.xlu0 %v4666, 112
      %v4687 = vpop.permute.xlu0 %4686
      %4688 = vrot.lane.b32.xlu0 %v4667, 112
      %v4689 = vpop.permute.xlu0 %4688
      %4690 = vrot.lane.b32.xlu0 %v4668, 112
      %v4691 = vpop.permute.xlu0 %4690
      %4692 = vrot.lane.b32.xlu0 %v4669, 112
      %v4693 = vpop.permute.xlu0 %4692
      %v4694 = vsel %vm846, %v4679, %v4681
      %v4695 = vsel %vm846, %v4683, %v4685
      %v4696 = vsel %vm846, %v4687, %v4689
      %v4697 = vsel %vm846, %v4691, %v4693
      %v4710 = vadd.f32 %v4510, %v4679
      %v4711 = vadd.f32 %v4511, %v4694
      %v4712 = vadd.f32 %v4512, %v4681
      %v4713 = vadd.f32 %v4513, %v4683
      %v4714 = vadd.f32 %v4514, %v4695
      %v4715 = vadd.f32 %v4515, %v4685
      %v4716 = vadd.f32 %v4516, %v4687
      %v4717 = vadd.f32 %v4517, %v4696
      %v4718 = vadd.f32 %v4518, %v4689
      %v4719 = vadd.f32 %v4519, %v4691
      %v4720 = vadd.f32 %v4520, %v4697
      %v4721 = vadd.f32 %v4521, %v4693
      %v4722 = vld [vmem:[#allocation2 + $0x8] sm:$0xff]
      %v4723 = vld [vmem:[#allocation2 + $0x10] sm:$0xff]
      %v4724 = vld [vmem:[#allocation2 + $0x18] sm:$0xff]
      %v4725 = vld [vmem:[#allocation2 + $0x28] sm:$0xff]
      %v4726 = vld [vmem:[#allocation2 + $0x30] sm:$0xff]
      %v4727 = vld [vmem:[#allocation2 + $0x38] sm:$0xff]
      %v4728 = vld [vmem:[#allocation2 + $0x48] sm:$0xff]
      %v4729 = vld [vmem:[#allocation2 + $0x50] sm:$0xff]
      %v4730 = vld [vmem:[#allocation2 + $0x58] sm:$0xff]
      %v4731 = vld [vmem:[#allocation2 + $0x68] sm:$0xff]
      %v4732 = vld [vmem:[#allocation2 + $0x70] sm:$0xff]
      %v4733 = vld [vmem:[#allocation2 + $0x78] sm:$0xff]
      %4734 = vset.pattern.permute.xlu0 5
      %4735 = vperm.xlu0 %4734, %v4446
      %v4736 = vpop.permute.xlu0 %4735
      %4738 = vset.pattern.permute.xlu0 5
      %4739 = vperm.xlu0 %4738, %v4447
      %v4740 = vpop.permute.xlu0 %4739
      %4742 = vset.pattern.permute.xlu0 5
      %4743 = vperm.xlu0 %4742, %v4448
      %v4744 = vpop.permute.xlu0 %4743
      %4746 = vset.pattern.permute.xlu0 5
      %4747 = vperm.xlu0 %4746, %v4449
      %v4748 = vpop.permute.xlu0 %4747
      %v4750 = vmul.f32 %v4722, %v4736
      %v4751 = vmul.f32 %v4723, %v4736
      %v4752 = vmul.f32 %v4724, %v4736
      %v4753 = vmul.f32 %v4725, %v4740
      %v4754 = vmul.f32 %v4726, %v4740
      %v4755 = vmul.f32 %v4727, %v4740
      %v4756 = vmul.f32 %v4728, %v4744
      %v4757 = vmul.f32 %v4729, %v4744
      %v4758 = vmul.f32 %v4730, %v4744
      %v4759 = vmul.f32 %v4731, %v4748
      %v4760 = vmul.f32 %v4732, %v4748
      %v4761 = vmul.f32 %v4733, %v4748
      %4774 = vrot.lane.b32.xlu0 %v4750, 112
      %v4775 = vpop.permute.xlu0 %4774
      %4776 = vrot.lane.b32.xlu0 %v4751, 112
      %v4777 = vpop.permute.xlu0 %4776
      %4778 = vrot.lane.b32.xlu0 %v4752, 112
      %v4779 = vpop.permute.xlu0 %4778
      %4780 = vrot.lane.b32.xlu0 %v4753, 112
      %v4781 = vpop.permute.xlu0 %4780
      %4782 = vrot.lane.b32.xlu0 %v4754, 112
      %v4783 = vpop.permute.xlu0 %4782
      %4784 = vrot.lane.b32.xlu0 %v4755, 112
      %v4785 = vpop.permute.xlu0 %4784
      %4786 = vrot.lane.b32.xlu0 %v4756, 112
      %v4787 = vpop.permute.xlu0 %4786
      %4788 = vrot.lane.b32.xlu0 %v4757, 112
      %v4789 = vpop.permute.xlu0 %4788
      %4790 = vrot.lane.b32.xlu0 %v4758, 112
      %v4791 = vpop.permute.xlu0 %4790
      %4792 = vrot.lane.b32.xlu0 %v4759, 112
      %v4793 = vpop.permute.xlu0 %4792
      %4794 = vrot.lane.b32.xlu0 %v4760, 112
      %v4795 = vpop.permute.xlu0 %4794
      %4796 = vrot.lane.b32.xlu0 %v4761, 112
      %v4797 = vpop.permute.xlu0 %4796
      %v4798 = vsel %vm846, %v4775, %v4777
      %v4799 = vsel %vm846, %v4777, %v4779
      %v4800 = vsel %vm846, %v4781, %v4783
      %v4801 = vsel %vm846, %v4783, %v4785
      %v4802 = vsel %vm846, %v4787, %v4789
      %v4803 = vsel %vm846, %v4789, %v4791
      %v4804 = vsel %vm846, %v4793, %v4795
      %v4805 = vsel %vm846, %v4795, %v4797
      %v4818 = vadd.f32 %v4538, %v4775
      %v4819 = vadd.f32 %v4539, %v4798
      %v4820 = vadd.f32 %v4540, %v4799
      %v4821 = vadd.f32 %v4541, %v4781
      %v4822 = vadd.f32 %v4542, %v4800
      %v4823 = vadd.f32 %v4543, %v4801
      %v4824 = vadd.f32 %v4544, %v4787
      %v4825 = vadd.f32 %v4545, %v4802
      %v4826 = vadd.f32 %v4546, %v4803
      %v4827 = vadd.f32 %v4547, %v4793
      %v4828 = vadd.f32 %v4548, %v4804
      %v4829 = vadd.f32 %v4549, %v4805
      %4830 = vset.pattern.permute.xlu0 6
      %4831 = vperm.xlu0 %4830, %v4446
      %v4832 = vpop.permute.xlu0 %4831
      %4834 = vset.pattern.permute.xlu0 6
      %4835 = vperm.xlu0 %4834, %v4447
      %v4836 = vpop.permute.xlu0 %4835
      %4838 = vset.pattern.permute.xlu0 6
      %4839 = vperm.xlu0 %4838, %v4448
      %v4840 = vpop.permute.xlu0 %4839
      %4842 = vset.pattern.permute.xlu0 6
      %4843 = vperm.xlu0 %4842, %v4449
      %v4844 = vpop.permute.xlu0 %4843
      %v4846 = vmul.f32 %v4722, %v4832
      %v4847 = vmul.f32 %v4723, %v4832
      %v4848 = vmul.f32 %v4724, %v4832
      %v4849 = vmul.f32 %v4725, %v4836
      %v4850 = vmul.f32 %v4726, %v4836
      %v4851 = vmul.f32 %v4727, %v4836
      %v4852 = vmul.f32 %v4728, %v4840
      %v4853 = vmul.f32 %v4729, %v4840
      %v4854 = vmul.f32 %v4730, %v4840
      %v4855 = vmul.f32 %v4731, %v4844
      %v4856 = vmul.f32 %v4732, %v4844
      %v4857 = vmul.f32 %v4733, %v4844
      %4870 = vrot.lane.b32.xlu0 %v4846, 96
      %v4871 = vpop.permute.xlu0 %4870
      %4872 = vrot.lane.b32.xlu0 %v4847, 96
      %v4873 = vpop.permute.xlu0 %4872
      %4874 = vrot.lane.b32.xlu0 %v4848, 96
      %v4875 = vpop.permute.xlu0 %4874
      %4876 = vrot.lane.b32.xlu0 %v4849, 96
      %v4877 = vpop.permute.xlu0 %4876
      %4878 = vrot.lane.b32.xlu0 %v4850, 96
      %v4879 = vpop.permute.xlu0 %4878
      %4880 = vrot.lane.b32.xlu0 %v4851, 96
      %v4881 = vpop.permute.xlu0 %4880
      %4882 = vrot.lane.b32.xlu0 %v4852, 96
      %v4883 = vpop.permute.xlu0 %4882
      %4884 = vrot.lane.b32.xlu0 %v4853, 96
      %v4885 = vpop.permute.xlu0 %4884
      %4886 = vrot.lane.b32.xlu0 %v4854, 96
      %v4887 = vpop.permute.xlu0 %4886
      %4888 = vrot.lane.b32.xlu0 %v4855, 96
      %v4889 = vpop.permute.xlu0 %4888
      %4890 = vrot.lane.b32.xlu0 %v4856, 96
      %v4891 = vpop.permute.xlu0 %4890
      %4892 = vrot.lane.b32.xlu0 %v4857, 96
      %v4893 = vpop.permute.xlu0 %4892
      %v4894 = vsel %vm987, %v4871, %v4873
      %v4895 = vsel %vm987, %v4873, %v4875
      %v4896 = vsel %vm987, %v4877, %v4879
      %v4897 = vsel %vm987, %v4879, %v4881
      %v4898 = vsel %vm987, %v4883, %v4885
      %v4899 = vsel %vm987, %v4885, %v4887
      %v4900 = vsel %vm987, %v4889, %v4891
      %v4901 = vsel %vm987, %v4891, %v4893
      %v4914 = vadd.f32 %v4634, %v4871
      %v4915 = vadd.f32 %v4635, %v4894
      %v4916 = vadd.f32 %v4636, %v4895
      %v4917 = vadd.f32 %v4637, %v4877
      %v4918 = vadd.f32 %v4638, %v4896
      %v4919 = vadd.f32 %v4639, %v4897
      %v4920 = vadd.f32 %v4640, %v4883
      %v4921 = vadd.f32 %v4641, %v4898
      %v4922 = vadd.f32 %v4642, %v4899
      %v4923 = vadd.f32 %v4643, %v4889
      %v4924 = vadd.f32 %v4644, %v4900
      %v4925 = vadd.f32 %v4645, %v4901
      %4926 = vset.pattern.permute.xlu0 7
      %4927 = vperm.xlu0 %4926, %v4446
      %v4928 = vpop.permute.xlu0 %4927
      %4930 = vset.pattern.permute.xlu0 7
      %4931 = vperm.xlu0 %4930, %v4447
      %v4932 = vpop.permute.xlu0 %4931
      %4934 = vset.pattern.permute.xlu0 7
      %4935 = vperm.xlu0 %4934, %v4448
      %v4936 = vpop.permute.xlu0 %4935
      %4938 = vset.pattern.permute.xlu0 7
      %4939 = vperm.xlu0 %4938, %v4449
      %v4940 = vpop.permute.xlu0 %4939
      %v4942 = vmul.f32 %v4722, %v4928
      %v4943 = vmul.f32 %v4723, %v4928
      %v4944 = vmul.f32 %v4724, %v4928
      %v4945 = vmul.f32 %v4725, %v4932
      %v4946 = vmul.f32 %v4726, %v4932
      %v4947 = vmul.f32 %v4727, %v4932
      %v4948 = vmul.f32 %v4728, %v4936
      %v4949 = vmul.f32 %v4729, %v4936
      %v4950 = vmul.f32 %v4730, %v4936
      %v4951 = vmul.f32 %v4731, %v4940
      %v4952 = vmul.f32 %v4732, %v4940
      %v4953 = vmul.f32 %v4733, %v4940
      %4966 = vrot.lane.b32.xlu0 %v4942, 96
      %v4967 = vpop.permute.xlu0 %4966
      %4968 = vrot.lane.b32.xlu0 %v4943, 96
      %v4969 = vpop.permute.xlu0 %4968
      %4970 = vrot.lane.b32.xlu0 %v4944, 96
      %v4971 = vpop.permute.xlu0 %4970
      %4972 = vrot.lane.b32.xlu0 %v4945, 96
      %v4973 = vpop.permute.xlu0 %4972
      %4974 = vrot.lane.b32.xlu0 %v4946, 96
      %v4975 = vpop.permute.xlu0 %4974
      %4976 = vrot.lane.b32.xlu0 %v4947, 96
      %v4977 = vpop.permute.xlu0 %4976
      %4978 = vrot.lane.b32.xlu0 %v4948, 96
      %v4979 = vpop.permute.xlu0 %4978
      %4980 = vrot.lane.b32.xlu0 %v4949, 96
      %v4981 = vpop.permute.xlu0 %4980
      %4982 = vrot.lane.b32.xlu0 %v4950, 96
      %v4983 = vpop.permute.xlu0 %4982
      %4984 = vrot.lane.b32.xlu0 %v4951, 96
      %v4985 = vpop.permute.xlu0 %4984
      %4986 = vrot.lane.b32.xlu0 %v4952, 96
      %v4987 = vpop.permute.xlu0 %4986
      %4988 = vrot.lane.b32.xlu0 %v4953, 96
      %v4989 = vpop.permute.xlu0 %4988
      %v4990 = vsel %vm987, %v4967, %v4969
      %v4991 = vsel %vm987, %v4969, %v4971
      %v4992 = vsel %vm987, %v4973, %v4975
      %v4993 = vsel %vm987, %v4975, %v4977
      %v4994 = vsel %vm987, %v4979, %v4981
      %v4995 = vsel %vm987, %v4981, %v4983
      %v4996 = vsel %vm987, %v4985, %v4987
      %v4997 = vsel %vm987, %v4987, %v4989
      %v5010 = vadd.f32 %v4710, %v4967
      %v5011 = vadd.f32 %v4711, %v4990
      %v5012 = vadd.f32 %v4712, %v4991
      %v5013 = vadd.f32 %v4713, %v4973
      %v5014 = vadd.f32 %v4714, %v4992
      %v5015 = vadd.f32 %v4715, %v4993
      %v5016 = vadd.f32 %v4716, %v4979
      %v5017 = vadd.f32 %v4717, %v4994
      %v5018 = vadd.f32 %v4718, %v4995
      %v5019 = vadd.f32 %v4719, %v4985
      %v5020 = vadd.f32 %v4720, %v4996
      %v5021 = vadd.f32 %v4721, %v4997
      %5022 = vset.pattern.permute.xlu0 8
      %5023 = vperm.xlu0 %5022, %v4446
      %v5024 = vpop.permute.xlu0 %5023
      %5026 = vset.pattern.permute.xlu0 8
      %5027 = vperm.xlu0 %5026, %v4447
      %v5028 = vpop.permute.xlu0 %5027
      %5030 = vset.pattern.permute.xlu0 8
      %5031 = vperm.xlu0 %5030, %v4448
      %v5032 = vpop.permute.xlu0 %5031
      %5034 = vset.pattern.permute.xlu0 8
      %5035 = vperm.xlu0 %5034, %v4449
      %v5036 = vpop.permute.xlu0 %5035
      %v5038 = vmul.f32 %v4722, %v5024
      %v5039 = vmul.f32 %v4723, %v5024
      %v5040 = vmul.f32 %v4724, %v5024
      %v5041 = vmul.f32 %v4725, %v5028
      %v5042 = vmul.f32 %v4726, %v5028
      %v5043 = vmul.f32 %v4727, %v5028
      %v5044 = vmul.f32 %v4728, %v5032
      %v5045 = vmul.f32 %v4729, %v5032
      %v5046 = vmul.f32 %v4730, %v5032
      %v5047 = vmul.f32 %v4731, %v5036
      %v5048 = vmul.f32 %v4732, %v5036
      %v5049 = vmul.f32 %v4733, %v5036
      %5062 = vrot.lane.b32.xlu0 %v5038, 96
      %v5063 = vpop.permute.xlu0 %5062
      %5064 = vrot.lane.b32.xlu0 %v5039, 96
      %v5065 = vpop.permute.xlu0 %5064
      %5066 = vrot.lane.b32.xlu0 %v5040, 96
      %v5067 = vpop.permute.xlu0 %5066
      %5068 = vrot.lane.b32.xlu0 %v5041, 96
      %v5069 = vpop.permute.xlu0 %5068
      %5070 = vrot.lane.b32.xlu0 %v5042, 96
      %v5071 = vpop.permute.xlu0 %5070
      %5072 = vrot.lane.b32.xlu0 %v5043, 96
      %v5073 = vpop.permute.xlu0 %5072
      %5074 = vrot.lane.b32.xlu0 %v5044, 96
      %v5075 = vpop.permute.xlu0 %5074
      %5076 = vrot.lane.b32.xlu0 %v5045, 96
      %v5077 = vpop.permute.xlu0 %5076
      %5078 = vrot.lane.b32.xlu0 %v5046, 96
      %v5079 = vpop.permute.xlu0 %5078
      %5080 = vrot.lane.b32.xlu0 %v5047, 96
      %v5081 = vpop.permute.xlu0 %5080
      %5082 = vrot.lane.b32.xlu0 %v5048, 96
      %v5083 = vpop.permute.xlu0 %5082
      %5084 = vrot.lane.b32.xlu0 %v5049, 96
      %v5085 = vpop.permute.xlu0 %5084
      %v5086 = vsel %vm987, %v5063, %v5065
      %v5087 = vsel %vm987, %v5065, %v5067
      %v5088 = vsel %vm987, %v5069, %v5071
      %v5089 = vsel %vm987, %v5071, %v5073
      %v5090 = vsel %vm987, %v5075, %v5077
      %v5091 = vsel %vm987, %v5077, %v5079
      %v5092 = vsel %vm987, %v5081, %v5083
      %v5093 = vsel %vm987, %v5083, %v5085
      %v5106 = vadd.f32 %v4818, %v5063
      %v5107 = vadd.f32 %v4819, %v5086
      %v5108 = vadd.f32 %v4820, %v5087
      %v5109 = vadd.f32 %v4821, %v5069
      %v5110 = vadd.f32 %v4822, %v5088
      %v5111 = vadd.f32 %v4823, %v5089
      %v5112 = vadd.f32 %v4824, %v5075
      %v5113 = vadd.f32 %v4825, %v5090
      %v5114 = vadd.f32 %v4826, %v5091
      %v5115 = vadd.f32 %v4827, %v5081
      %v5116 = vadd.f32 %v4828, %v5092
      %v5117 = vadd.f32 %v4829, %v5093
      %v5118 = vmul.f32 %v4914, %v1110
      %v5119 = vmul.f32 %v4915, %v1114
      %v5120 = vmul.f32 %v4916, %v1112
      %v5121 = vmul.f32 %v4917, %v1110
      %v5122 = vmul.f32 %v4918, %v1114
      %v5123 = vmul.f32 %v4919, %v1112
      %v5124 = vmul.f32 %v4920, %v1110
      %v5125 = vmul.f32 %v4921, %v1114
      %v5126 = vmul.f32 %v4922, %v1112
      %v5127 = vmul.f32 %v4923, %v1110
      %v5128 = vmul.f32 %v4924, %v1114
      %v5129 = vmul.f32 %v4925, %v1112
      %5142 = vrot.lane.b32.xlu0 %v5118, 1
      %v5143 = vpop.permute.xlu0 %5142
      %5144 = vrot.lane.b32.xlu0 %v5119, 1
      %v5145 = vpop.permute.xlu0 %5144
      %5146 = vrot.lane.b32.xlu0 %v5120, 1
      %v5147 = vpop.permute.xlu0 %5146
      %5148 = vrot.lane.b32.xlu0 %v5121, 1
      %v5149 = vpop.permute.xlu0 %5148
      %5150 = vrot.lane.b32.xlu0 %v5122, 1
      %v5151 = vpop.permute.xlu0 %5150
      %5152 = vrot.lane.b32.xlu0 %v5123, 1
      %v5153 = vpop.permute.xlu0 %5152
      %5154 = vrot.lane.b32.xlu0 %v5124, 1
      %v5155 = vpop.permute.xlu0 %5154
      %5156 = vrot.lane.b32.xlu0 %v5125, 1
      %v5157 = vpop.permute.xlu0 %5156
      %5158 = vrot.lane.b32.xlu0 %v5126, 1
      %v5159 = vpop.permute.xlu0 %5158
      %5160 = vrot.lane.b32.xlu0 %v5127, 1
      %v5161 = vpop.permute.xlu0 %5160
      %5162 = vrot.lane.b32.xlu0 %v5128, 1
      %v5163 = vpop.permute.xlu0 %5162
      %5164 = vrot.lane.b32.xlu0 %v5129, 1
      %v5165 = vpop.permute.xlu0 %5164
      %v5166 = vsel %vm1142, %v5143, %v5145
      %v5167 = vsel %vm1142, %v5145, %v5147
      %v5168 = vsel %vm1142, %v5149, %v5151
      %v5169 = vsel %vm1142, %v5151, %v5153
      %v5170 = vsel %vm1142, %v5155, %v5157
      %v5171 = vsel %vm1142, %v5157, %v5159
      %v5172 = vsel %vm1142, %v5161, %v5163
      %v5173 = vsel %vm1142, %v5163, %v5165
      %v5186 = vadd.f32 %v5010, %v5143
      %v5187 = vadd.f32 %v5011, %v5166
      %v5188 = vadd.f32 %v5012, %v5167
      %v5189 = vadd.f32 %v5013, %v5149
      %v5190 = vadd.f32 %v5014, %v5168
      %v5191 = vadd.f32 %v5015, %v5169
      %v5192 = vadd.f32 %v5016, %v5155
      %v5193 = vadd.f32 %v5017, %v5170
      %v5194 = vadd.f32 %v5018, %v5171
      %v5195 = vadd.f32 %v5019, %v5161
      %v5196 = vadd.f32 %v5020, %v5172
      %v5197 = vadd.f32 %v5021, %v5173
      %v5198 = vmul.f32 %v5106, %v1169
      %v5199 = vmul.f32 %v5107, %v1173
      %v5200 = vmul.f32 %v5108, %v1171
      %v5201 = vmul.f32 %v5109, %v1169
      %v5202 = vmul.f32 %v5110, %v1173
      %v5203 = vmul.f32 %v5111, %v1171
      %v5204 = vmul.f32 %v5112, %v1169
      %v5205 = vmul.f32 %v5113, %v1173
      %v5206 = vmul.f32 %v5114, %v1171
      %v5207 = vmul.f32 %v5115, %v1169
      %v5208 = vmul.f32 %v5116, %v1173
      %v5209 = vmul.f32 %v5117, %v1171
      %5222 = vrot.lane.b32.xlu0 %v5198, 127
      %v5223 = vpop.permute.xlu0 %5222
      %5224 = vrot.lane.b32.xlu0 %v5199, 127
      %v5225 = vpop.permute.xlu0 %5224
      %5226 = vrot.lane.b32.xlu0 %v5200, 127
      %v5227 = vpop.permute.xlu0 %5226
      %5228 = vrot.lane.b32.xlu0 %v5201, 127
      %v5229 = vpop.permute.xlu0 %5228
      %5230 = vrot.lane.b32.xlu0 %v5202, 127
      %v5231 = vpop.permute.xlu0 %5230
      %5232 = vrot.lane.b32.xlu0 %v5203, 127
      %v5233 = vpop.permute.xlu0 %5232
      %5234 = vrot.lane.b32.xlu0 %v5204, 127
      %v5235 = vpop.permute.xlu0 %5234
      %5236 = vrot.lane.b32.xlu0 %v5205, 127
      %v5237 = vpop.permute.xlu0 %5236
      %5238 = vrot.lane.b32.xlu0 %v5206, 127
      %v5239 = vpop.permute.xlu0 %5238
      %5240 = vrot.lane.b32.xlu0 %v5207, 127
      %v5241 = vpop.permute.xlu0 %5240
      %5242 = vrot.lane.b32.xlu0 %v5208, 127
      %v5243 = vpop.permute.xlu0 %5242
      %5244 = vrot.lane.b32.xlu0 %v5209, 127
      %v5245 = vpop.permute.xlu0 %5244
      %v5246 = vsel %vm1201, %v5223, %v5225
      %v5247 = vsel %vm1201, %v5225, %v5227
      %v5248 = vsel %vm1201, %v5229, %v5231
      %v5249 = vsel %vm1201, %v5231, %v5233
      %v5250 = vsel %vm1201, %v5235, %v5237
      %v5251 = vsel %vm1201, %v5237, %v5239
      %v5252 = vsel %vm1201, %v5241, %v5243
      %v5253 = vsel %vm1201, %v5243, %v5245
      %v5266 = vadd.f32 %v5186, %v5246
      %v5267 = vadd.f32 %v5187, %v5247
      %v5268 = vadd.f32 %v5188, %v5227
      %v5269 = vadd.f32 %v5189, %v5248
      %v5270 = vadd.f32 %v5190, %v5249
      %v5271 = vadd.f32 %v5191, %v5233
      %v5272 = vadd.f32 %v5192, %v5250
      %v5273 = vadd.f32 %v5193, %v5251
      %v5274 = vadd.f32 %v5194, %v5239
      %v5275 = vadd.f32 %v5195, %v5252
      %v5276 = vadd.f32 %v5196, %v5253
      %v5277 = vadd.f32 %v5197, %v5245
      %s5278 = scalar_lea.vmem %s7, 16
      %v5279 = vld [vmem:[%s5278] sm:$0xff]
      %v5280 = vld [vmem:[%s5278 + $0x8] sm:$0xff]
      %s5281 = scalar_lea.vmem %s8, 16
      %v5282 = vld [vmem:[%s5281] sm:$0xff]
      %v5283 = vld [vmem:[%s5281 + $0x8] sm:$0xff]
      %5285 = vset.pattern.permute.xlu0 0
      %5286 = vperm.xlu0 %5285, %v5282
      %v5287 = vpop.permute.xlu0 %5286
      %5290 = vset.pattern.permute.xlu0 0
      %5291 = vperm.xlu0 %5290, %v5283
      %v5292 = vpop.permute.xlu0 %5291
      %5306 = vrot.lane.b32.xlu0 %v5266, 16
      %v5307 = vpop.permute.xlu0 %5306
      %5308 = vrot.lane.b32.xlu0 %v5267, 16
      %v5309 = vpop.permute.xlu0 %5308
      %5310 = vrot.lane.b32.xlu0 %v5268, 16
      %v5311 = vpop.permute.xlu0 %5310
      %5312 = vrot.lane.b32.xlu0 %v5269, 16
      %v5313 = vpop.permute.xlu0 %5312
      %5314 = vrot.lane.b32.xlu0 %v5270, 16
      %v5315 = vpop.permute.xlu0 %5314
      %5316 = vrot.lane.b32.xlu0 %v5271, 16
      %v5317 = vpop.permute.xlu0 %5316
      %5318 = vrot.lane.b32.xlu0 %v5272, 16
      %v5319 = vpop.permute.xlu0 %5318
      %5320 = vrot.lane.b32.xlu0 %v5273, 16
      %v5321 = vpop.permute.xlu0 %5320
      %5322 = vrot.lane.b32.xlu0 %v5274, 16
      %v5323 = vpop.permute.xlu0 %5322
      %5324 = vrot.lane.b32.xlu0 %v5275, 16
      %v5325 = vpop.permute.xlu0 %5324
      %5326 = vrot.lane.b32.xlu0 %v5276, 16
      %v5327 = vpop.permute.xlu0 %5326
      %5328 = vrot.lane.b32.xlu0 %v5277, 16
      %v5329 = vpop.permute.xlu0 %5328
      %v5330 = vsel %vm1260, %v5307, %v5309
      %v5331 = vsel %vm1260, %v5309, %v5311
      %v5332 = vsel %vm1260, %v5313, %v5315
      %v5333 = vsel %vm1260, %v5315, %v5317
      %v5334 = vsel %vm1260, %v5319, %v5321
      %v5335 = vsel %vm1260, %v5321, %v5323
      %v5336 = vsel %vm1260, %v5325, %v5327
      %v5337 = vsel %vm1260, %v5327, %v5329
      %v5347 = vsel %vm2175, %v5279, 0
      %v5350 = vsel %vm2175, %v5280, 0
      %5352 = vmatprep.subr.mxu0 %v5331
      %5353 = vmatpush1.msra.mxu0 %v5330
      %5354 = vmatprep.subr.mxu0 %v5333
      %5355 = vmatpush1.msra.mxu0 %v5332
      %5356 = vmatprep.subr.mxu0 %v5335
      %5357 = vmatpush1.msra.mxu0 %v5334
      %5358 = vmatprep.subr.mxu0 %v5337
      %5359 = vmatpush1.msra.mxu0 %v5336
      %5360 = vmatprep.subr.mxu0 0.0
      %5361 = vmatpush1.msra.mxu0 0.0
      %5362 = vmatprep.subr.mxu0 0.0
      %5363 = vmatpush1.msra.mxu0 0.0
      %5364 = vmatprep.subr.mxu0 0.0
      %5365 = vmatpush1.msra.mxu0 0.0
      %5366 = vmatprep.subr.mxu0 0.0
      %5367 = vmatpush1.msra.mxu0 0.0
      %5368 = vmatprep.subr.mxu0 0.0
      %5369 = vmatpush1.msra.mxu0 0.0
      %5370 = vmatprep.subr.mxu0 0.0
      %5371 = vmatpush1.msra.mxu0 0.0
      %5372 = vmatprep.subr.mxu0 0.0
      %5373 = vmatpush1.msra.mxu0 0.0
      %5374 = vmatprep.subr.mxu0 0.0
      %5375 = vmatpush1.msra.mxu0 0.0
      %5376 = vmatprep.subr.mxu0 0.0
      %5377 = vmatpush1.msra.mxu0 0.0
      %5378 = vmatprep.subr.mxu0 0.0
      %5379 = vmatpush1.msra.mxu0 0.0
      %5380 = vmatprep.subr.mxu0 0.0
      %5381 = vmatpush1.msra.mxu0 0.0
      %5382 = vmatprep.subr.mxu0 0.0
      %5383 = vmatpush1.msra.mxu0 0.0
      %5384 = vmatprep.subr.mxu0 0.0
      %5385 = vmatpush1.msra.mxu0 0.0
      %5386 = vmatprep.subr.mxu0 0.0
      %5387 = vmatpush1.msra.mxu0 0.0
      %5388 = vmatprep.subr.mxu0 0.0
      %5389 = vmatpush1.msra.mxu0 0.0
      %5390 = vmatprep.subr.mxu0 0.0
      %5391 = vmatpush1.msra.mxu0 0.0
      %5392 = vmatprep.subr.mxu0 0.0
      %5393 = vmatpush1.msra.mxu0 0.0
      %5394 = vmatprep.subr.mxu0 0.0
      %5395 = vmatpush1.msra.mxu0 0.0
      %5396 = vmatprep.subr.mxu0 0.0
      %5397 = vmatpush1.msra.mxu0 0.0
      %5398 = vmatprep.subr.mxu0 0.0
      %5399 = vmatpush1.msra.mxu0 0.0
      %5400 = vmatprep.subr.mxu0 0.0
      %5401 = vmatpush1.msra.mxu0 0.0
      %5402 = vmatprep.subr.mxu0 0.0
      %5403 = vmatpush1.msra.mxu0 0.0
      %5404 = vmatprep.subr.mxu0 0.0
      %5405 = vmatpush1.msra.mxu0 0.0
      %5406 = vmatprep.subr.mxu0 0.0
      %5407 = vmatpush1.msra.mxu0 0.0
      %5408 = vmatprep.subr.mxu0 0.0
      %5409 = vmatpush1.msra.mxu0 0.0
      %5410 = vmatprep.subr.mxu0 0.0
      %5411 = vmatpush1.msra.mxu0 0.0
      %5412 = vmatprep.subr.mxu0 0.0
      %5413 = vmatpush1.msra.mxu0 0.0
      %5414 = vmatprep.subr.mxu0 0.0
      %5415 = vmatpush1.msra.mxu0 0.0
      %5416 = vmatprep.mubr.f32.mxu0 0.0
      %5417 = vmatmul.mubr.f32.gmra.mrb[0].mxu0 %v5347
      %v5418 = vpop.f32.mrb[0].mxu0
      %v5419 = vadd.f32 %v5287, %v5418
      %v5420 = vpop.f32.mrb[0].mxu0
      %v5421 = vadd.f32 %v5287, %v5420
      %5422 = vmatprep.mubr.f32.mxu0 0.0
      %5423 = vmatmul.mubr.f32.gmra.mrb[0].mxu0 %v5350
      %v5424 = vpop.f32.mrb[0].mxu0
      %v5425 = vadd.f32 %v5292, %v5424
      %v5426 = vpop.f32.mrb[0].mxu0
      %v5427 = vadd.f32 %v5292, %v5426
      %5428 = vdwg.mxu0
      %v5429 = vmax.f32 %v5419, 0.0
      %v5430 = vmax.f32 %v5421, 0.0
      %v5431 = vmax.f32 %v5425, 0.0
      %v5432 = vmax.f32 %v5427, 0.0
      %5433 = vst [vmem:[#allocation2 + $0x8] sm:$0xff] %v5429
      %5434 = vst [vmem:[#allocation2 + $0x10] sm:$0xff] %v5430
      %5435 = vst [vmem:[#allocation2 + $0x28] sm:$0xff] %v5431
      %5436 = vst [vmem:[#allocation2 + $0x30] sm:$0xff] %v5432
      %5437 = vst [vmem:[#allocation2 + $0x48] sm:$0xff] %v3961
      %5438 = vst [vmem:[#allocation2 + $0x50] sm:$0xff] %v3962
      %5439 = vst [vmem:[#allocation2 + $0x68] sm:$0xff] %v3963
      %5440 = vst [vmem:[#allocation2 + $0x70] sm:$0xff] %v3964
      %s5441 = scalar_lea.vmem %s9, 32
      %v5442 = vld [vmem:[%s5441] sm:$0xff]
      %v5443 = vld [vmem:[%s5441 + $0x8] sm:$0xff]
      %v5444 = vld [vmem:[%s5441 + $0x10] sm:$0xff]
      %v5445 = vld [vmem:[%s5441 + $0x18] sm:$0xff]
      %v5446 = vld [vmem:[#allocation2] sm:$0xff]
      %v5447 = vld [vmem:[#allocation2 + $0x8] sm:$0xff]
      %v5448 = vld [vmem:[#allocation2 + $0x10] sm:$0xff]
      %v5449 = vld [vmem:[#allocation2 + $0x20] sm:$0xff]
      %v5450 = vld [vmem:[#allocation2 + $0x28] sm:$0xff]
      %v5451 = vld [vmem:[#allocation2 + $0x30] sm:$0xff]
      %v5452 = vld [vmem:[#allocation2 + $0x40] sm:$0xff]
      %v5453 = vld [vmem:[#allocation2 + $0x48] sm:$0xff]
      %v5454 = vld [vmem:[#allocation2 + $0x50] sm:$0xff]
      %v5455 = vld [vmem:[#allocation2 + $0x60] sm:$0xff]
      %v5456 = vld [vmem:[#allocation2 + $0x68] sm:$0xff]
      %v5457 = vld [vmem:[#allocation2 + $0x70] sm:$0xff]
      %5459 = vset.pattern.permute.xlu0 0
      %5460 = vperm.xlu0 %5459, %v5442
      %v5461 = vpop.permute.xlu0 %5460
      %5464 = vset.pattern.permute.xlu0 0
      %5465 = vperm.xlu0 %5464, %v5443
      %v5466 = vpop.permute.xlu0 %5465
      %5469 = vset.pattern.permute.xlu0 0
      %5470 = vperm.xlu0 %5469, %v5444
      %v5471 = vpop.permute.xlu0 %5470
      %5474 = vset.pattern.permute.xlu0 0
      %5475 = vperm.xlu0 %5474, %v5445
      %v5476 = vpop.permute.xlu0 %5475
      %v5478 = vmul.f32 %v5446, %v5461
      %v5479 = vmul.f32 %v5447, %v5461
      %v5480 = vmul.f32 %v5448, %v5461
      %v5481 = vmul.f32 %v5449, %v5466
      %v5482 = vmul.f32 %v5450, %v5466
      %v5483 = vmul.f32 %v5451, %v5466
      %v5484 = vmul.f32 %v5452, %v5471
      %v5485 = vmul.f32 %v5453, %v5471
      %v5486 = vmul.f32 %v5454, %v5471
      %v5487 = vmul.f32 %v5455, %v5476
      %v5488 = vmul.f32 %v5456, %v5476
      %v5489 = vmul.f32 %v5457, %v5476
      %5490 = vset.pattern.permute.xlu0 1
      %5491 = vperm.xlu0 %5490, %v5442
      %v5492 = vpop.permute.xlu0 %5491
      %5494 = vset.pattern.permute.xlu0 1
      %5495 = vperm.xlu0 %5494, %v5443
      %v5496 = vpop.permute.xlu0 %5495
      %5498 = vset.pattern.permute.xlu0 1
      %5499 = vperm.xlu0 %5498, %v5444
      %v5500 = vpop.permute.xlu0 %5499
      %5502 = vset.pattern.permute.xlu0 1
      %5503 = vperm.xlu0 %5502, %v5445
      %v5504 = vpop.permute.xlu0 %5503
      %v5506 = vmul.f32 %v5446, %v5492
      %v5507 = vmul.f32 %v5447, %v5492
      %v5508 = vmul.f32 %v5448, %v5492
      %v5509 = vmul.f32 %v5449, %v5496
      %v5510 = vmul.f32 %v5450, %v5496
      %v5511 = vmul.f32 %v5451, %v5496
      %v5512 = vmul.f32 %v5452, %v5500
      %v5513 = vmul.f32 %v5453, %v5500
      %v5514 = vmul.f32 %v5454, %v5500
      %v5515 = vmul.f32 %v5455, %v5504
      %v5516 = vmul.f32 %v5456, %v5504
      %v5517 = vmul.f32 %v5457, %v5504
      %5518 = vset.pattern.permute.xlu0 2
      %5519 = vperm.xlu0 %5518, %v5442
      %v5520 = vpop.permute.xlu0 %5519
      %5522 = vset.pattern.permute.xlu0 2
      %5523 = vperm.xlu0 %5522, %v5443
      %v5524 = vpop.permute.xlu0 %5523
      %5526 = vset.pattern.permute.xlu0 2
      %5527 = vperm.xlu0 %5526, %v5444
      %v5528 = vpop.permute.xlu0 %5527
      %5530 = vset.pattern.permute.xlu0 2
      %5531 = vperm.xlu0 %5530, %v5445
      %v5532 = vpop.permute.xlu0 %5531
      %v5534 = vmul.f32 %v5446, %v5520
      %v5535 = vmul.f32 %v5447, %v5520
      %v5536 = vmul.f32 %v5448, %v5520
      %v5537 = vmul.f32 %v5449, %v5524
      %v5538 = vmul.f32 %v5450, %v5524
      %v5539 = vmul.f32 %v5451, %v5524
      %v5540 = vmul.f32 %v5452, %v5528
      %v5541 = vmul.f32 %v5453, %v5528
      %v5542 = vmul.f32 %v5454, %v5528
      %v5543 = vmul.f32 %v5455, %v5532
      %v5544 = vmul.f32 %v5456, %v5532
      %v5545 = vmul.f32 %v5457, %v5532
      %5546 = vset.pattern.permute.xlu0 3
      %5547 = vperm.xlu0 %5546, %v5442
      %v5548 = vpop.permute.xlu0 %5547
      %5550 = vset.pattern.permute.xlu0 3
      %5551 = vperm.xlu0 %5550, %v5443
      %v5552 = vpop.permute.xlu0 %5551
      %5554 = vset.pattern.permute.xlu0 3
      %5555 = vperm.xlu0 %5554, %v5444
      %v5556 = vpop.permute.xlu0 %5555
      %5558 = vset.pattern.permute.xlu0 3
      %5559 = vperm.xlu0 %5558, %v5445
      %v5560 = vpop.permute.xlu0 %5559
      %v5562 = vmul.f32 %v5446, %v5548
      %v5563 = vmul.f32 %v5447, %v5548
      %v5564 = vmul.f32 %v5448, %v5548
      %v5565 = vmul.f32 %v5449, %v5552
      %v5566 = vmul.f32 %v5450, %v5552
      %v5567 = vmul.f32 %v5451, %v5552
      %v5568 = vmul.f32 %v5452, %v5556
      %v5569 = vmul.f32 %v5453, %v5556
      %v5570 = vmul.f32 %v5454, %v5556
      %v5571 = vmul.f32 %v5455, %v5560
      %v5572 = vmul.f32 %v5456, %v5560
      %v5573 = vmul.f32 %v5457, %v5560
      %5586 = vrot.lane.b32.xlu0 %v5562, 112
      %v5587 = vpop.permute.xlu0 %5586
      %5588 = vrot.lane.b32.xlu0 %v5563, 112
      %v5589 = vpop.permute.xlu0 %5588
      %5590 = vrot.lane.b32.xlu0 %v5564, 112
      %v5591 = vpop.permute.xlu0 %5590
      %5592 = vrot.lane.b32.xlu0 %v5565, 112
      %v5593 = vpop.permute.xlu0 %5592
      %5594 = vrot.lane.b32.xlu0 %v5566, 112
      %v5595 = vpop.permute.xlu0 %5594
      %5596 = vrot.lane.b32.xlu0 %v5567, 112
      %v5597 = vpop.permute.xlu0 %5596
      %5598 = vrot.lane.b32.xlu0 %v5568, 112
      %v5599 = vpop.permute.xlu0 %5598
      %5600 = vrot.lane.b32.xlu0 %v5569, 112
      %v5601 = vpop.permute.xlu0 %5600
      %5602 = vrot.lane.b32.xlu0 %v5570, 112
      %v5603 = vpop.permute.xlu0 %5602
      %5604 = vrot.lane.b32.xlu0 %v5571, 112
      %v5605 = vpop.permute.xlu0 %5604
      %5606 = vrot.lane.b32.xlu0 %v5572, 112
      %v5607 = vpop.permute.xlu0 %5606
      %5608 = vrot.lane.b32.xlu0 %v5573, 112
      %v5609 = vpop.permute.xlu0 %5608
      %v5610 = vsel %vm846, %v5587, %v5589
      %v5611 = vsel %vm846, %v5589, %v5591
      %v5612 = vsel %vm846, %v5593, %v5595
      %v5613 = vsel %vm846, %v5595, %v5597
      %v5614 = vsel %vm846, %v5599, %v5601
      %v5615 = vsel %vm846, %v5601, %v5603
      %v5616 = vsel %vm846, %v5605, %v5607
      %v5617 = vsel %vm846, %v5607, %v5609
      %v5630 = vadd.f32 %v5478, %v5610
      %v5631 = vadd.f32 %v5479, %v5611
      %v5632 = vadd.f32 %v5480, %v5591
      %v5633 = vadd.f32 %v5481, %v5612
      %v5634 = vadd.f32 %v5482, %v5613
      %v5635 = vadd.f32 %v5483, %v5597
      %v5636 = vadd.f32 %v5484, %v5614
      %v5637 = vadd.f32 %v5485, %v5615
      %v5638 = vadd.f32 %v5486, %v5603
      %v5639 = vadd.f32 %v5487, %v5616
      %v5640 = vadd.f32 %v5488, %v5617
      %v5641 = vadd.f32 %v5489, %v5609
      %5642 = vset.pattern.permute.xlu0 4
      %5643 = vperm.xlu0 %5642, %v5442
      %v5644 = vpop.permute.xlu0 %5643
      %5646 = vset.pattern.permute.xlu0 4
      %5647 = vperm.xlu0 %5646, %v5443
      %v5648 = vpop.permute.xlu0 %5647
      %5650 = vset.pattern.permute.xlu0 4
      %5651 = vperm.xlu0 %5650, %v5444
      %v5652 = vpop.permute.xlu0 %5651
      %5654 = vset.pattern.permute.xlu0 4
      %5655 = vperm.xlu0 %5654, %v5445
      %v5656 = vpop.permute.xlu0 %5655
      %v5658 = vmul.f32 %v5447, %v5644
      %v5659 = vmul.f32 %v5448, %v5644
      %v5660 = vmul.f32 %v5450, %v5648
      %v5661 = vmul.f32 %v5451, %v5648
      %v5662 = vmul.f32 %v5453, %v5652
      %v5663 = vmul.f32 %v5454, %v5652
      %v5664 = vmul.f32 %v5456, %v5656
      %v5665 = vmul.f32 %v5457, %v5656
      %5674 = vrot.lane.b32.xlu0 %v5658, 112
      %v5675 = vpop.permute.xlu0 %5674
      %5676 = vrot.lane.b32.xlu0 %v5659, 112
      %v5677 = vpop.permute.xlu0 %5676
      %5678 = vrot.lane.b32.xlu0 %v5660, 112
      %v5679 = vpop.permute.xlu0 %5678
      %5680 = vrot.lane.b32.xlu0 %v5661, 112
      %v5681 = vpop.permute.xlu0 %5680
      %5682 = vrot.lane.b32.xlu0 %v5662, 112
      %v5683 = vpop.permute.xlu0 %5682
      %5684 = vrot.lane.b32.xlu0 %v5663, 112
      %v5685 = vpop.permute.xlu0 %5684
      %5686 = vrot.lane.b32.xlu0 %v5664, 112
      %v5687 = vpop.permute.xlu0 %5686
      %5688 = vrot.lane.b32.xlu0 %v5665, 112
      %v5689 = vpop.permute.xlu0 %5688
      %v5690 = vsel %vm846, %v5675, %v5677
      %v5691 = vsel %vm846, %v5679, %v5681
      %v5692 = vsel %vm846, %v5683, %v5685
      %v5693 = vsel %vm846, %v5687, %v5689
      %v5706 = vadd.f32 %v5506, %v5675
      %v5707 = vadd.f32 %v5507, %v5690
      %v5708 = vadd.f32 %v5508, %v5677
      %v5709 = vadd.f32 %v5509, %v5679
      %v5710 = vadd.f32 %v5510, %v5691
      %v5711 = vadd.f32 %v5511, %v5681
      %v5712 = vadd.f32 %v5512, %v5683
      %v5713 = vadd.f32 %v5513, %v5692
      %v5714 = vadd.f32 %v5514, %v5685
      %v5715 = vadd.f32 %v5515, %v5687
      %v5716 = vadd.f32 %v5516, %v5693
      %v5717 = vadd.f32 %v5517, %v5689
      %v5718 = vld [vmem:[#allocation2 + $0x8] sm:$0xff]
      %v5719 = vld [vmem:[#allocation2 + $0x10] sm:$0xff]
      %v5720 = vld [vmem:[#allocation2 + $0x18] sm:$0xff]
      %v5721 = vld [vmem:[#allocation2 + $0x28] sm:$0xff]
      %v5722 = vld [vmem:[#allocation2 + $0x30] sm:$0xff]
      %v5723 = vld [vmem:[#allocation2 + $0x38] sm:$0xff]
      %v5724 = vld [vmem:[#allocation2 + $0x48] sm:$0xff]
      %v5725 = vld [vmem:[#allocation2 + $0x50] sm:$0xff]
      %v5726 = vld [vmem:[#allocation2 + $0x58] sm:$0xff]
      %v5727 = vld [vmem:[#allocation2 + $0x68] sm:$0xff]
      %v5728 = vld [vmem:[#allocation2 + $0x70] sm:$0xff]
      %v5729 = vld [vmem:[#allocation2 + $0x78] sm:$0xff]
      %5730 = vset.pattern.permute.xlu0 5
      %5731 = vperm.xlu0 %5730, %v5442
      %v5732 = vpop.permute.xlu0 %5731
      %5734 = vset.pattern.permute.xlu0 5
      %5735 = vperm.xlu0 %5734, %v5443
      %v5736 = vpop.permute.xlu0 %5735
      %5738 = vset.pattern.permute.xlu0 5
      %5739 = vperm.xlu0 %5738, %v5444
      %v5740 = vpop.permute.xlu0 %5739
      %5742 = vset.pattern.permute.xlu0 5
      %5743 = vperm.xlu0 %5742, %v5445
      %v5744 = vpop.permute.xlu0 %5743
      %v5746 = vmul.f32 %v5718, %v5732
      %v5747 = vmul.f32 %v5719, %v5732
      %v5748 = vmul.f32 %v5720, %v5732
      %v5749 = vmul.f32 %v5721, %v5736
      %v5750 = vmul.f32 %v5722, %v5736
      %v5751 = vmul.f32 %v5723, %v5736
      %v5752 = vmul.f32 %v5724, %v5740
      %v5753 = vmul.f32 %v5725, %v5740
      %v5754 = vmul.f32 %v5726, %v5740
      %v5755 = vmul.f32 %v5727, %v5744
      %v5756 = vmul.f32 %v5728, %v5744
      %v5757 = vmul.f32 %v5729, %v5744
      %5770 = vrot.lane.b32.xlu0 %v5746, 112
      %v5771 = vpop.permute.xlu0 %5770
      %5772 = vrot.lane.b32.xlu0 %v5747, 112
      %v5773 = vpop.permute.xlu0 %5772
      %5774 = vrot.lane.b32.xlu0 %v5748, 112
      %v5775 = vpop.permute.xlu0 %5774
      %5776 = vrot.lane.b32.xlu0 %v5749, 112
      %v5777 = vpop.permute.xlu0 %5776
      %5778 = vrot.lane.b32.xlu0 %v5750, 112
      %v5779 = vpop.permute.xlu0 %5778
      %5780 = vrot.lane.b32.xlu0 %v5751, 112
      %v5781 = vpop.permute.xlu0 %5780
      %5782 = vrot.lane.b32.xlu0 %v5752, 112
      %v5783 = vpop.permute.xlu0 %5782
      %5784 = vrot.lane.b32.xlu0 %v5753, 112
      %v5785 = vpop.permute.xlu0 %5784
      %5786 = vrot.lane.b32.xlu0 %v5754, 112
      %v5787 = vpop.permute.xlu0 %5786
      %5788 = vrot.lane.b32.xlu0 %v5755, 112
      %v5789 = vpop.permute.xlu0 %5788
      %5790 = vrot.lane.b32.xlu0 %v5756, 112
      %v5791 = vpop.permute.xlu0 %5790
      %5792 = vrot.lane.b32.xlu0 %v5757, 112
      %v5793 = vpop.permute.xlu0 %5792
      %v5794 = vsel %vm846, %v5771, %v5773
      %v5795 = vsel %vm846, %v5773, %v5775
      %v5796 = vsel %vm846, %v5777, %v5779
      %v5797 = vsel %vm846, %v5779, %v5781
      %v5798 = vsel %vm846, %v5783, %v5785
      %v5799 = vsel %vm846, %v5785, %v5787
      %v5800 = vsel %vm846, %v5789, %v5791
      %v5801 = vsel %vm846, %v5791, %v5793
      %v5814 = vadd.f32 %v5534, %v5771
      %v5815 = vadd.f32 %v5535, %v5794
      %v5816 = vadd.f32 %v5536, %v5795
      %v5817 = vadd.f32 %v5537, %v5777
      %v5818 = vadd.f32 %v5538, %v5796
      %v5819 = vadd.f32 %v5539, %v5797
      %v5820 = vadd.f32 %v5540, %v5783
      %v5821 = vadd.f32 %v5541, %v5798
      %v5822 = vadd.f32 %v5542, %v5799
      %v5823 = vadd.f32 %v5543, %v5789
      %v5824 = vadd.f32 %v5544, %v5800
      %v5825 = vadd.f32 %v5545, %v5801
      %5826 = vset.pattern.permute.xlu0 6
      %5827 = vperm.xlu0 %5826, %v5442
      %v5828 = vpop.permute.xlu0 %5827
      %5830 = vset.pattern.permute.xlu0 6
      %5831 = vperm.xlu0 %5830, %v5443
      %v5832 = vpop.permute.xlu0 %5831
      %5834 = vset.pattern.permute.xlu0 6
      %5835 = vperm.xlu0 %5834, %v5444
      %v5836 = vpop.permute.xlu0 %5835
      %5838 = vset.pattern.permute.xlu0 6
      %5839 = vperm.xlu0 %5838, %v5445
      %v5840 = vpop.permute.xlu0 %5839
      %v5842 = vmul.f32 %v5718, %v5828
      %v5843 = vmul.f32 %v5719, %v5828
      %v5844 = vmul.f32 %v5720, %v5828
      %v5845 = vmul.f32 %v5721, %v5832
      %v5846 = vmul.f32 %v5722, %v5832
      %v5847 = vmul.f32 %v5723, %v5832
      %v5848 = vmul.f32 %v5724, %v5836
      %v5849 = vmul.f32 %v5725, %v5836
      %v5850 = vmul.f32 %v5726, %v5836
      %v5851 = vmul.f32 %v5727, %v5840
      %v5852 = vmul.f32 %v5728, %v5840
      %v5853 = vmul.f32 %v5729, %v5840
      %5866 = vrot.lane.b32.xlu0 %v5842, 96
      %v5867 = vpop.permute.xlu0 %5866
      %5868 = vrot.lane.b32.xlu0 %v5843, 96
      %v5869 = vpop.permute.xlu0 %5868
      %5870 = vrot.lane.b32.xlu0 %v5844, 96
      %v5871 = vpop.permute.xlu0 %5870
      %5872 = vrot.lane.b32.xlu0 %v5845, 96
      %v5873 = vpop.permute.xlu0 %5872
      %5874 = vrot.lane.b32.xlu0 %v5846, 96
      %v5875 = vpop.permute.xlu0 %5874
      %5876 = vrot.lane.b32.xlu0 %v5847, 96
      %v5877 = vpop.permute.xlu0 %5876
      %5878 = vrot.lane.b32.xlu0 %v5848, 96
      %v5879 = vpop.permute.xlu0 %5878
      %5880 = vrot.lane.b32.xlu0 %v5849, 96
      %v5881 = vpop.permute.xlu0 %5880
      %5882 = vrot.lane.b32.xlu0 %v5850, 96
      %v5883 = vpop.permute.xlu0 %5882
      %5884 = vrot.lane.b32.xlu0 %v5851, 96
      %v5885 = vpop.permute.xlu0 %5884
      %5886 = vrot.lane.b32.xlu0 %v5852, 96
      %v5887 = vpop.permute.xlu0 %5886
      %5888 = vrot.lane.b32.xlu0 %v5853, 96
      %v5889 = vpop.permute.xlu0 %5888
      %v5890 = vsel %vm987, %v5867, %v5869
      %v5891 = vsel %vm987, %v5869, %v5871
      %v5892 = vsel %vm987, %v5873, %v5875
      %v5893 = vsel %vm987, %v5875, %v5877
      %v5894 = vsel %vm987, %v5879, %v5881
      %v5895 = vsel %vm987, %v5881, %v5883
      %v5896 = vsel %vm987, %v5885, %v5887
      %v5897 = vsel %vm987, %v5887, %v5889
      %v5910 = vadd.f32 %v5630, %v5867
      %v5911 = vadd.f32 %v5631, %v5890
      %v5912 = vadd.f32 %v5632, %v5891
      %v5913 = vadd.f32 %v5633, %v5873
      %v5914 = vadd.f32 %v5634, %v5892
      %v5915 = vadd.f32 %v5635, %v5893
      %v5916 = vadd.f32 %v5636, %v5879
      %v5917 = vadd.f32 %v5637, %v5894
      %v5918 = vadd.f32 %v5638, %v5895
      %v5919 = vadd.f32 %v5639, %v5885
      %v5920 = vadd.f32 %v5640, %v5896
      %v5921 = vadd.f32 %v5641, %v5897
      %5922 = vset.pattern.permute.xlu0 7
      %5923 = vperm.xlu0 %5922, %v5442
      %v5924 = vpop.permute.xlu0 %5923
      %5926 = vset.pattern.permute.xlu0 7
      %5927 = vperm.xlu0 %5926, %v5443
      %v5928 = vpop.permute.xlu0 %5927
      %5930 = vset.pattern.permute.xlu0 7
      %5931 = vperm.xlu0 %5930, %v5444
      %v5932 = vpop.permute.xlu0 %5931
      %5934 = vset.pattern.permute.xlu0 7
      %5935 = vperm.xlu0 %5934, %v5445
      %v5936 = vpop.permute.xlu0 %5935
      %v5938 = vmul.f32 %v5718, %v5924
      %v5939 = vmul.f32 %v5719, %v5924
      %v5940 = vmul.f32 %v5720, %v5924
      %v5941 = vmul.f32 %v5721, %v5928
      %v5942 = vmul.f32 %v5722, %v5928
      %v5943 = vmul.f32 %v5723, %v5928
      %v5944 = vmul.f32 %v5724, %v5932
      %v5945 = vmul.f32 %v5725, %v5932
      %v5946 = vmul.f32 %v5726, %v5932
      %v5947 = vmul.f32 %v5727, %v5936
      %v5948 = vmul.f32 %v5728, %v5936
      %v5949 = vmul.f32 %v5729, %v5936
      %5962 = vrot.lane.b32.xlu0 %v5938, 96
      %v5963 = vpop.permute.xlu0 %5962
      %5964 = vrot.lane.b32.xlu0 %v5939, 96
      %v5965 = vpop.permute.xlu0 %5964
      %5966 = vrot.lane.b32.xlu0 %v5940, 96
      %v5967 = vpop.permute.xlu0 %5966
      %5968 = vrot.lane.b32.xlu0 %v5941, 96
      %v5969 = vpop.permute.xlu0 %5968
      %5970 = vrot.lane.b32.xlu0 %v5942, 96
      %v5971 = vpop.permute.xlu0 %5970
      %5972 = vrot.lane.b32.xlu0 %v5943, 96
      %v5973 = vpop.permute.xlu0 %5972
      %5974 = vrot.lane.b32.xlu0 %v5944, 96
      %v5975 = vpop.permute.xlu0 %5974
      %5976 = vrot.lane.b32.xlu0 %v5945, 96
      %v5977 = vpop.permute.xlu0 %5976
      %5978 = vrot.lane.b32.xlu0 %v5946, 96
      %v5979 = vpop.permute.xlu0 %5978
      %5980 = vrot.lane.b32.xlu0 %v5947, 96
      %v5981 = vpop.permute.xlu0 %5980
      %5982 = vrot.lane.b32.xlu0 %v5948, 96
      %v5983 = vpop.permute.xlu0 %5982
      %5984 = vrot.lane.b32.xlu0 %v5949, 96
      %v5985 = vpop.permute.xlu0 %5984
      %v5986 = vsel %vm987, %v5963, %v5965
      %v5987 = vsel %vm987, %v5965, %v5967
      %v5988 = vsel %vm987, %v5969, %v5971
      %v5989 = vsel %vm987, %v5971, %v5973
      %v5990 = vsel %vm987, %v5975, %v5977
      %v5991 = vsel %vm987, %v5977, %v5979
      %v5992 = vsel %vm987, %v5981, %v5983
      %v5993 = vsel %vm987, %v5983, %v5985
      %v6006 = vadd.f32 %v5706, %v5963
      %v6007 = vadd.f32 %v5707, %v5986
      %v6008 = vadd.f32 %v5708, %v5987
      %v6009 = vadd.f32 %v5709, %v5969
      %v6010 = vadd.f32 %v5710, %v5988
      %v6011 = vadd.f32 %v5711, %v5989
      %v6012 = vadd.f32 %v5712, %v5975
      %v6013 = vadd.f32 %v5713, %v5990
      %v6014 = vadd.f32 %v5714, %v5991
      %v6015 = vadd.f32 %v5715, %v5981
      %v6016 = vadd.f32 %v5716, %v5992
      %v6017 = vadd.f32 %v5717, %v5993
      %6018 = vset.pattern.permute.xlu0 8
      %6019 = vperm.xlu0 %6018, %v5442
      %v6020 = vpop.permute.xlu0 %6019
      %6022 = vset.pattern.permute.xlu0 8
      %6023 = vperm.xlu0 %6022, %v5443
      %v6024 = vpop.permute.xlu0 %6023
      %6026 = vset.pattern.permute.xlu0 8
      %6027 = vperm.xlu0 %6026, %v5444
      %v6028 = vpop.permute.xlu0 %6027
      %6030 = vset.pattern.permute.xlu0 8
      %6031 = vperm.xlu0 %6030, %v5445
      %v6032 = vpop.permute.xlu0 %6031
      %v6034 = vmul.f32 %v5718, %v6020
      %v6035 = vmul.f32 %v5719, %v6020
      %v6036 = vmul.f32 %v5720, %v6020
      %v6037 = vmul.f32 %v5721, %v6024
      %v6038 = vmul.f32 %v5722, %v6024
      %v6039 = vmul.f32 %v5723, %v6024
      %v6040 = vmul.f32 %v5724, %v6028
      %v6041 = vmul.f32 %v5725, %v6028
      %v6042 = vmul.f32 %v5726, %v6028
      %v6043 = vmul.f32 %v5727, %v6032
      %v6044 = vmul.f32 %v5728, %v6032
      %v6045 = vmul.f32 %v5729, %v6032
      %6058 = vrot.lane.b32.xlu0 %v6034, 96
      %v6059 = vpop.permute.xlu0 %6058
      %6060 = vrot.lane.b32.xlu0 %v6035, 96
      %v6061 = vpop.permute.xlu0 %6060
      %6062 = vrot.lane.b32.xlu0 %v6036, 96
      %v6063 = vpop.permute.xlu0 %6062
      %6064 = vrot.lane.b32.xlu0 %v6037, 96
      %v6065 = vpop.permute.xlu0 %6064
      %6066 = vrot.lane.b32.xlu0 %v6038, 96
      %v6067 = vpop.permute.xlu0 %6066
      %6068 = vrot.lane.b32.xlu0 %v6039, 96
      %v6069 = vpop.permute.xlu0 %6068
      %6070 = vrot.lane.b32.xlu0 %v6040, 96
      %v6071 = vpop.permute.xlu0 %6070
      %6072 = vrot.lane.b32.xlu0 %v6041, 96
      %v6073 = vpop.permute.xlu0 %6072
      %6074 = vrot.lane.b32.xlu0 %v6042, 96
      %v6075 = vpop.permute.xlu0 %6074
      %6076 = vrot.lane.b32.xlu0 %v6043, 96
      %v6077 = vpop.permute.xlu0 %6076
      %6078 = vrot.lane.b32.xlu0 %v6044, 96
      %v6079 = vpop.permute.xlu0 %6078
      %6080 = vrot.lane.b32.xlu0 %v6045, 96
      %v6081 = vpop.permute.xlu0 %6080
      %v6082 = vsel %vm987, %v6059, %v6061
      %v6083 = vsel %vm987, %v6061, %v6063
      %v6084 = vsel %vm987, %v6065, %v6067
      %v6085 = vsel %vm987, %v6067, %v6069
      %v6086 = vsel %vm987, %v6071, %v6073
      %v6087 = vsel %vm987, %v6073, %v6075
      %v6088 = vsel %vm987, %v6077, %v6079
      %v6089 = vsel %vm987, %v6079, %v6081
      %v6102 = vadd.f32 %v5814, %v6059
      %v6103 = vadd.f32 %v5815, %v6082
      %v6104 = vadd.f32 %v5816, %v6083
      %v6105 = vadd.f32 %v5817, %v6065
      %v6106 = vadd.f32 %v5818, %v6084
      %v6107 = vadd.f32 %v5819, %v6085
      %v6108 = vadd.f32 %v5820, %v6071
      %v6109 = vadd.f32 %v5821, %v6086
      %v6110 = vadd.f32 %v5822, %v6087
      %v6111 = vadd.f32 %v5823, %v6077
      %v6112 = vadd.f32 %v5824, %v6088
      %v6113 = vadd.f32 %v5825, %v6089
      %v6114 = vmul.f32 %v5910, %v1110
      %v6115 = vmul.f32 %v5911, %v1114
      %v6116 = vmul.f32 %v5912, %v1112
      %v6117 = vmul.f32 %v5913, %v1110
      %v6118 = vmul.f32 %v5914, %v1114
      %v6119 = vmul.f32 %v5915, %v1112
      %v6120 = vmul.f32 %v5916, %v1110
      %v6121 = vmul.f32 %v5917, %v1114
      %v6122 = vmul.f32 %v5918, %v1112
      %v6123 = vmul.f32 %v5919, %v1110
      %v6124 = vmul.f32 %v5920, %v1114
      %v6125 = vmul.f32 %v5921, %v1112
      %6138 = vrot.lane.b32.xlu0 %v6114, 1
      %v6139 = vpop.permute.xlu0 %6138
      %6140 = vrot.lane.b32.xlu0 %v6115, 1
      %v6141 = vpop.permute.xlu0 %6140
      %6142 = vrot.lane.b32.xlu0 %v6116, 1
      %v6143 = vpop.permute.xlu0 %6142
      %6144 = vrot.lane.b32.xlu0 %v6117, 1
      %v6145 = vpop.permute.xlu0 %6144
      %6146 = vrot.lane.b32.xlu0 %v6118, 1
      %v6147 = vpop.permute.xlu0 %6146
      %6148 = vrot.lane.b32.xlu0 %v6119, 1
      %v6149 = vpop.permute.xlu0 %6148
      %6150 = vrot.lane.b32.xlu0 %v6120, 1
      %v6151 = vpop.permute.xlu0 %6150
      %6152 = vrot.lane.b32.xlu0 %v6121, 1
      %v6153 = vpop.permute.xlu0 %6152
      %6154 = vrot.lane.b32.xlu0 %v6122, 1
      %v6155 = vpop.permute.xlu0 %6154
      %6156 = vrot.lane.b32.xlu0 %v6123, 1
      %v6157 = vpop.permute.xlu0 %6156
      %6158 = vrot.lane.b32.xlu0 %v6124, 1
      %v6159 = vpop.permute.xlu0 %6158
      %6160 = vrot.lane.b32.xlu0 %v6125, 1
      %v6161 = vpop.permute.xlu0 %6160
      %v6162 = vsel %vm1142, %v6139, %v6141
      %v6163 = vsel %vm1142, %v6141, %v6143
      %v6164 = vsel %vm1142, %v6145, %v6147
      %v6165 = vsel %vm1142, %v6147, %v6149
      %v6166 = vsel %vm1142, %v6151, %v6153
      %v6167 = vsel %vm1142, %v6153, %v6155
      %v6168 = vsel %vm1142, %v6157, %v6159
      %v6169 = vsel %vm1142, %v6159, %v6161
      %v6182 = vadd.f32 %v6006, %v6139
      %v6183 = vadd.f32 %v6007, %v6162
      %v6184 = vadd.f32 %v6008, %v6163
      %v6185 = vadd.f32 %v6009, %v6145
      %v6186 = vadd.f32 %v6010, %v6164
      %v6187 = vadd.f32 %v6011, %v6165
      %v6188 = vadd.f32 %v6012, %v6151
      %v6189 = vadd.f32 %v6013, %v6166
      %v6190 = vadd.f32 %v6014, %v6167
      %v6191 = vadd.f32 %v6015, %v6157
      %v6192 = vadd.f32 %v6016, %v6168
      %v6193 = vadd.f32 %v6017, %v6169
      %v6194 = vmul.f32 %v6102, %v1169
      %v6195 = vmul.f32 %v6103, %v1173
      %v6196 = vmul.f32 %v6104, %v1171
      %v6197 = vmul.f32 %v6105, %v1169
      %v6198 = vmul.f32 %v6106, %v1173
      %v6199 = vmul.f32 %v6107, %v1171
      %v6200 = vmul.f32 %v6108, %v1169
      %v6201 = vmul.f32 %v6109, %v1173
      %v6202 = vmul.f32 %v6110, %v1171
      %v6203 = vmul.f32 %v6111, %v1169
      %v6204 = vmul.f32 %v6112, %v1173
      %v6205 = vmul.f32 %v6113, %v1171
      %6218 = vrot.lane.b32.xlu0 %v6194, 127
      %v6219 = vpop.permute.xlu0 %6218
      %6220 = vrot.lane.b32.xlu0 %v6195, 127
      %v6221 = vpop.permute.xlu0 %6220
      %6222 = vrot.lane.b32.xlu0 %v6196, 127
      %v6223 = vpop.permute.xlu0 %6222
      %6224 = vrot.lane.b32.xlu0 %v6197, 127
      %v6225 = vpop.permute.xlu0 %6224
      %6226 = vrot.lane.b32.xlu0 %v6198, 127
      %v6227 = vpop.permute.xlu0 %6226
      %6228 = vrot.lane.b32.xlu0 %v6199, 127
      %v6229 = vpop.permute.xlu0 %6228
      %6230 = vrot.lane.b32.xlu0 %v6200, 127
      %v6231 = vpop.permute.xlu0 %6230
      %6232 = vrot.lane.b32.xlu0 %v6201, 127
      %v6233 = vpop.permute.xlu0 %6232
      %6234 = vrot.lane.b32.xlu0 %v6202, 127
      %v6235 = vpop.permute.xlu0 %6234
      %6236 = vrot.lane.b32.xlu0 %v6203, 127
      %v6237 = vpop.permute.xlu0 %6236
      %6238 = vrot.lane.b32.xlu0 %v6204, 127
      %v6239 = vpop.permute.xlu0 %6238
      %6240 = vrot.lane.b32.xlu0 %v6205, 127
      %v6241 = vpop.permute.xlu0 %6240
      %v6242 = vsel %vm1201, %v6219, %v6221
      %v6243 = vsel %vm1201, %v6221, %v6223
      %v6244 = vsel %vm1201, %v6225, %v6227
      %v6245 = vsel %vm1201, %v6227, %v6229
      %v6246 = vsel %vm1201, %v6231, %v6233
      %v6247 = vsel %vm1201, %v6233, %v6235
      %v6248 = vsel %vm1201, %v6237, %v6239
      %v6249 = vsel %vm1201, %v6239, %v6241
      %v6262 = vadd.f32 %v6182, %v6242
      %v6263 = vadd.f32 %v6183, %v6243
      %v6264 = vadd.f32 %v6184, %v6223
      %v6265 = vadd.f32 %v6185, %v6244
      %v6266 = vadd.f32 %v6186, %v6245
      %v6267 = vadd.f32 %v6187, %v6229
      %v6268 = vadd.f32 %v6188, %v6246
      %v6269 = vadd.f32 %v6189, %v6247
      %v6270 = vadd.f32 %v6190, %v6235
      %v6271 = vadd.f32 %v6191, %v6248
      %v6272 = vadd.f32 %v6192, %v6249
      %v6273 = vadd.f32 %v6193, %v6241
      %s6274 = scalar_lea.vmem %s10, 16
      %v6275 = vld [vmem:[%s6274] sm:$0xff]
      %v6276 = vld [vmem:[%s6274 + $0x8] sm:$0xff]
      %s6277 = scalar_lea.vmem %s11, 16
      %v6278 = vld [vmem:[%s6277] sm:$0xff]
      %v6279 = vld [vmem:[%s6277 + $0x8] sm:$0xff]
      %6281 = vset.pattern.permute.xlu0 0
      %6282 = vperm.xlu0 %6281, %v6278
      %v6283 = vpop.permute.xlu0 %6282
      %6286 = vset.pattern.permute.xlu0 0
      %6287 = vperm.xlu0 %6286, %v6279
      %v6288 = vpop.permute.xlu0 %6287
      %6302 = vrot.lane.b32.xlu0 %v6262, 16
      %v6303 = vpop.permute.xlu0 %6302
      %6304 = vrot.lane.b32.xlu0 %v6263, 16
      %v6305 = vpop.permute.xlu0 %6304
      %6306 = vrot.lane.b32.xlu0 %v6264, 16
      %v6307 = vpop.permute.xlu0 %6306
      %6308 = vrot.lane.b32.xlu0 %v6265, 16
      %v6309 = vpop.permute.xlu0 %6308
      %6310 = vrot.lane.b32.xlu0 %v6266, 16
      %v6311 = vpop.permute.xlu0 %6310
      %6312 = vrot.lane.b32.xlu0 %v6267, 16
      %v6313 = vpop.permute.xlu0 %6312
      %6314 = vrot.lane.b32.xlu0 %v6268, 16
      %v6315 = vpop.permute.xlu0 %6314
      %6316 = vrot.lane.b32.xlu0 %v6269, 16
      %v6317 = vpop.permute.xlu0 %6316
      %6318 = vrot.lane.b32.xlu0 %v6270, 16
      %v6319 = vpop.permute.xlu0 %6318
      %6320 = vrot.lane.b32.xlu0 %v6271, 16
      %v6321 = vpop.permute.xlu0 %6320
      %6322 = vrot.lane.b32.xlu0 %v6272, 16
      %v6323 = vpop.permute.xlu0 %6322
      %6324 = vrot.lane.b32.xlu0 %v6273, 16
      %v6325 = vpop.permute.xlu0 %6324
      %v6326 = vsel %vm1260, %v6303, %v6305
      %v6327 = vsel %vm1260, %v6305, %v6307
      %v6328 = vsel %vm1260, %v6309, %v6311
      %v6329 = vsel %vm1260, %v6311, %v6313
      %v6330 = vsel %vm1260, %v6315, %v6317
      %v6331 = vsel %vm1260, %v6317, %v6319
      %v6332 = vsel %vm1260, %v6321, %v6323
      %v6333 = vsel %vm1260, %v6323, %v6325
      %v6343 = vsel %vm2175, %v6275, 0
      %v6346 = vsel %vm2175, %v6276, 0
      %6348 = vmatprep.subr.mxu0 %v6327
      %6349 = vmatpush1.msra.mxu0 %v6326
      %6350 = vmatprep.subr.mxu0 %v6329
      %6351 = vmatpush1.msra.mxu0 %v6328
      %6352 = vmatprep.subr.mxu0 %v6331
      %6353 = vmatpush1.msra.mxu0 %v6330
      %6354 = vmatprep.subr.mxu0 %v6333
      %6355 = vmatpush1.msra.mxu0 %v6332
      %6356 = vmatprep.subr.mxu0 0.0
      %6357 = vmatpush1.msra.mxu0 0.0
      %6358 = vmatprep.subr.mxu0 0.0
      %6359 = vmatpush1.msra.mxu0 0.0
      %6360 = vmatprep.subr.mxu0 0.0
      %6361 = vmatpush1.msra.mxu0 0.0
      %6362 = vmatprep.subr.mxu0 0.0
      %6363 = vmatpush1.msra.mxu0 0.0
      %6364 = vmatprep.subr.mxu0 0.0
      %6365 = vmatpush1.msra.mxu0 0.0
      %6366 = vmatprep.subr.mxu0 0.0
      %6367 = vmatpush1.msra.mxu0 0.0
      %6368 = vmatprep.subr.mxu0 0.0
      %6369 = vmatpush1.msra.mxu0 0.0
      %6370 = vmatprep.subr.mxu0 0.0
      %6371 = vmatpush1.msra.mxu0 0.0
      %6372 = vmatprep.subr.mxu0 0.0
      %6373 = vmatpush1.msra.mxu0 0.0
      %6374 = vmatprep.subr.mxu0 0.0
      %6375 = vmatpush1.msra.mxu0 0.0
      %6376 = vmatprep.subr.mxu0 0.0
      %6377 = vmatpush1.msra.mxu0 0.0
      %6378 = vmatprep.subr.mxu0 0.0
      %6379 = vmatpush1.msra.mxu0 0.0
      %6380 = vmatprep.subr.mxu0 0.0
      %6381 = vmatpush1.msra.mxu0 0.0
      %6382 = vmatprep.subr.mxu0 0.0
      %6383 = vmatpush1.msra.mxu0 0.0
      %6384 = vmatprep.subr.mxu0 0.0
      %6385 = vmatpush1.msra.mxu0 0.0
      %6386 = vmatprep.subr.mxu0 0.0
      %6387 = vmatpush1.msra.mxu0 0.0
      %6388 = vmatprep.subr.mxu0 0.0
      %6389 = vmatpush1.msra.mxu0 0.0
      %6390 = vmatprep.subr.mxu0 0.0
      %6391 = vmatpush1.msra.mxu0 0.0
      %6392 = vmatprep.subr.mxu0 0.0
      %6393 = vmatpush1.msra.mxu0 0.0
      %6394 = vmatprep.subr.mxu0 0.0
      %6395 = vmatpush1.msra.mxu0 0.0
      %6396 = vmatprep.subr.mxu0 0.0
      %6397 = vmatpush1.msra.mxu0 0.0
      %6398 = vmatprep.subr.mxu0 0.0
      %6399 = vmatpush1.msra.mxu0 0.0
      %6400 = vmatprep.subr.mxu0 0.0
      %6401 = vmatpush1.msra.mxu0 0.0
      %6402 = vmatprep.subr.mxu0 0.0
      %6403 = vmatpush1.msra.mxu0 0.0
      %6404 = vmatprep.subr.mxu0 0.0
      %6405 = vmatpush1.msra.mxu0 0.0
      %6406 = vmatprep.subr.mxu0 0.0
      %6407 = vmatpush1.msra.mxu0 0.0
      %6408 = vmatprep.subr.mxu0 0.0
      %6409 = vmatpush1.msra.mxu0 0.0
      %6410 = vmatprep.subr.mxu0 0.0
      %6411 = vmatpush1.msra.mxu0 0.0
      %6412 = vmatprep.mubr.f32.mxu0 0.0
      %6413 = vmatmul.mubr.f32.gmra.mrb[0].mxu0 %v6343
      %v6414 = vpop.f32.mrb[0].mxu0
      %v6415 = vadd.f32 %v6283, %v6414
      %v6416 = vpop.f32.mrb[0].mxu0
      %v6417 = vadd.f32 %v6283, %v6416
      %6418 = vmatprep.mubr.f32.mxu0 0.0
      %6419 = vmatmul.mubr.f32.gmra.mrb[0].mxu0 %v6346
      %v6420 = vpop.f32.mrb[0].mxu0
      %v6421 = vadd.f32 %v6288, %v6420
      %v6422 = vpop.f32.mrb[0].mxu0
      %v6423 = vadd.f32 %v6288, %v6422
      %6424 = vdwg.mxu0
      %v6425 = vmax.f32 %v6415, 0.0
      %v6426 = vmax.f32 %v6417, 0.0
      %v6427 = vmax.f32 %v6421, 0.0
      %v6428 = vmax.f32 %v6423, 0.0
      %s6429 = scalar_lea.vmem %s12, 96
      %v6430 = vld [vmem:[%s6429] sm:$0xff]
      %v6431 = vld [vmem:[%s6429 + $0x8] sm:$0xff]
      %v6432 = vld [vmem:[%s6429 + $0x10] sm:$0x3]
      %s6433 = scalar_lea.vmem %s12, 120
      %v6434 = vld [vmem:[%s6433] sm:$0xff]
      %v6435 = vld [vmem:[%s6433 + $0x8] sm:$0xff]
      %v6436 = vld [vmem:[%s6433 + $0x10] sm:$0x3]
      %v6438 = vsel %vm1260, %v6434, 0
      %v6441 = vsel %vm1260, %v6435, 0
      %v6444 = vsel %vm1260, %v6436, 0
      %6446 = vmatprep.subr.mxu0 %v4430
      %6447 = vmatpush1.msra.mxu0 %v4429
      %6448 = vmatprep.subr.mxu0 %v4432
      %6449 = vmatpush1.msra.mxu0 %v4431
      %6450 = vmatprep.subr.mxu0 0.0
      %6451 = vmatpush1.msra.mxu0 0.0
      %6452 = vmatprep.subr.mxu0 0.0
      %6453 = vmatpush1.msra.mxu0 0.0
      %6454 = vmatprep.subr.mxu0 0.0
      %6455 = vmatpush1.msra.mxu0 0.0
      %6456 = vmatprep.subr.mxu0 0.0
      %6457 = vmatpush1.msra.mxu0 0.0
      %6458 = vmatprep.subr.mxu0 0.0
      %6459 = vmatpush1.msra.mxu0 0.0
      %6460 = vmatprep.subr.mxu0 0.0
      %6461 = vmatpush1.msra.mxu0 0.0
      %6462 = vmatprep.subr.mxu0 0.0
      %6463 = vmatpush1.msra.mxu0 0.0
      %6464 = vmatprep.subr.mxu0 0.0
      %6465 = vmatpush1.msra.mxu0 0.0
      %6466 = vmatprep.subr.mxu0 0.0
      %6467 = vmatpush1.msra.mxu0 0.0
      %6468 = vmatprep.subr.mxu0 0.0
      %6469 = vmatpush1.msra.mxu0 0.0
      %6470 = vmatprep.subr.mxu0 0.0
      %6471 = vmatpush1.msra.mxu0 0.0
      %6472 = vmatprep.subr.mxu0 0.0
      %6473 = vmatpush1.msra.mxu0 0.0
      %6474 = vmatprep.subr.mxu0 0.0
      %6475 = vmatpush1.msra.mxu0 0.0
      %6476 = vmatprep.subr.mxu0 0.0
      %6477 = vmatpush1.msra.mxu0 0.0
      %6478 = vmatprep.subr.mxu0 0.0
      %6479 = vmatpush1.msra.mxu0 0.0
      %6480 = vmatprep.subr.mxu0 0.0
      %6481 = vmatpush1.msra.mxu0 0.0
      %6482 = vmatprep.subr.mxu0 0.0
      %6483 = vmatpush1.msra.mxu0 0.0
      %6484 = vmatprep.subr.mxu0 0.0
      %6485 = vmatpush1.msra.mxu0 0.0
      %6486 = vmatprep.subr.mxu0 0.0
      %6487 = vmatpush1.msra.mxu0 0.0
      %6488 = vmatprep.subr.mxu0 0.0
      %6489 = vmatpush1.msra.mxu0 0.0
      %6490 = vmatprep.subr.mxu0 0.0
      %6491 = vmatpush1.msra.mxu0 0.0
      %6492 = vmatprep.subr.mxu0 0.0
      %6493 = vmatpush1.msra.mxu0 0.0
      %6494 = vmatprep.subr.mxu0 0.0
      %6495 = vmatpush1.msra.mxu0 0.0
      %6496 = vmatprep.subr.mxu0 0.0
      %6497 = vmatpush1.msra.mxu0 0.0
      %6498 = vmatprep.subr.mxu0 0.0
      %6499 = vmatpush1.msra.mxu0 0.0
      %6500 = vmatprep.subr.mxu0 0.0
      %6501 = vmatpush1.msra.mxu0 0.0
      %6502 = vmatprep.subr.mxu0 0.0
      %6503 = vmatpush1.msra.mxu0 0.0
      %6504 = vmatprep.subr.mxu0 0.0
      %6505 = vmatpush1.msra.mxu0 0.0
      %6506 = vmatprep.subr.mxu0 0.0
      %6507 = vmatpush1.msra.mxu0 0.0
      %6508 = vmatprep.subr.mxu0 0.0
      %6509 = vmatpush1.msra.mxu0 0.0
      %6510 = vmatprep.mubr.f32.mxu0 0.0
      %6511 = vmatmul.mubr.f32.gmra.mrb[0].mxu0 %v6438
      %v6512 = vpop.f32.mrb[0].mxu0
      %v6513 = vadd.f32 0.0, %v6512
      %v6514 = vpop.f32.mrb[0].mxu0
      %v6515 = vadd.f32 0.0, %v6514
      %6516 = vmatprep.mubr.f32.mxu0 0.0
      %6517 = vmatmul.mubr.f32.gmra.mrb[0].mxu0 %v6441
      %v6518 = vpop.f32.mrb[0].mxu0
      %v6519 = vadd.f32 0.0, %v6518
      %v6520 = vpop.f32.mrb[0].mxu0
      %v6521 = vadd.f32 0.0, %v6520
      %6522 = vmatprep.mubr.f32.mxu0 0.0
      %6523 = vmatmul.mubr.f32.gmra.mrb[0].mxu0 %v6444
      %v6524 = vpop.f32.mrb[0].mxu0
      %v6525 = vadd.f32 0.0, %v6524
      %v6526 = vpop.f32.mrb[0].mxu0
      %v6527 = vadd.f32 0.0, %v6526
      %6528 = vdwg.mxu0
      %v6530 = vsel %vm1260, %v6430, 0
      %v6533 = vsel %vm1260, %v6431, 0
      %v6536 = vsel %vm1260, %v6432, 0
      %6538 = vmatprep.subr.mxu0 %v3950
      %6539 = vmatpush1.msra.mxu0 %v3949
      %6540 = vmatprep.subr.mxu0 %v3952
      %6541 = vmatpush1.msra.mxu0 %v3951
      %6542 = vmatprep.subr.mxu0 0.0
      %6543 = vmatpush1.msra.mxu0 0.0
      %6544 = vmatprep.subr.mxu0 0.0
      %6545 = vmatpush1.msra.mxu0 0.0
      %6546 = vmatprep.subr.mxu0 0.0
      %6547 = vmatpush1.msra.mxu0 0.0
      %6548 = vmatprep.subr.mxu0 0.0
      %6549 = vmatpush1.msra.mxu0 0.0
      %6550 = vmatprep.subr.mxu0 0.0
      %6551 = vmatpush1.msra.mxu0 0.0
      %6552 = vmatprep.subr.mxu0 0.0
      %6553 = vmatpush1.msra.mxu0 0.0
      %6554 = vmatprep.subr.mxu0 0.0
      %6555 = vmatpush1.msra.mxu0 0.0
      %6556 = vmatprep.subr.mxu0 0.0
      %6557 = vmatpush1.msra.mxu0 0.0
      %6558 = vmatprep.subr.mxu0 0.0
      %6559 = vmatpush1.msra.mxu0 0.0
      %6560 = vmatprep.subr.mxu0 0.0
      %6561 = vmatpush1.msra.mxu0 0.0
      %6562 = vmatprep.subr.mxu0 0.0
      %6563 = vmatpush1.msra.mxu0 0.0
      %6564 = vmatprep.subr.mxu0 0.0
      %6565 = vmatpush1.msra.mxu0 0.0
      %6566 = vmatprep.subr.mxu0 0.0
      %6567 = vmatpush1.msra.mxu0 0.0
      %6568 = vmatprep.subr.mxu0 0.0
      %6569 = vmatpush1.msra.mxu0 0.0
      %6570 = vmatprep.subr.mxu0 0.0
      %6571 = vmatpush1.msra.mxu0 0.0
      %6572 = vmatprep.subr.mxu0 0.0
      %6573 = vmatpush1.msra.mxu0 0.0
      %6574 = vmatprep.subr.mxu0 0.0
      %6575 = vmatpush1.msra.mxu0 0.0
      %6576 = vmatprep.subr.mxu0 0.0
      %6577 = vmatpush1.msra.mxu0 0.0
      %6578 = vmatprep.subr.mxu0 0.0
      %6579 = vmatpush1.msra.mxu0 0.0
      %6580 = vmatprep.subr.mxu0 0.0
      %6581 = vmatpush1.msra.mxu0 0.0
      %6582 = vmatprep.subr.mxu0 0.0
      %6583 = vmatpush1.msra.mxu0 0.0
      %6584 = vmatprep.subr.mxu0 0.0
      %6585 = vmatpush1.msra.mxu0 0.0
      %6586 = vmatprep.subr.mxu0 0.0
      %6587 = vmatpush1.msra.mxu0 0.0
      %6588 = vmatprep.subr.mxu0 0.0
      %6589 = vmatpush1.msra.mxu0 0.0
      %6590 = vmatprep.subr.mxu0 0.0
      %6591 = vmatpush1.msra.mxu0 0.0
      %6592 = vmatprep.subr.mxu0 0.0
      %6593 = vmatpush1.msra.mxu0 0.0
      %6594 = vmatprep.subr.mxu0 0.0
      %6595 = vmatpush1.msra.mxu0 0.0
      %6596 = vmatprep.subr.mxu0 0.0
      %6597 = vmatpush1.msra.mxu0 0.0
      %6598 = vmatprep.subr.mxu0 0.0
      %6599 = vmatpush1.msra.mxu0 0.0
      %6600 = vmatprep.subr.mxu0 0.0
      %6601 = vmatpush1.msra.mxu0 0.0
      %6602 = vmatprep.mubr.f32.mxu0 0.0
      %6603 = vmatmul.mubr.f32.gmra.mrb[0].mxu0 %v6530
      %v6604 = vpop.f32.mrb[0].mxu0
      %v6605 = vadd.f32 %v6513, %v6604
      %v6606 = vpop.f32.mrb[0].mxu0
      %v6607 = vadd.f32 %v6515, %v6606
      %6608 = vmatprep.mubr.f32.mxu0 0.0
      %6609 = vmatmul.mubr.f32.gmra.mrb[0].mxu0 %v6533
      %v6610 = vpop.f32.mrb[0].mxu0
      %v6611 = vadd.f32 %v6519, %v6610
      %v6612 = vpop.f32.mrb[0].mxu0
      %v6613 = vadd.f32 %v6521, %v6612
      %6614 = vmatprep.mubr.f32.mxu0 0.0
      %6615 = vmatmul.mubr.f32.gmra.mrb[0].mxu0 %v6536
      %v6616 = vpop.f32.mrb[0].mxu0
      %v6617 = vadd.f32 %v6525, %v6616
      %v6618 = vpop.f32.mrb[0].mxu0
      %v6619 = vadd.f32 %v6527, %v6618
      %6620 = vdwg.mxu0
      %s6621 = scalar_lea.vmem %s12, 144
      %v6622 = vld [vmem:[%s6621] sm:$0xff]
      %v6623 = vld [vmem:[%s6621 + $0x8] sm:$0xff]
      %v6624 = vld [vmem:[%s6621 + $0x10] sm:$0x3]
      %v6626 = vsel %vm1260, %v6622, 0
      %v6629 = vsel %vm1260, %v6623, 0
      %v6632 = vsel %vm1260, %v6624, 0
      %6634 = vmatprep.subr.mxu0 %v5430
      %6635 = vmatpush1.msra.mxu0 %v5429
      %6636 = vmatprep.subr.mxu0 %v5432
      %6637 = vmatpush1.msra.mxu0 %v5431
      %6638 = vmatprep.subr.mxu0 0.0
      %6639 = vmatpush1.msra.mxu0 0.0
      %6640 = vmatprep.subr.mxu0 0.0
      %6641 = vmatpush1.msra.mxu0 0.0
      %6642 = vmatprep.subr.mxu0 0.0
      %6643 = vmatpush1.msra.mxu0 0.0
      %6644 = vmatprep.subr.mxu0 0.0
      %6645 = vmatpush1.msra.mxu0 0.0
      %6646 = vmatprep.subr.mxu0 0.0
      %6647 = vmatpush1.msra.mxu0 0.0
      %6648 = vmatprep.subr.mxu0 0.0
      %6649 = vmatpush1.msra.mxu0 0.0
      %6650 = vmatprep.subr.mxu0 0.0
      %6651 = vmatpush1.msra.mxu0 0.0
      %6652 = vmatprep.subr.mxu0 0.0
      %6653 = vmatpush1.msra.mxu0 0.0
      %6654 = vmatprep.subr.mxu0 0.0
      %6655 = vmatpush1.msra.mxu0 0.0
      %6656 = vmatprep.subr.mxu0 0.0
      %6657 = vmatpush1.msra.mxu0 0.0
      %6658 = vmatprep.subr.mxu0 0.0
      %6659 = vmatpush1.msra.mxu0 0.0
      %6660 = vmatprep.subr.mxu0 0.0
      %6661 = vmatpush1.msra.mxu0 0.0
      %6662 = vmatprep.subr.mxu0 0.0
      %6663 = vmatpush1.msra.mxu0 0.0
      %6664 = vmatprep.subr.mxu0 0.0
      %6665 = vmatpush1.msra.mxu0 0.0
      %6666 = vmatprep.subr.mxu0 0.0
      %6667 = vmatpush1.msra.mxu0 0.0
      %6668 = vmatprep.subr.mxu0 0.0
      %6669 = vmatpush1.msra.mxu0 0.0
      %6670 = vmatprep.subr.mxu0 0.0
      %6671 = vmatpush1.msra.mxu0 0.0
      %6672 = vmatprep.subr.mxu0 0.0
      %6673 = vmatpush1.msra.mxu0 0.0
      %6674 = vmatprep.subr.mxu0 0.0
      %6675 = vmatpush1.msra.mxu0 0.0
      %6676 = vmatprep.subr.mxu0 0.0
      %6677 = vmatpush1.msra.mxu0 0.0
      %6678 = vmatprep.subr.mxu0 0.0
      %6679 = vmatpush1.msra.mxu0 0.0
      %6680 = vmatprep.subr.mxu0 0.0
      %6681 = vmatpush1.msra.mxu0 0.0
      %6682 = vmatprep.subr.mxu0 0.0
      %6683 = vmatpush1.msra.mxu0 0.0
      %6684 = vmatprep.subr.mxu0 0.0
      %6685 = vmatpush1.msra.mxu0 0.0
      %6686 = vmatprep.subr.mxu0 0.0
      %6687 = vmatpush1.msra.mxu0 0.0
      %6688 = vmatprep.subr.mxu0 0.0
      %6689 = vmatpush1.msra.mxu0 0.0
      %6690 = vmatprep.subr.mxu0 0.0
      %6691 = vmatpush1.msra.mxu0 0.0
      %6692 = vmatprep.subr.mxu0 0.0
      %6693 = vmatpush1.msra.mxu0 0.0
      %6694 = vmatprep.subr.mxu0 0.0
      %6695 = vmatpush1.msra.mxu0 0.0
      %6696 = vmatprep.subr.mxu0 0.0
      %6697 = vmatpush1.msra.mxu0 0.0
      %6698 = vmatprep.mubr.f32.mxu0 0.0
      %6699 = vmatmul.mubr.f32.gmra.mrb[0].mxu0 %v6626
      %v6700 = vpop.f32.mrb[0].mxu0
      %v6701 = vadd.f32 0.0, %v6700
      %v6702 = vpop.f32.mrb[0].mxu0
      %v6703 = vadd.f32 0.0, %v6702
      %6704 = vmatprep.mubr.f32.mxu0 0.0
      %6705 = vmatmul.mubr.f32.gmra.mrb[0].mxu0 %v6629
      %v6706 = vpop.f32.mrb[0].mxu0
      %v6707 = vadd.f32 0.0, %v6706
      %v6708 = vpop.f32.mrb[0].mxu0
      %v6709 = vadd.f32 0.0, %v6708
      %6710 = vmatprep.mubr.f32.mxu0 0.0
      %6711 = vmatmul.mubr.f32.gmra.mrb[0].mxu0 %v6632
      %v6712 = vpop.f32.mrb[0].mxu0
      %v6713 = vadd.f32 0.0, %v6712
      %v6714 = vpop.f32.mrb[0].mxu0
      %v6715 = vadd.f32 0.0, %v6714
      %6716 = vdwg.mxu0
      %v6717 = vadd.f32 %v6605, %v6701
      %v6718 = vadd.f32 %v6607, %v6703
      %v6719 = vadd.f32 %v6611, %v6707
      %v6720 = vadd.f32 %v6613, %v6709
      %v6721 = vadd.f32 %v6617, %v6713
      %v6722 = vadd.f32 %v6619, %v6715
      %s6723 = scalar_lea.vmem %s12, 168
      %v6724 = vld [vmem:[%s6723] sm:$0xff]
      %v6725 = vld [vmem:[%s6723 + $0x8] sm:$0xff]
      %v6726 = vld [vmem:[%s6723 + $0x10] sm:$0x3]
      %v6728 = vsel %vm1260, %v6724, 0
      %v6731 = vsel %vm1260, %v6725, 0
      %v6734 = vsel %vm1260, %v6726, 0
      %6736 = vmatprep.subr.mxu0 %v6426
      %6737 = vmatpush1.msra.mxu0 %v6425
      %6738 = vmatprep.subr.mxu0 %v6428
      %6739 = vmatpush1.msra.mxu0 %v6427
      %6740 = vmatprep.subr.mxu0 0.0
      %6741 = vmatpush1.msra.mxu0 0.0
      %6742 = vmatprep.subr.mxu0 0.0
      %6743 = vmatpush1.msra.mxu0 0.0
      %6744 = vmatprep.subr.mxu0 0.0
      %6745 = vmatpush1.msra.mxu0 0.0
      %6746 = vmatprep.subr.mxu0 0.0
      %6747 = vmatpush1.msra.mxu0 0.0
      %6748 = vmatprep.subr.mxu0 0.0
      %6749 = vmatpush1.msra.mxu0 0.0
      %6750 = vmatprep.subr.mxu0 0.0
      %6751 = vmatpush1.msra.mxu0 0.0
      %6752 = vmatprep.subr.mxu0 0.0
      %6753 = vmatpush1.msra.mxu0 0.0
      %6754 = vmatprep.subr.mxu0 0.0
      %6755 = vmatpush1.msra.mxu0 0.0
      %6756 = vmatprep.subr.mxu0 0.0
      %6757 = vmatpush1.msra.mxu0 0.0
      %6758 = vmatprep.subr.mxu0 0.0
      %6759 = vmatpush1.msra.mxu0 0.0
      %6760 = vmatprep.subr.mxu0 0.0
      %6761 = vmatpush1.msra.mxu0 0.0
      %6762 = vmatprep.subr.mxu0 0.0
      %6763 = vmatpush1.msra.mxu0 0.0
      %6764 = vmatprep.subr.mxu0 0.0
      %6765 = vmatpush1.msra.mxu0 0.0
      %6766 = vmatprep.subr.mxu0 0.0
      %6767 = vmatpush1.msra.mxu0 0.0
      %6768 = vmatprep.subr.mxu0 0.0
      %6769 = vmatpush1.msra.mxu0 0.0
      %6770 = vmatprep.subr.mxu0 0.0
      %6771 = vmatpush1.msra.mxu0 0.0
      %6772 = vmatprep.subr.mxu0 0.0
      %6773 = vmatpush1.msra.mxu0 0.0
      %6774 = vmatprep.subr.mxu0 0.0
      %6775 = vmatpush1.msra.mxu0 0.0
      %6776 = vmatprep.subr.mxu0 0.0
      %6777 = vmatpush1.msra.mxu0 0.0
      %6778 = vmatprep.subr.mxu0 0.0
      %6779 = vmatpush1.msra.mxu0 0.0
      %6780 = vmatprep.subr.mxu0 0.0
      %6781 = vmatpush1.msra.mxu0 0.0
      %6782 = vmatprep.subr.mxu0 0.0
      %6783 = vmatpush1.msra.mxu0 0.0
      %6784 = vmatprep.subr.mxu0 0.0
      %6785 = vmatpush1.msra.mxu0 0.0
      %6786 = vmatprep.subr.mxu0 0.0
      %6787 = vmatpush1.msra.mxu0 0.0
      %6788 = vmatprep.subr.mxu0 0.0
      %6789 = vmatpush1.msra.mxu0 0.0
      %6790 = vmatprep.subr.mxu0 0.0
      %6791 = vmatpush1.msra.mxu0 0.0
      %6792 = vmatprep.subr.mxu0 0.0
      %6793 = vmatpush1.msra.mxu0 0.0
      %6794 = vmatprep.subr.mxu0 0.0
      %6795 = vmatpush1.msra.mxu0 0.0
      %6796 = vmatprep.subr.mxu0 0.0
      %6797 = vmatpush1.msra.mxu0 0.0
      %6798 = vmatprep.subr.mxu0 0.0
      %6799 = vmatpush1.msra.mxu0 0.0
      %6800 = vmatprep.mubr.f32.mxu0 0.0
      %6801 = vmatmul.mubr.f32.gmra.mrb[0].mxu0 %v6728
      %v6802 = vpop.f32.mrb[0].mxu0
      %v6803 = vadd.f32 0.0, %v6802
      %v6804 = vpop.f32.mrb[0].mxu0
      %v6805 = vadd.f32 0.0, %v6804
      %6806 = vmatprep.mubr.f32.mxu0 0.0
      %6807 = vmatmul.mubr.f32.gmra.mrb[0].mxu0 %v6731
      %v6808 = vpop.f32.mrb[0].mxu0
      %v6809 = vadd.f32 0.0, %v6808
      %v6810 = vpop.f32.mrb[0].mxu0
      %v6811 = vadd.f32 0.0, %v6810
      %6812 = vmatprep.mubr.f32.mxu0 0.0
      %6813 = vmatmul.mubr.f32.gmra.mrb[0].mxu0 %v6734
      %v6814 = vpop.f32.mrb[0].mxu0
      %v6815 = vadd.f32 0.0, %v6814
      %v6816 = vpop.f32.mrb[0].mxu0
      %v6817 = vadd.f32 0.0, %v6816
      %6818 = vdwg.mxu0
      %v6819 = vadd.f32 %v6717, %v6803
      %v6820 = vadd.f32 %v6718, %v6805
      %v6821 = vadd.f32 %v6719, %v6809
      %v6822 = vadd.f32 %v6720, %v6811
      %v6823 = vadd.f32 %v6721, %v6815
      %v6824 = vadd.f32 %v6722, %v6817
      %s6825 = scalar_lea.vmem %s13, 24
      %v6826 = vld [vmem:[%s6825] sm:$0xff]
      %v6827 = vld [vmem:[%s6825 + $0x8] sm:$0xff]
      %v6828 = vld [vmem:[%s6825 + $0x10] sm:$0x3]
      %6830 = vset.pattern.permute.xlu0 0
      %6831 = vperm.xlu0 %6830, %v6826
      %v6832 = vpop.permute.xlu0 %6831
      %6835 = vset.pattern.permute.xlu0 0
      %6836 = vperm.xlu0 %6835, %v6827
      %v6837 = vpop.permute.xlu0 %6836
      %6840 = vset.pattern.permute.xlu0 0
      %6841 = vperm.xlu0 %6840, %v6828
      %v6842 = vpop.permute.xlu0 %6841
      %v6844 = vadd.f32 %v6819, %v6832
      %v6845 = vadd.f32 %v6820, %v6832
      %v6846 = vadd.f32 %v6821, %v6837
      %v6847 = vadd.f32 %v6822, %v6837
      %v6848 = vadd.f32 %v6823, %v6842
      %v6849 = vadd.f32 %v6824, %v6842
      %v6850 = vmax.f32 %v6844, 0.0
      %v6851 = vmax.f32 %v6845, 0.0
      %v6852 = vmax.f32 %v6846, 0.0
      %v6853 = vmax.f32 %v6847, 0.0
      %v6854 = vmax.f32 %v6848, 0.0
      %v6855 = vmax.f32 %v6849, 0.0
      %v6856 = vmax.f32 %v3742, %v3743
      %6857 = vmax.xlane.f32.xlu0 %v6856
      %v6858 = vpop.xlane.xlu0 %6857
      %v6859 = vmax.f32 %v3744, %v3745
      %6860 = vmax.xlane.f32.xlu0 %v6859
      %v6861 = vpop.xlane.xlu0 %6860
      %v6862 = vsel %vm622, %v3746, -inf
      %v6863 = vsel %vm622, %v3747, -inf
      %v6864 = vmax.f32 %v6862, %v6863
      %6865 = vmax.xlane.f32.xlu0 %v6864
      %v6866 = vpop.xlane.xlu0 %6865
      %s6867 = scalar_lea.vmem %s14, 24
      %v6868 = vld [vmem:[%s6867] sm:$0xff]
      %v6869 = vld [vmem:[%s6867 + $0x8] sm:$0xff]
      %v6870 = vld [vmem:[%s6867 + $0x10] sm:$0x3]
      %v6871 = vmul.f32 %v6868, %v6858
      %v6872 = vmul.f32 %v6869, %v6861
      %v6873 = vmul.f32 %v6870, %v6866
      %v6874 = vsel %vm3698, %v6871, 0.0
      %v6875 = vsel %vm3698, %v6872, 0.0
      %v6876 = vadd.f32 %v6874, %v6875
      %v6877 = vsel %vm3702, %v6873, 0.0
      %v6878 = vadd.f32 %v6876, %v6877
      %v6879 = vrot.slane %v6878, 4
      %v6880 = vadd.f32 %v6878, %v6879
      %v6881 = vrot.slane %v6880, 2
      %v6882 = vadd.f32 %v6880, %v6881
      %v6883 = vrot.slane %v6882, 1
      %v6884 = vadd.f32 %v6882, %v6883
      %v6885 = vmax.f32 %v6884, 0.0
      %s6886 = scalar_lea.vmem %s15, 24
      %v6887 = vld [vmem:[%s6886] sm:$0xff]
      %v6888 = vld [vmem:[%s6886 + $0x8] sm:$0xff]
      %v6889 = vld [vmem:[%s6886 + $0x10] sm:$0x3]
      %v6890 = vmul.f32 %v6887, %v6885
      %v6891 = vmul.f32 %v6888, %v6885
      %v6892 = vmul.f32 %v6889, %v6885
      %v6893 = vsel %vm3698, %v6890, 0.0
      %6894 = vadd.xlane.f32.xlu0 %v6893
      %v6895 = vpop.xlane.xlu0 %6894
      %v6896 = vsel %vm3698, %v6891, 0.0
      %6897 = vadd.xlane.f32.xlu0 %v6896
      %v6898 = vpop.xlane.xlu0 %6897
      %v6899 = vsel %vm3702, %v6892, 0.0
      %6900 = vadd.xlane.f32.xlu0 %v6899
      %v6901 = vpop.xlane.xlu0 %6900
      %v6902 = vsub.f32 0.0, %v6895
      %v6903 = vsub.f32 0.0, %v6898
      %v6904 = vsub.f32 0.0, %v6901
      %v6905 = vmul.f32 %v6902, 1.442695
      %v6906 = vpow.pop %v6905
      %v6907 = vmul.f32 %v6903, 1.442695
      %v6908 = vpow.pop %v6907
      %v6909 = vmul.f32 %v6904, 1.442695
      %v6910 = vpow.pop %v6909
      %v6911 = vadd.f32 %v6906, 1.0
      %v6912 = vadd.f32 %v6908, 1.0
      %v6913 = vadd.f32 %v6910, 1.0
      %v6914 = vrcp.pop %v6911
      %v6915 = vrcp.pop %v6912
      %v6916 = vrcp.pop %v6913
      %v6917 = vmul.f32 %v6850, %v6914
      %v6918 = vmul.f32 %v6851, %v6914
      %v6919 = vmul.f32 %v6852, %v6915
      %v6920 = vmul.f32 %v6853, %v6915
      %v6921 = vmul.f32 %v6854, %v6916
      %v6922 = vmul.f32 %v6855, %v6916
      %s6923 = scalar_lea.vmem %s2, 128
      %v6924 = vld [vmem:[%s6923] sm:$0xff]
      %v6925 = vld [vmem:[%s6923 + $0x8] sm:$0xff]
      %v6926 = vld [vmem:[%s6923 + $0x10] sm:$0xff]
      %v6927 = vld [vmem:[%s6923 + $0x18] sm:$0xff]
      %v6928 = vld [vmem:[%s6923 + $0x20] sm:$0xff]
      %v6929 = vld [vmem:[%s6923 + $0x28] sm:$0xff]
      %v6930 = vld [vmem:[%s6923 + $0x30] sm:$0xff]
      %v6931 = vld [vmem:[%s6923 + $0x38] sm:$0xff]
      %s6932 = scalar_lea.vmem %s3, 128
      %v6933 = vld [vmem:[%s6932] sm:$0xff]
      %v6934 = vld [vmem:[%s6932 + $0x8] sm:$0xff]
      %v6935 = vld [vmem:[%s6932 + $0x10] sm:$0xff]
      %v6936 = vld [vmem:[%s6932 + $0x18] sm:$0xff]
      %v6937 = vld [vmem:[%s6932 + $0x20] sm:$0xff]
      %v6938 = vld [vmem:[%s6932 + $0x28] sm:$0xff]
      %v6939 = vld [vmem:[%s6932 + $0x30] sm:$0xff]
      %v6940 = vld [vmem:[%s6932 + $0x38] sm:$0xff]
      %6942 = vset.pattern.permute.xlu0 0
      %6943 = vperm.xlu0 %6942, %v6933
      %v6944 = vpop.permute.xlu0 %6943
      %6947 = vset.pattern.permute.xlu0 0
      %6948 = vperm.xlu0 %6947, %v6934
      %v6949 = vpop.permute.xlu0 %6948
      %6952 = vset.pattern.permute.xlu0 0
      %6953 = vperm.xlu0 %6952, %v6935
      %v6954 = vpop.permute.xlu0 %6953
      %6957 = vset.pattern.permute.xlu0 0
      %6958 = vperm.xlu0 %6957, %v6936
      %v6959 = vpop.permute.xlu0 %6958
      %6962 = vset.pattern.permute.xlu0 0
      %6963 = vperm.xlu0 %6962, %v6937
      %v6964 = vpop.permute.xlu0 %6963
      %6967 = vset.pattern.permute.xlu0 0
      %6968 = vperm.xlu0 %6967, %v6938
      %v6969 = vpop.permute.xlu0 %6968
      %6972 = vset.pattern.permute.xlu0 0
      %6973 = vperm.xlu0 %6972, %v6939
      %v6974 = vpop.permute.xlu0 %6973
      %6977 = vset.pattern.permute.xlu0 0
      %6978 = vperm.xlu0 %6977, %v6940
      %v6979 = vpop.permute.xlu0 %6978
      %v6982 = vsel %vm597, %v6924, 0
      %v6985 = vsel %vm597, %v6925, 0
      %v6988 = vsel %vm597, %v6926, 0
      %v6991 = vsel %vm597, %v6927, 0
      %v6994 = vsel %vm597, %v6928, 0
      %v6997 = vsel %vm597, %v6929, 0
      %v7000 = vsel %vm597, %v6930, 0
      %v7003 = vsel %vm597, %v6931, 0
      %v7006 = vsel %vm622, %v6921, 0
      %v7009 = vsel %vm622, %v6922, 0
      %7011 = vmatprep.subr.mxu0 %v6918
      %7012 = vmatpush1.msra.mxu0 %v6917
      %7013 = vmatprep.subr.mxu0 %v6920
      %7014 = vmatpush1.msra.mxu0 %v6919
      %7015 = vmatprep.subr.mxu0 %v7009
      %7016 = vmatpush1.msra.mxu0 %v7006
      %7017 = vmatprep.subr.mxu0 0.0
      %7018 = vmatpush1.msra.mxu0 0.0
      %7019 = vmatprep.subr.mxu0 0.0
      %7020 = vmatpush1.msra.mxu0 0.0
      %7021 = vmatprep.subr.mxu0 0.0
      %7022 = vmatpush1.msra.mxu0 0.0
      %7023 = vmatprep.subr.mxu0 0.0
      %7024 = vmatpush1.msra.mxu0 0.0
      %7025 = vmatprep.subr.mxu0 0.0
      %7026 = vmatpush1.msra.mxu0 0.0
      %7027 = vmatprep.subr.mxu0 0.0
      %7028 = vmatpush1.msra.mxu0 0.0
      %7029 = vmatprep.subr.mxu0 0.0
      %7030 = vmatpush1.msra.mxu0 0.0
      %7031 = vmatprep.subr.mxu0 0.0
      %7032 = vmatpush1.msra.mxu0 0.0
      %7033 = vmatprep.subr.mxu0 0.0
      %7034 = vmatpush1.msra.mxu0 0.0
      %7035 = vmatprep.subr.mxu0 0.0
      %7036 = vmatpush1.msra.mxu0 0.0
      %7037 = vmatprep.subr.mxu0 0.0
      %7038 = vmatpush1.msra.mxu0 0.0
      %7039 = vmatprep.subr.mxu0 0.0
      %7040 = vmatpush1.msra.mxu0 0.0
      %7041 = vmatprep.subr.mxu0 0.0
      %7042 = vmatpush1.msra.mxu0 0.0
      %7043 = vmatprep.subr.mxu0 0.0
      %7044 = vmatpush1.msra.mxu0 0.0
      %7045 = vmatprep.subr.mxu0 0.0
      %7046 = vmatpush1.msra.mxu0 0.0
      %7047 = vmatprep.subr.mxu0 0.0
      %7048 = vmatpush1.msra.mxu0 0.0
      %7049 = vmatprep.subr.mxu0 0.0
      %7050 = vmatpush1.msra.mxu0 0.0
      %7051 = vmatprep.subr.mxu0 0.0
      %7052 = vmatpush1.msra.mxu0 0.0
      %7053 = vmatprep.subr.mxu0 0.0
      %7054 = vmatpush1.msra.mxu0 0.0
      %7055 = vmatprep.subr.mxu0 0.0
      %7056 = vmatpush1.msra.mxu0 0.0
      %7057 = vmatprep.subr.mxu0 0.0
      %7058 = vmatpush1.msra.mxu0 0.0
      %7059 = vmatprep.subr.mxu0 0.0
      %7060 = vmatpush1.msra.mxu0 0.0
      %7061 = vmatprep.subr.mxu0 0.0
      %7062 = vmatpush1.msra.mxu0 0.0
      %7063 = vmatprep.subr.mxu0 0.0
      %7064 = vmatpush1.msra.mxu0 0.0
      %7065 = vmatprep.subr.mxu0 0.0
      %7066 = vmatpush1.msra.mxu0 0.0
      %7067 = vmatprep.subr.mxu0 0.0
      %7068 = vmatpush1.msra.mxu0 0.0
      %7069 = vmatprep.subr.mxu0 0.0
      %7070 = vmatpush1.msra.mxu0 0.0
      %7071 = vmatprep.subr.mxu0 0.0
      %7072 = vmatpush1.msra.mxu0 0.0
      %7073 = vmatprep.subr.mxu0 0.0
      %7074 = vmatpush1.msra.mxu0 0.0
      %7075 = vmatprep.mubr.f32.mxu0 0.0
      %7076 = vmatmul.mubr.f32.gmra.mrb[0].mxu0 %v6982
      %v7077 = vpop.f32.mrb[0].mxu0
      %v7078 = vadd.f32 %v6944, %v7077
      %v7079 = vpop.f32.mrb[0].mxu0
      %v7080 = vadd.f32 %v6944, %v7079
      %7081 = vmatprep.mubr.f32.mxu0 0.0
      %7082 = vmatmul.mubr.f32.gmra.mrb[0].mxu0 %v6985
      %v7083 = vpop.f32.mrb[0].mxu0
      %v7084 = vadd.f32 %v6949, %v7083
      %v7085 = vpop.f32.mrb[0].mxu0
      %v7086 = vadd.f32 %v6949, %v7085
      %7087 = vmatprep.mubr.f32.mxu0 0.0
      %7088 = vmatmul.mubr.f32.gmra.mrb[0].mxu0 %v6988
      %v7089 = vpop.f32.mrb[0].mxu0
      %v7090 = vadd.f32 %v6954, %v7089
      %v7091 = vpop.f32.mrb[0].mxu0
      %v7092 = vadd.f32 %v6954, %v7091
      %7093 = vmatprep.mubr.f32.mxu0 0.0
      %7094 = vmatmul.mubr.f32.gmra.mrb[0].mxu0 %v6991
      %v7095 = vpop.f32.mrb[0].mxu0
      %v7096 = vadd.f32 %v6959, %v7095
      %v7097 = vpop.f32.mrb[0].mxu0
      %v7098 = vadd.f32 %v6959, %v7097
      %7099 = vmatprep.mubr.f32.mxu0 0.0
      %7100 = vmatmul.mubr.f32.gmra.mrb[0].mxu0 %v6994
      %v7101 = vpop.f32.mrb[0].mxu0
      %v7102 = vadd.f32 %v6964, %v7101
      %v7103 = vpop.f32.mrb[0].mxu0
      %v7104 = vadd.f32 %v6964, %v7103
      %7105 = vmatprep.mubr.f32.mxu0 0.0
      %7106 = vmatmul.mubr.f32.gmra.mrb[0].mxu0 %v6997
      %v7107 = vpop.f32.mrb[0].mxu0
      %v7108 = vadd.f32 %v6969, %v7107
      %v7109 = vpop.f32.mrb[0].mxu0
      %v7110 = vadd.f32 %v6969, %v7109
      %7111 = vmatprep.mubr.f32.mxu0 0.0
      %7112 = vmatmul.mubr.f32.gmra.mrb[0].mxu0 %v7000
      %v7113 = vpop.f32.mrb[0].mxu0
      %v7114 = vadd.f32 %v6974, %v7113
      %v7115 = vpop.f32.mrb[0].mxu0
      %v7116 = vadd.f32 %v6974, %v7115
      %7117 = vmatprep.mubr.f32.mxu0 0.0
      %7118 = vmatmul.mubr.f32.gmra.mrb[0].mxu0 %v7003
      %v7119 = vpop.f32.mrb[0].mxu0
      %v7120 = vadd.f32 %v6979, %v7119
      %v7121 = vpop.f32.mrb[0].mxu0
      %v7122 = vadd.f32 %v6979, %v7121
      %7123 = vdwg.mxu0
      %v7124 = vmax.f32 %v7078, 0.0
      %v7125 = vmax.f32 %v7080, 0.0
      %v7126 = vmax.f32 %v7084, 0.0
      %v7127 = vmax.f32 %v7086, 0.0
      %v7128 = vmax.f32 %v7090, 0.0
      %v7129 = vmax.f32 %v7092, 0.0
      %v7130 = vmax.f32 %v7096, 0.0
      %v7131 = vmax.f32 %v7098, 0.0
      %v7132 = vmax.f32 %v7102, 0.0
      %v7133 = vmax.f32 %v7104, 0.0
      %v7134 = vmax.f32 %v7108, 0.0
      %v7135 = vmax.f32 %v7110, 0.0
      %v7136 = vmax.f32 %v7114, 0.0
      %v7137 = vmax.f32 %v7116, 0.0
      %v7138 = vmax.f32 %v7120, 0.0
      %v7139 = vmax.f32 %v7122, 0.0
      %7140 = vst [vmem:[#allocation2 + $0x8] sm:$0xff] %v7128
      %7141 = vst [vmem:[#allocation2 + $0x10] sm:$0xff] %v7129
      %7142 = vst [vmem:[#allocation2 + $0x28] sm:$0xff] %v7130
      %7143 = vst [vmem:[#allocation2 + $0x30] sm:$0xff] %v7131
      %s7144 = scalar_lea.vmem %s4, 32
      %v7145 = vld [vmem:[%s7144] sm:$0xff]
      %v7146 = vld [vmem:[%s7144 + $0x8] sm:$0xff]
      %v7147 = vld [vmem:[#allocation2] sm:$0xff]
      %v7148 = vld [vmem:[#allocation2 + $0x8] sm:$0xff]
      %v7149 = vld [vmem:[#allocation2 + $0x10] sm:$0xff]
      %v7150 = vld [vmem:[#allocation2 + $0x20] sm:$0xff]
      %v7151 = vld [vmem:[#allocation2 + $0x28] sm:$0xff]
      %v7152 = vld [vmem:[#allocation2 + $0x30] sm:$0xff]
      %7154 = vset.pattern.permute.xlu0 0
      %7155 = vperm.xlu0 %7154, %v7145
      %v7156 = vpop.permute.xlu0 %7155
      %7159 = vset.pattern.permute.xlu0 0
      %7160 = vperm.xlu0 %7159, %v7146
      %v7161 = vpop.permute.xlu0 %7160
      %v7163 = vmul.f32 %v7147, %v7156
      %v7164 = vmul.f32 %v7148, %v7156
      %v7165 = vmul.f32 %v7149, %v7156
      %v7166 = vmul.f32 %v7150, %v7161
      %v7167 = vmul.f32 %v7151, %v7161
      %v7168 = vmul.f32 %v7152, %v7161
      %7169 = vset.pattern.permute.xlu0 1
      %7170 = vperm.xlu0 %7169, %v7145
      %v7171 = vpop.permute.xlu0 %7170
      %7173 = vset.pattern.permute.xlu0 1
      %7174 = vperm.xlu0 %7173, %v7146
      %v7175 = vpop.permute.xlu0 %7174
      %v7177 = vmul.f32 %v7147, %v7171
      %v7178 = vmul.f32 %v7148, %v7171
      %v7179 = vmul.f32 %v7149, %v7171
      %v7180 = vmul.f32 %v7150, %v7175
      %v7181 = vmul.f32 %v7151, %v7175
      %v7182 = vmul.f32 %v7152, %v7175
      %7183 = vset.pattern.permute.xlu0 2
      %7184 = vperm.xlu0 %7183, %v7145
      %v7185 = vpop.permute.xlu0 %7184
      %7187 = vset.pattern.permute.xlu0 2
      %7188 = vperm.xlu0 %7187, %v7146
      %v7189 = vpop.permute.xlu0 %7188
      %v7191 = vmul.f32 %v7147, %v7185
      %v7192 = vmul.f32 %v7148, %v7185
      %v7193 = vmul.f32 %v7149, %v7185
      %v7194 = vmul.f32 %v7150, %v7189
      %v7195 = vmul.f32 %v7151, %v7189
      %v7196 = vmul.f32 %v7152, %v7189
      %7197 = vset.pattern.permute.xlu0 3
      %7198 = vperm.xlu0 %7197, %v7145
      %v7199 = vpop.permute.xlu0 %7198
      %7201 = vset.pattern.permute.xlu0 3
      %7202 = vperm.xlu0 %7201, %v7146
      %v7203 = vpop.permute.xlu0 %7202
      %v7205 = vmul.f32 %v7147, %v7199
      %v7206 = vmul.f32 %v7148, %v7199
      %v7207 = vmul.f32 %v7149, %v7199
      %v7208 = vmul.f32 %v7150, %v7203
      %v7209 = vmul.f32 %v7151, %v7203
      %v7210 = vmul.f32 %v7152, %v7203
      %7217 = vrot.lane.b32.xlu0 %v7205, 112
      %v7218 = vpop.permute.xlu0 %7217
      %7219 = vrot.lane.b32.xlu0 %v7206, 112
      %v7220 = vpop.permute.xlu0 %7219
      %7221 = vrot.lane.b32.xlu0 %v7207, 112
      %v7222 = vpop.permute.xlu0 %7221
      %7223 = vrot.lane.b32.xlu0 %v7208, 112
      %v7224 = vpop.permute.xlu0 %7223
      %7225 = vrot.lane.b32.xlu0 %v7209, 112
      %v7226 = vpop.permute.xlu0 %7225
      %7227 = vrot.lane.b32.xlu0 %v7210, 112
      %v7228 = vpop.permute.xlu0 %7227
      %v7229 = vsel %vm846, %v7218, %v7220
      %v7230 = vsel %vm846, %v7220, %v7222
      %v7231 = vsel %vm846, %v7224, %v7226
      %v7232 = vsel %vm846, %v7226, %v7228
      %v7239 = vadd.f32 %v7163, %v7229
      %v7240 = vadd.f32 %v7164, %v7230
      %v7241 = vadd.f32 %v7165, %v7222
      %v7242 = vadd.f32 %v7166, %v7231
      %v7243 = vadd.f32 %v7167, %v7232
      %v7244 = vadd.f32 %v7168, %v7228
      %7245 = vset.pattern.permute.xlu0 4
      %7246 = vperm.xlu0 %7245, %v7145
      %v7247 = vpop.permute.xlu0 %7246
      %7249 = vset.pattern.permute.xlu0 4
      %7250 = vperm.xlu0 %7249, %v7146
      %v7251 = vpop.permute.xlu0 %7250
      %v7253 = vmul.f32 %v7148, %v7247
      %v7254 = vmul.f32 %v7149, %v7247
      %v7255 = vmul.f32 %v7151, %v7251
      %v7256 = vmul.f32 %v7152, %v7251
      %7261 = vrot.lane.b32.xlu0 %v7253, 112
      %v7262 = vpop.permute.xlu0 %7261
      %7263 = vrot.lane.b32.xlu0 %v7254, 112
      %v7264 = vpop.permute.xlu0 %7263
      %7265 = vrot.lane.b32.xlu0 %v7255, 112
      %v7266 = vpop.permute.xlu0 %7265
      %7267 = vrot.lane.b32.xlu0 %v7256, 112
      %v7268 = vpop.permute.xlu0 %7267
      %v7269 = vsel %vm846, %v7262, %v7264
      %v7270 = vsel %vm846, %v7266, %v7268
      %v7277 = vadd.f32 %v7177, %v7262
      %v7278 = vadd.f32 %v7178, %v7269
      %v7279 = vadd.f32 %v7179, %v7264
      %v7280 = vadd.f32 %v7180, %v7266
      %v7281 = vadd.f32 %v7181, %v7270
      %v7282 = vadd.f32 %v7182, %v7268
      %v7283 = vld [vmem:[#allocation2 + $0x8] sm:$0xff]
      %v7284 = vld [vmem:[#allocation2 + $0x10] sm:$0xff]
      %v7285 = vld [vmem:[#allocation2 + $0x18] sm:$0xff]
      %v7286 = vld [vmem:[#allocation2 + $0x28] sm:$0xff]
      %v7287 = vld [vmem:[#allocation2 + $0x30] sm:$0xff]
      %v7288 = vld [vmem:[#allocation2 + $0x38] sm:$0xff]
      %7289 = vset.pattern.permute.xlu0 5
      %7290 = vperm.xlu0 %7289, %v7145
      %v7291 = vpop.permute.xlu0 %7290
      %7293 = vset.pattern.permute.xlu0 5
      %7294 = vperm.xlu0 %7293, %v7146
      %v7295 = vpop.permute.xlu0 %7294
      %v7297 = vmul.f32 %v7283, %v7291
      %v7298 = vmul.f32 %v7284, %v7291
      %v7299 = vmul.f32 %v7285, %v7291
      %v7300 = vmul.f32 %v7286, %v7295
      %v7301 = vmul.f32 %v7287, %v7295
      %v7302 = vmul.f32 %v7288, %v7295
      %7309 = vrot.lane.b32.xlu0 %v7297, 112
      %v7310 = vpop.permute.xlu0 %7309
      %7311 = vrot.lane.b32.xlu0 %v7298, 112
      %v7312 = vpop.permute.xlu0 %7311
      %7313 = vrot.lane.b32.xlu0 %v7299, 112
      %v7314 = vpop.permute.xlu0 %7313
      %7315 = vrot.lane.b32.xlu0 %v7300, 112
      %v7316 = vpop.permute.xlu0 %7315
      %7317 = vrot.lane.b32.xlu0 %v7301, 112
      %v7318 = vpop.permute.xlu0 %7317
      %7319 = vrot.lane.b32.xlu0 %v7302, 112
      %v7320 = vpop.permute.xlu0 %7319
      %v7321 = vsel %vm846, %v7310, %v7312
      %v7322 = vsel %vm846, %v7312, %v7314
      %v7323 = vsel %vm846, %v7316, %v7318
      %v7324 = vsel %vm846, %v7318, %v7320
      %v7331 = vadd.f32 %v7191, %v7310
      %v7332 = vadd.f32 %v7192, %v7321
      %v7333 = vadd.f32 %v7193, %v7322
      %v7334 = vadd.f32 %v7194, %v7316
      %v7335 = vadd.f32 %v7195, %v7323
      %v7336 = vadd.f32 %v7196, %v7324
      %7337 = vset.pattern.permute.xlu0 6
      %7338 = vperm.xlu0 %7337, %v7145
      %v7339 = vpop.permute.xlu0 %7338
      %7341 = vset.pattern.permute.xlu0 6
      %7342 = vperm.xlu0 %7341, %v7146
      %v7343 = vpop.permute.xlu0 %7342
      %v7345 = vmul.f32 %v7283, %v7339
      %v7346 = vmul.f32 %v7284, %v7339
      %v7347 = vmul.f32 %v7285, %v7339
      %v7348 = vmul.f32 %v7286, %v7343
      %v7349 = vmul.f32 %v7287, %v7343
      %v7350 = vmul.f32 %v7288, %v7343
      %7357 = vrot.lane.b32.xlu0 %v7345, 96
      %v7358 = vpop.permute.xlu0 %7357
      %7359 = vrot.lane.b32.xlu0 %v7346, 96
      %v7360 = vpop.permute.xlu0 %7359
      %7361 = vrot.lane.b32.xlu0 %v7347, 96
      %v7362 = vpop.permute.xlu0 %7361
      %7363 = vrot.lane.b32.xlu0 %v7348, 96
      %v7364 = vpop.permute.xlu0 %7363
      %7365 = vrot.lane.b32.xlu0 %v7349, 96
      %v7366 = vpop.permute.xlu0 %7365
      %7367 = vrot.lane.b32.xlu0 %v7350, 96
      %v7368 = vpop.permute.xlu0 %7367
      %v7369 = vsel %vm987, %v7358, %v7360
      %v7370 = vsel %vm987, %v7360, %v7362
      %v7371 = vsel %vm987, %v7364, %v7366
      %v7372 = vsel %vm987, %v7366, %v7368
      %v7379 = vadd.f32 %v7239, %v7358
      %v7380 = vadd.f32 %v7240, %v7369
      %v7381 = vadd.f32 %v7241, %v7370
      %v7382 = vadd.f32 %v7242, %v7364
      %v7383 = vadd.f32 %v7243, %v7371
      %v7384 = vadd.f32 %v7244, %v7372
      %7385 = vset.pattern.permute.xlu0 7
      %7386 = vperm.xlu0 %7385, %v7145
      %v7387 = vpop.permute.xlu0 %7386
      %7389 = vset.pattern.permute.xlu0 7
      %7390 = vperm.xlu0 %7389, %v7146
      %v7391 = vpop.permute.xlu0 %7390
      %v7393 = vmul.f32 %v7283, %v7387
      %v7394 = vmul.f32 %v7284, %v7387
      %v7395 = vmul.f32 %v7285, %v7387
      %v7396 = vmul.f32 %v7286, %v7391
      %v7397 = vmul.f32 %v7287, %v7391
      %v7398 = vmul.f32 %v7288, %v7391
      %7405 = vrot.lane.b32.xlu0 %v7393, 96
      %v7406 = vpop.permute.xlu0 %7405
      %7407 = vrot.lane.b32.xlu0 %v7394, 96
      %v7408 = vpop.permute.xlu0 %7407
      %7409 = vrot.lane.b32.xlu0 %v7395, 96
      %v7410 = vpop.permute.xlu0 %7409
      %7411 = vrot.lane.b32.xlu0 %v7396, 96
      %v7412 = vpop.permute.xlu0 %7411
      %7413 = vrot.lane.b32.xlu0 %v7397, 96
      %v7414 = vpop.permute.xlu0 %7413
      %7415 = vrot.lane.b32.xlu0 %v7398, 96
      %v7416 = vpop.permute.xlu0 %7415
      %v7417 = vsel %vm987, %v7406, %v7408
      %v7418 = vsel %vm987, %v7408, %v7410
      %v7419 = vsel %vm987, %v7412, %v7414
      %v7420 = vsel %vm987, %v7414, %v7416
      %v7427 = vadd.f32 %v7277, %v7406
      %v7428 = vadd.f32 %v7278, %v7417
      %v7429 = vadd.f32 %v7279, %v7418
      %v7430 = vadd.f32 %v7280, %v7412
      %v7431 = vadd.f32 %v7281, %v7419
      %v7432 = vadd.f32 %v7282, %v7420
      %7433 = vset.pattern.permute.xlu0 8
      %7434 = vperm.xlu0 %7433, %v7145
      %v7435 = vpop.permute.xlu0 %7434
      %7437 = vset.pattern.permute.xlu0 8
      %7438 = vperm.xlu0 %7437, %v7146
      %v7439 = vpop.permute.xlu0 %7438
      %v7441 = vmul.f32 %v7283, %v7435
      %v7442 = vmul.f32 %v7284, %v7435
      %v7443 = vmul.f32 %v7285, %v7435
      %v7444 = vmul.f32 %v7286, %v7439
      %v7445 = vmul.f32 %v7287, %v7439
      %v7446 = vmul.f32 %v7288, %v7439
      %7453 = vrot.lane.b32.xlu0 %v7441, 96
      %v7454 = vpop.permute.xlu0 %7453
      %7455 = vrot.lane.b32.xlu0 %v7442, 96
      %v7456 = vpop.permute.xlu0 %7455
      %7457 = vrot.lane.b32.xlu0 %v7443, 96
      %v7458 = vpop.permute.xlu0 %7457
      %7459 = vrot.lane.b32.xlu0 %v7444, 96
      %v7460 = vpop.permute.xlu0 %7459
      %7461 = vrot.lane.b32.xlu0 %v7445, 96
      %v7462 = vpop.permute.xlu0 %7461
      %7463 = vrot.lane.b32.xlu0 %v7446, 96
      %v7464 = vpop.permute.xlu0 %7463
      %v7465 = vsel %vm987, %v7454, %v7456
      %v7466 = vsel %vm987, %v7456, %v7458
      %v7467 = vsel %vm987, %v7460, %v7462
      %v7468 = vsel %vm987, %v7462, %v7464
      %v7475 = vadd.f32 %v7331, %v7454
      %v7476 = vadd.f32 %v7332, %v7465
      %v7477 = vadd.f32 %v7333, %v7466
      %v7478 = vadd.f32 %v7334, %v7460
      %v7479 = vadd.f32 %v7335, %v7467
      %v7480 = vadd.f32 %v7336, %v7468
      %v7481 = vmul.f32 %v7379, %v1110
      %v7482 = vmul.f32 %v7380, %v1114
      %v7483 = vmul.f32 %v7381, %v1112
      %v7484 = vmul.f32 %v7382, %v1110
      %v7485 = vmul.f32 %v7383, %v1114
      %v7486 = vmul.f32 %v7384, %v1112
      %7493 = vrot.lane.b32.xlu0 %v7481, 1
      %v7494 = vpop.permute.xlu0 %7493
      %7495 = vrot.lane.b32.xlu0 %v7482, 1
      %v7496 = vpop.permute.xlu0 %7495
      %7497 = vrot.lane.b32.xlu0 %v7483, 1
      %v7498 = vpop.permute.xlu0 %7497
      %7499 = vrot.lane.b32.xlu0 %v7484, 1
      %v7500 = vpop.permute.xlu0 %7499
      %7501 = vrot.lane.b32.xlu0 %v7485, 1
      %v7502 = vpop.permute.xlu0 %7501
      %7503 = vrot.lane.b32.xlu0 %v7486, 1
      %v7504 = vpop.permute.xlu0 %7503
      %v7505 = vsel %vm1142, %v7494, %v7496
      %v7506 = vsel %vm1142, %v7496, %v7498
      %v7507 = vsel %vm1142, %v7500, %v7502
      %v7508 = vsel %vm1142, %v7502, %v7504
      %v7515 = vadd.f32 %v7427, %v7494
      %v7516 = vadd.f32 %v7428, %v7505
      %v7517 = vadd.f32 %v7429, %v7506
      %v7518 = vadd.f32 %v7430, %v7500
      %v7519 = vadd.f32 %v7431, %v7507
      %v7520 = vadd.f32 %v7432, %v7508
      %v7521 = vmul.f32 %v7475, %v1169
      %v7522 = vmul.f32 %v7476, %v1173
      %v7523 = vmul.f32 %v7477, %v1171
      %v7524 = vmul.f32 %v7478, %v1169
      %v7525 = vmul.f32 %v7479, %v1173
      %v7526 = vmul.f32 %v7480, %v1171
      %7533 = vrot.lane.b32.xlu0 %v7521, 127
      %v7534 = vpop.permute.xlu0 %7533
      %7535 = vrot.lane.b32.xlu0 %v7522, 127
      %v7536 = vpop.permute.xlu0 %7535
      %7537 = vrot.lane.b32.xlu0 %v7523, 127
      %v7538 = vpop.permute.xlu0 %7537
      %7539 = vrot.lane.b32.xlu0 %v7524, 127
      %v7540 = vpop.permute.xlu0 %7539
      %7541 = vrot.lane.b32.xlu0 %v7525, 127
      %v7542 = vpop.permute.xlu0 %7541
      %7543 = vrot.lane.b32.xlu0 %v7526, 127
      %v7544 = vpop.permute.xlu0 %7543
      %v7545 = vsel %vm1201, %v7534, %v7536
      %v7546 = vsel %vm1201, %v7536, %v7538
      %v7547 = vsel %vm1201, %v7540, %v7542
      %v7548 = vsel %vm1201, %v7542, %v7544
      %v7555 = vadd.f32 %v7515, %v7545
      %v7556 = vadd.f32 %v7516, %v7546
      %v7557 = vadd.f32 %v7517, %v7538
      %v7558 = vadd.f32 %v7518, %v7547
      %v7559 = vadd.f32 %v7519, %v7548
      %v7560 = vadd.f32 %v7520, %v7544
      %s7561 = scalar_lea.vmem %s5, 32
      %v7562 = vld [vmem:[%s7561] sm:$0xff]
      %v7563 = vld [vmem:[%s7561 + $0x8] sm:$0xff]
      %7565 = vset.pattern.permute.xlu0 0
      %7566 = vperm.xlu0 %7565, %v7562
      %v7567 = vpop.permute.xlu0 %7566
      %7570 = vset.pattern.permute.xlu0 0
      %7571 = vperm.xlu0 %7570, %v7563
      %v7572 = vpop.permute.xlu0 %7571
      %v7574 = vadd.f32 %v7555, %v7567
      %v7575 = vadd.f32 %v7556, %v7567
      %v7576 = vadd.f32 %v7557, %v7567
      %v7577 = vadd.f32 %v7558, %v7572
      %v7578 = vadd.f32 %v7559, %v7572
      %v7579 = vadd.f32 %v7560, %v7572
      %v7580 = vmax.f32 %v7574, 0.0
      %v7581 = vmax.f32 %v7575, 0.0
      %v7582 = vmax.f32 %v7576, 0.0
      %v7583 = vmax.f32 %v7577, 0.0
      %v7584 = vmax.f32 %v7578, 0.0
      %v7585 = vmax.f32 %v7579, 0.0
      %7592 = vrot.lane.b32.xlu0 %v7580, 16
      %v7593 = vpop.permute.xlu0 %7592
      %7594 = vrot.lane.b32.xlu0 %v7581, 16
      %v7595 = vpop.permute.xlu0 %7594
      %7596 = vrot.lane.b32.xlu0 %v7582, 16
      %v7597 = vpop.permute.xlu0 %7596
      %7598 = vrot.lane.b32.xlu0 %v7583, 16
      %v7599 = vpop.permute.xlu0 %7598
      %7600 = vrot.lane.b32.xlu0 %v7584, 16
      %v7601 = vpop.permute.xlu0 %7600
      %7602 = vrot.lane.b32.xlu0 %v7585, 16
      %v7603 = vpop.permute.xlu0 %7602
      %v7604 = vsel %vm1260, %v7593, %v7595
      %v7605 = vsel %vm1260, %v7595, %v7597
      %v7606 = vsel %vm1260, %v7599, %v7601
      %v7607 = vsel %vm1260, %v7601, %v7603
      %7612 = vst [vmem:[#allocation2 + $0x8] sm:$0xff] %v7604
      %7613 = vst [vmem:[#allocation2 + $0x10] sm:$0xff] %v7605
      %7614 = vst [vmem:[#allocation2 + $0x28] sm:$0xff] %v7606
      %7615 = vst [vmem:[#allocation2 + $0x30] sm:$0xff] %v7607
      %7616 = vst [vmem:[#allocation2 + $0x48] sm:$0xff] %v7132
      %7617 = vst [vmem:[#allocation2 + $0x50] sm:$0xff] %v7133
      %7618 = vst [vmem:[#allocation2 + $0x68] sm:$0xff] %v7134
      %7619 = vst [vmem:[#allocation2 + $0x70] sm:$0xff] %v7135
      %s7620 = scalar_lea.vmem %s6, 64
      %v7621 = vld [vmem:[%s7620] sm:$0xff]
      %v7622 = vld [vmem:[%s7620 + $0x8] sm:$0xff]
      %v7623 = vld [vmem:[%s7620 + $0x10] sm:$0xff]
      %v7624 = vld [vmem:[%s7620 + $0x18] sm:$0xff]
      %v7625 = vld [vmem:[#allocation2] sm:$0xff]
      %v7626 = vld [vmem:[#allocation2 + $0x8] sm:$0xff]
      %v7627 = vld [vmem:[#allocation2 + $0x10] sm:$0xff]
      %v7628 = vld [vmem:[#allocation2 + $0x20] sm:$0xff]
      %v7629 = vld [vmem:[#allocation2 + $0x28] sm:$0xff]
      %v7630 = vld [vmem:[#allocation2 + $0x30] sm:$0xff]
      %v7631 = vld [vmem:[#allocation2 + $0x40] sm:$0xff]
      %v7632 = vld [vmem:[#allocation2 + $0x48] sm:$0xff]
      %v7633 = vld [vmem:[#allocation2 + $0x50] sm:$0xff]
      %v7634 = vld [vmem:[#allocation2 + $0x60] sm:$0xff]
      %v7635 = vld [vmem:[#allocation2 + $0x68] sm:$0xff]
      %v7636 = vld [vmem:[#allocation2 + $0x70] sm:$0xff]
      %7638 = vset.pattern.permute.xlu0 0
      %7639 = vperm.xlu0 %7638, %v7621
      %v7640 = vpop.permute.xlu0 %7639
      %7643 = vset.pattern.permute.xlu0 0
      %7644 = vperm.xlu0 %7643, %v7622
      %v7645 = vpop.permute.xlu0 %7644
      %7648 = vset.pattern.permute.xlu0 0
      %7649 = vperm.xlu0 %7648, %v7623
      %v7650 = vpop.permute.xlu0 %7649
      %7653 = vset.pattern.permute.xlu0 0
      %7654 = vperm.xlu0 %7653, %v7624
      %v7655 = vpop.permute.xlu0 %7654
      %v7657 = vmul.f32 %v7625, %v7640
      %v7658 = vmul.f32 %v7626, %v7640
      %v7659 = vmul.f32 %v7627, %v7640
      %v7660 = vmul.f32 %v7628, %v7645
      %v7661 = vmul.f32 %v7629, %v7645
      %v7662 = vmul.f32 %v7630, %v7645
      %v7663 = vmul.f32 %v7631, %v7650
      %v7664 = vmul.f32 %v7632, %v7650
      %v7665 = vmul.f32 %v7633, %v7650
      %v7666 = vmul.f32 %v7634, %v7655
      %v7667 = vmul.f32 %v7635, %v7655
      %v7668 = vmul.f32 %v7636, %v7655
      %7669 = vset.pattern.permute.xlu0 1
      %7670 = vperm.xlu0 %7669, %v7621
      %v7671 = vpop.permute.xlu0 %7670
      %7673 = vset.pattern.permute.xlu0 1
      %7674 = vperm.xlu0 %7673, %v7622
      %v7675 = vpop.permute.xlu0 %7674
      %7677 = vset.pattern.permute.xlu0 1
      %7678 = vperm.xlu0 %7677, %v7623
      %v7679 = vpop.permute.xlu0 %7678
      %7681 = vset.pattern.permute.xlu0 1
      %7682 = vperm.xlu0 %7681, %v7624
      %v7683 = vpop.permute.xlu0 %7682
      %v7685 = vmul.f32 %v7625, %v7671
      %v7686 = vmul.f32 %v7626, %v7671
      %v7687 = vmul.f32 %v7627, %v7671
      %v7688 = vmul.f32 %v7628, %v7675
      %v7689 = vmul.f32 %v7629, %v7675
      %v7690 = vmul.f32 %v7630, %v7675
      %v7691 = vmul.f32 %v7631, %v7679
      %v7692 = vmul.f32 %v7632, %v7679
      %v7693 = vmul.f32 %v7633, %v7679
      %v7694 = vmul.f32 %v7634, %v7683
      %v7695 = vmul.f32 %v7635, %v7683
      %v7696 = vmul.f32 %v7636, %v7683
      %7697 = vset.pattern.permute.xlu0 2
      %7698 = vperm.xlu0 %7697, %v7621
      %v7699 = vpop.permute.xlu0 %7698
      %7701 = vset.pattern.permute.xlu0 2
      %7702 = vperm.xlu0 %7701, %v7622
      %v7703 = vpop.permute.xlu0 %7702
      %7705 = vset.pattern.permute.xlu0 2
      %7706 = vperm.xlu0 %7705, %v7623
      %v7707 = vpop.permute.xlu0 %7706
      %7709 = vset.pattern.permute.xlu0 2
      %7710 = vperm.xlu0 %7709, %v7624
      %v7711 = vpop.permute.xlu0 %7710
      %v7713 = vmul.f32 %v7625, %v7699
      %v7714 = vmul.f32 %v7626, %v7699
      %v7715 = vmul.f32 %v7627, %v7699
      %v7716 = vmul.f32 %v7628, %v7703
      %v7717 = vmul.f32 %v7629, %v7703
      %v7718 = vmul.f32 %v7630, %v7703
      %v7719 = vmul.f32 %v7631, %v7707
      %v7720 = vmul.f32 %v7632, %v7707
      %v7721 = vmul.f32 %v7633, %v7707
      %v7722 = vmul.f32 %v7634, %v7711
      %v7723 = vmul.f32 %v7635, %v7711
      %v7724 = vmul.f32 %v7636, %v7711
      %7725 = vset.pattern.permute.xlu0 3
      %7726 = vperm.xlu0 %7725, %v7621
      %v7727 = vpop.permute.xlu0 %7726
      %7729 = vset.pattern.permute.xlu0 3
      %7730 = vperm.xlu0 %7729, %v7622
      %v7731 = vpop.permute.xlu0 %7730
      %7733 = vset.pattern.permute.xlu0 3
      %7734 = vperm.xlu0 %7733, %v7623
      %v7735 = vpop.permute.xlu0 %7734
      %7737 = vset.pattern.permute.xlu0 3
      %7738 = vperm.xlu0 %7737, %v7624
      %v7739 = vpop.permute.xlu0 %7738
      %v7741 = vmul.f32 %v7625, %v7727
      %v7742 = vmul.f32 %v7626, %v7727
      %v7743 = vmul.f32 %v7627, %v7727
      %v7744 = vmul.f32 %v7628, %v7731
      %v7745 = vmul.f32 %v7629, %v7731
      %v7746 = vmul.f32 %v7630, %v7731
      %v7747 = vmul.f32 %v7631, %v7735
      %v7748 = vmul.f32 %v7632, %v7735
      %v7749 = vmul.f32 %v7633, %v7735
      %v7750 = vmul.f32 %v7634, %v7739
      %v7751 = vmul.f32 %v7635, %v7739
      %v7752 = vmul.f32 %v7636, %v7739
      %7765 = vrot.lane.b32.xlu0 %v7741, 112
      %v7766 = vpop.permute.xlu0 %7765
      %7767 = vrot.lane.b32.xlu0 %v7742, 112
      %v7768 = vpop.permute.xlu0 %7767
      %7769 = vrot.lane.b32.xlu0 %v7743, 112
      %v7770 = vpop.permute.xlu0 %7769
      %7771 = vrot.lane.b32.xlu0 %v7744, 112
      %v7772 = vpop.permute.xlu0 %7771
      %7773 = vrot.lane.b32.xlu0 %v7745, 112
      %v7774 = vpop.permute.xlu0 %7773
      %7775 = vrot.lane.b32.xlu0 %v7746, 112
      %v7776 = vpop.permute.xlu0 %7775
      %7777 = vrot.lane.b32.xlu0 %v7747, 112
      %v7778 = vpop.permute.xlu0 %7777
      %7779 = vrot.lane.b32.xlu0 %v7748, 112
      %v7780 = vpop.permute.xlu0 %7779
      %7781 = vrot.lane.b32.xlu0 %v7749, 112
      %v7782 = vpop.permute.xlu0 %7781
      %7783 = vrot.lane.b32.xlu0 %v7750, 112
      %v7784 = vpop.permute.xlu0 %7783
      %7785 = vrot.lane.b32.xlu0 %v7751, 112
      %v7786 = vpop.permute.xlu0 %7785
      %7787 = vrot.lane.b32.xlu0 %v7752, 112
      %v7788 = vpop.permute.xlu0 %7787
      %v7789 = vsel %vm846, %v7766, %v7768
      %v7790 = vsel %vm846, %v7768, %v7770
      %v7791 = vsel %vm846, %v7772, %v7774
      %v7792 = vsel %vm846, %v7774, %v7776
      %v7793 = vsel %vm846, %v7778, %v7780
      %v7794 = vsel %vm846, %v7780, %v7782
      %v7795 = vsel %vm846, %v7784, %v7786
      %v7796 = vsel %vm846, %v7786, %v7788
      %v7809 = vadd.f32 %v7657, %v7789
      %v7810 = vadd.f32 %v7658, %v7790
      %v7811 = vadd.f32 %v7659, %v7770
      %v7812 = vadd.f32 %v7660, %v7791
      %v7813 = vadd.f32 %v7661, %v7792
      %v7814 = vadd.f32 %v7662, %v7776
      %v7815 = vadd.f32 %v7663, %v7793
      %v7816 = vadd.f32 %v7664, %v7794
      %v7817 = vadd.f32 %v7665, %v7782
      %v7818 = vadd.f32 %v7666, %v7795
      %v7819 = vadd.f32 %v7667, %v7796
      %v7820 = vadd.f32 %v7668, %v7788
      %7821 = vset.pattern.permute.xlu0 4
      %7822 = vperm.xlu0 %7821, %v7621
      %v7823 = vpop.permute.xlu0 %7822
      %7825 = vset.pattern.permute.xlu0 4
      %7826 = vperm.xlu0 %7825, %v7622
      %v7827 = vpop.permute.xlu0 %7826
      %7829 = vset.pattern.permute.xlu0 4
      %7830 = vperm.xlu0 %7829, %v7623
      %v7831 = vpop.permute.xlu0 %7830
      %7833 = vset.pattern.permute.xlu0 4
      %7834 = vperm.xlu0 %7833, %v7624
      %v7835 = vpop.permute.xlu0 %7834
      %v7837 = vmul.f32 %v7626, %v7823
      %v7838 = vmul.f32 %v7627, %v7823
      %v7839 = vmul.f32 %v7629, %v7827
      %v7840 = vmul.f32 %v7630, %v7827
      %v7841 = vmul.f32 %v7632, %v7831
      %v7842 = vmul.f32 %v7633, %v7831
      %v7843 = vmul.f32 %v7635, %v7835
      %v7844 = vmul.f32 %v7636, %v7835
      %7853 = vrot.lane.b32.xlu0 %v7837, 112
      %v7854 = vpop.permute.xlu0 %7853
      %7855 = vrot.lane.b32.xlu0 %v7838, 112
      %v7856 = vpop.permute.xlu0 %7855
      %7857 = vrot.lane.b32.xlu0 %v7839, 112
      %v7858 = vpop.permute.xlu0 %7857
      %7859 = vrot.lane.b32.xlu0 %v7840, 112
      %v7860 = vpop.permute.xlu0 %7859
      %7861 = vrot.lane.b32.xlu0 %v7841, 112
      %v7862 = vpop.permute.xlu0 %7861
      %7863 = vrot.lane.b32.xlu0 %v7842, 112
      %v7864 = vpop.permute.xlu0 %7863
      %7865 = vrot.lane.b32.xlu0 %v7843, 112
      %v7866 = vpop.permute.xlu0 %7865
      %7867 = vrot.lane.b32.xlu0 %v7844, 112
      %v7868 = vpop.permute.xlu0 %7867
      %v7869 = vsel %vm846, %v7854, %v7856
      %v7870 = vsel %vm846, %v7858, %v7860
      %v7871 = vsel %vm846, %v7862, %v7864
      %v7872 = vsel %vm846, %v7866, %v7868
      %v7885 = vadd.f32 %v7685, %v7854
      %v7886 = vadd.f32 %v7686, %v7869
      %v7887 = vadd.f32 %v7687, %v7856
      %v7888 = vadd.f32 %v7688, %v7858
      %v7889 = vadd.f32 %v7689, %v7870
      %v7890 = vadd.f32 %v7690, %v7860
      %v7891 = vadd.f32 %v7691, %v7862
      %v7892 = vadd.f32 %v7692, %v7871
      %v7893 = vadd.f32 %v7693, %v7864
      %v7894 = vadd.f32 %v7694, %v7866
      %v7895 = vadd.f32 %v7695, %v7872
      %v7896 = vadd.f32 %v7696, %v7868
      %v7897 = vld [vmem:[#allocation2 + $0x8] sm:$0xff]
      %v7898 = vld [vmem:[#allocation2 + $0x10] sm:$0xff]
      %v7899 = vld [vmem:[#allocation2 + $0x18] sm:$0xff]
      %v7900 = vld [vmem:[#allocation2 + $0x28] sm:$0xff]
      %v7901 = vld [vmem:[#allocation2 + $0x30] sm:$0xff]
      %v7902 = vld [vmem:[#allocation2 + $0x38] sm:$0xff]
      %v7903 = vld [vmem:[#allocation2 + $0x48] sm:$0xff]
      %v7904 = vld [vmem:[#allocation2 + $0x50] sm:$0xff]
      %v7905 = vld [vmem:[#allocation2 + $0x58] sm:$0xff]
      %v7906 = vld [vmem:[#allocation2 + $0x68] sm:$0xff]
      %v7907 = vld [vmem:[#allocation2 + $0x70] sm:$0xff]
      %v7908 = vld [vmem:[#allocation2 + $0x78] sm:$0xff]
      %7909 = vset.pattern.permute.xlu0 5
      %7910 = vperm.xlu0 %7909, %v7621
      %v7911 = vpop.permute.xlu0 %7910
      %7913 = vset.pattern.permute.xlu0 5
      %7914 = vperm.xlu0 %7913, %v7622
      %v7915 = vpop.permute.xlu0 %7914
      %7917 = vset.pattern.permute.xlu0 5
      %7918 = vperm.xlu0 %7917, %v7623
      %v7919 = vpop.permute.xlu0 %7918
      %7921 = vset.pattern.permute.xlu0 5
      %7922 = vperm.xlu0 %7921, %v7624
      %v7923 = vpop.permute.xlu0 %7922
      %v7925 = vmul.f32 %v7897, %v7911
      %v7926 = vmul.f32 %v7898, %v7911
      %v7927 = vmul.f32 %v7899, %v7911
      %v7928 = vmul.f32 %v7900, %v7915
      %v7929 = vmul.f32 %v7901, %v7915
      %v7930 = vmul.f32 %v7902, %v7915
      %v7931 = vmul.f32 %v7903, %v7919
      %v7932 = vmul.f32 %v7904, %v7919
      %v7933 = vmul.f32 %v7905, %v7919
      %v7934 = vmul.f32 %v7906, %v7923
      %v7935 = vmul.f32 %v7907, %v7923
      %v7936 = vmul.f32 %v7908, %v7923
      %7949 = vrot.lane.b32.xlu0 %v7925, 112
      %v7950 = vpop.permute.xlu0 %7949
      %7951 = vrot.lane.b32.xlu0 %v7926, 112
      %v7952 = vpop.permute.xlu0 %7951
      %7953 = vrot.lane.b32.xlu0 %v7927, 112
      %v7954 = vpop.permute.xlu0 %7953
      %7955 = vrot.lane.b32.xlu0 %v7928, 112
      %v7956 = vpop.permute.xlu0 %7955
      %7957 = vrot.lane.b32.xlu0 %v7929, 112
      %v7958 = vpop.permute.xlu0 %7957
      %7959 = vrot.lane.b32.xlu0 %v7930, 112
      %v7960 = vpop.permute.xlu0 %7959
      %7961 = vrot.lane.b32.xlu0 %v7931, 112
      %v7962 = vpop.permute.xlu0 %7961
      %7963 = vrot.lane.b32.xlu0 %v7932, 112
      %v7964 = vpop.permute.xlu0 %7963
      %7965 = vrot.lane.b32.xlu0 %v7933, 112
      %v7966 = vpop.permute.xlu0 %7965
      %7967 = vrot.lane.b32.xlu0 %v7934, 112
      %v7968 = vpop.permute.xlu0 %7967
      %7969 = vrot.lane.b32.xlu0 %v7935, 112
      %v7970 = vpop.permute.xlu0 %7969
      %7971 = vrot.lane.b32.xlu0 %v7936, 112
      %v7972 = vpop.permute.xlu0 %7971
      %v7973 = vsel %vm846, %v7950, %v7952
      %v7974 = vsel %vm846, %v7952, %v7954
      %v7975 = vsel %vm846, %v7956, %v7958
      %v7976 = vsel %vm846, %v7958, %v7960
      %v7977 = vsel %vm846, %v7962, %v7964
      %v7978 = vsel %vm846, %v7964, %v7966
      %v7979 = vsel %vm846, %v7968, %v7970
      %v7980 = vsel %vm846, %v7970, %v7972
      %v7993 = vadd.f32 %v7713, %v7950
      %v7994 = vadd.f32 %v7714, %v7973
      %v7995 = vadd.f32 %v7715, %v7974
      %v7996 = vadd.f32 %v7716, %v7956
      %v7997 = vadd.f32 %v7717, %v7975
      %v7998 = vadd.f32 %v7718, %v7976
      %v7999 = vadd.f32 %v7719, %v7962
      %v8000 = vadd.f32 %v7720, %v7977
      %v8001 = vadd.f32 %v7721, %v7978
      %v8002 = vadd.f32 %v7722, %v7968
      %v8003 = vadd.f32 %v7723, %v7979
      %v8004 = vadd.f32 %v7724, %v7980
      %8005 = vset.pattern.permute.xlu0 6
      %8006 = vperm.xlu0 %8005, %v7621
      %v8007 = vpop.permute.xlu0 %8006
      %8009 = vset.pattern.permute.xlu0 6
      %8010 = vperm.xlu0 %8009, %v7622
      %v8011 = vpop.permute.xlu0 %8010
      %8013 = vset.pattern.permute.xlu0 6
      %8014 = vperm.xlu0 %8013, %v7623
      %v8015 = vpop.permute.xlu0 %8014
      %8017 = vset.pattern.permute.xlu0 6
      %8018 = vperm.xlu0 %8017, %v7624
      %v8019 = vpop.permute.xlu0 %8018
      %v8021 = vmul.f32 %v7897, %v8007
      %v8022 = vmul.f32 %v7898, %v8007
      %v8023 = vmul.f32 %v7899, %v8007
      %v8024 = vmul.f32 %v7900, %v8011
      %v8025 = vmul.f32 %v7901, %v8011
      %v8026 = vmul.f32 %v7902, %v8011
      %v8027 = vmul.f32 %v7903, %v8015
      %v8028 = vmul.f32 %v7904, %v8015
      %v8029 = vmul.f32 %v7905, %v8015
      %v8030 = vmul.f32 %v7906, %v8019
      %v8031 = vmul.f32 %v7907, %v8019
      %v8032 = vmul.f32 %v7908, %v8019
      %8045 = vrot.lane.b32.xlu0 %v8021, 96
      %v8046 = vpop.permute.xlu0 %8045
      %8047 = vrot.lane.b32.xlu0 %v8022, 96
      %v8048 = vpop.permute.xlu0 %8047
      %8049 = vrot.lane.b32.xlu0 %v8023, 96
      %v8050 = vpop.permute.xlu0 %8049
      %8051 = vrot.lane.b32.xlu0 %v8024, 96
      %v8052 = vpop.permute.xlu0 %8051
      %8053 = vrot.lane.b32.xlu0 %v8025, 96
      %v8054 = vpop.permute.xlu0 %8053
      %8055 = vrot.lane.b32.xlu0 %v8026, 96
      %v8056 = vpop.permute.xlu0 %8055
      %8057 = vrot.lane.b32.xlu0 %v8027, 96
      %v8058 = vpop.permute.xlu0 %8057
      %8059 = vrot.lane.b32.xlu0 %v8028, 96
      %v8060 = vpop.permute.xlu0 %8059
      %8061 = vrot.lane.b32.xlu0 %v8029, 96
      %v8062 = vpop.permute.xlu0 %8061
      %8063 = vrot.lane.b32.xlu0 %v8030, 96
      %v8064 = vpop.permute.xlu0 %8063
      %8065 = vrot.lane.b32.xlu0 %v8031, 96
      %v8066 = vpop.permute.xlu0 %8065
      %8067 = vrot.lane.b32.xlu0 %v8032, 96
      %v8068 = vpop.permute.xlu0 %8067
      %v8069 = vsel %vm987, %v8046, %v8048
      %v8070 = vsel %vm987, %v8048, %v8050
      %v8071 = vsel %vm987, %v8052, %v8054
      %v8072 = vsel %vm987, %v8054, %v8056
      %v8073 = vsel %vm987, %v8058, %v8060
      %v8074 = vsel %vm987, %v8060, %v8062
      %v8075 = vsel %vm987, %v8064, %v8066
      %v8076 = vsel %vm987, %v8066, %v8068
      %v8089 = vadd.f32 %v7809, %v8046
      %v8090 = vadd.f32 %v7810, %v8069
      %v8091 = vadd.f32 %v7811, %v8070
      %v8092 = vadd.f32 %v7812, %v8052
      %v8093 = vadd.f32 %v7813, %v8071
      %v8094 = vadd.f32 %v7814, %v8072
      %v8095 = vadd.f32 %v7815, %v8058
      %v8096 = vadd.f32 %v7816, %v8073
      %v8097 = vadd.f32 %v7817, %v8074
      %v8098 = vadd.f32 %v7818, %v8064
      %v8099 = vadd.f32 %v7819, %v8075
      %v8100 = vadd.f32 %v7820, %v8076
      %8101 = vset.pattern.permute.xlu0 7
      %8102 = vperm.xlu0 %8101, %v7621
      %v8103 = vpop.permute.xlu0 %8102
      %8105 = vset.pattern.permute.xlu0 7
      %8106 = vperm.xlu0 %8105, %v7622
      %v8107 = vpop.permute.xlu0 %8106
      %8109 = vset.pattern.permute.xlu0 7
      %8110 = vperm.xlu0 %8109, %v7623
      %v8111 = vpop.permute.xlu0 %8110
      %8113 = vset.pattern.permute.xlu0 7
      %8114 = vperm.xlu0 %8113, %v7624
      %v8115 = vpop.permute.xlu0 %8114
      %v8117 = vmul.f32 %v7897, %v8103
      %v8118 = vmul.f32 %v7898, %v8103
      %v8119 = vmul.f32 %v7899, %v8103
      %v8120 = vmul.f32 %v7900, %v8107
      %v8121 = vmul.f32 %v7901, %v8107
      %v8122 = vmul.f32 %v7902, %v8107
      %v8123 = vmul.f32 %v7903, %v8111
      %v8124 = vmul.f32 %v7904, %v8111
      %v8125 = vmul.f32 %v7905, %v8111
      %v8126 = vmul.f32 %v7906, %v8115
      %v8127 = vmul.f32 %v7907, %v8115
      %v8128 = vmul.f32 %v7908, %v8115
      %8141 = vrot.lane.b32.xlu0 %v8117, 96
      %v8142 = vpop.permute.xlu0 %8141
      %8143 = vrot.lane.b32.xlu0 %v8118, 96
      %v8144 = vpop.permute.xlu0 %8143
      %8145 = vrot.lane.b32.xlu0 %v8119, 96
      %v8146 = vpop.permute.xlu0 %8145
      %8147 = vrot.lane.b32.xlu0 %v8120, 96
      %v8148 = vpop.permute.xlu0 %8147
      %8149 = vrot.lane.b32.xlu0 %v8121, 96
      %v8150 = vpop.permute.xlu0 %8149
      %8151 = vrot.lane.b32.xlu0 %v8122, 96
      %v8152 = vpop.permute.xlu0 %8151
      %8153 = vrot.lane.b32.xlu0 %v8123, 96
      %v8154 = vpop.permute.xlu0 %8153
      %8155 = vrot.lane.b32.xlu0 %v8124, 96
      %v8156 = vpop.permute.xlu0 %8155
      %8157 = vrot.lane.b32.xlu0 %v8125, 96
      %v8158 = vpop.permute.xlu0 %8157
      %8159 = vrot.lane.b32.xlu0 %v8126, 96
      %v8160 = vpop.permute.xlu0 %8159
      %8161 = vrot.lane.b32.xlu0 %v8127, 96
      %v8162 = vpop.permute.xlu0 %8161
      %8163 = vrot.lane.b32.xlu0 %v8128, 96
      %v8164 = vpop.permute.xlu0 %8163
      %v8165 = vsel %vm987, %v8142, %v8144
      %v8166 = vsel %vm987, %v8144, %v8146
      %v8167 = vsel %vm987, %v8148, %v8150
      %v8168 = vsel %vm987, %v8150, %v8152
      %v8169 = vsel %vm987, %v8154, %v8156
      %v8170 = vsel %vm987, %v8156, %v8158
      %v8171 = vsel %vm987, %v8160, %v8162
      %v8172 = vsel %vm987, %v8162, %v8164
      %v8185 = vadd.f32 %v7885, %v8142
      %v8186 = vadd.f32 %v7886, %v8165
      %v8187 = vadd.f32 %v7887, %v8166
      %v8188 = vadd.f32 %v7888, %v8148
      %v8189 = vadd.f32 %v7889, %v8167
      %v8190 = vadd.f32 %v7890, %v8168
      %v8191 = vadd.f32 %v7891, %v8154
      %v8192 = vadd.f32 %v7892, %v8169
      %v8193 = vadd.f32 %v7893, %v8170
      %v8194 = vadd.f32 %v7894, %v8160
      %v8195 = vadd.f32 %v7895, %v8171
      %v8196 = vadd.f32 %v7896, %v8172
      %8197 = vset.pattern.permute.xlu0 8
      %8198 = vperm.xlu0 %8197, %v7621
      %v8199 = vpop.permute.xlu0 %8198
      %8201 = vset.pattern.permute.xlu0 8
      %8202 = vperm.xlu0 %8201, %v7622
      %v8203 = vpop.permute.xlu0 %8202
      %8205 = vset.pattern.permute.xlu0 8
      %8206 = vperm.xlu0 %8205, %v7623
      %v8207 = vpop.permute.xlu0 %8206
      %8209 = vset.pattern.permute.xlu0 8
      %8210 = vperm.xlu0 %8209, %v7624
      %v8211 = vpop.permute.xlu0 %8210
      %v8213 = vmul.f32 %v7897, %v8199
      %v8214 = vmul.f32 %v7898, %v8199
      %v8215 = vmul.f32 %v7899, %v8199
      %v8216 = vmul.f32 %v7900, %v8203
      %v8217 = vmul.f32 %v7901, %v8203
      %v8218 = vmul.f32 %v7902, %v8203
      %v8219 = vmul.f32 %v7903, %v8207
      %v8220 = vmul.f32 %v7904, %v8207
      %v8221 = vmul.f32 %v7905, %v8207
      %v8222 = vmul.f32 %v7906, %v8211
      %v8223 = vmul.f32 %v7907, %v8211
      %v8224 = vmul.f32 %v7908, %v8211
      %8237 = vrot.lane.b32.xlu0 %v8213, 96
      %v8238 = vpop.permute.xlu0 %8237
      %8239 = vrot.lane.b32.xlu0 %v8214, 96
      %v8240 = vpop.permute.xlu0 %8239
      %8241 = vrot.lane.b32.xlu0 %v8215, 96
      %v8242 = vpop.permute.xlu0 %8241
      %8243 = vrot.lane.b32.xlu0 %v8216, 96
      %v8244 = vpop.permute.xlu0 %8243
      %8245 = vrot.lane.b32.xlu0 %v8217, 96
      %v8246 = vpop.permute.xlu0 %8245
      %8247 = vrot.lane.b32.xlu0 %v8218, 96
      %v8248 = vpop.permute.xlu0 %8247
      %8249 = vrot.lane.b32.xlu0 %v8219, 96
      %v8250 = vpop.permute.xlu0 %8249
      %8251 = vrot.lane.b32.xlu0 %v8220, 96
      %v8252 = vpop.permute.xlu0 %8251
      %8253 = vrot.lane.b32.xlu0 %v8221, 96
      %v8254 = vpop.permute.xlu0 %8253
      %8255 = vrot.lane.b32.xlu0 %v8222, 96
      %v8256 = vpop.permute.xlu0 %8255
      %8257 = vrot.lane.b32.xlu0 %v8223, 96
      %v8258 = vpop.permute.xlu0 %8257
      %8259 = vrot.lane.b32.xlu0 %v8224, 96
      %v8260 = vpop.permute.xlu0 %8259
      %v8261 = vsel %vm987, %v8238, %v8240
      %v8262 = vsel %vm987, %v8240, %v8242
      %v8263 = vsel %vm987, %v8244, %v8246
      %v8264 = vsel %vm987, %v8246, %v8248
      %v8265 = vsel %vm987, %v8250, %v8252
      %v8266 = vsel %vm987, %v8252, %v8254
      %v8267 = vsel %vm987, %v8256, %v8258
      %v8268 = vsel %vm987, %v8258, %v8260
      %v8281 = vadd.f32 %v7993, %v8238
      %v8282 = vadd.f32 %v7994, %v8261
      %v8283 = vadd.f32 %v7995, %v8262
      %v8284 = vadd.f32 %v7996, %v8244
      %v8285 = vadd.f32 %v7997, %v8263
      %v8286 = vadd.f32 %v7998, %v8264
      %v8287 = vadd.f32 %v7999, %v8250
      %v8288 = vadd.f32 %v8000, %v8265
      %v8289 = vadd.f32 %v8001, %v8266
      %v8290 = vadd.f32 %v8002, %v8256
      %v8291 = vadd.f32 %v8003, %v8267
      %v8292 = vadd.f32 %v8004, %v8268
      %v8293 = vmul.f32 %v8089, %v1110
      %v8294 = vmul.f32 %v8090, %v1114
      %v8295 = vmul.f32 %v8091, %v1112
      %v8296 = vmul.f32 %v8092, %v1110
      %v8297 = vmul.f32 %v8093, %v1114
      %v8298 = vmul.f32 %v8094, %v1112
      %v8299 = vmul.f32 %v8095, %v1110
      %v8300 = vmul.f32 %v8096, %v1114
      %v8301 = vmul.f32 %v8097, %v1112
      %v8302 = vmul.f32 %v8098, %v1110
      %v8303 = vmul.f32 %v8099, %v1114
      %v8304 = vmul.f32 %v8100, %v1112
      %8317 = vrot.lane.b32.xlu0 %v8293, 1
      %v8318 = vpop.permute.xlu0 %8317
      %8319 = vrot.lane.b32.xlu0 %v8294, 1
      %v8320 = vpop.permute.xlu0 %8319
      %8321 = vrot.lane.b32.xlu0 %v8295, 1
      %v8322 = vpop.permute.xlu0 %8321
      %8323 = vrot.lane.b32.xlu0 %v8296, 1
      %v8324 = vpop.permute.xlu0 %8323
      %8325 = vrot.lane.b32.xlu0 %v8297, 1
      %v8326 = vpop.permute.xlu0 %8325
      %8327 = vrot.lane.b32.xlu0 %v8298, 1
      %v8328 = vpop.permute.xlu0 %8327
      %8329 = vrot.lane.b32.xlu0 %v8299, 1
      %v8330 = vpop.permute.xlu0 %8329
      %8331 = vrot.lane.b32.xlu0 %v8300, 1
      %v8332 = vpop.permute.xlu0 %8331
      %8333 = vrot.lane.b32.xlu0 %v8301, 1
      %v8334 = vpop.permute.xlu0 %8333
      %8335 = vrot.lane.b32.xlu0 %v8302, 1
      %v8336 = vpop.permute.xlu0 %8335
      %8337 = vrot.lane.b32.xlu0 %v8303, 1
      %v8338 = vpop.permute.xlu0 %8337
      %8339 = vrot.lane.b32.xlu0 %v8304, 1
      %v8340 = vpop.permute.xlu0 %8339
      %v8341 = vsel %vm1142, %v8318, %v8320
      %v8342 = vsel %vm1142, %v8320, %v8322
      %v8343 = vsel %vm1142, %v8324, %v8326
      %v8344 = vsel %vm1142, %v8326, %v8328
      %v8345 = vsel %vm1142, %v8330, %v8332
      %v8346 = vsel %vm1142, %v8332, %v8334
      %v8347 = vsel %vm1142, %v8336, %v8338
      %v8348 = vsel %vm1142, %v8338, %v8340
      %v8361 = vadd.f32 %v8185, %v8318
      %v8362 = vadd.f32 %v8186, %v8341
      %v8363 = vadd.f32 %v8187, %v8342
      %v8364 = vadd.f32 %v8188, %v8324
      %v8365 = vadd.f32 %v8189, %v8343
      %v8366 = vadd.f32 %v8190, %v8344
      %v8367 = vadd.f32 %v8191, %v8330
      %v8368 = vadd.f32 %v8192, %v8345
      %v8369 = vadd.f32 %v8193, %v8346
      %v8370 = vadd.f32 %v8194, %v8336
      %v8371 = vadd.f32 %v8195, %v8347
      %v8372 = vadd.f32 %v8196, %v8348
      %v8373 = vmul.f32 %v8281, %v1169
      %v8374 = vmul.f32 %v8282, %v1173
      %v8375 = vmul.f32 %v8283, %v1171
      %v8376 = vmul.f32 %v8284, %v1169
      %v8377 = vmul.f32 %v8285, %v1173
      %v8378 = vmul.f32 %v8286, %v1171
      %v8379 = vmul.f32 %v8287, %v1169
      %v8380 = vmul.f32 %v8288, %v1173
      %v8381 = vmul.f32 %v8289, %v1171
      %v8382 = vmul.f32 %v8290, %v1169
      %v8383 = vmul.f32 %v8291, %v1173
      %v8384 = vmul.f32 %v8292, %v1171
      %8397 = vrot.lane.b32.xlu0 %v8373, 127
      %v8398 = vpop.permute.xlu0 %8397
      %8399 = vrot.lane.b32.xlu0 %v8374, 127
      %v8400 = vpop.permute.xlu0 %8399
      %8401 = vrot.lane.b32.xlu0 %v8375, 127
      %v8402 = vpop.permute.xlu0 %8401
      %8403 = vrot.lane.b32.xlu0 %v8376, 127
      %v8404 = vpop.permute.xlu0 %8403
      %8405 = vrot.lane.b32.xlu0 %v8377, 127
      %v8406 = vpop.permute.xlu0 %8405
      %8407 = vrot.lane.b32.xlu0 %v8378, 127
      %v8408 = vpop.permute.xlu0 %8407
      %8409 = vrot.lane.b32.xlu0 %v8379, 127
      %v8410 = vpop.permute.xlu0 %8409
      %8411 = vrot.lane.b32.xlu0 %v8380, 127
      %v8412 = vpop.permute.xlu0 %8411
      %8413 = vrot.lane.b32.xlu0 %v8381, 127
      %v8414 = vpop.permute.xlu0 %8413
      %8415 = vrot.lane.b32.xlu0 %v8382, 127
      %v8416 = vpop.permute.xlu0 %8415
      %8417 = vrot.lane.b32.xlu0 %v8383, 127
      %v8418 = vpop.permute.xlu0 %8417
      %8419 = vrot.lane.b32.xlu0 %v8384, 127
      %v8420 = vpop.permute.xlu0 %8419
      %v8421 = vsel %vm1201, %v8398, %v8400
      %v8422 = vsel %vm1201, %v8400, %v8402
      %v8423 = vsel %vm1201, %v8404, %v8406
      %v8424 = vsel %vm1201, %v8406, %v8408
      %v8425 = vsel %vm1201, %v8410, %v8412
      %v8426 = vsel %vm1201, %v8412, %v8414
      %v8427 = vsel %vm1201, %v8416, %v8418
      %v8428 = vsel %vm1201, %v8418, %v8420
      %v8441 = vadd.f32 %v8361, %v8421
      %v8442 = vadd.f32 %v8362, %v8422
      %v8443 = vadd.f32 %v8363, %v8402
      %v8444 = vadd.f32 %v8364, %v8423
      %v8445 = vadd.f32 %v8365, %v8424
      %v8446 = vadd.f32 %v8366, %v8408
      %v8447 = vadd.f32 %v8367, %v8425
      %v8448 = vadd.f32 %v8368, %v8426
      %v8449 = vadd.f32 %v8369, %v8414
      %v8450 = vadd.f32 %v8370, %v8427
      %v8451 = vadd.f32 %v8371, %v8428
      %v8452 = vadd.f32 %v8372, %v8420
      %s8453 = scalar_lea.vmem %s7, 32
      %v8454 = vld [vmem:[%s8453] sm:$0xff]
      %v8455 = vld [vmem:[%s8453 + $0x8] sm:$0xff]
      %s8456 = scalar_lea.vmem %s8, 32
      %v8457 = vld [vmem:[%s8456] sm:$0xff]
      %v8458 = vld [vmem:[%s8456 + $0x8] sm:$0xff]
      %8460 = vset.pattern.permute.xlu0 0
      %8461 = vperm.xlu0 %8460, %v8457
      %v8462 = vpop.permute.xlu0 %8461
      %8465 = vset.pattern.permute.xlu0 0
      %8466 = vperm.xlu0 %8465, %v8458
      %v8467 = vpop.permute.xlu0 %8466
      %8481 = vrot.lane.b32.xlu0 %v8441, 16
      %v8482 = vpop.permute.xlu0 %8481
      %8483 = vrot.lane.b32.xlu0 %v8442, 16
      %v8484 = vpop.permute.xlu0 %8483
      %8485 = vrot.lane.b32.xlu0 %v8443, 16
      %v8486 = vpop.permute.xlu0 %8485
      %8487 = vrot.lane.b32.xlu0 %v8444, 16
      %v8488 = vpop.permute.xlu0 %8487
      %8489 = vrot.lane.b32.xlu0 %v8445, 16
      %v8490 = vpop.permute.xlu0 %8489
      %8491 = vrot.lane.b32.xlu0 %v8446, 16
      %v8492 = vpop.permute.xlu0 %8491
      %8493 = vrot.lane.b32.xlu0 %v8447, 16
      %v8494 = vpop.permute.xlu0 %8493
      %8495 = vrot.lane.b32.xlu0 %v8448, 16
      %v8496 = vpop.permute.xlu0 %8495
      %8497 = vrot.lane.b32.xlu0 %v8449, 16
      %v8498 = vpop.permute.xlu0 %8497
      %8499 = vrot.lane.b32.xlu0 %v8450, 16
      %v8500 = vpop.permute.xlu0 %8499
      %8501 = vrot.lane.b32.xlu0 %v8451, 16
      %v8502 = vpop.permute.xlu0 %8501
      %8503 = vrot.lane.b32.xlu0 %v8452, 16
      %v8504 = vpop.permute.xlu0 %8503
      %v8505 = vsel %vm1260, %v8482, %v8484
      %v8506 = vsel %vm1260, %v8484, %v8486
      %v8507 = vsel %vm1260, %v8488, %v8490
      %v8508 = vsel %vm1260, %v8490, %v8492
      %v8509 = vsel %vm1260, %v8494, %v8496
      %v8510 = vsel %vm1260, %v8496, %v8498
      %v8511 = vsel %vm1260, %v8500, %v8502
      %v8512 = vsel %vm1260, %v8502, %v8504
      %v8522 = vsel %vm2175, %v8454, 0
      %v8525 = vsel %vm2175, %v8455, 0
      %8527 = vmatprep.subr.mxu0 %v8506
      %8528 = vmatpush1.msra.mxu0 %v8505
      %8529 = vmatprep.subr.mxu0 %v8508
      %8530 = vmatpush1.msra.mxu0 %v8507
      %8531 = vmatprep.subr.mxu0 %v8510
      %8532 = vmatpush1.msra.mxu0 %v8509
      %8533 = vmatprep.subr.mxu0 %v8512
      %8534 = vmatpush1.msra.mxu0 %v8511
      %8535 = vmatprep.subr.mxu0 0.0
      %8536 = vmatpush1.msra.mxu0 0.0
      %8537 = vmatprep.subr.mxu0 0.0
      %8538 = vmatpush1.msra.mxu0 0.0
      %8539 = vmatprep.subr.mxu0 0.0
      %8540 = vmatpush1.msra.mxu0 0.0
      %8541 = vmatprep.subr.mxu0 0.0
      %8542 = vmatpush1.msra.mxu0 0.0
      %8543 = vmatprep.subr.mxu0 0.0
      %8544 = vmatpush1.msra.mxu0 0.0
      %8545 = vmatprep.subr.mxu0 0.0
      %8546 = vmatpush1.msra.mxu0 0.0
      %8547 = vmatprep.subr.mxu0 0.0
      %8548 = vmatpush1.msra.mxu0 0.0
      %8549 = vmatprep.subr.mxu0 0.0
      %8550 = vmatpush1.msra.mxu0 0.0
      %8551 = vmatprep.subr.mxu0 0.0
      %8552 = vmatpush1.msra.mxu0 0.0
      %8553 = vmatprep.subr.mxu0 0.0
      %8554 = vmatpush1.msra.mxu0 0.0
      %8555 = vmatprep.subr.mxu0 0.0
      %8556 = vmatpush1.msra.mxu0 0.0
      %8557 = vmatprep.subr.mxu0 0.0
      %8558 = vmatpush1.msra.mxu0 0.0
      %8559 = vmatprep.subr.mxu0 0.0
      %8560 = vmatpush1.msra.mxu0 0.0
      %8561 = vmatprep.subr.mxu0 0.0
      %8562 = vmatpush1.msra.mxu0 0.0
      %8563 = vmatprep.subr.mxu0 0.0
      %8564 = vmatpush1.msra.mxu0 0.0
      %8565 = vmatprep.subr.mxu0 0.0
      %8566 = vmatpush1.msra.mxu0 0.0
      %8567 = vmatprep.subr.mxu0 0.0
      %8568 = vmatpush1.msra.mxu0 0.0
      %8569 = vmatprep.subr.mxu0 0.0
      %8570 = vmatpush1.msra.mxu0 0.0
      %8571 = vmatprep.subr.mxu0 0.0
      %8572 = vmatpush1.msra.mxu0 0.0
      %8573 = vmatprep.subr.mxu0 0.0
      %8574 = vmatpush1.msra.mxu0 0.0
      %8575 = vmatprep.subr.mxu0 0.0
      %8576 = vmatpush1.msra.mxu0 0.0
      %8577 = vmatprep.subr.mxu0 0.0
      %8578 = vmatpush1.msra.mxu0 0.0
      %8579 = vmatprep.subr.mxu0 0.0
      %8580 = vmatpush1.msra.mxu0 0.0
      %8581 = vmatprep.subr.mxu0 0.0
      %8582 = vmatpush1.msra.mxu0 0.0
      %8583 = vmatprep.subr.mxu0 0.0
      %8584 = vmatpush1.msra.mxu0 0.0
      %8585 = vmatprep.subr.mxu0 0.0
      %8586 = vmatpush1.msra.mxu0 0.0
      %8587 = vmatprep.subr.mxu0 0.0
      %8588 = vmatpush1.msra.mxu0 0.0
      %8589 = vmatprep.subr.mxu0 0.0
      %8590 = vmatpush1.msra.mxu0 0.0
      %8591 = vmatprep.mubr.f32.mxu0 0.0
      %8592 = vmatmul.mubr.f32.gmra.mrb[0].mxu0 %v8522
      %v8593 = vpop.f32.mrb[0].mxu0
      %v8594 = vadd.f32 %v8462, %v8593
      %v8595 = vpop.f32.mrb[0].mxu0
      %v8596 = vadd.f32 %v8462, %v8595
      %8597 = vmatprep.mubr.f32.mxu0 0.0
      %8598 = vmatmul.mubr.f32.gmra.mrb[0].mxu0 %v8525
      %v8599 = vpop.f32.mrb[0].mxu0
      %v8600 = vadd.f32 %v8467, %v8599
      %v8601 = vpop.f32.mrb[0].mxu0
      %v8602 = vadd.f32 %v8467, %v8601
      %8603 = vdwg.mxu0
      %v8604 = vmax.f32 %v8594, 0.0
      %v8605 = vmax.f32 %v8596, 0.0
      %v8606 = vmax.f32 %v8600, 0.0
      %v8607 = vmax.f32 %v8602, 0.0
      %8608 = vst [vmem:[#allocation2 + $0x8] sm:$0xff] %v8604
      %8609 = vst [vmem:[#allocation2 + $0x10] sm:$0xff] %v8605
      %8610 = vst [vmem:[#allocation2 + $0x28] sm:$0xff] %v8606
      %8611 = vst [vmem:[#allocation2 + $0x30] sm:$0xff] %v8607
      %8612 = vst [vmem:[#allocation2 + $0x48] sm:$0xff] %v7136
      %8613 = vst [vmem:[#allocation2 + $0x50] sm:$0xff] %v7137
      %8614 = vst [vmem:[#allocation2 + $0x68] sm:$0xff] %v7138
      %8615 = vst [vmem:[#allocation2 + $0x70] sm:$0xff] %v7139
      %s8616 = scalar_lea.vmem %s9, 64
      %v8617 = vld [vmem:[%s8616] sm:$0xff]
      %v8618 = vld [vmem:[%s8616 + $0x8] sm:$0xff]
      %v8619 = vld [vmem:[%s8616 + $0x10] sm:$0xff]
      %v8620 = vld [vmem:[%s8616 + $0x18] sm:$0xff]
      %v8621 = vld [vmem:[#allocation2] sm:$0xff]
      %v8622 = vld [vmem:[#allocation2 + $0x8] sm:$0xff]
      %v8623 = vld [vmem:[#allocation2 + $0x10] sm:$0xff]
      %v8624 = vld [vmem:[#allocation2 + $0x20] sm:$0xff]
      %v8625 = vld [vmem:[#allocation2 + $0x28] sm:$0xff]
      %v8626 = vld [vmem:[#allocation2 + $0x30] sm:$0xff]
      %v8627 = vld [vmem:[#allocation2 + $0x40] sm:$0xff]
      %v8628 = vld [vmem:[#allocation2 + $0x48] sm:$0xff]
      %v8629 = vld [vmem:[#allocation2 + $0x50] sm:$0xff]
      %v8630 = vld [vmem:[#allocation2 + $0x60] sm:$0xff]
      %v8631 = vld [vmem:[#allocation2 + $0x68] sm:$0xff]
      %v8632 = vld [vmem:[#allocation2 + $0x70] sm:$0xff]
      %8634 = vset.pattern.permute.xlu0 0
      %8635 = vperm.xlu0 %8634, %v8617
      %v8636 = vpop.permute.xlu0 %8635
      %8639 = vset.pattern.permute.xlu0 0
      %8640 = vperm.xlu0 %8639, %v8618
      %v8641 = vpop.permute.xlu0 %8640
      %8644 = vset.pattern.permute.xlu0 0
      %8645 = vperm.xlu0 %8644, %v8619
      %v8646 = vpop.permute.xlu0 %8645
      %8649 = vset.pattern.permute.xlu0 0
      %8650 = vperm.xlu0 %8649, %v8620
      %v8651 = vpop.permute.xlu0 %8650
      %v8653 = vmul.f32 %v8621, %v8636
      %v8654 = vmul.f32 %v8622, %v8636
      %v8655 = vmul.f32 %v8623, %v8636
      %v8656 = vmul.f32 %v8624, %v8641
      %v8657 = vmul.f32 %v8625, %v8641
      %v8658 = vmul.f32 %v8626, %v8641
      %v8659 = vmul.f32 %v8627, %v8646
      %v8660 = vmul.f32 %v8628, %v8646
      %v8661 = vmul.f32 %v8629, %v8646
      %v8662 = vmul.f32 %v8630, %v8651
      %v8663 = vmul.f32 %v8631, %v8651
      %v8664 = vmul.f32 %v8632, %v8651
      %8665 = vset.pattern.permute.xlu0 1
      %8666 = vperm.xlu0 %8665, %v8617
      %v8667 = vpop.permute.xlu0 %8666
      %8669 = vset.pattern.permute.xlu0 1
      %8670 = vperm.xlu0 %8669, %v8618
      %v8671 = vpop.permute.xlu0 %8670
      %8673 = vset.pattern.permute.xlu0 1
      %8674 = vperm.xlu0 %8673, %v8619
      %v8675 = vpop.permute.xlu0 %8674
      %8677 = vset.pattern.permute.xlu0 1
      %8678 = vperm.xlu0 %8677, %v8620
      %v8679 = vpop.permute.xlu0 %8678
      %v8681 = vmul.f32 %v8621, %v8667
      %v8682 = vmul.f32 %v8622, %v8667
      %v8683 = vmul.f32 %v8623, %v8667
      %v8684 = vmul.f32 %v8624, %v8671
      %v8685 = vmul.f32 %v8625, %v8671
      %v8686 = vmul.f32 %v8626, %v8671
      %v8687 = vmul.f32 %v8627, %v8675
      %v8688 = vmul.f32 %v8628, %v8675
      %v8689 = vmul.f32 %v8629, %v8675
      %v8690 = vmul.f32 %v8630, %v8679
      %v8691 = vmul.f32 %v8631, %v8679
      %v8692 = vmul.f32 %v8632, %v8679
      %8693 = vset.pattern.permute.xlu0 2
      %8694 = vperm.xlu0 %8693, %v8617
      %v8695 = vpop.permute.xlu0 %8694
      %8697 = vset.pattern.permute.xlu0 2
      %8698 = vperm.xlu0 %8697, %v8618
      %v8699 = vpop.permute.xlu0 %8698
      %8701 = vset.pattern.permute.xlu0 2
      %8702 = vperm.xlu0 %8701, %v8619
      %v8703 = vpop.permute.xlu0 %8702
      %8705 = vset.pattern.permute.xlu0 2
      %8706 = vperm.xlu0 %8705, %v8620
      %v8707 = vpop.permute.xlu0 %8706
      %v8709 = vmul.f32 %v8621, %v8695
      %v8710 = vmul.f32 %v8622, %v8695
      %v8711 = vmul.f32 %v8623, %v8695
      %v8712 = vmul.f32 %v8624, %v8699
      %v8713 = vmul.f32 %v8625, %v8699
      %v8714 = vmul.f32 %v8626, %v8699
      %v8715 = vmul.f32 %v8627, %v8703
      %v8716 = vmul.f32 %v8628, %v8703
      %v8717 = vmul.f32 %v8629, %v8703
      %v8718 = vmul.f32 %v8630, %v8707
      %v8719 = vmul.f32 %v8631, %v8707
      %v8720 = vmul.f32 %v8632, %v8707
      %8721 = vset.pattern.permute.xlu0 3
      %8722 = vperm.xlu0 %8721, %v8617
      %v8723 = vpop.permute.xlu0 %8722
      %8725 = vset.pattern.permute.xlu0 3
      %8726 = vperm.xlu0 %8725, %v8618
      %v8727 = vpop.permute.xlu0 %8726
      %8729 = vset.pattern.permute.xlu0 3
      %8730 = vperm.xlu0 %8729, %v8619
      %v8731 = vpop.permute.xlu0 %8730
      %8733 = vset.pattern.permute.xlu0 3
      %8734 = vperm.xlu0 %8733, %v8620
      %v8735 = vpop.permute.xlu0 %8734
      %v8737 = vmul.f32 %v8621, %v8723
      %v8738 = vmul.f32 %v8622, %v8723
      %v8739 = vmul.f32 %v8623, %v8723
      %v8740 = vmul.f32 %v8624, %v8727
      %v8741 = vmul.f32 %v8625, %v8727
      %v8742 = vmul.f32 %v8626, %v8727
      %v8743 = vmul.f32 %v8627, %v8731
      %v8744 = vmul.f32 %v8628, %v8731
      %v8745 = vmul.f32 %v8629, %v8731
      %v8746 = vmul.f32 %v8630, %v8735
      %v8747 = vmul.f32 %v8631, %v8735
      %v8748 = vmul.f32 %v8632, %v8735
      %8761 = vrot.lane.b32.xlu0 %v8737, 112
      %v8762 = vpop.permute.xlu0 %8761
      %8763 = vrot.lane.b32.xlu0 %v8738, 112
      %v8764 = vpop.permute.xlu0 %8763
      %8765 = vrot.lane.b32.xlu0 %v8739, 112
      %v8766 = vpop.permute.xlu0 %8765
      %8767 = vrot.lane.b32.xlu0 %v8740, 112
      %v8768 = vpop.permute.xlu0 %8767
      %8769 = vrot.lane.b32.xlu0 %v8741, 112
      %v8770 = vpop.permute.xlu0 %8769
      %8771 = vrot.lane.b32.xlu0 %v8742, 112
      %v8772 = vpop.permute.xlu0 %8771
      %8773 = vrot.lane.b32.xlu0 %v8743, 112
      %v8774 = vpop.permute.xlu0 %8773
      %8775 = vrot.lane.b32.xlu0 %v8744, 112
      %v8776 = vpop.permute.xlu0 %8775
      %8777 = vrot.lane.b32.xlu0 %v8745, 112
      %v8778 = vpop.permute.xlu0 %8777
      %8779 = vrot.lane.b32.xlu0 %v8746, 112
      %v8780 = vpop.permute.xlu0 %8779
      %8781 = vrot.lane.b32.xlu0 %v8747, 112
      %v8782 = vpop.permute.xlu0 %8781
      %8783 = vrot.lane.b32.xlu0 %v8748, 112
      %v8784 = vpop.permute.xlu0 %8783
      %v8785 = vsel %vm846, %v8762, %v8764
      %v8786 = vsel %vm846, %v8764, %v8766
      %v8787 = vsel %vm846, %v8768, %v8770
      %v8788 = vsel %vm846, %v8770, %v8772
      %v8789 = vsel %vm846, %v8774, %v8776
      %v8790 = vsel %vm846, %v8776, %v8778
      %v8791 = vsel %vm846, %v8780, %v8782
      %v8792 = vsel %vm846, %v8782, %v8784
      %v8805 = vadd.f32 %v8653, %v8785
      %v8806 = vadd.f32 %v8654, %v8786
      %v8807 = vadd.f32 %v8655, %v8766
      %v8808 = vadd.f32 %v8656, %v8787
      %v8809 = vadd.f32 %v8657, %v8788
      %v8810 = vadd.f32 %v8658, %v8772
      %v8811 = vadd.f32 %v8659, %v8789
      %v8812 = vadd.f32 %v8660, %v8790
      %v8813 = vadd.f32 %v8661, %v8778
      %v8814 = vadd.f32 %v8662, %v8791
      %v8815 = vadd.f32 %v8663, %v8792
      %v8816 = vadd.f32 %v8664, %v8784
      %8817 = vset.pattern.permute.xlu0 4
      %8818 = vperm.xlu0 %8817, %v8617
      %v8819 = vpop.permute.xlu0 %8818
      %8821 = vset.pattern.permute.xlu0 4
      %8822 = vperm.xlu0 %8821, %v8618
      %v8823 = vpop.permute.xlu0 %8822
      %8825 = vset.pattern.permute.xlu0 4
      %8826 = vperm.xlu0 %8825, %v8619
      %v8827 = vpop.permute.xlu0 %8826
      %8829 = vset.pattern.permute.xlu0 4
      %8830 = vperm.xlu0 %8829, %v8620
      %v8831 = vpop.permute.xlu0 %8830
      %v8833 = vmul.f32 %v8622, %v8819
      %v8834 = vmul.f32 %v8623, %v8819
      %v8835 = vmul.f32 %v8625, %v8823
      %v8836 = vmul.f32 %v8626, %v8823
      %v8837 = vmul.f32 %v8628, %v8827
      %v8838 = vmul.f32 %v8629, %v8827
      %v8839 = vmul.f32 %v8631, %v8831
      %v8840 = vmul.f32 %v8632, %v8831
      %8849 = vrot.lane.b32.xlu0 %v8833, 112
      %v8850 = vpop.permute.xlu0 %8849
      %8851 = vrot.lane.b32.xlu0 %v8834, 112
      %v8852 = vpop.permute.xlu0 %8851
      %8853 = vrot.lane.b32.xlu0 %v8835, 112
      %v8854 = vpop.permute.xlu0 %8853
      %8855 = vrot.lane.b32.xlu0 %v8836, 112
      %v8856 = vpop.permute.xlu0 %8855
      %8857 = vrot.lane.b32.xlu0 %v8837, 112
      %v8858 = vpop.permute.xlu0 %8857
      %8859 = vrot.lane.b32.xlu0 %v8838, 112
      %v8860 = vpop.permute.xlu0 %8859
      %8861 = vrot.lane.b32.xlu0 %v8839, 112
      %v8862 = vpop.permute.xlu0 %8861
      %8863 = vrot.lane.b32.xlu0 %v8840, 112
      %v8864 = vpop.permute.xlu0 %8863
      %v8865 = vsel %vm846, %v8850, %v8852
      %v8866 = vsel %vm846, %v8854, %v8856
      %v8867 = vsel %vm846, %v8858, %v8860
      %v8868 = vsel %vm846, %v8862, %v8864
      %v8881 = vadd.f32 %v8681, %v8850
      %v8882 = vadd.f32 %v8682, %v8865
      %v8883 = vadd.f32 %v8683, %v8852
      %v8884 = vadd.f32 %v8684, %v8854
      %v8885 = vadd.f32 %v8685, %v8866
      %v8886 = vadd.f32 %v8686, %v8856
      %v8887 = vadd.f32 %v8687, %v8858
      %v8888 = vadd.f32 %v8688, %v8867
      %v8889 = vadd.f32 %v8689, %v8860
      %v8890 = vadd.f32 %v8690, %v8862
      %v8891 = vadd.f32 %v8691, %v8868
      %v8892 = vadd.f32 %v8692, %v8864
      %v8893 = vld [vmem:[#allocation2 + $0x8] sm:$0xff]
      %v8894 = vld [vmem:[#allocation2 + $0x10] sm:$0xff]
      %v8895 = vld [vmem:[#allocation2 + $0x18] sm:$0xff]
      %v8896 = vld [vmem:[#allocation2 + $0x28] sm:$0xff]
      %v8897 = vld [vmem:[#allocation2 + $0x30] sm:$0xff]
      %v8898 = vld [vmem:[#allocation2 + $0x38] sm:$0xff]
      %v8899 = vld [vmem:[#allocation2 + $0x48] sm:$0xff]
      %v8900 = vld [vmem:[#allocation2 + $0x50] sm:$0xff]
      %v8901 = vld [vmem:[#allocation2 + $0x58] sm:$0xff]
      %v8902 = vld [vmem:[#allocation2 + $0x68] sm:$0xff]
      %v8903 = vld [vmem:[#allocation2 + $0x70] sm:$0xff]
      %v8904 = vld [vmem:[#allocation2 + $0x78] sm:$0xff]
      %8905 = vset.pattern.permute.xlu0 5
      %8906 = vperm.xlu0 %8905, %v8617
      %v8907 = vpop.permute.xlu0 %8906
      %8909 = vset.pattern.permute.xlu0 5
      %8910 = vperm.xlu0 %8909, %v8618
      %v8911 = vpop.permute.xlu0 %8910
      %8913 = vset.pattern.permute.xlu0 5
      %8914 = vperm.xlu0 %8913, %v8619
      %v8915 = vpop.permute.xlu0 %8914
      %8917 = vset.pattern.permute.xlu0 5
      %8918 = vperm.xlu0 %8917, %v8620
      %v8919 = vpop.permute.xlu0 %8918
      %v8921 = vmul.f32 %v8893, %v8907
      %v8922 = vmul.f32 %v8894, %v8907
      %v8923 = vmul.f32 %v8895, %v8907
      %v8924 = vmul.f32 %v8896, %v8911
      %v8925 = vmul.f32 %v8897, %v8911
      %v8926 = vmul.f32 %v8898, %v8911
      %v8927 = vmul.f32 %v8899, %v8915
      %v8928 = vmul.f32 %v8900, %v8915
      %v8929 = vmul.f32 %v8901, %v8915
      %v8930 = vmul.f32 %v8902, %v8919
      %v8931 = vmul.f32 %v8903, %v8919
      %v8932 = vmul.f32 %v8904, %v8919
      %8945 = vrot.lane.b32.xlu0 %v8921, 112
      %v8946 = vpop.permute.xlu0 %8945
      %8947 = vrot.lane.b32.xlu0 %v8922, 112
      %v8948 = vpop.permute.xlu0 %8947
      %8949 = vrot.lane.b32.xlu0 %v8923, 112
      %v8950 = vpop.permute.xlu0 %8949
      %8951 = vrot.lane.b32.xlu0 %v8924, 112
      %v8952 = vpop.permute.xlu0 %8951
      %8953 = vrot.lane.b32.xlu0 %v8925, 112
      %v8954 = vpop.permute.xlu0 %8953
      %8955 = vrot.lane.b32.xlu0 %v8926, 112
      %v8956 = vpop.permute.xlu0 %8955
      %8957 = vrot.lane.b32.xlu0 %v8927, 112
      %v8958 = vpop.permute.xlu0 %8957
      %8959 = vrot.lane.b32.xlu0 %v8928, 112
      %v8960 = vpop.permute.xlu0 %8959
      %8961 = vrot.lane.b32.xlu0 %v8929, 112
      %v8962 = vpop.permute.xlu0 %8961
      %8963 = vrot.lane.b32.xlu0 %v8930, 112
      %v8964 = vpop.permute.xlu0 %8963
      %8965 = vrot.lane.b32.xlu0 %v8931, 112
      %v8966 = vpop.permute.xlu0 %8965
      %8967 = vrot.lane.b32.xlu0 %v8932, 112
      %v8968 = vpop.permute.xlu0 %8967
      %v8969 = vsel %vm846, %v8946, %v8948
      %v8970 = vsel %vm846, %v8948, %v8950
      %v8971 = vsel %vm846, %v8952, %v8954
      %v8972 = vsel %vm846, %v8954, %v8956
      %v8973 = vsel %vm846, %v8958, %v8960
      %v8974 = vsel %vm846, %v8960, %v8962
      %v8975 = vsel %vm846, %v8964, %v8966
      %v8976 = vsel %vm846, %v8966, %v8968
      %v8989 = vadd.f32 %v8709, %v8946
      %v8990 = vadd.f32 %v8710, %v8969
      %v8991 = vadd.f32 %v8711, %v8970
      %v8992 = vadd.f32 %v8712, %v8952
      %v8993 = vadd.f32 %v8713, %v8971
      %v8994 = vadd.f32 %v8714, %v8972
      %v8995 = vadd.f32 %v8715, %v8958
      %v8996 = vadd.f32 %v8716, %v8973
      %v8997 = vadd.f32 %v8717, %v8974
      %v8998 = vadd.f32 %v8718, %v8964
      %v8999 = vadd.f32 %v8719, %v8975
      %v9000 = vadd.f32 %v8720, %v8976
      %9001 = vset.pattern.permute.xlu0 6
      %9002 = vperm.xlu0 %9001, %v8617
      %v9003 = vpop.permute.xlu0 %9002
      %9005 = vset.pattern.permute.xlu0 6
      %9006 = vperm.xlu0 %9005, %v8618
      %v9007 = vpop.permute.xlu0 %9006
      %9009 = vset.pattern.permute.xlu0 6
      %9010 = vperm.xlu0 %9009, %v8619
      %v9011 = vpop.permute.xlu0 %9010
      %9013 = vset.pattern.permute.xlu0 6
      %9014 = vperm.xlu0 %9013, %v8620
      %v9015 = vpop.permute.xlu0 %9014
      %v9017 = vmul.f32 %v8893, %v9003
      %v9018 = vmul.f32 %v8894, %v9003
      %v9019 = vmul.f32 %v8895, %v9003
      %v9020 = vmul.f32 %v8896, %v9007
      %v9021 = vmul.f32 %v8897, %v9007
      %v9022 = vmul.f32 %v8898, %v9007
      %v9023 = vmul.f32 %v8899, %v9011
      %v9024 = vmul.f32 %v8900, %v9011
      %v9025 = vmul.f32 %v8901, %v9011
      %v9026 = vmul.f32 %v8902, %v9015
      %v9027 = vmul.f32 %v8903, %v9015
      %v9028 = vmul.f32 %v8904, %v9015
      %9041 = vrot.lane.b32.xlu0 %v9017, 96
      %v9042 = vpop.permute.xlu0 %9041
      %9043 = vrot.lane.b32.xlu0 %v9018, 96
      %v9044 = vpop.permute.xlu0 %9043
      %9045 = vrot.lane.b32.xlu0 %v9019, 96
      %v9046 = vpop.permute.xlu0 %9045
      %9047 = vrot.lane.b32.xlu0 %v9020, 96
      %v9048 = vpop.permute.xlu0 %9047
      %9049 = vrot.lane.b32.xlu0 %v9021, 96
      %v9050 = vpop.permute.xlu0 %9049
      %9051 = vrot.lane.b32.xlu0 %v9022, 96
      %v9052 = vpop.permute.xlu0 %9051
      %9053 = vrot.lane.b32.xlu0 %v9023, 96
      %v9054 = vpop.permute.xlu0 %9053
      %9055 = vrot.lane.b32.xlu0 %v9024, 96
      %v9056 = vpop.permute.xlu0 %9055
      %9057 = vrot.lane.b32.xlu0 %v9025, 96
      %v9058 = vpop.permute.xlu0 %9057
      %9059 = vrot.lane.b32.xlu0 %v9026, 96
      %v9060 = vpop.permute.xlu0 %9059
      %9061 = vrot.lane.b32.xlu0 %v9027, 96
      %v9062 = vpop.permute.xlu0 %9061
      %9063 = vrot.lane.b32.xlu0 %v9028, 96
      %v9064 = vpop.permute.xlu0 %9063
      %v9065 = vsel %vm987, %v9042, %v9044
      %v9066 = vsel %vm987, %v9044, %v9046
      %v9067 = vsel %vm987, %v9048, %v9050
      %v9068 = vsel %vm987, %v9050, %v9052
      %v9069 = vsel %vm987, %v9054, %v9056
      %v9070 = vsel %vm987, %v9056, %v9058
      %v9071 = vsel %vm987, %v9060, %v9062
      %v9072 = vsel %vm987, %v9062, %v9064
      %v9085 = vadd.f32 %v8805, %v9042
      %v9086 = vadd.f32 %v8806, %v9065
      %v9087 = vadd.f32 %v8807, %v9066
      %v9088 = vadd.f32 %v8808, %v9048
      %v9089 = vadd.f32 %v8809, %v9067
      %v9090 = vadd.f32 %v8810, %v9068
      %v9091 = vadd.f32 %v8811, %v9054
      %v9092 = vadd.f32 %v8812, %v9069
      %v9093 = vadd.f32 %v8813, %v9070
      %v9094 = vadd.f32 %v8814, %v9060
      %v9095 = vadd.f32 %v8815, %v9071
      %v9096 = vadd.f32 %v8816, %v9072
      %9097 = vset.pattern.permute.xlu0 7
      %9098 = vperm.xlu0 %9097, %v8617
      %v9099 = vpop.permute.xlu0 %9098
      %9101 = vset.pattern.permute.xlu0 7
      %9102 = vperm.xlu0 %9101, %v8618
      %v9103 = vpop.permute.xlu0 %9102
      %9105 = vset.pattern.permute.xlu0 7
      %9106 = vperm.xlu0 %9105, %v8619
      %v9107 = vpop.permute.xlu0 %9106
      %9109 = vset.pattern.permute.xlu0 7
      %9110 = vperm.xlu0 %9109, %v8620
      %v9111 = vpop.permute.xlu0 %9110
      %v9113 = vmul.f32 %v8893, %v9099
      %v9114 = vmul.f32 %v8894, %v9099
      %v9115 = vmul.f32 %v8895, %v9099
      %v9116 = vmul.f32 %v8896, %v9103
      %v9117 = vmul.f32 %v8897, %v9103
      %v9118 = vmul.f32 %v8898, %v9103
      %v9119 = vmul.f32 %v8899, %v9107
      %v9120 = vmul.f32 %v8900, %v9107
      %v9121 = vmul.f32 %v8901, %v9107
      %v9122 = vmul.f32 %v8902, %v9111
      %v9123 = vmul.f32 %v8903, %v9111
      %v9124 = vmul.f32 %v8904, %v9111
      %9137 = vrot.lane.b32.xlu0 %v9113, 96
      %v9138 = vpop.permute.xlu0 %9137
      %9139 = vrot.lane.b32.xlu0 %v9114, 96
      %v9140 = vpop.permute.xlu0 %9139
      %9141 = vrot.lane.b32.xlu0 %v9115, 96
      %v9142 = vpop.permute.xlu0 %9141
      %9143 = vrot.lane.b32.xlu0 %v9116, 96
      %v9144 = vpop.permute.xlu0 %9143
      %9145 = vrot.lane.b32.xlu0 %v9117, 96
      %v9146 = vpop.permute.xlu0 %9145
      %9147 = vrot.lane.b32.xlu0 %v9118, 96
      %v9148 = vpop.permute.xlu0 %9147
      %9149 = vrot.lane.b32.xlu0 %v9119, 96
      %v9150 = vpop.permute.xlu0 %9149
      %9151 = vrot.lane.b32.xlu0 %v9120, 96
      %v9152 = vpop.permute.xlu0 %9151
      %9153 = vrot.lane.b32.xlu0 %v9121, 96
      %v9154 = vpop.permute.xlu0 %9153
      %9155 = vrot.lane.b32.xlu0 %v9122, 96
      %v9156 = vpop.permute.xlu0 %9155
      %9157 = vrot.lane.b32.xlu0 %v9123, 96
      %v9158 = vpop.permute.xlu0 %9157
      %9159 = vrot.lane.b32.xlu0 %v9124, 96
      %v9160 = vpop.permute.xlu0 %9159
      %v9161 = vsel %vm987, %v9138, %v9140
      %v9162 = vsel %vm987, %v9140, %v9142
      %v9163 = vsel %vm987, %v9144, %v9146
      %v9164 = vsel %vm987, %v9146, %v9148
      %v9165 = vsel %vm987, %v9150, %v9152
      %v9166 = vsel %vm987, %v9152, %v9154
      %v9167 = vsel %vm987, %v9156, %v9158
      %v9168 = vsel %vm987, %v9158, %v9160
      %v9181 = vadd.f32 %v8881, %v9138
      %v9182 = vadd.f32 %v8882, %v9161
      %v9183 = vadd.f32 %v8883, %v9162
      %v9184 = vadd.f32 %v8884, %v9144
      %v9185 = vadd.f32 %v8885, %v9163
      %v9186 = vadd.f32 %v8886, %v9164
      %v9187 = vadd.f32 %v8887, %v9150
      %v9188 = vadd.f32 %v8888, %v9165
      %v9189 = vadd.f32 %v8889, %v9166
      %v9190 = vadd.f32 %v8890, %v9156
      %v9191 = vadd.f32 %v8891, %v9167
      %v9192 = vadd.f32 %v8892, %v9168
      %9193 = vset.pattern.permute.xlu0 8
      %9194 = vperm.xlu0 %9193, %v8617
      %v9195 = vpop.permute.xlu0 %9194
      %9197 = vset.pattern.permute.xlu0 8
      %9198 = vperm.xlu0 %9197, %v8618
      %v9199 = vpop.permute.xlu0 %9198
      %9201 = vset.pattern.permute.xlu0 8
      %9202 = vperm.xlu0 %9201, %v8619
      %v9203 = vpop.permute.xlu0 %9202
      %9205 = vset.pattern.permute.xlu0 8
      %9206 = vperm.xlu0 %9205, %v8620
      %v9207 = vpop.permute.xlu0 %9206
      %v9209 = vmul.f32 %v8893, %v9195
      %v9210 = vmul.f32 %v8894, %v9195
      %v9211 = vmul.f32 %v8895, %v9195
      %v9212 = vmul.f32 %v8896, %v9199
      %v9213 = vmul.f32 %v8897, %v9199
      %v9214 = vmul.f32 %v8898, %v9199
      %v9215 = vmul.f32 %v8899, %v9203
      %v9216 = vmul.f32 %v8900, %v9203
      %v9217 = vmul.f32 %v8901, %v9203
      %v9218 = vmul.f32 %v8902, %v9207
      %v9219 = vmul.f32 %v8903, %v9207
      %v9220 = vmul.f32 %v8904, %v9207
      %9233 = vrot.lane.b32.xlu0 %v9209, 96
      %v9234 = vpop.permute.xlu0 %9233
      %9235 = vrot.lane.b32.xlu0 %v9210, 96
      %v9236 = vpop.permute.xlu0 %9235
      %9237 = vrot.lane.b32.xlu0 %v9211, 96
      %v9238 = vpop.permute.xlu0 %9237
      %9239 = vrot.lane.b32.xlu0 %v9212, 96
      %v9240 = vpop.permute.xlu0 %9239
      %9241 = vrot.lane.b32.xlu0 %v9213, 96
      %v9242 = vpop.permute.xlu0 %9241
      %9243 = vrot.lane.b32.xlu0 %v9214, 96
      %v9244 = vpop.permute.xlu0 %9243
      %9245 = vrot.lane.b32.xlu0 %v9215, 96
      %v9246 = vpop.permute.xlu0 %9245
      %9247 = vrot.lane.b32.xlu0 %v9216, 96
      %v9248 = vpop.permute.xlu0 %9247
      %9249 = vrot.lane.b32.xlu0 %v9217, 96
      %v9250 = vpop.permute.xlu0 %9249
      %9251 = vrot.lane.b32.xlu0 %v9218, 96
      %v9252 = vpop.permute.xlu0 %9251
      %9253 = vrot.lane.b32.xlu0 %v9219, 96
      %v9254 = vpop.permute.xlu0 %9253
      %9255 = vrot.lane.b32.xlu0 %v9220, 96
      %v9256 = vpop.permute.xlu0 %9255
      %v9257 = vsel %vm987, %v9234, %v9236
      %v9258 = vsel %vm987, %v9236, %v9238
      %v9259 = vsel %vm987, %v9240, %v9242
      %v9260 = vsel %vm987, %v9242, %v9244
      %v9261 = vsel %vm987, %v9246, %v9248
      %v9262 = vsel %vm987, %v9248, %v9250
      %v9263 = vsel %vm987, %v9252, %v9254
      %v9264 = vsel %vm987, %v9254, %v9256
      %v9277 = vadd.f32 %v8989, %v9234
      %v9278 = vadd.f32 %v8990, %v9257
      %v9279 = vadd.f32 %v8991, %v9258
      %v9280 = vadd.f32 %v8992, %v9240
      %v9281 = vadd.f32 %v8993, %v9259
      %v9282 = vadd.f32 %v8994, %v9260
      %v9283 = vadd.f32 %v8995, %v9246
      %v9284 = vadd.f32 %v8996, %v9261
      %v9285 = vadd.f32 %v8997, %v9262
      %v9286 = vadd.f32 %v8998, %v9252
      %v9287 = vadd.f32 %v8999, %v9263
      %v9288 = vadd.f32 %v9000, %v9264
      %v9289 = vmul.f32 %v9085, %v1110
      %v9290 = vmul.f32 %v9086, %v1114
      %v9291 = vmul.f32 %v9087, %v1112
      %v9292 = vmul.f32 %v9088, %v1110
      %v9293 = vmul.f32 %v9089, %v1114
      %v9294 = vmul.f32 %v9090, %v1112
      %v9295 = vmul.f32 %v9091, %v1110
      %v9296 = vmul.f32 %v9092, %v1114
      %v9297 = vmul.f32 %v9093, %v1112
      %v9298 = vmul.f32 %v9094, %v1110
      %v9299 = vmul.f32 %v9095, %v1114
      %v9300 = vmul.f32 %v9096, %v1112
      %9313 = vrot.lane.b32.xlu0 %v9289, 1
      %v9314 = vpop.permute.xlu0 %9313
      %9315 = vrot.lane.b32.xlu0 %v9290, 1
      %v9316 = vpop.permute.xlu0 %9315
      %9317 = vrot.lane.b32.xlu0 %v9291, 1
      %v9318 = vpop.permute.xlu0 %9317
      %9319 = vrot.lane.b32.xlu0 %v9292, 1
      %v9320 = vpop.permute.xlu0 %9319
      %9321 = vrot.lane.b32.xlu0 %v9293, 1
      %v9322 = vpop.permute.xlu0 %9321
      %9323 = vrot.lane.b32.xlu0 %v9294, 1
      %v9324 = vpop.permute.xlu0 %9323
      %9325 = vrot.lane.b32.xlu0 %v9295, 1
      %v9326 = vpop.permute.xlu0 %9325
      %9327 = vrot.lane.b32.xlu0 %v9296, 1
      %v9328 = vpop.permute.xlu0 %9327
      %9329 = vrot.lane.b32.xlu0 %v9297, 1
      %v9330 = vpop.permute.xlu0 %9329
      %9331 = vrot.lane.b32.xlu0 %v9298, 1
      %v9332 = vpop.permute.xlu0 %9331
      %9333 = vrot.lane.b32.xlu0 %v9299, 1
      %v9334 = vpop.permute.xlu0 %9333
      %9335 = vrot.lane.b32.xlu0 %v9300, 1
      %v9336 = vpop.permute.xlu0 %9335
      %v9337 = vsel %vm1142, %v9314, %v9316
      %v9338 = vsel %vm1142, %v9316, %v9318
      %v9339 = vsel %vm1142, %v9320, %v9322
      %v9340 = vsel %vm1142, %v9322, %v9324
      %v9341 = vsel %vm1142, %v9326, %v9328
      %v9342 = vsel %vm1142, %v9328, %v9330
      %v9343 = vsel %vm1142, %v9332, %v9334
      %v9344 = vsel %vm1142, %v9334, %v9336
      %v9357 = vadd.f32 %v9181, %v9314
      %v9358 = vadd.f32 %v9182, %v9337
      %v9359 = vadd.f32 %v9183, %v9338
      %v9360 = vadd.f32 %v9184, %v9320
      %v9361 = vadd.f32 %v9185, %v9339
      %v9362 = vadd.f32 %v9186, %v9340
      %v9363 = vadd.f32 %v9187, %v9326
      %v9364 = vadd.f32 %v9188, %v9341
      %v9365 = vadd.f32 %v9189, %v9342
      %v9366 = vadd.f32 %v9190, %v9332
      %v9367 = vadd.f32 %v9191, %v9343
      %v9368 = vadd.f32 %v9192, %v9344
      %v9369 = vmul.f32 %v9277, %v1169
      %v9370 = vmul.f32 %v9278, %v1173
      %v9371 = vmul.f32 %v9279, %v1171
      %v9372 = vmul.f32 %v9280, %v1169
      %v9373 = vmul.f32 %v9281, %v1173
      %v9374 = vmul.f32 %v9282, %v1171
      %v9375 = vmul.f32 %v9283, %v1169
      %v9376 = vmul.f32 %v9284, %v1173
      %v9377 = vmul.f32 %v9285, %v1171
      %v9378 = vmul.f32 %v9286, %v1169
      %v9379 = vmul.f32 %v9287, %v1173
      %v9380 = vmul.f32 %v9288, %v1171
      %9393 = vrot.lane.b32.xlu0 %v9369, 127
      %v9394 = vpop.permute.xlu0 %9393
      %9395 = vrot.lane.b32.xlu0 %v9370, 127
      %v9396 = vpop.permute.xlu0 %9395
      %9397 = vrot.lane.b32.xlu0 %v9371, 127
      %v9398 = vpop.permute.xlu0 %9397
      %9399 = vrot.lane.b32.xlu0 %v9372, 127
      %v9400 = vpop.permute.xlu0 %9399
      %9401 = vrot.lane.b32.xlu0 %v9373, 127
      %v9402 = vpop.permute.xlu0 %9401
      %9403 = vrot.lane.b32.xlu0 %v9374, 127
      %v9404 = vpop.permute.xlu0 %9403
      %9405 = vrot.lane.b32.xlu0 %v9375, 127
      %v9406 = vpop.permute.xlu0 %9405
      %9407 = vrot.lane.b32.xlu0 %v9376, 127
      %v9408 = vpop.permute.xlu0 %9407
      %9409 = vrot.lane.b32.xlu0 %v9377, 127
      %v9410 = vpop.permute.xlu0 %9409
      %9411 = vrot.lane.b32.xlu0 %v9378, 127
      %v9412 = vpop.permute.xlu0 %9411
      %9413 = vrot.lane.b32.xlu0 %v9379, 127
      %v9414 = vpop.permute.xlu0 %9413
      %9415 = vrot.lane.b32.xlu0 %v9380, 127
      %v9416 = vpop.permute.xlu0 %9415
      %v9417 = vsel %vm1201, %v9394, %v9396
      %v9418 = vsel %vm1201, %v9396, %v9398
      %v9419 = vsel %vm1201, %v9400, %v9402
      %v9420 = vsel %vm1201, %v9402, %v9404
      %v9421 = vsel %vm1201, %v9406, %v9408
      %v9422 = vsel %vm1201, %v9408, %v9410
      %v9423 = vsel %vm1201, %v9412, %v9414
      %v9424 = vsel %vm1201, %v9414, %v9416
      %v9437 = vadd.f32 %v9357, %v9417
      %v9438 = vadd.f32 %v9358, %v9418
      %v9439 = vadd.f32 %v9359, %v9398
      %v9440 = vadd.f32 %v9360, %v9419
      %v9441 = vadd.f32 %v9361, %v9420
      %v9442 = vadd.f32 %v9362, %v9404
      %v9443 = vadd.f32 %v9363, %v9421
      %v9444 = vadd.f32 %v9364, %v9422
      %v9445 = vadd.f32 %v9365, %v9410
      %v9446 = vadd.f32 %v9366, %v9423
      %v9447 = vadd.f32 %v9367, %v9424
      %v9448 = vadd.f32 %v9368, %v9416
      %s9449 = scalar_lea.vmem %s10, 32
      %v9450 = vld [vmem:[%s9449] sm:$0xff]
      %v9451 = vld [vmem:[%s9449 + $0x8] sm:$0xff]
      %s9452 = scalar_lea.vmem %s11, 32
      %v9453 = vld [vmem:[%s9452] sm:$0xff]
      %v9454 = vld [vmem:[%s9452 + $0x8] sm:$0xff]
      %9456 = vset.pattern.permute.xlu0 0
      %9457 = vperm.xlu0 %9456, %v9453
      %v9458 = vpop.permute.xlu0 %9457
      %9461 = vset.pattern.permute.xlu0 0
      %9462 = vperm.xlu0 %9461, %v9454
      %v9463 = vpop.permute.xlu0 %9462
      %9477 = vrot.lane.b32.xlu0 %v9437, 16
      %v9478 = vpop.permute.xlu0 %9477
      %9479 = vrot.lane.b32.xlu0 %v9438, 16
      %v9480 = vpop.permute.xlu0 %9479
      %9481 = vrot.lane.b32.xlu0 %v9439, 16
      %v9482 = vpop.permute.xlu0 %9481
      %9483 = vrot.lane.b32.xlu0 %v9440, 16
      %v9484 = vpop.permute.xlu0 %9483
      %9485 = vrot.lane.b32.xlu0 %v9441, 16
      %v9486 = vpop.permute.xlu0 %9485
      %9487 = vrot.lane.b32.xlu0 %v9442, 16
      %v9488 = vpop.permute.xlu0 %9487
      %9489 = vrot.lane.b32.xlu0 %v9443, 16
      %v9490 = vpop.permute.xlu0 %9489
      %9491 = vrot.lane.b32.xlu0 %v9444, 16
      %v9492 = vpop.permute.xlu0 %9491
      %9493 = vrot.lane.b32.xlu0 %v9445, 16
      %v9494 = vpop.permute.xlu0 %9493
      %9495 = vrot.lane.b32.xlu0 %v9446, 16
      %v9496 = vpop.permute.xlu0 %9495
      %9497 = vrot.lane.b32.xlu0 %v9447, 16
      %v9498 = vpop.permute.xlu0 %9497
      %9499 = vrot.lane.b32.xlu0 %v9448, 16
      %v9500 = vpop.permute.xlu0 %9499
      %v9501 = vsel %vm1260, %v9478, %v9480
      %v9502 = vsel %vm1260, %v9480, %v9482
      %v9503 = vsel %vm1260, %v9484, %v9486
      %v9504 = vsel %vm1260, %v9486, %v9488
      %v9505 = vsel %vm1260, %v9490, %v9492
      %v9506 = vsel %vm1260, %v9492, %v9494
      %v9507 = vsel %vm1260, %v9496, %v9498
      %v9508 = vsel %vm1260, %v9498, %v9500
      %v9518 = vsel %vm2175, %v9450, 0
      %v9521 = vsel %vm2175, %v9451, 0
      %9523 = vmatprep.subr.mxu0 %v9502
      %9524 = vmatpush1.msra.mxu0 %v9501
      %9525 = vmatprep.subr.mxu0 %v9504
      %9526 = vmatpush1.msra.mxu0 %v9503
      %9527 = vmatprep.subr.mxu0 %v9506
      %9528 = vmatpush1.msra.mxu0 %v9505
      %9529 = vmatprep.subr.mxu0 %v9508
      %9530 = vmatpush1.msra.mxu0 %v9507
      %9531 = vmatprep.subr.mxu0 0.0
      %9532 = vmatpush1.msra.mxu0 0.0
      %9533 = vmatprep.subr.mxu0 0.0
      %9534 = vmatpush1.msra.mxu0 0.0
      %9535 = vmatprep.subr.mxu0 0.0
      %9536 = vmatpush1.msra.mxu0 0.0
      %9537 = vmatprep.subr.mxu0 0.0
      %9538 = vmatpush1.msra.mxu0 0.0
      %9539 = vmatprep.subr.mxu0 0.0
      %9540 = vmatpush1.msra.mxu0 0.0
      %9541 = vmatprep.subr.mxu0 0.0
      %9542 = vmatpush1.msra.mxu0 0.0
      %9543 = vmatprep.subr.mxu0 0.0
      %9544 = vmatpush1.msra.mxu0 0.0
      %9545 = vmatprep.subr.mxu0 0.0
      %9546 = vmatpush1.msra.mxu0 0.0
      %9547 = vmatprep.subr.mxu0 0.0
      %9548 = vmatpush1.msra.mxu0 0.0
      %9549 = vmatprep.subr.mxu0 0.0
      %9550 = vmatpush1.msra.mxu0 0.0
      %9551 = vmatprep.subr.mxu0 0.0
      %9552 = vmatpush1.msra.mxu0 0.0
      %9553 = vmatprep.subr.mxu0 0.0
      %9554 = vmatpush1.msra.mxu0 0.0
      %9555 = vmatprep.subr.mxu0 0.0
      %9556 = vmatpush1.msra.mxu0 0.0
      %9557 = vmatprep.subr.mxu0 0.0
      %9558 = vmatpush1.msra.mxu0 0.0
      %9559 = vmatprep.subr.mxu0 0.0
      %9560 = vmatpush1.msra.mxu0 0.0
      %9561 = vmatprep.subr.mxu0 0.0
      %9562 = vmatpush1.msra.mxu0 0.0
      %9563 = vmatprep.subr.mxu0 0.0
      %9564 = vmatpush1.msra.mxu0 0.0
      %9565 = vmatprep.subr.mxu0 0.0
      %9566 = vmatpush1.msra.mxu0 0.0
      %9567 = vmatprep.subr.mxu0 0.0
      %9568 = vmatpush1.msra.mxu0 0.0
      %9569 = vmatprep.subr.mxu0 0.0
      %9570 = vmatpush1.msra.mxu0 0.0
      %9571 = vmatprep.subr.mxu0 0.0
      %9572 = vmatpush1.msra.mxu0 0.0
      %9573 = vmatprep.subr.mxu0 0.0
      %9574 = vmatpush1.msra.mxu0 0.0
      %9575 = vmatprep.subr.mxu0 0.0
      %9576 = vmatpush1.msra.mxu0 0.0
      %9577 = vmatprep.subr.mxu0 0.0
      %9578 = vmatpush1.msra.mxu0 0.0
      %9579 = vmatprep.subr.mxu0 0.0
      %9580 = vmatpush1.msra.mxu0 0.0
      %9581 = vmatprep.subr.mxu0 0.0
      %9582 = vmatpush1.msra.mxu0 0.0
      %9583 = vmatprep.subr.mxu0 0.0
      %9584 = vmatpush1.msra.mxu0 0.0
      %9585 = vmatprep.subr.mxu0 0.0
      %9586 = vmatpush1.msra.mxu0 0.0
      %9587 = vmatprep.mubr.f32.mxu0 0.0
      %9588 = vmatmul.mubr.f32.gmra.mrb[0].mxu0 %v9518
      %v9589 = vpop.f32.mrb[0].mxu0
      %v9590 = vadd.f32 %v9458, %v9589
      %v9591 = vpop.f32.mrb[0].mxu0
      %v9592 = vadd.f32 %v9458, %v9591
      %9593 = vmatprep.mubr.f32.mxu0 0.0
      %9594 = vmatmul.mubr.f32.gmra.mrb[0].mxu0 %v9521
      %v9595 = vpop.f32.mrb[0].mxu0
      %v9596 = vadd.f32 %v9463, %v9595
      %v9597 = vpop.f32.mrb[0].mxu0
      %v9598 = vadd.f32 %v9463, %v9597
      %9599 = vdwg.mxu0
      %v9600 = vmax.f32 %v9590, 0.0
      %v9601 = vmax.f32 %v9592, 0.0
      %v9602 = vmax.f32 %v9596, 0.0
      %v9603 = vmax.f32 %v9598, 0.0
      %s9604 = scalar_lea.vmem %s12, 192
      %v9605 = vld [vmem:[%s9604] sm:$0xff]
      %v9606 = vld [vmem:[%s9604 + $0x8] sm:$0xff]
      %v9607 = vld [vmem:[%s9604 + $0x10] sm:$0x3]
      %s9608 = scalar_lea.vmem %s12, 216
      %v9609 = vld [vmem:[%s9608] sm:$0xff]
      %v9610 = vld [vmem:[%s9608 + $0x8] sm:$0xff]
      %v9611 = vld [vmem:[%s9608 + $0x10] sm:$0x3]
      %v9613 = vsel %vm1260, %v9609, 0
      %v9616 = vsel %vm1260, %v9610, 0
      %v9619 = vsel %vm1260, %v9611, 0
      %9621 = vmatprep.subr.mxu0 %v7605
      %9622 = vmatpush1.msra.mxu0 %v7604
      %9623 = vmatprep.subr.mxu0 %v7607
      %9624 = vmatpush1.msra.mxu0 %v7606
      %9625 = vmatprep.subr.mxu0 0.0
      %9626 = vmatpush1.msra.mxu0 0.0
      %9627 = vmatprep.subr.mxu0 0.0
      %9628 = vmatpush1.msra.mxu0 0.0
      %9629 = vmatprep.subr.mxu0 0.0
      %9630 = vmatpush1.msra.mxu0 0.0
      %9631 = vmatprep.subr.mxu0 0.0
      %9632 = vmatpush1.msra.mxu0 0.0
      %9633 = vmatprep.subr.mxu0 0.0
      %9634 = vmatpush1.msra.mxu0 0.0
      %9635 = vmatprep.subr.mxu0 0.0
      %9636 = vmatpush1.msra.mxu0 0.0
      %9637 = vmatprep.subr.mxu0 0.0
      %9638 = vmatpush1.msra.mxu0 0.0
      %9639 = vmatprep.subr.mxu0 0.0
      %9640 = vmatpush1.msra.mxu0 0.0
      %9641 = vmatprep.subr.mxu0 0.0
      %9642 = vmatpush1.msra.mxu0 0.0
      %9643 = vmatprep.subr.mxu0 0.0
      %9644 = vmatpush1.msra.mxu0 0.0
      %9645 = vmatprep.subr.mxu0 0.0
      %9646 = vmatpush1.msra.mxu0 0.0
      %9647 = vmatprep.subr.mxu0 0.0
      %9648 = vmatpush1.msra.mxu0 0.0
      %9649 = vmatprep.subr.mxu0 0.0
      %9650 = vmatpush1.msra.mxu0 0.0
      %9651 = vmatprep.subr.mxu0 0.0
      %9652 = vmatpush1.msra.mxu0 0.0
      %9653 = vmatprep.subr.mxu0 0.0
      %9654 = vmatpush1.msra.mxu0 0.0
      %9655 = vmatprep.subr.mxu0 0.0
      %9656 = vmatpush1.msra.mxu0 0.0
      %9657 = vmatprep.subr.mxu0 0.0
      %9658 = vmatpush1.msra.mxu0 0.0
      %9659 = vmatprep.subr.mxu0 0.0
      %9660 = vmatpush1.msra.mxu0 0.0
      %9661 = vmatprep.subr.mxu0 0.0
      %9662 = vmatpush1.msra.mxu0 0.0
      %9663 = vmatprep.subr.mxu0 0.0
      %9664 = vmatpush1.msra.mxu0 0.0
      %9665 = vmatprep.subr.mxu0 0.0
      %9666 = vmatpush1.msra.mxu0 0.0
      %9667 = vmatprep.subr.mxu0 0.0
      %9668 = vmatpush1.msra.mxu0 0.0
      %9669 = vmatprep.subr.mxu0 0.0
      %9670 = vmatpush1.msra.mxu0 0.0
      %9671 = vmatprep.subr.mxu0 0.0
      %9672 = vmatpush1.msra.mxu0 0.0
      %9673 = vmatprep.subr.mxu0 0.0
      %9674 = vmatpush1.msra.mxu0 0.0
      %9675 = vmatprep.subr.mxu0 0.0
      %9676 = vmatpush1.msra.mxu0 0.0
      %9677 = vmatprep.subr.mxu0 0.0
      %9678 = vmatpush1.msra.mxu0 0.0
      %9679 = vmatprep.subr.mxu0 0.0
      %9680 = vmatpush1.msra.mxu0 0.0
      %9681 = vmatprep.subr.mxu0 0.0
      %9682 = vmatpush1.msra.mxu0 0.0
      %9683 = vmatprep.subr.mxu0 0.0
      %9684 = vmatpush1.msra.mxu0 0.0
      %9685 = vmatprep.mubr.f32.mxu0 0.0
      %9686 = vmatmul.mubr.f32.gmra.mrb[0].mxu0 %v9613
      %v9687 = vpop.f32.mrb[0].mxu0
      %v9688 = vadd.f32 0.0, %v9687
      %v9689 = vpop.f32.mrb[0].mxu0
      %v9690 = vadd.f32 0.0, %v9689
      %9691 = vmatprep.mubr.f32.mxu0 0.0
      %9692 = vmatmul.mubr.f32.gmra.mrb[0].mxu0 %v9616
      %v9693 = vpop.f32.mrb[0].mxu0
      %v9694 = vadd.f32 0.0, %v9693
      %v9695 = vpop.f32.mrb[0].mxu0
      %v9696 = vadd.f32 0.0, %v9695
      %9697 = vmatprep.mubr.f32.mxu0 0.0
      %9698 = vmatmul.mubr.f32.gmra.mrb[0].mxu0 %v9619
      %v9699 = vpop.f32.mrb[0].mxu0
      %v9700 = vadd.f32 0.0, %v9699
      %v9701 = vpop.f32.mrb[0].mxu0
      %v9702 = vadd.f32 0.0, %v9701
      %9703 = vdwg.mxu0
      %v9705 = vsel %vm1260, %v9605, 0
      %v9708 = vsel %vm1260, %v9606, 0
      %v9711 = vsel %vm1260, %v9607, 0
      %9713 = vmatprep.subr.mxu0 %v7125
      %9714 = vmatpush1.msra.mxu0 %v7124
      %9715 = vmatprep.subr.mxu0 %v7127
      %9716 = vmatpush1.msra.mxu0 %v7126
      %9717 = vmatprep.subr.mxu0 0.0
      %9718 = vmatpush1.msra.mxu0 0.0
      %9719 = vmatprep.subr.mxu0 0.0
      %9720 = vmatpush1.msra.mxu0 0.0
      %9721 = vmatprep.subr.mxu0 0.0
      %9722 = vmatpush1.msra.mxu0 0.0
      %9723 = vmatprep.subr.mxu0 0.0
      %9724 = vmatpush1.msra.mxu0 0.0
      %9725 = vmatprep.subr.mxu0 0.0
      %9726 = vmatpush1.msra.mxu0 0.0
      %9727 = vmatprep.subr.mxu0 0.0
      %9728 = vmatpush1.msra.mxu0 0.0
      %9729 = vmatprep.subr.mxu0 0.0
      %9730 = vmatpush1.msra.mxu0 0.0
      %9731 = vmatprep.subr.mxu0 0.0
      %9732 = vmatpush1.msra.mxu0 0.0
      %9733 = vmatprep.subr.mxu0 0.0
      %9734 = vmatpush1.msra.mxu0 0.0
      %9735 = vmatprep.subr.mxu0 0.0
      %9736 = vmatpush1.msra.mxu0 0.0
      %9737 = vmatprep.subr.mxu0 0.0
      %9738 = vmatpush1.msra.mxu0 0.0
      %9739 = vmatprep.subr.mxu0 0.0
      %9740 = vmatpush1.msra.mxu0 0.0
      %9741 = vmatprep.subr.mxu0 0.0
      %9742 = vmatpush1.msra.mxu0 0.0
      %9743 = vmatprep.subr.mxu0 0.0
      %9744 = vmatpush1.msra.mxu0 0.0
      %9745 = vmatprep.subr.mxu0 0.0
      %9746 = vmatpush1.msra.mxu0 0.0
      %9747 = vmatprep.subr.mxu0 0.0
      %9748 = vmatpush1.msra.mxu0 0.0
      %9749 = vmatprep.subr.mxu0 0.0
      %9750 = vmatpush1.msra.mxu0 0.0
      %9751 = vmatprep.subr.mxu0 0.0
      %9752 = vmatpush1.msra.mxu0 0.0
      %9753 = vmatprep.subr.mxu0 0.0
      %9754 = vmatpush1.msra.mxu0 0.0
      %9755 = vmatprep.subr.mxu0 0.0
      %9756 = vmatpush1.msra.mxu0 0.0
      %9757 = vmatprep.subr.mxu0 0.0
      %9758 = vmatpush1.msra.mxu0 0.0
      %9759 = vmatprep.subr.mxu0 0.0
      %9760 = vmatpush1.msra.mxu0 0.0
      %9761 = vmatprep.subr.mxu0 0.0
      %9762 = vmatpush1.msra.mxu0 0.0
      %9763 = vmatprep.subr.mxu0 0.0
      %9764 = vmatpush1.msra.mxu0 0.0
      %9765 = vmatprep.subr.mxu0 0.0
      %9766 = vmatpush1.msra.mxu0 0.0
      %9767 = vmatprep.subr.mxu0 0.0
      %9768 = vmatpush1.msra.mxu0 0.0
      %9769 = vmatprep.subr.mxu0 0.0
      %9770 = vmatpush1.msra.mxu0 0.0
      %9771 = vmatprep.subr.mxu0 0.0
      %9772 = vmatpush1.msra.mxu0 0.0
      %9773 = vmatprep.subr.mxu0 0.0
      %9774 = vmatpush1.msra.mxu0 0.0
      %9775 = vmatprep.subr.mxu0 0.0
      %9776 = vmatpush1.msra.mxu0 0.0
      %9777 = vmatprep.mubr.f32.mxu0 0.0
      %9778 = vmatmul.mubr.f32.gmra.mrb[0].mxu0 %v9705
      %v9779 = vpop.f32.mrb[0].mxu0
      %v9780 = vadd.f32 %v9688, %v9779
      %v9781 = vpop.f32.mrb[0].mxu0
      %v9782 = vadd.f32 %v9690, %v9781
      %9783 = vmatprep.mubr.f32.mxu0 0.0
      %9784 = vmatmul.mubr.f32.gmra.mrb[0].mxu0 %v9708
      %v9785 = vpop.f32.mrb[0].mxu0
      %v9786 = vadd.f32 %v9694, %v9785
      %v9787 = vpop.f32.mrb[0].mxu0
      %v9788 = vadd.f32 %v9696, %v9787
      %9789 = vmatprep.mubr.f32.mxu0 0.0
      %9790 = vmatmul.mubr.f32.gmra.mrb[0].mxu0 %v9711
      %v9791 = vpop.f32.mrb[0].mxu0
      %v9792 = vadd.f32 %v9700, %v9791
      %v9793 = vpop.f32.mrb[0].mxu0
      %v9794 = vadd.f32 %v9702, %v9793
      %9795 = vdwg.mxu0
      %s9796 = scalar_lea.vmem %s12, 240
      %v9797 = vld [vmem:[%s9796] sm:$0xff]
      %v9798 = vld [vmem:[%s9796 + $0x8] sm:$0xff]
      %v9799 = vld [vmem:[%s9796 + $0x10] sm:$0x3]
      %v9801 = vsel %vm1260, %v9797, 0
      %v9804 = vsel %vm1260, %v9798, 0
      %v9807 = vsel %vm1260, %v9799, 0
      %9809 = vmatprep.subr.mxu0 %v8605
      %9810 = vmatpush1.msra.mxu0 %v8604
      %9811 = vmatprep.subr.mxu0 %v8607
      %9812 = vmatpush1.msra.mxu0 %v8606
      %9813 = vmatprep.subr.mxu0 0.0
      %9814 = vmatpush1.msra.mxu0 0.0
      %9815 = vmatprep.subr.mxu0 0.0
      %9816 = vmatpush1.msra.mxu0 0.0
      %9817 = vmatprep.subr.mxu0 0.0
      %9818 = vmatpush1.msra.mxu0 0.0
      %9819 = vmatprep.subr.mxu0 0.0
      %9820 = vmatpush1.msra.mxu0 0.0
      %9821 = vmatprep.subr.mxu0 0.0
      %9822 = vmatpush1.msra.mxu0 0.0
      %9823 = vmatprep.subr.mxu0 0.0
      %9824 = vmatpush1.msra.mxu0 0.0
      %9825 = vmatprep.subr.mxu0 0.0
      %9826 = vmatpush1.msra.mxu0 0.0
      %9827 = vmatprep.subr.mxu0 0.0
      %9828 = vmatpush1.msra.mxu0 0.0
      %9829 = vmatprep.subr.mxu0 0.0
      %9830 = vmatpush1.msra.mxu0 0.0
      %9831 = vmatprep.subr.mxu0 0.0
      %9832 = vmatpush1.msra.mxu0 0.0
      %9833 = vmatprep.subr.mxu0 0.0
      %9834 = vmatpush1.msra.mxu0 0.0
      %9835 = vmatprep.subr.mxu0 0.0
      %9836 = vmatpush1.msra.mxu0 0.0
      %9837 = vmatprep.subr.mxu0 0.0
      %9838 = vmatpush1.msra.mxu0 0.0
      %9839 = vmatprep.subr.mxu0 0.0
      %9840 = vmatpush1.msra.mxu0 0.0
      %9841 = vmatprep.subr.mxu0 0.0
      %9842 = vmatpush1.msra.mxu0 0.0
      %9843 = vmatprep.subr.mxu0 0.0
      %9844 = vmatpush1.msra.mxu0 0.0
      %9845 = vmatprep.subr.mxu0 0.0
      %9846 = vmatpush1.msra.mxu0 0.0
      %9847 = vmatprep.subr.mxu0 0.0
      %9848 = vmatpush1.msra.mxu0 0.0
      %9849 = vmatprep.subr.mxu0 0.0
      %9850 = vmatpush1.msra.mxu0 0.0
      %9851 = vmatprep.subr.mxu0 0.0
      %9852 = vmatpush1.msra.mxu0 0.0
      %9853 = vmatprep.subr.mxu0 0.0
      %9854 = vmatpush1.msra.mxu0 0.0
      %9855 = vmatprep.subr.mxu0 0.0
      %9856 = vmatpush1.msra.mxu0 0.0
      %9857 = vmatprep.subr.mxu0 0.0
      %9858 = vmatpush1.msra.mxu0 0.0
      %9859 = vmatprep.subr.mxu0 0.0
      %9860 = vmatpush1.msra.mxu0 0.0
      %9861 = vmatprep.subr.mxu0 0.0
      %9862 = vmatpush1.msra.mxu0 0.0
      %9863 = vmatprep.subr.mxu0 0.0
      %9864 = vmatpush1.msra.mxu0 0.0
      %9865 = vmatprep.subr.mxu0 0.0
      %9866 = vmatpush1.msra.mxu0 0.0
      %9867 = vmatprep.subr.mxu0 0.0
      %9868 = vmatpush1.msra.mxu0 0.0
      %9869 = vmatprep.subr.mxu0 0.0
      %9870 = vmatpush1.msra.mxu0 0.0
      %9871 = vmatprep.subr.mxu0 0.0
      %9872 = vmatpush1.msra.mxu0 0.0
      %9873 = vmatprep.mubr.f32.mxu0 0.0
      %9874 = vmatmul.mubr.f32.gmra.mrb[0].mxu0 %v9801
      %v9875 = vpop.f32.mrb[0].mxu0
      %v9876 = vadd.f32 0.0, %v9875
      %v9877 = vpop.f32.mrb[0].mxu0
      %v9878 = vadd.f32 0.0, %v9877
      %9879 = vmatprep.mubr.f32.mxu0 0.0
      %9880 = vmatmul.mubr.f32.gmra.mrb[0].mxu0 %v9804
      %v9881 = vpop.f32.mrb[0].mxu0
      %v9882 = vadd.f32 0.0, %v9881
      %v9883 = vpop.f32.mrb[0].mxu0
      %v9884 = vadd.f32 0.0, %v9883
      %9885 = vmatprep.mubr.f32.mxu0 0.0
      %9886 = vmatmul.mubr.f32.gmra.mrb[0].mxu0 %v9807
      %v9887 = vpop.f32.mrb[0].mxu0
      %v9888 = vadd.f32 0.0, %v9887
      %v9889 = vpop.f32.mrb[0].mxu0
      %v9890 = vadd.f32 0.0, %v9889
      %9891 = vdwg.mxu0
      %v9892 = vadd.f32 %v9780, %v9876
      %v9893 = vadd.f32 %v9782, %v9878
      %v9894 = vadd.f32 %v9786, %v9882
      %v9895 = vadd.f32 %v9788, %v9884
      %v9896 = vadd.f32 %v9792, %v9888
      %v9897 = vadd.f32 %v9794, %v9890
      %s9898 = scalar_lea.vmem %s12, 264
      %v9899 = vld [vmem:[%s9898] sm:$0xff]
      %v9900 = vld [vmem:[%s9898 + $0x8] sm:$0xff]
      %v9901 = vld [vmem:[%s9898 + $0x10] sm:$0x3]
      %v9903 = vsel %vm1260, %v9899, 0
      %v9906 = vsel %vm1260, %v9900, 0
      %v9909 = vsel %vm1260, %v9901, 0
      %9911 = vmatprep.subr.mxu0 %v9601
      %9912 = vmatpush1.msra.mxu0 %v9600
      %9913 = vmatprep.subr.mxu0 %v9603
      %9914 = vmatpush1.msra.mxu0 %v9602
      %9915 = vmatprep.subr.mxu0 0.0
      %9916 = vmatpush1.msra.mxu0 0.0
      %9917 = vmatprep.subr.mxu0 0.0
      %9918 = vmatpush1.msra.mxu0 0.0
      %9919 = vmatprep.subr.mxu0 0.0
      %9920 = vmatpush1.msra.mxu0 0.0
      %9921 = vmatprep.subr.mxu0 0.0
      %9922 = vmatpush1.msra.mxu0 0.0
      %9923 = vmatprep.subr.mxu0 0.0
      %9924 = vmatpush1.msra.mxu0 0.0
      %9925 = vmatprep.subr.mxu0 0.0
      %9926 = vmatpush1.msra.mxu0 0.0
      %9927 = vmatprep.subr.mxu0 0.0
      %9928 = vmatpush1.msra.mxu0 0.0
      %9929 = vmatprep.subr.mxu0 0.0
      %9930 = vmatpush1.msra.mxu0 0.0
      %9931 = vmatprep.subr.mxu0 0.0
      %9932 = vmatpush1.msra.mxu0 0.0
      %9933 = vmatprep.subr.mxu0 0.0
      %9934 = vmatpush1.msra.mxu0 0.0
      %9935 = vmatprep.subr.mxu0 0.0
      %9936 = vmatpush1.msra.mxu0 0.0
      %9937 = vmatprep.subr.mxu0 0.0
      %9938 = vmatpush1.msra.mxu0 0.0
      %9939 = vmatprep.subr.mxu0 0.0
      %9940 = vmatpush1.msra.mxu0 0.0
      %9941 = vmatprep.subr.mxu0 0.0
      %9942 = vmatpush1.msra.mxu0 0.0
      %9943 = vmatprep.subr.mxu0 0.0
      %9944 = vmatpush1.msra.mxu0 0.0
      %9945 = vmatprep.subr.mxu0 0.0
      %9946 = vmatpush1.msra.mxu0 0.0
      %9947 = vmatprep.subr.mxu0 0.0
      %9948 = vmatpush1.msra.mxu0 0.0
      %9949 = vmatprep.subr.mxu0 0.0
      %9950 = vmatpush1.msra.mxu0 0.0
      %9951 = vmatprep.subr.mxu0 0.0
      %9952 = vmatpush1.msra.mxu0 0.0
      %9953 = vmatprep.subr.mxu0 0.0
      %9954 = vmatpush1.msra.mxu0 0.0
      %9955 = vmatprep.subr.mxu0 0.0
      %9956 = vmatpush1.msra.mxu0 0.0
      %9957 = vmatprep.subr.mxu0 0.0
      %9958 = vmatpush1.msra.mxu0 0.0
      %9959 = vmatprep.subr.mxu0 0.0
      %9960 = vmatpush1.msra.mxu0 0.0
      %9961 = vmatprep.subr.mxu0 0.0
      %9962 = vmatpush1.msra.mxu0 0.0
      %9963 = vmatprep.subr.mxu0 0.0
      %9964 = vmatpush1.msra.mxu0 0.0
      %9965 = vmatprep.subr.mxu0 0.0
      %9966 = vmatpush1.msra.mxu0 0.0
      %9967 = vmatprep.subr.mxu0 0.0
      %9968 = vmatpush1.msra.mxu0 0.0
      %9969 = vmatprep.subr.mxu0 0.0
      %9970 = vmatpush1.msra.mxu0 0.0
      %9971 = vmatprep.subr.mxu0 0.0
      %9972 = vmatpush1.msra.mxu0 0.0
      %9973 = vmatprep.subr.mxu0 0.0
      %9974 = vmatpush1.msra.mxu0 0.0
      %9975 = vmatprep.mubr.f32.mxu0 0.0
      %9976 = vmatmul.mubr.f32.gmra.mrb[0].mxu0 %v9903
      %v9977 = vpop.f32.mrb[0].mxu0
      %v9978 = vadd.f32 0.0, %v9977
      %v9979 = vpop.f32.mrb[0].mxu0
      %v9980 = vadd.f32 0.0, %v9979
      %9981 = vmatprep.mubr.f32.mxu0 0.0
      %9982 = vmatmul.mubr.f32.gmra.mrb[0].mxu0 %v9906
      %v9983 = vpop.f32.mrb[0].mxu0
      %v9984 = vadd.f32 0.0, %v9983
      %v9985 = vpop.f32.mrb[0].mxu0
      %v9986 = vadd.f32 0.0, %v9985
      %9987 = vmatprep.mubr.f32.mxu0 0.0
      %9988 = vmatmul.mubr.f32.gmra.mrb[0].mxu0 %v9909
      %v9989 = vpop.f32.mrb[0].mxu0
      %v9990 = vadd.f32 0.0, %v9989
      %v9991 = vpop.f32.mrb[0].mxu0
      %v9992 = vadd.f32 0.0, %v9991
      %9993 = vdwg.mxu0
      %v9994 = vadd.f32 %v9892, %v9978
      %v9995 = vadd.f32 %v9893, %v9980
      %v9996 = vadd.f32 %v9894, %v9984
      %v9997 = vadd.f32 %v9895, %v9986
      %v9998 = vadd.f32 %v9896, %v9990
      %v9999 = vadd.f32 %v9897, %v9992
      %s10000 = scalar_lea.vmem %s13, 48
      %v10001 = vld [vmem:[%s10000] sm:$0xff]
      %v10002 = vld [vmem:[%s10000 + $0x8] sm:$0xff]
      %v10003 = vld [vmem:[%s10000 + $0x10] sm:$0x3]
      %10005 = vset.pattern.permute.xlu0 0
      %10006 = vperm.xlu0 %10005, %v10001
      %v10007 = vpop.permute.xlu0 %10006
      %10010 = vset.pattern.permute.xlu0 0
      %10011 = vperm.xlu0 %10010, %v10002
      %v10012 = vpop.permute.xlu0 %10011
      %10015 = vset.pattern.permute.xlu0 0
      %10016 = vperm.xlu0 %10015, %v10003
      %v10017 = vpop.permute.xlu0 %10016
      %v10019 = vadd.f32 %v9994, %v10007
      %v10020 = vadd.f32 %v9995, %v10007
      %v10021 = vadd.f32 %v9996, %v10012
      %v10022 = vadd.f32 %v9997, %v10012
      %v10023 = vadd.f32 %v9998, %v10017
      %v10024 = vadd.f32 %v9999, %v10017
      %v10025 = vmax.f32 %v10019, 0.0
      %v10026 = vmax.f32 %v10020, 0.0
      %v10027 = vmax.f32 %v10021, 0.0
      %v10028 = vmax.f32 %v10022, 0.0
      %v10029 = vmax.f32 %v10023, 0.0
      %v10030 = vmax.f32 %v10024, 0.0
      %v10031 = vmax.f32 %v6917, %v6918
      %10032 = vmax.xlane.f32.xlu0 %v10031
      %v10033 = vpop.xlane.xlu0 %10032
      %v10034 = vmax.f32 %v6919, %v6920
      %10035 = vmax.xlane.f32.xlu0 %v10034
      %v10036 = vpop.xlane.xlu0 %10035
      %v10037 = vsel %vm622, %v6921, -inf
      %v10038 = vsel %vm622, %v6922, -inf
      %v10039 = vmax.f32 %v10037, %v10038
      %10040 = vmax.xlane.f32.xlu0 %v10039
      %v10041 = vpop.xlane.xlu0 %10040
      %s10042 = scalar_lea.vmem %s14, 48
      %v10043 = vld [vmem:[%s10042] sm:$0xff]
      %v10044 = vld [vmem:[%s10042 + $0x8] sm:$0xff]
      %v10045 = vld [vmem:[%s10042 + $0x10] sm:$0x3]
      %v10046 = vmul.f32 %v10043, %v10033
      %v10047 = vmul.f32 %v10044, %v10036
      %v10048 = vmul.f32 %v10045, %v10041
      %v10049 = vsel %vm3698, %v10046, 0.0
      %v10050 = vsel %vm3698, %v10047, 0.0
      %v10051 = vadd.f32 %v10049, %v10050
      %v10052 = vsel %vm3702, %v10048, 0.0
      %v10053 = vadd.f32 %v10051, %v10052
      %v10054 = vrot.slane %v10053, 4
      %v10055 = vadd.f32 %v10053, %v10054
      %v10056 = vrot.slane %v10055, 2
      %v10057 = vadd.f32 %v10055, %v10056
      %v10058 = vrot.slane %v10057, 1
      %v10059 = vadd.f32 %v10057, %v10058
      %v10060 = vmax.f32 %v10059, 0.0
      %s10061 = scalar_lea.vmem %s15, 48
      %v10062 = vld [vmem:[%s10061] sm:$0xff]
      %v10063 = vld [vmem:[%s10061 + $0x8] sm:$0xff]
      %v10064 = vld [vmem:[%s10061 + $0x10] sm:$0x3]
      %v10065 = vmul.f32 %v10062, %v10060
      %v10066 = vmul.f32 %v10063, %v10060
      %v10067 = vmul.f32 %v10064, %v10060
      %v10068 = vsel %vm3698, %v10065, 0.0
      %10069 = vadd.xlane.f32.xlu0 %v10068
      %v10070 = vpop.xlane.xlu0 %10069
      %v10071 = vsel %vm3698, %v10066, 0.0
      %10072 = vadd.xlane.f32.xlu0 %v10071
      %v10073 = vpop.xlane.xlu0 %10072
      %v10074 = vsel %vm3702, %v10067, 0.0
      %10075 = vadd.xlane.f32.xlu0 %v10074
      %v10076 = vpop.xlane.xlu0 %10075
      %v10077 = vsub.f32 0.0, %v10070
      %v10078 = vsub.f32 0.0, %v10073
      %v10079 = vsub.f32 0.0, %v10076
      %v10080 = vmul.f32 %v10077, 1.442695
      %v10081 = vpow.pop %v10080
      %v10082 = vmul.f32 %v10078, 1.442695
      %v10083 = vpow.pop %v10082
      %v10084 = vmul.f32 %v10079, 1.442695
      %v10085 = vpow.pop %v10084
      %v10086 = vadd.f32 %v10081, 1.0
      %v10087 = vadd.f32 %v10083, 1.0
      %v10088 = vadd.f32 %v10085, 1.0
      %v10089 = vrcp.pop %v10086
      %v10090 = vrcp.pop %v10087
      %v10091 = vrcp.pop %v10088
      %v10092 = vmul.f32 %v10025, %v10089
      %v10093 = vmul.f32 %v10026, %v10089
      %v10094 = vmul.f32 %v10027, %v10090
      %v10095 = vmul.f32 %v10028, %v10090
      %v10096 = vmul.f32 %v10029, %v10091
      %v10097 = vmul.f32 %v10030, %v10091
      %10098 = vst [vmem:[%s521] sm:$0xff] %v10092
      %10099 = vst [vmem:[%s521 + $0x8] sm:$0xff] %v10093
      %10100 = vst [vmem:[%s521 + $0x10] sm:$0xff] %v10094
      %10101 = vst [vmem:[%s521 + $0x18] sm:$0xff] %v10095
      %10102 = vst [vmem:[%s521 + $0x20] sm:$0x3] %v10096
      %10103 = vst [vmem:[%s521 + $0x28] sm:$0x3] %v10097
      %p10104 = scmp.lt.s32.totalorder %s27, 1
      %s10105 = scalar_select %p10104, %s27, 1
      %s10106 = smul.addr %s10105, 6
      %s10107 = smul.addr %s10106, 8
      %s10108 = scalar_lea.vmem %s16, %s10107
      // Predicated region
      $region85: #{lfe3_forward.1} parent=83 // pred_check
        %p10109 = pneg %p386
      $region86: #{lfe3_forward.1} parent=83 // pred_check_branch
        %10111 = sbr.rel (%p10109) target = $region88
      $region87: #{lfe3_forward.1} parent=83 // pred_region
        _
      $region88: #{lfe3_forward.1} parent=83 // pred_fallthru
        _
    $region84: #{lfe3_forward.1} parent=5 // pred_fallthru
      _
    %p10112 = scmp.le.s32.totalorder 2, %s22
    // Predicated region
    $region89: #{lfe3_forward.1} parent=5 // pred_check
      %p10113 = pneg %p10112
    $region90: #{lfe3_forward.1} parent=5 // pred_check_branch
      %10115 = sbr.rel (%p10113) target = $region92
    $region91: #{lfe3_forward.1} parent=5 // pred_region
      %s10116 = ssub.s32 %s22, 2
      // Predicated region
      $region93: #{lfe3_forward.1} parent=91 // pred_check
        %p10117 = pneg %p392
      $region94: #{lfe3_forward.1} parent=91 // pred_check_branch
        %10119 = sbr.rel (%p10117) target = $region96
      $region95: #{lfe3_forward.1} parent=91 // pred_region
        %p10120 = scmp.lt.s32.totalorder %s28, 1
        %s10121 = scalar_select %p10120, %s28, 1
        %s10122 = smul.addr %s10121, 6
        %s10123 = smul.addr %s10122, 8
        %s10124 = scalar_lea.vmem %s16, %s10123
      $region96: #{lfe3_forward.1} parent=91 // pred_fallthru
        _
    $region92: #{lfe3_forward.1} parent=5 // pred_fallthru
      _
  $region6: #{lfe3_forward.1} parent=0 // loop_footer
    %s26 = sadd.s32 1, %s22
  $region7: #{lfe3_forward.1} parent=0 // loop_footer_branch
    %21 = sbr.rel target = $region3
  $region8: #{lfe3_forward.1} parent=0 // loop_exit
    _

</llo_original>
